<compile_context>
chip_gen: v7x
topology: tpu7x:2x2x1
jax: 0.10.0
libtpu: 0.0.40
codegen_flags: <defaults>
</compile_context>

<pallas_src>
import functools

import numpy as np
import jax
import jax.numpy as jnp
from jax.experimental import pallas as pl
from jax.experimental.pallas import tpu as pltpu


TILE_N = 8                                   # images per grid step
_POOL1 = 8                                   # pooled1 quad-grid / pooled2 spatial size
_UPQ = ((0, 0), (0, 1), (1, -1), (1, 0))     # (parity, shift) pairs used by layer 2


# ----------------------------------------------------------------------------
# Static scatter matrices mapping HWIO conv weights onto the fused patch layout
# ----------------------------------------------------------------------------
@functools.lru_cache(maxsize=None)
def _conv1_scatter_matrix(c_in):
    """(64*c_in, 16, 9*c_in) 0/1 tensor.  16 combos = (out-parity a,b) x (pool oy,ox)."""
    lane = 16 * c_in
    m = np.zeros((4 * lane, 16, 9 * c_in), np.float32)
    for a in range(2):
        for b in range(2):
            for oy in range(2):
                for ox in range(2):
                    k = (a * 2 + b) * 4 + oy * 2 + ox
                    for dy in range(3):
                        mr, nr = divmod(2 * a + oy + dy, 4)
                        for dx in range(3):
                            mc, nc_ = divmod(2 * b + ox + dx, 4)
                            g = mr * 2 + mc
                            for c in range(c_in):
                                row = g * lane + (nr * 4 + nc_) * c_in + c
                                m[row, k, (dy * 3 + dx) * c_in + c] = 1.0
    return m


@functools.lru_cache(maxsize=None)
def _conv2_scatter_matrix(c_in):
    """(16*c_in, 4, 9*c_in) 0/1 tensor.  4 combos = pool sub-positions (oy, ox)."""
    m = np.zeros((16 * c_in, 4, 9 * c_in), np.float32)
    for oy in range(2):
        for ox in range(2):
            s = oy * 2 + ox
            for dy in range(3):
                rr = oy + dy - 1
                pr = rr % 2
                ur = _UPQ.index((pr, (rr - pr) // 2))
                for dx in range(3):
                    rc = ox + dx - 1
                    pc = rc % 2
                    uc = _UPQ.index((pc, (rc - pc) // 2))
                    for c in range(c_in):
                        row = (ur * 4 + uc) * c_in + c
                        m[row, s, (dy * 3 + dx) * c_in + c] = 1.0
    return m


# ----------------------------------------------------------------------------
# Fused Pallas kernel: conv1+pool -> conv2+pool -> flatten -> fc1 -> fc2
# ----------------------------------------------------------------------------
def _convnet_kernel(xq_ref, w1_ref, b1_ref, w2_ref, b2_ref,
                    wf1_ref, bf1_ref, wf2_ref, bf2_ref, o_ref):
    t = xq_ref.shape[0]
    rows = t * _POOL1 * _POOL1                        # (t, I, J) rows
    c1 = b1_ref.shape[-1]                             # conv1 out channels (10)
    c2 = b2_ref.shape[-1]                             # conv2 out channels (20)

    # ---- layer 1: conv1 -> pool(max) -> +bias -> relu ----------------------
    xq = xq_ref[...]                                  # (t, 9, 9, 16*Cin)
    pieces = []
    for mr in range(2):
        for mc in range(2):
            sl = xq[:, mr:mr + 8, mc:mc + 8, :]       # (t, 8, 8, 16*Cin)
            pieces.append(sl.reshape(rows, sl.shape[-1]))
    patch1 = jnp.concatenate(pieces, axis=-1)         # (rows, 64*Cin)
    z1 = jnp.dot(patch1, w1_ref[...],
                 preferred_element_type=jnp.float32)  # (rows, 16*c1)

    b1 = b1_ref[...]
    planes = []                                       # pooled1 parity planes (a, b)
    for a in range(2):
        for b in range(2):
            base = (a * 2 + b) * 4 * c1
            v = z1[:, base:base + c1]
            for sp in range(1, 4):
                v = jnp.maximum(v, z1[:, base + sp * c1: base + (sp + 1) * c1])
            v = jnp.maximum(v + b1, 0.0)              # relu(max + bias), exact
            planes.append(v.reshape(t, _POOL1, _POOL1, c1))

    def pad_hw(x):                                    # zero-pad by 1 in H and W
        zw = jnp.zeros((t, _POOL1, 1, c1), x.dtype)
        x = jnp.concatenate([zw, x, zw], axis=2)
        zh = jnp.zeros((t, 1, _POOL1 + 2, c1), x.dtype)
        return jnp.concatenate([zh, x, zh], axis=1)   # (t, 10, 10, c1)

    ppad = [pad_hw(p) for p in planes]

    # ---- layer 2: conv2 -> pool(max) -> +bias -> relu ----------------------
    pieces2 = []
    for (pr, qr) in _UPQ:
        for (pc, qc) in _UPQ:
            src = ppad[pr * 2 + pc]
            sl = src[:, qr + 1:qr + 1 + _POOL1, qc + 1:qc + 1 + _POOL1, :]
            pieces2.append(sl.reshape(rows, c1))
    patch2 = jnp.concatenate(pieces2, axis=-1)        # (rows, 16*c1)
    z2 = jnp.dot(patch2, w2_ref[...],
                 preferred_element_type=jnp.float32)  # (rows, 4*c2)
    v2 = z2[:, 0:c2]
    for sp in range(1, 4):
        v2 = jnp.maximum(v2, z2[:, sp * c2:(sp + 1) * c2])
    y2 = jnp.maximum(v2 + b2_ref[...], 0.0)           # (rows, c2), rows = (t, h, w)
    y2 = y2.reshape(t, _POOL1, _POOL1, c2)

    # ---- flatten (NHWC order; w_fc1 rows were permuted to match) + MLP -----
    flat = jnp.concatenate(
        [y2[:, hh, ww, :] for hh in range(_POOL1) for ww in range(_POOL1)],
        axis=-1)                                      # (t, 8*8*c2) = (t, 1280)
    hid = jnp.dot(flat, wf1_ref[...],
                  preferred_element_type=jnp.float32) + bf1_ref[...]
    hid = jnp.maximum(hid, 0.0)
    o_ref[...] = jnp.dot(hid, wf2_ref[...],
                         preferred_element_type=jnp.float32) + bf2_ref[...]


# ----------------------------------------------------------------------------
# JAX wrapper
# ----------------------------------------------------------------------------
def _prep_input(x_nchw, tile_n):
    """NCHW -> padded NHWC -> space-to-depth(4) quad-parity layout (N, 9, 9, 16*C)."""
    n, c = x_nchw.shape[0], x_nchw.shape[1]
    xh = jnp.transpose(x_nchw, (0, 2, 3, 1))                    # (N, 32, 32, C)
    xp = jnp.pad(xh, ((0, 0), (1, 3), (1, 3), (0, 0)))          # (N, 36, 36, C)
    xq = xp.reshape(n, 9, 4, 9, 4, c)
    xq = xq.transpose(0, 1, 3, 2, 4, 5).reshape(n, 9, 9, 16 * c)
    npad = ((n + tile_n - 1) // tile_n) * tile_n
    if npad != n:
        xq = jnp.pad(xq, ((0, npad - n), (0, 0), (0, 0), (0, 0)))
    return xq, npad


def init_params(key, num_channels, num_classes):
    ks = jax.random.split(key, 8)

    def uinit(k, shape, fan_in):
        bound = 1.0 / jnp.sqrt(jnp.float32(fan_in))
        return jax.random.uniform(k, shape, jnp.float32, -bound, bound)

    return {
        # conv weights in HWIO layout (PyTorch OIHW permuted); fc weights (in, out)
        "w_conv1": uinit(ks[0], (3, 3, num_channels, 10), 9 * num_channels),
        "b_conv1": uinit(ks[1], (10,), 9 * num_channels),
        "w_conv2": uinit(ks[2], (3, 3, 10, 20), 9 * 10),
        "b_conv2": uinit(ks[3], (20,), 9 * 10),
        "w_fc1": uinit(ks[4], (20 * 8 * 8, 120), 20 * 8 * 8),   # rows in NCHW order
        "b_fc1": uinit(ks[5], (120,), 20 * 8 * 8),
        "w_fc2": uinit(ks[6], (120, num_classes), 120),
        "b_fc2": uinit(ks[7], (num_classes,), 120),
    }


@jax.jit
def convnet_forward(x_nchw, params):
    """x_nchw: (N, C, 32, 32) float32 -> logits (N, num_classes)."""
    n, c = x_nchw.shape[0], x_nchw.shape[1]
    num_classes = params["w_fc2"].shape[1]

    xq, npad = _prep_input(x_nchw, TILE_N)

    # one-time weight re-packing (tiny XLA ops, hoisted out of the hot loop)
    w1c = params["w_conv1"].reshape(9 * c, 10)
    w1all = jnp.tensordot(jnp.asarray(_conv1_scatter_matrix(c)), w1c,
                          axes=([2], [0])).reshape(64 * c, 16 * 10)
    w2c = params["w_conv2"].reshape(9 * 10, 20)
    w2all = jnp.tensordot(jnp.asarray(_conv2_scatter_matrix(10)), w2c,
                          axes=([2], [0])).reshape(160, 4 * 20)
    # permute fc1 rows from NCHW-flatten to NHWC-flatten order
    wf1 = params["w_fc1"].reshape(20, 8, 8, 120).transpose(1, 2, 0, 3).reshape(1280, 120)
    wf2 = params["w_fc2"]

    b1 = params["b_conv1"].reshape(1, 10)
    b2 = params["b_conv2"].reshape(1, 20)
    bf1 = params["b_fc1"].reshape(1, 120)
    bf2 = params["b_fc2"].reshape(1, num_classes)

    def fixed(shape):
        return pl.BlockSpec(shape, lambda i: (0,) * len(shape))

    out = pl.pallas_call(
        _convnet_kernel,
        grid=(npad // TILE_N,),
        in_specs=[
            pl.BlockSpec((TILE_N, 9, 9, 16 * c), lambda i: (i, 0, 0, 0)),
            fixed(w1all.shape), fixed(b1.shape),
            fixed(w2all.shape), fixed(b2.shape),
            fixed(wf1.shape), fixed(bf1.shape),
            fixed(wf2.shape), fixed(bf2.shape),
        ],
        out_specs=pl.BlockSpec((TILE_N, num_classes), lambda i: (i, 0)),
        out_shape=jax.ShapeDtypeStruct((npad, num_classes), jnp.float32),
        compiler_params=pltpu.CompilerParams(
            dimension_semantics=("parallel",),
            vmem_limit_bytes=32 * 1024 * 1024,
        ),
    )(xq, w1all, b1, w2all, b2, wf1, bf1, wf2, bf2)
    return out[:n]


if __name__ == "__main__":
    # fc1 = Linear(20*8*8, 120) implies 32x32 spatial; num_classes = 10 (CIFAR-10)
    batch, num_channels, spatial, num_classes = 2, 3, 32, 10

    key = jax.random.PRNGKey(0)
    kx, kp = jax.random.split(key)
    x = jax.random.normal(kx, (batch, num_channels, spatial, spatial), jnp.float32)
    params = init_params(kp, num_channels, num_classes)

    out = convnet_forward(x, params)
    out = jax.block_until_ready(out)
    assert out.shape == (batch, num_classes), out.shape
    print("KERNEL_OK")
</pallas_src>

<mosaic_0001>
module attributes {stable_mosaic.version = 11 : i64} {
  func.func @_convnet_kernel(%arg0: i32, %arg1: memref<8x9x9x48xf32, #tpu.memory_space<vmem>>, %arg2: memref<192x160xf32, #tpu.memory_space<vmem>>, %arg3: memref<1x10xf32, #tpu.memory_space<vmem>>, %arg4: memref<160x80xf32, #tpu.memory_space<vmem>>, %arg5: memref<1x20xf32, #tpu.memory_space<vmem>>, %arg6: memref<1280x120xf32, #tpu.memory_space<vmem>>, %arg7: memref<1x120xf32, #tpu.memory_space<vmem>>, %arg8: memref<120x10xf32, #tpu.memory_space<vmem>>, %arg9: memref<1x10xf32, #tpu.memory_space<vmem>>, %arg10: memref<8x10xf32, #tpu.memory_space<vmem>>) attributes {dimension_semantics = [#tpu.dimension_semantics<parallel>], iteration_bounds = array<i64: 1>, scalar_prefetch = 0 : i64, scratch_operands = 0 : i64, tpu.core_type = #tpu.core_type<tc>, window_params = [{transform_indices = @transform_0, window_bounds = array<i64: 8, 9, 9, 48>}, {pipeline_mode = #tpu.pipeline_mode<synchronous>, transform_indices = @transform_1, window_bounds = array<i64: 192, 160>}, {pipeline_mode = #tpu.pipeline_mode<synchronous>, transform_indices = @transform_2, window_bounds = array<i64: 1, 10>}, {pipeline_mode = #tpu.pipeline_mode<synchronous>, transform_indices = @transform_3, window_bounds = array<i64: 160, 80>}, {pipeline_mode = #tpu.pipeline_mode<synchronous>, transform_indices = @transform_4, window_bounds = array<i64: 1, 20>}, {pipeline_mode = #tpu.pipeline_mode<synchronous>, transform_indices = @transform_5, window_bounds = array<i64: 1280, 120>}, {pipeline_mode = #tpu.pipeline_mode<synchronous>, transform_indices = @transform_6, window_bounds = array<i64: 1, 120>}, {pipeline_mode = #tpu.pipeline_mode<synchronous>, transform_indices = @transform_7, window_bounds = array<i64: 120, 10>}, {pipeline_mode = #tpu.pipeline_mode<synchronous>, transform_indices = @transform_8, window_bounds = array<i64: 1, 10>}, {transform_indices = @transform_9, window_bounds = array<i64: 8, 10>}]} {
    %c0 = arith.constant 0 : index
    %c0_0 = arith.constant 0 : index
    %c0_1 = arith.constant 0 : index
    %c0_2 = arith.constant 0 : index
    %0 = vector.load %arg1[%c0, %c0_0, %c0_1, %c0_2] : memref<8x9x9x48xf32, #tpu.memory_space<vmem>>, vector<8x9x9x48xf32>
    %1 = vector.extract_strided_slice %0 {offsets = [0, 0, 0, 0], sizes = [8, 8, 8, 48], strides = [1, 1, 1, 1]} : vector<8x9x9x48xf32> to vector<8x8x8x48xf32>
    %2 = vector.shape_cast %1 : vector<8x8x8x48xf32> to vector<512x48xf32>
    %3 = vector.extract_strided_slice %0 {offsets = [0, 0, 1, 0], sizes = [8, 8, 8, 48], strides = [1, 1, 1, 1]} : vector<8x9x9x48xf32> to vector<8x8x8x48xf32>
    %4 = vector.shape_cast %3 : vector<8x8x8x48xf32> to vector<512x48xf32>
    %5 = vector.extract_strided_slice %0 {offsets = [0, 1, 0, 0], sizes = [8, 8, 8, 48], strides = [1, 1, 1, 1]} : vector<8x9x9x48xf32> to vector<8x8x8x48xf32>
    %6 = vector.shape_cast %5 : vector<8x8x8x48xf32> to vector<512x48xf32>
    %7 = vector.extract_strided_slice %0 {offsets = [0, 1, 1, 0], sizes = [8, 8, 8, 48], strides = [1, 1, 1, 1]} : vector<8x9x9x48xf32> to vector<8x8x8x48xf32>
    %8 = vector.shape_cast %7 : vector<8x8x8x48xf32> to vector<512x48xf32>
    %9 = tpu.concatenate %2, %4, %6, %8 in 1 : vector<512x48xf32>, vector<512x48xf32>, vector<512x48xf32>, vector<512x48xf32> -> vector<512x192xf32>
    %c0_3 = arith.constant 0 : index
    %c0_4 = arith.constant 0 : index
    %10 = vector.load %arg2[%c0_3, %c0_4] : memref<192x160xf32, #tpu.memory_space<vmem>>, vector<192x160xf32>
    %cst = arith.constant dense<0.000000e+00> : vector<512x160xf32>
    %11 = tpu.matmul %9, %10, %cst {dimension_numbers = #tpu.dot_dimension_numbers<[1], [0], [0], [1], [0, 0, 1, 1], [], []>} : vector<512x192xf32>, vector<192x160xf32>, vector<512x160xf32> -> vector<512x160xf32>
    %c0_5 = arith.constant 0 : index
    %c0_6 = arith.constant 0 : index
    %12 = vector.load %arg3[%c0_5, %c0_6] : memref<1x10xf32, #tpu.memory_space<vmem>>, vector<1x10xf32>
    %13 = vector.extract_strided_slice %11 {offsets = [0, 0], sizes = [512, 10], strides = [1, 1]} : vector<512x160xf32> to vector<512x10xf32>
    %14 = vector.extract_strided_slice %11 {offsets = [0, 10], sizes = [512, 10], strides = [1, 1]} : vector<512x160xf32> to vector<512x10xf32>
    %15 = arith.maximumf %13, %14 : vector<512x10xf32>
    %16 = vector.extract_strided_slice %11 {offsets = [0, 20], sizes = [512, 10], strides = [1, 1]} : vector<512x160xf32> to vector<512x10xf32>
    %17 = arith.maximumf %15, %16 : vector<512x10xf32>
    %18 = vector.extract_strided_slice %11 {offsets = [0, 30], sizes = [512, 10], strides = [1, 1]} : vector<512x160xf32> to vector<512x10xf32>
    %19 = arith.maximumf %17, %18 : vector<512x10xf32>
    %20 = vector.broadcast %12 : vector<1x10xf32> to vector<512x10xf32>
    %21 = arith.addf %19, %20 : vector<512x10xf32>
    %cst_7 = arith.constant 0.000000e+00 : f32
    %22 = vector.broadcast %cst_7 : f32 to vector<512x10xf32>
    %23 = arith.maximumf %21, %22 : vector<512x10xf32>
    %24 = vector.shape_cast %23 : vector<512x10xf32> to vector<8x8x8x10xf32>
    %25 = vector.extract_strided_slice %11 {offsets = [0, 40], sizes = [512, 10], strides = [1, 1]} : vector<512x160xf32> to vector<512x10xf32>
    %26 = vector.extract_strided_slice %11 {offsets = [0, 50], sizes = [512, 10], strides = [1, 1]} : vector<512x160xf32> to vector<512x10xf32>
    %27 = arith.maximumf %25, %26 : vector<512x10xf32>
    %28 = vector.extract_strided_slice %11 {offsets = [0, 60], sizes = [512, 10], strides = [1, 1]} : vector<512x160xf32> to vector<512x10xf32>
    %29 = arith.maximumf %27, %28 : vector<512x10xf32>
    %30 = vector.extract_strided_slice %11 {offsets = [0, 70], sizes = [512, 10], strides = [1, 1]} : vector<512x160xf32> to vector<512x10xf32>
    %31 = arith.maximumf %29, %30 : vector<512x10xf32>
    %32 = vector.broadcast %12 : vector<1x10xf32> to vector<512x10xf32>
    %33 = arith.addf %31, %32 : vector<512x10xf32>
    %cst_8 = arith.constant 0.000000e+00 : f32
    %34 = vector.broadcast %cst_8 : f32 to vector<512x10xf32>
    %35 = arith.maximumf %33, %34 : vector<512x10xf32>
    %36 = vector.shape_cast %35 : vector<512x10xf32> to vector<8x8x8x10xf32>
    %37 = vector.extract_strided_slice %11 {offsets = [0, 80], sizes = [512, 10], strides = [1, 1]} : vector<512x160xf32> to vector<512x10xf32>
    %38 = vector.extract_strided_slice %11 {offsets = [0, 90], sizes = [512, 10], strides = [1, 1]} : vector<512x160xf32> to vector<512x10xf32>
    %39 = arith.maximumf %37, %38 : vector<512x10xf32>
    %40 = vector.extract_strided_slice %11 {offsets = [0, 100], sizes = [512, 10], strides = [1, 1]} : vector<512x160xf32> to vector<512x10xf32>
    %41 = arith.maximumf %39, %40 : vector<512x10xf32>
    %42 = vector.extract_strided_slice %11 {offsets = [0, 110], sizes = [512, 10], strides = [1, 1]} : vector<512x160xf32> to vector<512x10xf32>
    %43 = arith.maximumf %41, %42 : vector<512x10xf32>
    %44 = vector.broadcast %12 : vector<1x10xf32> to vector<512x10xf32>
    %45 = arith.addf %43, %44 : vector<512x10xf32>
    %cst_9 = arith.constant 0.000000e+00 : f32
    %46 = vector.broadcast %cst_9 : f32 to vector<512x10xf32>
    %47 = arith.maximumf %45, %46 : vector<512x10xf32>
    %48 = vector.shape_cast %47 : vector<512x10xf32> to vector<8x8x8x10xf32>
    %49 = vector.extract_strided_slice %11 {offsets = [0, 120], sizes = [512, 10], strides = [1, 1]} : vector<512x160xf32> to vector<512x10xf32>
    %50 = vector.extract_strided_slice %11 {offsets = [0, 130], sizes = [512, 10], strides = [1, 1]} : vector<512x160xf32> to vector<512x10xf32>
    %51 = arith.maximumf %49, %50 : vector<512x10xf32>
    %52 = vector.extract_strided_slice %11 {offsets = [0, 140], sizes = [512, 10], strides = [1, 1]} : vector<512x160xf32> to vector<512x10xf32>
    %53 = arith.maximumf %51, %52 : vector<512x10xf32>
    %54 = vector.extract_strided_slice %11 {offsets = [0, 150], sizes = [512, 10], strides = [1, 1]} : vector<512x160xf32> to vector<512x10xf32>
    %55 = arith.maximumf %53, %54 : vector<512x10xf32>
    %56 = vector.broadcast %12 : vector<1x10xf32> to vector<512x10xf32>
    %57 = arith.addf %55, %56 : vector<512x10xf32>
    %cst_10 = arith.constant 0.000000e+00 : f32
    %58 = vector.broadcast %cst_10 : f32 to vector<512x10xf32>
    %59 = arith.maximumf %57, %58 : vector<512x10xf32>
    %60 = vector.shape_cast %59 : vector<512x10xf32> to vector<8x8x8x10xf32>
    %cst_11 = arith.constant 0.000000e+00 : f32
    %61 = vector.broadcast %cst_11 : f32 to vector<8x8x1x10xf32>
    %62 = tpu.concatenate %61, %24, %61 in 2 : vector<8x8x1x10xf32>, vector<8x8x8x10xf32>, vector<8x8x1x10xf32> -> vector<8x8x10x10xf32>
    %cst_12 = arith.constant 0.000000e+00 : f32
    %63 = vector.broadcast %cst_12 : f32 to vector<8x1x10x10xf32>
    %64 = tpu.concatenate %63, %62, %63 in 1 : vector<8x1x10x10xf32>, vector<8x8x10x10xf32>, vector<8x1x10x10xf32> -> vector<8x10x10x10xf32>
    %cst_13 = arith.constant 0.000000e+00 : f32
    %65 = vector.broadcast %cst_13 : f32 to vector<8x8x1x10xf32>
    %66 = tpu.concatenate %65, %36, %65 in 2 : vector<8x8x1x10xf32>, vector<8x8x8x10xf32>, vector<8x8x1x10xf32> -> vector<8x8x10x10xf32>
    %cst_14 = arith.constant 0.000000e+00 : f32
    %67 = vector.broadcast %cst_14 : f32 to vector<8x1x10x10xf32>
    %68 = tpu.concatenate %67, %66, %67 in 1 : vector<8x1x10x10xf32>, vector<8x8x10x10xf32>, vector<8x1x10x10xf32> -> vector<8x10x10x10xf32>
    %cst_15 = arith.constant 0.000000e+00 : f32
    %69 = vector.broadcast %cst_15 : f32 to vector<8x8x1x10xf32>
    %70 = tpu.concatenate %69, %48, %69 in 2 : vector<8x8x1x10xf32>, vector<8x8x8x10xf32>, vector<8x8x1x10xf32> -> vector<8x8x10x10xf32>
    %cst_16 = arith.constant 0.000000e+00 : f32
    %71 = vector.broadcast %cst_16 : f32 to vector<8x1x10x10xf32>
    %72 = tpu.concatenate %71, %70, %71 in 1 : vector<8x1x10x10xf32>, vector<8x8x10x10xf32>, vector<8x1x10x10xf32> -> vector<8x10x10x10xf32>
    %cst_17 = arith.constant 0.000000e+00 : f32
    %73 = vector.broadcast %cst_17 : f32 to vector<8x8x1x10xf32>
    %74 = tpu.concatenate %73, %60, %73 in 2 : vector<8x8x1x10xf32>, vector<8x8x8x10xf32>, vector<8x8x1x10xf32> -> vector<8x8x10x10xf32>
    %cst_18 = arith.constant 0.000000e+00 : f32
    %75 = vector.broadcast %cst_18 : f32 to vector<8x1x10x10xf32>
    %76 = tpu.concatenate %75, %74, %75 in 1 : vector<8x1x10x10xf32>, vector<8x8x10x10xf32>, vector<8x1x10x10xf32> -> vector<8x10x10x10xf32>
    %77 = vector.extract_strided_slice %64 {offsets = [0, 1, 1, 0], sizes = [8, 8, 8, 10], strides = [1, 1, 1, 1]} : vector<8x10x10x10xf32> to vector<8x8x8x10xf32>
    %78 = vector.shape_cast %77 : vector<8x8x8x10xf32> to vector<512x10xf32>
    %79 = vector.extract_strided_slice %64 {offsets = [0, 1, 2, 0], sizes = [8, 8, 8, 10], strides = [1, 1, 1, 1]} : vector<8x10x10x10xf32> to vector<8x8x8x10xf32>
    %80 = vector.shape_cast %79 : vector<8x8x8x10xf32> to vector<512x10xf32>
    %81 = vector.extract_strided_slice %68 {offsets = [0, 1, 0, 0], sizes = [8, 8, 8, 10], strides = [1, 1, 1, 1]} : vector<8x10x10x10xf32> to vector<8x8x8x10xf32>
    %82 = vector.shape_cast %81 : vector<8x8x8x10xf32> to vector<512x10xf32>
    %83 = vector.extract_strided_slice %68 {offsets = [0, 1, 1, 0], sizes = [8, 8, 8, 10], strides = [1, 1, 1, 1]} : vector<8x10x10x10xf32> to vector<8x8x8x10xf32>
    %84 = vector.shape_cast %83 : vector<8x8x8x10xf32> to vector<512x10xf32>
    %85 = vector.extract_strided_slice %64 {offsets = [0, 2, 1, 0], sizes = [8, 8, 8, 10], strides = [1, 1, 1, 1]} : vector<8x10x10x10xf32> to vector<8x8x8x10xf32>
    %86 = vector.shape_cast %85 : vector<8x8x8x10xf32> to vector<512x10xf32>
    %87 = vector.extract_strided_slice %64 {offsets = [0, 2, 2, 0], sizes = [8, 8, 8, 10], strides = [1, 1, 1, 1]} : vector<8x10x10x10xf32> to vector<8x8x8x10xf32>
    %88 = vector.shape_cast %87 : vector<8x8x8x10xf32> to vector<512x10xf32>
    %89 = vector.extract_strided_slice %68 {offsets = [0, 2, 0, 0], sizes = [8, 8, 8, 10], strides = [1, 1, 1, 1]} : vector<8x10x10x10xf32> to vector<8x8x8x10xf32>
    %90 = vector.shape_cast %89 : vector<8x8x8x10xf32> to vector<512x10xf32>
    %91 = vector.extract_strided_slice %68 {offsets = [0, 2, 1, 0], sizes = [8, 8, 8, 10], strides = [1, 1, 1, 1]} : vector<8x10x10x10xf32> to vector<8x8x8x10xf32>
    %92 = vector.shape_cast %91 : vector<8x8x8x10xf32> to vector<512x10xf32>
    %93 = vector.extract_strided_slice %72 {offsets = [0, 0, 1, 0], sizes = [8, 8, 8, 10], strides = [1, 1, 1, 1]} : vector<8x10x10x10xf32> to vector<8x8x8x10xf32>
    %94 = vector.shape_cast %93 : vector<8x8x8x10xf32> to vector<512x10xf32>
    %95 = vector.extract_strided_slice %72 {offsets = [0, 0, 2, 0], sizes = [8, 8, 8, 10], strides = [1, 1, 1, 1]} : vector<8x10x10x10xf32> to vector<8x8x8x10xf32>
    %96 = vector.shape_cast %95 : vector<8x8x8x10xf32> to vector<512x10xf32>
    %97 = vector.extract_strided_slice %76 {offsets = [0, 0, 0, 0], sizes = [8, 8, 8, 10], strides = [1, 1, 1, 1]} : vector<8x10x10x10xf32> to vector<8x8x8x10xf32>
    %98 = vector.shape_cast %97 : vector<8x8x8x10xf32> to vector<512x10xf32>
    %99 = vector.extract_strided_slice %76 {offsets = [0, 0, 1, 0], sizes = [8, 8, 8, 10], strides = [1, 1, 1, 1]} : vector<8x10x10x10xf32> to vector<8x8x8x10xf32>
    %100 = vector.shape_cast %99 : vector<8x8x8x10xf32> to vector<512x10xf32>
    %101 = vector.extract_strided_slice %72 {offsets = [0, 1, 1, 0], sizes = [8, 8, 8, 10], strides = [1, 1, 1, 1]} : vector<8x10x10x10xf32> to vector<8x8x8x10xf32>
    %102 = vector.shape_cast %101 : vector<8x8x8x10xf32> to vector<512x10xf32>
    %103 = vector.extract_strided_slice %72 {offsets = [0, 1, 2, 0], sizes = [8, 8, 8, 10], strides = [1, 1, 1, 1]} : vector<8x10x10x10xf32> to vector<8x8x8x10xf32>
    %104 = vector.shape_cast %103 : vector<8x8x8x10xf32> to vector<512x10xf32>
    %105 = vector.extract_strided_slice %76 {offsets = [0, 1, 0, 0], sizes = [8, 8, 8, 10], strides = [1, 1, 1, 1]} : vector<8x10x10x10xf32> to vector<8x8x8x10xf32>
    %106 = vector.shape_cast %105 : vector<8x8x8x10xf32> to vector<512x10xf32>
    %107 = vector.extract_strided_slice %76 {offsets = [0, 1, 1, 0], sizes = [8, 8, 8, 10], strides = [1, 1, 1, 1]} : vector<8x10x10x10xf32> to vector<8x8x8x10xf32>
    %108 = vector.shape_cast %107 : vector<8x8x8x10xf32> to vector<512x10xf32>
    %109 = tpu.concatenate %78, %80, %82, %84, %86, %88, %90, %92, %94, %96, %98, %100, %102, %104, %106, %108 in 1 : vector<512x10xf32>, vector<512x10xf32>, vector<512x10xf32>, vector<512x10xf32>, vector<512x10xf32>, vector<512x10xf32>, vector<512x10xf32>, vector<512x10xf32>, vector<512x10xf32>, vector<512x10xf32>, vector<512x10xf32>, vector<512x10xf32>, vector<512x10xf32>, vector<512x10xf32>, vector<512x10xf32>, vector<512x10xf32> -> vector<512x160xf32>
    %c0_19 = arith.constant 0 : index
    %c0_20 = arith.constant 0 : index
    %110 = vector.load %arg4[%c0_19, %c0_20] : memref<160x80xf32, #tpu.memory_space<vmem>>, vector<160x80xf32>
    %cst_21 = arith.constant dense<0.000000e+00> : vector<512x80xf32>
    %111 = tpu.matmul %109, %110, %cst_21 {dimension_numbers = #tpu.dot_dimension_numbers<[1], [0], [0], [1], [0, 0, 1, 1], [], []>} : vector<512x160xf32>, vector<160x80xf32>, vector<512x80xf32> -> vector<512x80xf32>
    %112 = vector.extract_strided_slice %111 {offsets = [0, 0], sizes = [512, 20], strides = [1, 1]} : vector<512x80xf32> to vector<512x20xf32>
    %113 = vector.extract_strided_slice %111 {offsets = [0, 20], sizes = [512, 20], strides = [1, 1]} : vector<512x80xf32> to vector<512x20xf32>
    %114 = arith.maximumf %112, %113 : vector<512x20xf32>
    %115 = vector.extract_strided_slice %111 {offsets = [0, 40], sizes = [512, 20], strides = [1, 1]} : vector<512x80xf32> to vector<512x20xf32>
    %116 = arith.maximumf %114, %115 : vector<512x20xf32>
    %117 = vector.extract_strided_slice %111 {offsets = [0, 60], sizes = [512, 20], strides = [1, 1]} : vector<512x80xf32> to vector<512x20xf32>
    %118 = arith.maximumf %116, %117 : vector<512x20xf32>
    %c0_22 = arith.constant 0 : index
    %c0_23 = arith.constant 0 : index
    %119 = vector.load %arg5[%c0_22, %c0_23] : memref<1x20xf32, #tpu.memory_space<vmem>>, vector<1x20xf32>
    %120 = vector.broadcast %119 : vector<1x20xf32> to vector<512x20xf32>
    %121 = arith.addf %118, %120 : vector<512x20xf32>
    %cst_24 = arith.constant 0.000000e+00 : f32
    %122 = vector.broadcast %cst_24 : f32 to vector<512x20xf32>
    %123 = arith.maximumf %121, %122 : vector<512x20xf32>
    %124 = vector.shape_cast %123 : vector<512x20xf32> to vector<8x8x8x20xf32>
    %125 = vector.extract_strided_slice %124 {offsets = [0, 0, 0, 0], sizes = [8, 1, 1, 20], strides = [1, 1, 1, 1]} : vector<8x8x8x20xf32> to vector<8x1x1x20xf32>
    %126 = vector.shape_cast %125 : vector<8x1x1x20xf32> to vector<8x20xf32>
    %127 = vector.extract_strided_slice %124 {offsets = [0, 0, 1, 0], sizes = [8, 1, 1, 20], strides = [1, 1, 1, 1]} : vector<8x8x8x20xf32> to vector<8x1x1x20xf32>
    %128 = vector.shape_cast %127 : vector<8x1x1x20xf32> to vector<8x20xf32>
    %129 = vector.extract_strided_slice %124 {offsets = [0, 0, 2, 0], sizes = [8, 1, 1, 20], strides = [1, 1, 1, 1]} : vector<8x8x8x20xf32> to vector<8x1x1x20xf32>
    %130 = vector.shape_cast %129 : vector<8x1x1x20xf32> to vector<8x20xf32>
    %131 = vector.extract_strided_slice %124 {offsets = [0, 0, 3, 0], sizes = [8, 1, 1, 20], strides = [1, 1, 1, 1]} : vector<8x8x8x20xf32> to vector<8x1x1x20xf32>
    %132 = vector.shape_cast %131 : vector<8x1x1x20xf32> to vector<8x20xf32>
    %133 = vector.extract_strided_slice %124 {offsets = [0, 0, 4, 0], sizes = [8, 1, 1, 20], strides = [1, 1, 1, 1]} : vector<8x8x8x20xf32> to vector<8x1x1x20xf32>
    %134 = vector.shape_cast %133 : vector<8x1x1x20xf32> to vector<8x20xf32>
    %135 = vector.extract_strided_slice %124 {offsets = [0, 0, 5, 0], sizes = [8, 1, 1, 20], strides = [1, 1, 1, 1]} : vector<8x8x8x20xf32> to vector<8x1x1x20xf32>
    %136 = vector.shape_cast %135 : vector<8x1x1x20xf32> to vector<8x20xf32>
    %137 = vector.extract_strided_slice %124 {offsets = [0, 0, 6, 0], sizes = [8, 1, 1, 20], strides = [1, 1, 1, 1]} : vector<8x8x8x20xf32> to vector<8x1x1x20xf32>
    %138 = vector.shape_cast %137 : vector<8x1x1x20xf32> to vector<8x20xf32>
    %139 = vector.extract_strided_slice %124 {offsets = [0, 0, 7, 0], sizes = [8, 1, 1, 20], strides = [1, 1, 1, 1]} : vector<8x8x8x20xf32> to vector<8x1x1x20xf32>
    %140 = vector.shape_cast %139 : vector<8x1x1x20xf32> to vector<8x20xf32>
    %141 = vector.extract_strided_slice %124 {offsets = [0, 1, 0, 0], sizes = [8, 1, 1, 20], strides = [1, 1, 1, 1]} : vector<8x8x8x20xf32> to vector<8x1x1x20xf32>
    %142 = vector.shape_cast %141 : vector<8x1x1x20xf32> to vector<8x20xf32>
    %143 = vector.extract_strided_slice %124 {offsets = [0, 1, 1, 0], sizes = [8, 1, 1, 20], strides = [1, 1, 1, 1]} : vector<8x8x8x20xf32> to vector<8x1x1x20xf32>
    %144 = vector.shape_cast %143 : vector<8x1x1x20xf32> to vector<8x20xf32>
    %145 = vector.extract_strided_slice %124 {offsets = [0, 1, 2, 0], sizes = [8, 1, 1, 20], strides = [1, 1, 1, 1]} : vector<8x8x8x20xf32> to vector<8x1x1x20xf32>
    %146 = vector.shape_cast %145 : vector<8x1x1x20xf32> to vector<8x20xf32>
    %147 = vector.extract_strided_slice %124 {offsets = [0, 1, 3, 0], sizes = [8, 1, 1, 20], strides = [1, 1, 1, 1]} : vector<8x8x8x20xf32> to vector<8x1x1x20xf32>
    %148 = vector.shape_cast %147 : vector<8x1x1x20xf32> to vector<8x20xf32>
    %149 = vector.extract_strided_slice %124 {offsets = [0, 1, 4, 0], sizes = [8, 1, 1, 20], strides = [1, 1, 1, 1]} : vector<8x8x8x20xf32> to vector<8x1x1x20xf32>
    %150 = vector.shape_cast %149 : vector<8x1x1x20xf32> to vector<8x20xf32>
    %151 = vector.extract_strided_slice %124 {offsets = [0, 1, 5, 0], sizes = [8, 1, 1, 20], strides = [1, 1, 1, 1]} : vector<8x8x8x20xf32> to vector<8x1x1x20xf32>
    %152 = vector.shape_cast %151 : vector<8x1x1x20xf32> to vector<8x20xf32>
    %153 = vector.extract_strided_slice %124 {offsets = [0, 1, 6, 0], sizes = [8, 1, 1, 20], strides = [1, 1, 1, 1]} : vector<8x8x8x20xf32> to vector<8x1x1x20xf32>
    %154 = vector.shape_cast %153 : vector<8x1x1x20xf32> to vector<8x20xf32>
    %155 = vector.extract_strided_slice %124 {offsets = [0, 1, 7, 0], sizes = [8, 1, 1, 20], strides = [1, 1, 1, 1]} : vector<8x8x8x20xf32> to vector<8x1x1x20xf32>
    %156 = vector.shape_cast %155 : vector<8x1x1x20xf32> to vector<8x20xf32>
    %157 = vector.extract_strided_slice %124 {offsets = [0, 2, 0, 0], sizes = [8, 1, 1, 20], strides = [1, 1, 1, 1]} : vector<8x8x8x20xf32> to vector<8x1x1x20xf32>
    %158 = vector.shape_cast %157 : vector<8x1x1x20xf32> to vector<8x20xf32>
    %159 = vector.extract_strided_slice %124 {offsets = [0, 2, 1, 0], sizes = [8, 1, 1, 20], strides = [1, 1, 1, 1]} : vector<8x8x8x20xf32> to vector<8x1x1x20xf32>
    %160 = vector.shape_cast %159 : vector<8x1x1x20xf32> to vector<8x20xf32>
    %161 = vector.extract_strided_slice %124 {offsets = [0, 2, 2, 0], sizes = [8, 1, 1, 20], strides = [1, 1, 1, 1]} : vector<8x8x8x20xf32> to vector<8x1x1x20xf32>
    %162 = vector.shape_cast %161 : vector<8x1x1x20xf32> to vector<8x20xf32>
    %163 = vector.extract_strided_slice %124 {offsets = [0, 2, 3, 0], sizes = [8, 1, 1, 20], strides = [1, 1, 1, 1]} : vector<8x8x8x20xf32> to vector<8x1x1x20xf32>
    %164 = vector.shape_cast %163 : vector<8x1x1x20xf32> to vector<8x20xf32>
    %165 = vector.extract_strided_slice %124 {offsets = [0, 2, 4, 0], sizes = [8, 1, 1, 20], strides = [1, 1, 1, 1]} : vector<8x8x8x20xf32> to vector<8x1x1x20xf32>
    %166 = vector.shape_cast %165 : vector<8x1x1x20xf32> to vector<8x20xf32>
    %167 = vector.extract_strided_slice %124 {offsets = [0, 2, 5, 0], sizes = [8, 1, 1, 20], strides = [1, 1, 1, 1]} : vector<8x8x8x20xf32> to vector<8x1x1x20xf32>
    %168 = vector.shape_cast %167 : vector<8x1x1x20xf32> to vector<8x20xf32>
    %169 = vector.extract_strided_slice %124 {offsets = [0, 2, 6, 0], sizes = [8, 1, 1, 20], strides = [1, 1, 1, 1]} : vector<8x8x8x20xf32> to vector<8x1x1x20xf32>
    %170 = vector.shape_cast %169 : vector<8x1x1x20xf32> to vector<8x20xf32>
    %171 = vector.extract_strided_slice %124 {offsets = [0, 2, 7, 0], sizes = [8, 1, 1, 20], strides = [1, 1, 1, 1]} : vector<8x8x8x20xf32> to vector<8x1x1x20xf32>
    %172 = vector.shape_cast %171 : vector<8x1x1x20xf32> to vector<8x20xf32>
    %173 = vector.extract_strided_slice %124 {offsets = [0, 3, 0, 0], sizes = [8, 1, 1, 20], strides = [1, 1, 1, 1]} : vector<8x8x8x20xf32> to vector<8x1x1x20xf32>
    %174 = vector.shape_cast %173 : vector<8x1x1x20xf32> to vector<8x20xf32>
    %175 = vector.extract_strided_slice %124 {offsets = [0, 3, 1, 0], sizes = [8, 1, 1, 20], strides = [1, 1, 1, 1]} : vector<8x8x8x20xf32> to vector<8x1x1x20xf32>
    %176 = vector.shape_cast %175 : vector<8x1x1x20xf32> to vector<8x20xf32>
    %177 = vector.extract_strided_slice %124 {offsets = [0, 3, 2, 0], sizes = [8, 1, 1, 20], strides = [1, 1, 1, 1]} : vector<8x8x8x20xf32> to vector<8x1x1x20xf32>
    %178 = vector.shape_cast %177 : vector<8x1x1x20xf32> to vector<8x20xf32>
    %179 = vector.extract_strided_slice %124 {offsets = [0, 3, 3, 0], sizes = [8, 1, 1, 20], strides = [1, 1, 1, 1]} : vector<8x8x8x20xf32> to vector<8x1x1x20xf32>
    %180 = vector.shape_cast %179 : vector<8x1x1x20xf32> to vector<8x20xf32>
    %181 = vector.extract_strided_slice %124 {offsets = [0, 3, 4, 0], sizes = [8, 1, 1, 20], strides = [1, 1, 1, 1]} : vector<8x8x8x20xf32> to vector<8x1x1x20xf32>
    %182 = vector.shape_cast %181 : vector<8x1x1x20xf32> to vector<8x20xf32>
    %183 = vector.extract_strided_slice %124 {offsets = [0, 3, 5, 0], sizes = [8, 1, 1, 20], strides = [1, 1, 1, 1]} : vector<8x8x8x20xf32> to vector<8x1x1x20xf32>
    %184 = vector.shape_cast %183 : vector<8x1x1x20xf32> to vector<8x20xf32>
    %185 = vector.extract_strided_slice %124 {offsets = [0, 3, 6, 0], sizes = [8, 1, 1, 20], strides = [1, 1, 1, 1]} : vector<8x8x8x20xf32> to vector<8x1x1x20xf32>
    %186 = vector.shape_cast %185 : vector<8x1x1x20xf32> to vector<8x20xf32>
    %187 = vector.extract_strided_slice %124 {offsets = [0, 3, 7, 0], sizes = [8, 1, 1, 20], strides = [1, 1, 1, 1]} : vector<8x8x8x20xf32> to vector<8x1x1x20xf32>
    %188 = vector.shape_cast %187 : vector<8x1x1x20xf32> to vector<8x20xf32>
    %189 = vector.extract_strided_slice %124 {offsets = [0, 4, 0, 0], sizes = [8, 1, 1, 20], strides = [1, 1, 1, 1]} : vector<8x8x8x20xf32> to vector<8x1x1x20xf32>
    %190 = vector.shape_cast %189 : vector<8x1x1x20xf32> to vector<8x20xf32>
    %191 = vector.extract_strided_slice %124 {offsets = [0, 4, 1, 0], sizes = [8, 1, 1, 20], strides = [1, 1, 1, 1]} : vector<8x8x8x20xf32> to vector<8x1x1x20xf32>
    %192 = vector.shape_cast %191 : vector<8x1x1x20xf32> to vector<8x20xf32>
    %193 = vector.extract_strided_slice %124 {offsets = [0, 4, 2, 0], sizes = [8, 1, 1, 20], strides = [1, 1, 1, 1]} : vector<8x8x8x20xf32> to vector<8x1x1x20xf32>
    %194 = vector.shape_cast %193 : vector<8x1x1x20xf32> to vector<8x20xf32>
    %195 = vector.extract_strided_slice %124 {offsets = [0, 4, 3, 0], sizes = [8, 1, 1, 20], strides = [1, 1, 1, 1]} : vector<8x8x8x20xf32> to vector<8x1x1x20xf32>
    %196 = vector.shape_cast %195 : vector<8x1x1x20xf32> to vector<8x20xf32>
    %197 = vector.extract_strided_slice %124 {offsets = [0, 4, 4, 0], sizes = [8, 1, 1, 20], strides = [1, 1, 1, 1]} : vector<8x8x8x20xf32> to vector<8x1x1x20xf32>
    %198 = vector.shape_cast %197 : vector<8x1x1x20xf32> to vector<8x20xf32>
    %199 = vector.extract_strided_slice %124 {offsets = [0, 4, 5, 0], sizes = [8, 1, 1, 20], strides = [1, 1, 1, 1]} : vector<8x8x8x20xf32> to vector<8x1x1x20xf32>
    %200 = vector.shape_cast %199 : vector<8x1x1x20xf32> to vector<8x20xf32>
    %201 = vector.extract_strided_slice %124 {offsets = [0, 4, 6, 0], sizes = [8, 1, 1, 20], strides = [1, 1, 1, 1]} : vector<8x8x8x20xf32> to vector<8x1x1x20xf32>
    %202 = vector.shape_cast %201 : vector<8x1x1x20xf32> to vector<8x20xf32>
    %203 = vector.extract_strided_slice %124 {offsets = [0, 4, 7, 0], sizes = [8, 1, 1, 20], strides = [1, 1, 1, 1]} : vector<8x8x8x20xf32> to vector<8x1x1x20xf32>
    %204 = vector.shape_cast %203 : vector<8x1x1x20xf32> to vector<8x20xf32>
    %205 = vector.extract_strided_slice %124 {offsets = [0, 5, 0, 0], sizes = [8, 1, 1, 20], strides = [1, 1, 1, 1]} : vector<8x8x8x20xf32> to vector<8x1x1x20xf32>
    %206 = vector.shape_cast %205 : vector<8x1x1x20xf32> to vector<8x20xf32>
    %207 = vector.extract_strided_slice %124 {offsets = [0, 5, 1, 0], sizes = [8, 1, 1, 20], strides = [1, 1, 1, 1]} : vector<8x8x8x20xf32> to vector<8x1x1x20xf32>
    %208 = vector.shape_cast %207 : vector<8x1x1x20xf32> to vector<8x20xf32>
    %209 = vector.extract_strided_slice %124 {offsets = [0, 5, 2, 0], sizes = [8, 1, 1, 20], strides = [1, 1, 1, 1]} : vector<8x8x8x20xf32> to vector<8x1x1x20xf32>
    %210 = vector.shape_cast %209 : vector<8x1x1x20xf32> to vector<8x20xf32>
    %211 = vector.extract_strided_slice %124 {offsets = [0, 5, 3, 0], sizes = [8, 1, 1, 20], strides = [1, 1, 1, 1]} : vector<8x8x8x20xf32> to vector<8x1x1x20xf32>
    %212 = vector.shape_cast %211 : vector<8x1x1x20xf32> to vector<8x20xf32>
    %213 = vector.extract_strided_slice %124 {offsets = [0, 5, 4, 0], sizes = [8, 1, 1, 20], strides = [1, 1, 1, 1]} : vector<8x8x8x20xf32> to vector<8x1x1x20xf32>
    %214 = vector.shape_cast %213 : vector<8x1x1x20xf32> to vector<8x20xf32>
    %215 = vector.extract_strided_slice %124 {offsets = [0, 5, 5, 0], sizes = [8, 1, 1, 20], strides = [1, 1, 1, 1]} : vector<8x8x8x20xf32> to vector<8x1x1x20xf32>
    %216 = vector.shape_cast %215 : vector<8x1x1x20xf32> to vector<8x20xf32>
    %217 = vector.extract_strided_slice %124 {offsets = [0, 5, 6, 0], sizes = [8, 1, 1, 20], strides = [1, 1, 1, 1]} : vector<8x8x8x20xf32> to vector<8x1x1x20xf32>
    %218 = vector.shape_cast %217 : vector<8x1x1x20xf32> to vector<8x20xf32>
    %219 = vector.extract_strided_slice %124 {offsets = [0, 5, 7, 0], sizes = [8, 1, 1, 20], strides = [1, 1, 1, 1]} : vector<8x8x8x20xf32> to vector<8x1x1x20xf32>
    %220 = vector.shape_cast %219 : vector<8x1x1x20xf32> to vector<8x20xf32>
    %221 = vector.extract_strided_slice %124 {offsets = [0, 6, 0, 0], sizes = [8, 1, 1, 20], strides = [1, 1, 1, 1]} : vector<8x8x8x20xf32> to vector<8x1x1x20xf32>
    %222 = vector.shape_cast %221 : vector<8x1x1x20xf32> to vector<8x20xf32>
    %223 = vector.extract_strided_slice %124 {offsets = [0, 6, 1, 0], sizes = [8, 1, 1, 20], strides = [1, 1, 1, 1]} : vector<8x8x8x20xf32> to vector<8x1x1x20xf32>
    %224 = vector.shape_cast %223 : vector<8x1x1x20xf32> to vector<8x20xf32>
    %225 = vector.extract_strided_slice %124 {offsets = [0, 6, 2, 0], sizes = [8, 1, 1, 20], strides = [1, 1, 1, 1]} : vector<8x8x8x20xf32> to vector<8x1x1x20xf32>
    %226 = vector.shape_cast %225 : vector<8x1x1x20xf32> to vector<8x20xf32>
    %227 = vector.extract_strided_slice %124 {offsets = [0, 6, 3, 0], sizes = [8, 1, 1, 20], strides = [1, 1, 1, 1]} : vector<8x8x8x20xf32> to vector<8x1x1x20xf32>
    %228 = vector.shape_cast %227 : vector<8x1x1x20xf32> to vector<8x20xf32>
    %229 = vector.extract_strided_slice %124 {offsets = [0, 6, 4, 0], sizes = [8, 1, 1, 20], strides = [1, 1, 1, 1]} : vector<8x8x8x20xf32> to vector<8x1x1x20xf32>
    %230 = vector.shape_cast %229 : vector<8x1x1x20xf32> to vector<8x20xf32>
    %231 = vector.extract_strided_slice %124 {offsets = [0, 6, 5, 0], sizes = [8, 1, 1, 20], strides = [1, 1, 1, 1]} : vector<8x8x8x20xf32> to vector<8x1x1x20xf32>
    %232 = vector.shape_cast %231 : vector<8x1x1x20xf32> to vector<8x20xf32>
    %233 = vector.extract_strided_slice %124 {offsets = [0, 6, 6, 0], sizes = [8, 1, 1, 20], strides = [1, 1, 1, 1]} : vector<8x8x8x20xf32> to vector<8x1x1x20xf32>
    %234 = vector.shape_cast %233 : vector<8x1x1x20xf32> to vector<8x20xf32>
    %235 = vector.extract_strided_slice %124 {offsets = [0, 6, 7, 0], sizes = [8, 1, 1, 20], strides = [1, 1, 1, 1]} : vector<8x8x8x20xf32> to vector<8x1x1x20xf32>
    %236 = vector.shape_cast %235 : vector<8x1x1x20xf32> to vector<8x20xf32>
    %237 = vector.extract_strided_slice %124 {offsets = [0, 7, 0, 0], sizes = [8, 1, 1, 20], strides = [1, 1, 1, 1]} : vector<8x8x8x20xf32> to vector<8x1x1x20xf32>
    %238 = vector.shape_cast %237 : vector<8x1x1x20xf32> to vector<8x20xf32>
    %239 = vector.extract_strided_slice %124 {offsets = [0, 7, 1, 0], sizes = [8, 1, 1, 20], strides = [1, 1, 1, 1]} : vector<8x8x8x20xf32> to vector<8x1x1x20xf32>
    %240 = vector.shape_cast %239 : vector<8x1x1x20xf32> to vector<8x20xf32>
    %241 = vector.extract_strided_slice %124 {offsets = [0, 7, 2, 0], sizes = [8, 1, 1, 20], strides = [1, 1, 1, 1]} : vector<8x8x8x20xf32> to vector<8x1x1x20xf32>
    %242 = vector.shape_cast %241 : vector<8x1x1x20xf32> to vector<8x20xf32>
    %243 = vector.extract_strided_slice %124 {offsets = [0, 7, 3, 0], sizes = [8, 1, 1, 20], strides = [1, 1, 1, 1]} : vector<8x8x8x20xf32> to vector<8x1x1x20xf32>
    %244 = vector.shape_cast %243 : vector<8x1x1x20xf32> to vector<8x20xf32>
    %245 = vector.extract_strided_slice %124 {offsets = [0, 7, 4, 0], sizes = [8, 1, 1, 20], strides = [1, 1, 1, 1]} : vector<8x8x8x20xf32> to vector<8x1x1x20xf32>
    %246 = vector.shape_cast %245 : vector<8x1x1x20xf32> to vector<8x20xf32>
    %247 = vector.extract_strided_slice %124 {offsets = [0, 7, 5, 0], sizes = [8, 1, 1, 20], strides = [1, 1, 1, 1]} : vector<8x8x8x20xf32> to vector<8x1x1x20xf32>
    %248 = vector.shape_cast %247 : vector<8x1x1x20xf32> to vector<8x20xf32>
    %249 = vector.extract_strided_slice %124 {offsets = [0, 7, 6, 0], sizes = [8, 1, 1, 20], strides = [1, 1, 1, 1]} : vector<8x8x8x20xf32> to vector<8x1x1x20xf32>
    %250 = vector.shape_cast %249 : vector<8x1x1x20xf32> to vector<8x20xf32>
    %251 = vector.extract_strided_slice %124 {offsets = [0, 7, 7, 0], sizes = [8, 1, 1, 20], strides = [1, 1, 1, 1]} : vector<8x8x8x20xf32> to vector<8x1x1x20xf32>
    %252 = vector.shape_cast %251 : vector<8x1x1x20xf32> to vector<8x20xf32>
    %253 = tpu.concatenate %126, %128, %130, %132, %134, %136, %138, %140, %142, %144, %146, %148, %150, %152, %154, %156 in 1 : vector<8x20xf32>, vector<8x20xf32>, vector<8x20xf32>, vector<8x20xf32>, vector<8x20xf32>, vector<8x20xf32>, vector<8x20xf32>, vector<8x20xf32>, vector<8x20xf32>, vector<8x20xf32>, vector<8x20xf32>, vector<8x20xf32>, vector<8x20xf32>, vector<8x20xf32>, vector<8x20xf32>, vector<8x20xf32> -> vector<8x320xf32>
    %254 = tpu.concatenate %158, %160, %162, %164, %166, %168, %170, %172, %174, %176, %178, %180, %182, %184, %186, %188 in 1 : vector<8x20xf32>, vector<8x20xf32>, vector<8x20xf32>, vector<8x20xf32>, vector<8x20xf32>, vector<8x20xf32>, vector<8x20xf32>, vector<8x20xf32>, vector<8x20xf32>, vector<8x20xf32>, vector<8x20xf32>, vector<8x20xf32>, vector<8x20xf32>, vector<8x20xf32>, vector<8x20xf32>, vector<8x20xf32> -> vector<8x320xf32>
    %255 = tpu.concatenate %190, %192, %194, %196, %198, %200, %202, %204, %206, %208, %210, %212, %214, %216, %218, %220 in 1 : vector<8x20xf32>, vector<8x20xf32>, vector<8x20xf32>, vector<8x20xf32>, vector<8x20xf32>, vector<8x20xf32>, vector<8x20xf32>, vector<8x20xf32>, vector<8x20xf32>, vector<8x20xf32>, vector<8x20xf32>, vector<8x20xf32>, vector<8x20xf32>, vector<8x20xf32>, vector<8x20xf32>, vector<8x20xf32> -> vector<8x320xf32>
    %256 = tpu.concatenate %222, %224, %226, %228, %230, %232, %234, %236, %238, %240, %242, %244, %246, %248, %250, %252 in 1 : vector<8x20xf32>, vector<8x20xf32>, vector<8x20xf32>, vector<8x20xf32>, vector<8x20xf32>, vector<8x20xf32>, vector<8x20xf32>, vector<8x20xf32>, vector<8x20xf32>, vector<8x20xf32>, vector<8x20xf32>, vector<8x20xf32>, vector<8x20xf32>, vector<8x20xf32>, vector<8x20xf32>, vector<8x20xf32> -> vector<8x320xf32>
    %257 = tpu.concatenate %253, %254, %255, %256 in 1 : vector<8x320xf32>, vector<8x320xf32>, vector<8x320xf32>, vector<8x320xf32> -> vector<8x1280xf32>
    %c0_25 = arith.constant 0 : index
    %c0_26 = arith.constant 0 : index
    %258 = vector.load %arg6[%c0_25, %c0_26] : memref<1280x120xf32, #tpu.memory_space<vmem>>, vector<1280x120xf32>
    %cst_27 = arith.constant dense<0.000000e+00> : vector<8x120xf32>
    %259 = tpu.matmul %257, %258, %cst_27 {dimension_numbers = #tpu.dot_dimension_numbers<[1], [0], [0], [1], [0, 0, 1, 1], [], []>} : vector<8x1280xf32>, vector<1280x120xf32>, vector<8x120xf32> -> vector<8x120xf32>
    %c0_28 = arith.constant 0 : index
    %c0_29 = arith.constant 0 : index
    %260 = vector.load %arg7[%c0_28, %c0_29] : memref<1x120xf32, #tpu.memory_space<vmem>>, vector<1x120xf32>
    %261 = vector.broadcast %260 : vector<1x120xf32> to vector<8x120xf32>
    %262 = arith.addf %259, %261 : vector<8x120xf32>
    %cst_30 = arith.constant 0.000000e+00 : f32
    %263 = vector.broadcast %cst_30 : f32 to vector<8x120xf32>
    %264 = arith.maximumf %262, %263 : vector<8x120xf32>
    %c0_31 = arith.constant 0 : index
    %c0_32 = arith.constant 0 : index
    %265 = vector.load %arg8[%c0_31, %c0_32] : memref<120x10xf32, #tpu.memory_space<vmem>>, vector<120x10xf32>
    %cst_33 = arith.constant dense<0.000000e+00> : vector<8x10xf32>
    %266 = tpu.matmul %264, %265, %cst_33 {dimension_numbers = #tpu.dot_dimension_numbers<[1], [0], [0], [1], [0, 0, 1, 1], [], []>} : vector<8x120xf32>, vector<120x10xf32>, vector<8x10xf32> -> vector<8x10xf32>
    %c0_34 = arith.constant 0 : index
    %c0_35 = arith.constant 0 : index
    %267 = vector.load %arg9[%c0_34, %c0_35] : memref<1x10xf32, #tpu.memory_space<vmem>>, vector<1x10xf32>
    %268 = vector.broadcast %267 : vector<1x10xf32> to vector<8x10xf32>
    %269 = arith.addf %266, %268 : vector<8x10xf32>
    %c0_36 = arith.constant 0 : index
    %c0_37 = arith.constant 0 : index
    %270 = vector.load %arg10[%c0_36, %c0_37] : memref<8x10xf32, #tpu.memory_space<vmem>>, vector<8x10xf32>
    tpu.vector_store %arg10[%c0_36, %c0_37], %269 {strides = array<i32>} : memref<8x10xf32, #tpu.memory_space<vmem>>, vector<8x10xf32>,
    return
  }
  func.func @transform_0(%arg0: i32) -> (i32, i32, i32, i32) {
    %c0_i32 = arith.constant 0 : i32
    %c0_i32_0 = arith.constant 0 : i32
    %c0_i32_1 = arith.constant 0 : i32
    %c0_i32_2 = arith.constant 0 : i32
    return %arg0, %c0_i32, %c0_i32_0, %c0_i32_1 : i32, i32, i32, i32
  }
  func.func @transform_1(%arg0: i32) -> (i32, i32) {
    %c0_i32 = arith.constant 0 : i32
    %c0_i32_0 = arith.constant 0 : i32
    %c0_i32_1 = arith.constant 0 : i32
    return %c0_i32, %c0_i32_0 : i32, i32
  }
  func.func @transform_2(%arg0: i32) -> (i32, i32) {
    %c0_i32 = arith.constant 0 : i32
    %c0_i32_0 = arith.constant 0 : i32
    %c0_i32_1 = arith.constant 0 : i32
    return %c0_i32, %c0_i32_0 : i32, i32
  }
  func.func @transform_3(%arg0: i32) -> (i32, i32) {
    %c0_i32 = arith.constant 0 : i32
    %c0_i32_0 = arith.constant 0 : i32
    %c0_i32_1 = arith.constant 0 : i32
    return %c0_i32, %c0_i32_0 : i32, i32
  }
  func.func @transform_4(%arg0: i32) -> (i32, i32) {
    %c0_i32 = arith.constant 0 : i32
    %c0_i32_0 = arith.constant 0 : i32
    %c0_i32_1 = arith.constant 0 : i32
    return %c0_i32, %c0_i32_0 : i32, i32
  }
  func.func @transform_5(%arg0: i32) -> (i32, i32) {
    %c0_i32 = arith.constant 0 : i32
    %c0_i32_0 = arith.constant 0 : i32
    %c0_i32_1 = arith.constant 0 : i32
    return %c0_i32, %c0_i32_0 : i32, i32
  }
  func.func @transform_6(%arg0: i32) -> (i32, i32) {
    %c0_i32 = arith.constant 0 : i32
    %c0_i32_0 = arith.constant 0 : i32
    %c0_i32_1 = arith.constant 0 : i32
    return %c0_i32, %c0_i32_0 : i32, i32
  }
  func.func @transform_7(%arg0: i32) -> (i32, i32) {
    %c0_i32 = arith.constant 0 : i32
    %c0_i32_0 = arith.constant 0 : i32
    %c0_i32_1 = arith.constant 0 : i32
    return %c0_i32, %c0_i32_0 : i32, i32
  }
  func.func @transform_8(%arg0: i32) -> (i32, i32) {
    %c0_i32 = arith.constant 0 : i32
    %c0_i32_0 = arith.constant 0 : i32
    %c0_i32_1 = arith.constant 0 : i32
    return %c0_i32, %c0_i32_0 : i32, i32
  }
  func.func @transform_9(%arg0: i32) -> (i32, i32) {
    %c0_i32 = arith.constant 0 : i32
    %c0_i32_0 = arith.constant 0 : i32
    return %arg0, %c0_i32 : i32, i32
  }
}

</mosaic_0001>

<llo_original>
// kernel: convnet_forward.1
$region0: #{convnet_forward.1}
  #allocation0 [shape = 'u32[]', space=smem, size = 0x4, offset = 0x4, fixed_abs, tag = 'smem constant byte address 0x4 - core index']
  #allocation1 [shape = 'u32[144,128]{1,0:T(1,128)}', space=vmem, size = 0x12000, scoped, tag = 'internal scratch']
  %s0 = inlined_call_operand.vmem [shape: f32[8,9,9,48], index: 0, kind: input, shape index: {}]
  %s1 = inlined_call_operand.vmem [shape: f32[192,160], index: 1, kind: input, shape index: {}]
  %s2 = inlined_call_operand.vmem [shape: f32[1,10], index: 2, kind: input, shape index: {}]
  %s3 = inlined_call_operand.vmem [shape: f32[160,80], index: 3, kind: input, shape index: {}]
  %s4 = inlined_call_operand.vmem [shape: f32[1,20], index: 4, kind: input, shape index: {}]
  %s5 = inlined_call_operand.vmem [shape: f32[1280,120], index: 5, kind: input, shape index: {}]
  %s6 = inlined_call_operand.vmem [shape: f32[1,120], index: 6, kind: input, shape index: {}]
  %s7 = inlined_call_operand.vmem [shape: f32[120,10], index: 7, kind: input, shape index: {}]
  %s8 = inlined_call_operand.vmem [shape: f32[1,10], index: 8, kind: input, shape index: {}]
  %s9 = inlined_call_operand.vmem [shape: f32[8,10], index: 9, kind: output, shape index: {}]
  %s10 = sld [smem:[#allocation0]]
  $region46: #{convnet_forward.1} parent=0
    _
  %s12 = ssub.s32 1, %s10
  %s13 = scalar_select 0, %s12, %s10
  // Predicated region
  $region2: #{convnet_forward.1} parent=0 // pred_check
    _
  $region3: #{convnet_forward.1} parent=0 // pred_check_branch
    %15 = sbr.rel (0) target = $region5
  $region4: #{convnet_forward.1} parent=0 // pred_region
    _
  $region5: #{convnet_forward.1} parent=0 // pred_fallthru
    _
  // Predicated region
  $region6: #{convnet_forward.1} parent=0 // pred_check
    _
  $region7: #{convnet_forward.1} parent=0 // pred_check_branch
    %17 = sbr.rel (0) target = $region9
  $region8: #{convnet_forward.1} parent=0 // pred_region
    _
  $region9: #{convnet_forward.1} parent=0 // pred_fallthru
    _
  // Predicated region
  $region10: #{convnet_forward.1} parent=0 // pred_check
    _
  $region11: #{convnet_forward.1} parent=0 // pred_check_branch
    %19 = sbr.rel (0) target = $region13
  $region12: #{convnet_forward.1} parent=0 // pred_region
    _
  $region13: #{convnet_forward.1} parent=0 // pred_fallthru
    _
  // Predicated region
  $region14: #{convnet_forward.1} parent=0 // pred_check
    _
  $region15: #{convnet_forward.1} parent=0 // pred_check_branch
    %21 = sbr.rel (0) target = $region17
  $region16: #{convnet_forward.1} parent=0 // pred_region
    _
  $region17: #{convnet_forward.1} parent=0 // pred_fallthru
    _
  // Predicated region
  $region18: #{convnet_forward.1} parent=0 // pred_check
    _
  $region19: #{convnet_forward.1} parent=0 // pred_check_branch
    %23 = sbr.rel (0) target = $region21
  $region20: #{convnet_forward.1} parent=0 // pred_region
    _
  $region21: #{convnet_forward.1} parent=0 // pred_fallthru
    _
  // Predicated region
  $region22: #{convnet_forward.1} parent=0 // pred_check
    _
  $region23: #{convnet_forward.1} parent=0 // pred_check_branch
    %25 = sbr.rel (0) target = $region25
  $region24: #{convnet_forward.1} parent=0 // pred_region
    _
  $region25: #{convnet_forward.1} parent=0 // pred_fallthru
    _
  // Predicated region
  $region26: #{convnet_forward.1} parent=0 // pred_check
    _
  $region27: #{convnet_forward.1} parent=0 // pred_check_branch
    %27 = sbr.rel (0) target = $region29
  $region28: #{convnet_forward.1} parent=0 // pred_region
    _
  $region29: #{convnet_forward.1} parent=0 // pred_fallthru
    _
  // Predicated region
  $region30: #{convnet_forward.1} parent=0 // pred_check
    _
  $region31: #{convnet_forward.1} parent=0 // pred_check_branch
    %29 = sbr.rel (0) target = $region33
  $region32: #{convnet_forward.1} parent=0 // pred_region
    _
  $region33: #{convnet_forward.1} parent=0 // pred_fallthru
    _
  // Predicated region
  $region34: #{convnet_forward.1} parent=0 // pred_check
    _
  $region35: #{convnet_forward.1} parent=0 // pred_check_branch
    %31 = sbr.rel (0) target = $region37
  $region36: #{convnet_forward.1} parent=0 // pred_region
    _
  $region37: #{convnet_forward.1} parent=0 // pred_fallthru
    _
  %v32 = vld [vmem:[%s0] sm:$0xff]
  %v33 = vld [vmem:[%s0 + $0x8] sm:$0x1]
  %v34 = vld [vmem:[%s0 + $0x10] sm:$0xff]
  %v35 = vld [vmem:[%s0 + $0x18] sm:$0x1]
  %v36 = vld [vmem:[%s0 + $0x20] sm:$0xff]
  %v37 = vld [vmem:[%s0 + $0x28] sm:$0x1]
  %v38 = vld [vmem:[%s0 + $0x30] sm:$0xff]
  %v39 = vld [vmem:[%s0 + $0x38] sm:$0x1]
  %v40 = vld [vmem:[%s0 + $0x40] sm:$0xff]
  %v41 = vld [vmem:[%s0 + $0x48] sm:$0x1]
  %v42 = vld [vmem:[%s0 + $0x50] sm:$0xff]
  %v43 = vld [vmem:[%s0 + $0x58] sm:$0x1]
  %v44 = vld [vmem:[%s0 + $0x60] sm:$0xff]
  %v45 = vld [vmem:[%s0 + $0x68] sm:$0x1]
  %v46 = vld [vmem:[%s0 + $0x70] sm:$0xff]
  %v47 = vld [vmem:[%s0 + $0x78] sm:$0x1]
  %v48 = vld [vmem:[%s0 + $0x80] sm:$0xff]
  %v49 = vld [vmem:[%s0 + $0x88] sm:$0x1]
  %v50 = vld [vmem:[%s0 + $0x90] sm:$0xff]
  %v51 = vld [vmem:[%s0 + $0x98] sm:$0x1]
  %v52 = vld [vmem:[%s0 + $0xa0] sm:$0xff]
  %v53 = vld [vmem:[%s0 + $0xa8] sm:$0x1]
  %v54 = vld [vmem:[%s0 + $0xb0] sm:$0xff]
  %v55 = vld [vmem:[%s0 + $0xb8] sm:$0x1]
  %v56 = vld [vmem:[%s0 + $0xc0] sm:$0xff]
  %v57 = vld [vmem:[%s0 + $0xc8] sm:$0x1]
  %v58 = vld [vmem:[%s0 + $0xd0] sm:$0xff]
  %v59 = vld [vmem:[%s0 + $0xd8] sm:$0x1]
  %v60 = vld [vmem:[%s0 + $0xe0] sm:$0xff]
  %v61 = vld [vmem:[%s0 + $0xe8] sm:$0x1]
  %v62 = vld [vmem:[%s0 + $0xf0] sm:$0xff]
  %v63 = vld [vmem:[%s0 + $0xf8] sm:$0x1]
  %v64 = vld [vmem:[%s0 + $0x100] sm:$0xff]
  %v65 = vld [vmem:[%s0 + $0x108] sm:$0x1]
  %v66 = vld [vmem:[%s0 + $0x110] sm:$0xff]
  %v67 = vld [vmem:[%s0 + $0x118] sm:$0x1]
  %v68 = vld [vmem:[%s0 + $0x120] sm:$0xff]
  %v69 = vld [vmem:[%s0 + $0x128] sm:$0x1]
  %v70 = vld [vmem:[%s0 + $0x130] sm:$0xff]
  %v71 = vld [vmem:[%s0 + $0x138] sm:$0x1]
  %v72 = vld [vmem:[%s0 + $0x140] sm:$0xff]
  %v73 = vld [vmem:[%s0 + $0x148] sm:$0x1]
  %v74 = vld [vmem:[%s0 + $0x150] sm:$0xff]
  %v75 = vld [vmem:[%s0 + $0x158] sm:$0x1]
  %v76 = vld [vmem:[%s0 + $0x160] sm:$0xff]
  %v77 = vld [vmem:[%s0 + $0x168] sm:$0x1]
  %v78 = vld [vmem:[%s0 + $0x170] sm:$0xff]
  %v79 = vld [vmem:[%s0 + $0x178] sm:$0x1]
  %v80 = vld [vmem:[%s0 + $0x180] sm:$0xff]
  %v81 = vld [vmem:[%s0 + $0x188] sm:$0x1]
  %v82 = vld [vmem:[%s0 + $0x190] sm:$0xff]
  %v83 = vld [vmem:[%s0 + $0x198] sm:$0x1]
  %v84 = vld [vmem:[%s0 + $0x1a0] sm:$0xff]
  %v85 = vld [vmem:[%s0 + $0x1a8] sm:$0x1]
  %v86 = vld [vmem:[%s0 + $0x1b0] sm:$0xff]
  %v87 = vld [vmem:[%s0 + $0x1b8] sm:$0x1]
  %v88 = vld [vmem:[%s0 + $0x1c0] sm:$0xff]
  %v89 = vld [vmem:[%s0 + $0x1c8] sm:$0x1]
  %v90 = vld [vmem:[%s0 + $0x1d0] sm:$0xff]
  %v91 = vld [vmem:[%s0 + $0x1d8] sm:$0x1]
  %v92 = vld [vmem:[%s0 + $0x1e0] sm:$0xff]
  %v93 = vld [vmem:[%s0 + $0x1e8] sm:$0x1]
  %v94 = vld [vmem:[%s0 + $0x1f0] sm:$0xff]
  %v95 = vld [vmem:[%s0 + $0x1f8] sm:$0x1]
  %v96 = vld [vmem:[%s0 + $0x200] sm:$0xff]
  %v97 = vld [vmem:[%s0 + $0x208] sm:$0x1]
  %v98 = vld [vmem:[%s0 + $0x210] sm:$0xff]
  %v99 = vld [vmem:[%s0 + $0x218] sm:$0x1]
  %v100 = vld [vmem:[%s0 + $0x220] sm:$0xff]
  %v101 = vld [vmem:[%s0 + $0x228] sm:$0x1]
  %v102 = vld [vmem:[%s0 + $0x230] sm:$0xff]
  %v103 = vld [vmem:[%s0 + $0x238] sm:$0x1]
  %v104 = vld [vmem:[%s0 + $0x240] sm:$0xff]
  %v105 = vld [vmem:[%s0 + $0x248] sm:$0x1]
  %v106 = vld [vmem:[%s0 + $0x250] sm:$0xff]
  %v107 = vld [vmem:[%s0 + $0x258] sm:$0x1]
  %v108 = vld [vmem:[%s0 + $0x260] sm:$0xff]
  %v109 = vld [vmem:[%s0 + $0x268] sm:$0x1]
  %v110 = vld [vmem:[%s0 + $0x270] sm:$0xff]
  %v111 = vld [vmem:[%s0 + $0x278] sm:$0x1]
  %v112 = vld [vmem:[%s0 + $0x280] sm:$0xff]
  %v113 = vld [vmem:[%s0 + $0x288] sm:$0x1]
  %v114 = vld [vmem:[%s0 + $0x290] sm:$0xff]
  %v115 = vld [vmem:[%s0 + $0x298] sm:$0x1]
  %v116 = vld [vmem:[%s0 + $0x2a0] sm:$0xff]
  %v117 = vld [vmem:[%s0 + $0x2a8] sm:$0x1]
  %v118 = vld [vmem:[%s0 + $0x2b0] sm:$0xff]
  %v119 = vld [vmem:[%s0 + $0x2b8] sm:$0x1]
  %v120 = vld [vmem:[%s0 + $0x2c0] sm:$0xff]
  %v121 = vld [vmem:[%s0 + $0x2c8] sm:$0x1]
  %v122 = vld [vmem:[%s0 + $0x2d0] sm:$0xff]
  %v123 = vld [vmem:[%s0 + $0x2d8] sm:$0x1]
  %v124 = vld [vmem:[%s0 + $0x2e0] sm:$0xff]
  %v125 = vld [vmem:[%s0 + $0x2e8] sm:$0x1]
  %v126 = vld [vmem:[%s0 + $0x2f0] sm:$0xff]
  %v127 = vld [vmem:[%s0 + $0x2f8] sm:$0x1]
  %v128 = vld [vmem:[%s0 + $0x300] sm:$0xff]
  %v129 = vld [vmem:[%s0 + $0x308] sm:$0x1]
  %v130 = vld [vmem:[%s0 + $0x310] sm:$0xff]
  %v131 = vld [vmem:[%s0 + $0x318] sm:$0x1]
  %v132 = vld [vmem:[%s0 + $0x320] sm:$0xff]
  %v133 = vld [vmem:[%s0 + $0x328] sm:$0x1]
  %v134 = vld [vmem:[%s0 + $0x330] sm:$0xff]
  %v135 = vld [vmem:[%s0 + $0x338] sm:$0x1]
  %v136 = vld [vmem:[%s0 + $0x340] sm:$0xff]
  %v137 = vld [vmem:[%s0 + $0x348] sm:$0x1]
  %v138 = vld [vmem:[%s0 + $0x350] sm:$0xff]
  %v139 = vld [vmem:[%s0 + $0x358] sm:$0x1]
  %v140 = vld [vmem:[%s0 + $0x360] sm:$0xff]
  %v141 = vld [vmem:[%s0 + $0x368] sm:$0x1]
  %v142 = vld [vmem:[%s0 + $0x370] sm:$0xff]
  %v143 = vld [vmem:[%s0 + $0x378] sm:$0x1]
  %v144 = vld [vmem:[%s0 + $0x380] sm:$0xff]
  %v145 = vld [vmem:[%s0 + $0x388] sm:$0x1]
  %v146 = vld [vmem:[%s0 + $0x390] sm:$0xff]
  %v147 = vld [vmem:[%s0 + $0x398] sm:$0x1]
  %v148 = vld [vmem:[%s0 + $0x3a0] sm:$0xff]
  %v149 = vld [vmem:[%s0 + $0x3a8] sm:$0x1]
  %v150 = vld [vmem:[%s0 + $0x3b0] sm:$0xff]
  %v151 = vld [vmem:[%s0 + $0x3b8] sm:$0x1]
  %v152 = vld [vmem:[%s0 + $0x3c0] sm:$0xff]
  %v153 = vld [vmem:[%s0 + $0x3c8] sm:$0x1]
  %v154 = vld [vmem:[%s0 + $0x3d0] sm:$0xff]
  %v155 = vld [vmem:[%s0 + $0x3d8] sm:$0x1]
  %v156 = vld [vmem:[%s0 + $0x3e0] sm:$0xff]
  %v157 = vld [vmem:[%s0 + $0x3e8] sm:$0x1]
  %v158 = vld [vmem:[%s0 + $0x3f0] sm:$0xff]
  %v159 = vld [vmem:[%s0 + $0x3f8] sm:$0x1]
  %v160 = vld [vmem:[%s0 + $0x400] sm:$0xff]
  %v161 = vld [vmem:[%s0 + $0x408] sm:$0x1]
  %v162 = vld [vmem:[%s0 + $0x410] sm:$0xff]
  %v163 = vld [vmem:[%s0 + $0x418] sm:$0x1]
  %v164 = vld [vmem:[%s0 + $0x420] sm:$0xff]
  %v165 = vld [vmem:[%s0 + $0x428] sm:$0x1]
  %v166 = vld [vmem:[%s0 + $0x430] sm:$0xff]
  %v167 = vld [vmem:[%s0 + $0x438] sm:$0x1]
  %v168 = vld [vmem:[%s0 + $0x440] sm:$0xff]
  %v169 = vld [vmem:[%s0 + $0x448] sm:$0x1]
  %v170 = vld [vmem:[%s0 + $0x450] sm:$0xff]
  %v171 = vld [vmem:[%s0 + $0x458] sm:$0x1]
  %v172 = vld [vmem:[%s0 + $0x460] sm:$0xff]
  %v173 = vld [vmem:[%s0 + $0x468] sm:$0x1]
  %v174 = vld [vmem:[%s0 + $0x470] sm:$0xff]
  %v175 = vld [vmem:[%s0 + $0x478] sm:$0x1]
  %vm304 = vcmask 1046528
  %v305 = vrot.slane %v32, 1
  %v306 = vrot.slane %v33, 1
  %v307 = vsel %vm304, %v305, %v306
  %v308 = vrot.slane %v34, 1
  %v309 = vrot.slane %v35, 1
  %v310 = vsel %vm304, %v308, %v309
  %v311 = vrot.slane %v36, 1
  %v312 = vrot.slane %v37, 1
  %v313 = vsel %vm304, %v311, %v312
  %v314 = vrot.slane %v38, 1
  %v315 = vrot.slane %v39, 1
  %v316 = vsel %vm304, %v314, %v315
  %v317 = vrot.slane %v40, 1
  %v318 = vrot.slane %v41, 1
  %v319 = vsel %vm304, %v317, %v318
  %v320 = vrot.slane %v42, 1
  %v321 = vrot.slane %v43, 1
  %v322 = vsel %vm304, %v320, %v321
  %v323 = vrot.slane %v44, 1
  %v324 = vrot.slane %v45, 1
  %v325 = vsel %vm304, %v323, %v324
  %v326 = vrot.slane %v46, 1
  %v327 = vrot.slane %v47, 1
  %v328 = vsel %vm304, %v326, %v327
  %v329 = vrot.slane %v50, 1
  %v330 = vrot.slane %v51, 1
  %v331 = vsel %vm304, %v329, %v330
  %v332 = vrot.slane %v52, 1
  %v333 = vrot.slane %v53, 1
  %v334 = vsel %vm304, %v332, %v333
  %v335 = vrot.slane %v54, 1
  %v336 = vrot.slane %v55, 1
  %v337 = vsel %vm304, %v335, %v336
  %v338 = vrot.slane %v56, 1
  %v339 = vrot.slane %v57, 1
  %v340 = vsel %vm304, %v338, %v339
  %v341 = vrot.slane %v58, 1
  %v342 = vrot.slane %v59, 1
  %v343 = vsel %vm304, %v341, %v342
  %v344 = vrot.slane %v60, 1
  %v345 = vrot.slane %v61, 1
  %v346 = vsel %vm304, %v344, %v345
  %v347 = vrot.slane %v62, 1
  %v348 = vrot.slane %v63, 1
  %v349 = vsel %vm304, %v347, %v348
  %v350 = vrot.slane %v64, 1
  %v351 = vrot.slane %v65, 1
  %v352 = vsel %vm304, %v350, %v351
  %v353 = vrot.slane %v68, 1
  %v354 = vrot.slane %v69, 1
  %v355 = vsel %vm304, %v353, %v354
  %v356 = vrot.slane %v70, 1
  %v357 = vrot.slane %v71, 1
  %v358 = vsel %vm304, %v356, %v357
  %v359 = vrot.slane %v72, 1
  %v360 = vrot.slane %v73, 1
  %v361 = vsel %vm304, %v359, %v360
  %v362 = vrot.slane %v74, 1
  %v363 = vrot.slane %v75, 1
  %v364 = vsel %vm304, %v362, %v363
  %v365 = vrot.slane %v76, 1
  %v366 = vrot.slane %v77, 1
  %v367 = vsel %vm304, %v365, %v366
  %v368 = vrot.slane %v78, 1
  %v369 = vrot.slane %v79, 1
  %v370 = vsel %vm304, %v368, %v369
  %v371 = vrot.slane %v80, 1
  %v372 = vrot.slane %v81, 1
  %v373 = vsel %vm304, %v371, %v372
  %v374 = vrot.slane %v82, 1
  %v375 = vrot.slane %v83, 1
  %v376 = vsel %vm304, %v374, %v375
  %v377 = vrot.slane %v86, 1
  %v378 = vrot.slane %v87, 1
  %v379 = vsel %vm304, %v377, %v378
  %v380 = vrot.slane %v88, 1
  %v381 = vrot.slane %v89, 1
  %v382 = vsel %vm304, %v380, %v381
  %v383 = vrot.slane %v90, 1
  %v384 = vrot.slane %v91, 1
  %v385 = vsel %vm304, %v383, %v384
  %v386 = vrot.slane %v92, 1
  %v387 = vrot.slane %v93, 1
  %v388 = vsel %vm304, %v386, %v387
  %v389 = vrot.slane %v94, 1
  %v390 = vrot.slane %v95, 1
  %v391 = vsel %vm304, %v389, %v390
  %v392 = vrot.slane %v96, 1
  %v393 = vrot.slane %v97, 1
  %v394 = vsel %vm304, %v392, %v393
  %v395 = vrot.slane %v98, 1
  %v396 = vrot.slane %v99, 1
  %v397 = vsel %vm304, %v395, %v396
  %v398 = vrot.slane %v100, 1
  %v399 = vrot.slane %v101, 1
  %v400 = vsel %vm304, %v398, %v399
  %v401 = vrot.slane %v104, 1
  %v402 = vrot.slane %v105, 1
  %v403 = vsel %vm304, %v401, %v402
  %v404 = vrot.slane %v106, 1
  %v405 = vrot.slane %v107, 1
  %v406 = vsel %vm304, %v404, %v405
  %v407 = vrot.slane %v108, 1
  %v408 = vrot.slane %v109, 1
  %v409 = vsel %vm304, %v407, %v408
  %v410 = vrot.slane %v110, 1
  %v411 = vrot.slane %v111, 1
  %v412 = vsel %vm304, %v410, %v411
  %v413 = vrot.slane %v112, 1
  %v414 = vrot.slane %v113, 1
  %v415 = vsel %vm304, %v413, %v414
  %v416 = vrot.slane %v114, 1
  %v417 = vrot.slane %v115, 1
  %v418 = vsel %vm304, %v416, %v417
  %v419 = vrot.slane %v116, 1
  %v420 = vrot.slane %v117, 1
  %v421 = vsel %vm304, %v419, %v420
  %v422 = vrot.slane %v118, 1
  %v423 = vrot.slane %v119, 1
  %v424 = vsel %vm304, %v422, %v423
  %v425 = vrot.slane %v122, 1
  %v426 = vrot.slane %v123, 1
  %v427 = vsel %vm304, %v425, %v426
  %v428 = vrot.slane %v124, 1
  %v429 = vrot.slane %v125, 1
  %v430 = vsel %vm304, %v428, %v429
  %v431 = vrot.slane %v126, 1
  %v432 = vrot.slane %v127, 1
  %v433 = vsel %vm304, %v431, %v432
  %v434 = vrot.slane %v128, 1
  %v435 = vrot.slane %v129, 1
  %v436 = vsel %vm304, %v434, %v435
  %v437 = vrot.slane %v130, 1
  %v438 = vrot.slane %v131, 1
  %v439 = vsel %vm304, %v437, %v438
  %v440 = vrot.slane %v132, 1
  %v441 = vrot.slane %v133, 1
  %v442 = vsel %vm304, %v440, %v441
  %v443 = vrot.slane %v134, 1
  %v444 = vrot.slane %v135, 1
  %v445 = vsel %vm304, %v443, %v444
  %v446 = vrot.slane %v136, 1
  %v447 = vrot.slane %v137, 1
  %v448 = vsel %vm304, %v446, %v447
  %v449 = vrot.slane %v140, 1
  %v450 = vrot.slane %v141, 1
  %v451 = vsel %vm304, %v449, %v450
  %v452 = vrot.slane %v142, 1
  %v453 = vrot.slane %v143, 1
  %v454 = vsel %vm304, %v452, %v453
  %v455 = vrot.slane %v144, 1
  %v456 = vrot.slane %v145, 1
  %v457 = vsel %vm304, %v455, %v456
  %v458 = vrot.slane %v146, 1
  %v459 = vrot.slane %v147, 1
  %v460 = vsel %vm304, %v458, %v459
  %v461 = vrot.slane %v148, 1
  %v462 = vrot.slane %v149, 1
  %v463 = vsel %vm304, %v461, %v462
  %v464 = vrot.slane %v150, 1
  %v465 = vrot.slane %v151, 1
  %v466 = vsel %vm304, %v464, %v465
  %v467 = vrot.slane %v152, 1
  %v468 = vrot.slane %v153, 1
  %v469 = vsel %vm304, %v467, %v468
  %v470 = vrot.slane %v154, 1
  %v471 = vrot.slane %v155, 1
  %v472 = vsel %vm304, %v470, %v471
  %v473 = vrot.slane %v158, 1
  %v474 = vrot.slane %v159, 1
  %v475 = vsel %vm304, %v473, %v474
  %v476 = vrot.slane %v160, 1
  %v477 = vrot.slane %v161, 1
  %v478 = vsel %vm304, %v476, %v477
  %v479 = vrot.slane %v162, 1
  %v480 = vrot.slane %v163, 1
  %v481 = vsel %vm304, %v479, %v480
  %v482 = vrot.slane %v164, 1
  %v483 = vrot.slane %v165, 1
  %v484 = vsel %vm304, %v482, %v483
  %v485 = vrot.slane %v166, 1
  %v486 = vrot.slane %v167, 1
  %v487 = vsel %vm304, %v485, %v486
  %v488 = vrot.slane %v168, 1
  %v489 = vrot.slane %v169, 1
  %v490 = vsel %vm304, %v488, %v489
  %v491 = vrot.slane %v170, 1
  %v492 = vrot.slane %v171, 1
  %v493 = vsel %vm304, %v491, %v492
  %v494 = vrot.slane %v172, 1
  %v495 = vrot.slane %v173, 1
  %v496 = vsel %vm304, %v494, %v495
  %v513 = vrot.slane %v48, 1
  %v514 = vrot.slane %v49, 1
  %v515 = vsel %vm304, %v513, %v514
  %v516 = vrot.slane %v66, 1
  %v517 = vrot.slane %v67, 1
  %v518 = vsel %vm304, %v516, %v517
  %v519 = vrot.slane %v84, 1
  %v520 = vrot.slane %v85, 1
  %v521 = vsel %vm304, %v519, %v520
  %v522 = vrot.slane %v102, 1
  %v523 = vrot.slane %v103, 1
  %v524 = vsel %vm304, %v522, %v523
  %v525 = vrot.slane %v120, 1
  %v526 = vrot.slane %v121, 1
  %v527 = vsel %vm304, %v525, %v526
  %v528 = vrot.slane %v138, 1
  %v529 = vrot.slane %v139, 1
  %v530 = vsel %vm304, %v528, %v529
  %v531 = vrot.slane %v156, 1
  %v532 = vrot.slane %v157, 1
  %v533 = vsel %vm304, %v531, %v532
  %v534 = vrot.slane %v174, 1
  %v535 = vrot.slane %v175, 1
  %v536 = vsel %vm304, %v534, %v535
  %537 = vrot.lane.b32.xlu0 %v307, 48
  %v538 = vpop.permute.xlu0 %537
  %539 = vrot.lane.b32.xlu0 %v310, 48
  %v540 = vpop.permute.xlu0 %539
  %541 = vrot.lane.b32.xlu0 %v313, 48
  %v542 = vpop.permute.xlu0 %541
  %543 = vrot.lane.b32.xlu0 %v316, 48
  %v544 = vpop.permute.xlu0 %543
  %545 = vrot.lane.b32.xlu0 %v319, 48
  %v546 = vpop.permute.xlu0 %545
  %547 = vrot.lane.b32.xlu0 %v322, 48
  %v548 = vpop.permute.xlu0 %547
  %549 = vrot.lane.b32.xlu0 %v325, 48
  %v550 = vpop.permute.xlu0 %549
  %551 = vrot.lane.b32.xlu0 %v328, 48
  %v552 = vpop.permute.xlu0 %551
  %553 = vrot.lane.b32.xlu0 %v331, 48
  %v554 = vpop.permute.xlu0 %553
  %555 = vrot.lane.b32.xlu0 %v334, 48
  %v556 = vpop.permute.xlu0 %555
  %557 = vrot.lane.b32.xlu0 %v337, 48
  %v558 = vpop.permute.xlu0 %557
  %559 = vrot.lane.b32.xlu0 %v340, 48
  %v560 = vpop.permute.xlu0 %559
  %561 = vrot.lane.b32.xlu0 %v343, 48
  %v562 = vpop.permute.xlu0 %561
  %563 = vrot.lane.b32.xlu0 %v346, 48
  %v564 = vpop.permute.xlu0 %563
  %565 = vrot.lane.b32.xlu0 %v349, 48
  %v566 = vpop.permute.xlu0 %565
  %567 = vrot.lane.b32.xlu0 %v352, 48
  %v568 = vpop.permute.xlu0 %567
  %569 = vrot.lane.b32.xlu0 %v355, 48
  %v570 = vpop.permute.xlu0 %569
  %571 = vrot.lane.b32.xlu0 %v358, 48
  %v572 = vpop.permute.xlu0 %571
  %573 = vrot.lane.b32.xlu0 %v361, 48
  %v574 = vpop.permute.xlu0 %573
  %575 = vrot.lane.b32.xlu0 %v364, 48
  %v576 = vpop.permute.xlu0 %575
  %577 = vrot.lane.b32.xlu0 %v367, 48
  %v578 = vpop.permute.xlu0 %577
  %579 = vrot.lane.b32.xlu0 %v370, 48
  %v580 = vpop.permute.xlu0 %579
  %581 = vrot.lane.b32.xlu0 %v373, 48
  %v582 = vpop.permute.xlu0 %581
  %583 = vrot.lane.b32.xlu0 %v376, 48
  %v584 = vpop.permute.xlu0 %583
  %585 = vrot.lane.b32.xlu0 %v379, 48
  %v586 = vpop.permute.xlu0 %585
  %587 = vrot.lane.b32.xlu0 %v382, 48
  %v588 = vpop.permute.xlu0 %587
  %589 = vrot.lane.b32.xlu0 %v385, 48
  %v590 = vpop.permute.xlu0 %589
  %591 = vrot.lane.b32.xlu0 %v388, 48
  %v592 = vpop.permute.xlu0 %591
  %593 = vrot.lane.b32.xlu0 %v391, 48
  %v594 = vpop.permute.xlu0 %593
  %595 = vrot.lane.b32.xlu0 %v394, 48
  %v596 = vpop.permute.xlu0 %595
  %597 = vrot.lane.b32.xlu0 %v397, 48
  %v598 = vpop.permute.xlu0 %597
  %599 = vrot.lane.b32.xlu0 %v400, 48
  %v600 = vpop.permute.xlu0 %599
  %601 = vrot.lane.b32.xlu0 %v403, 48
  %v602 = vpop.permute.xlu0 %601
  %603 = vrot.lane.b32.xlu0 %v406, 48
  %v604 = vpop.permute.xlu0 %603
  %605 = vrot.lane.b32.xlu0 %v409, 48
  %v606 = vpop.permute.xlu0 %605
  %607 = vrot.lane.b32.xlu0 %v412, 48
  %v608 = vpop.permute.xlu0 %607
  %609 = vrot.lane.b32.xlu0 %v415, 48
  %v610 = vpop.permute.xlu0 %609
  %611 = vrot.lane.b32.xlu0 %v418, 48
  %v612 = vpop.permute.xlu0 %611
  %613 = vrot.lane.b32.xlu0 %v421, 48
  %v614 = vpop.permute.xlu0 %613
  %615 = vrot.lane.b32.xlu0 %v424, 48
  %v616 = vpop.permute.xlu0 %615
  %617 = vrot.lane.b32.xlu0 %v427, 48
  %v618 = vpop.permute.xlu0 %617
  %619 = vrot.lane.b32.xlu0 %v430, 48
  %v620 = vpop.permute.xlu0 %619
  %621 = vrot.lane.b32.xlu0 %v433, 48
  %v622 = vpop.permute.xlu0 %621
  %623 = vrot.lane.b32.xlu0 %v436, 48
  %v624 = vpop.permute.xlu0 %623
  %625 = vrot.lane.b32.xlu0 %v439, 48
  %v626 = vpop.permute.xlu0 %625
  %627 = vrot.lane.b32.xlu0 %v442, 48
  %v628 = vpop.permute.xlu0 %627
  %629 = vrot.lane.b32.xlu0 %v445, 48
  %v630 = vpop.permute.xlu0 %629
  %631 = vrot.lane.b32.xlu0 %v448, 48
  %v632 = vpop.permute.xlu0 %631
  %633 = vrot.lane.b32.xlu0 %v451, 48
  %v634 = vpop.permute.xlu0 %633
  %635 = vrot.lane.b32.xlu0 %v454, 48
  %v636 = vpop.permute.xlu0 %635
  %637 = vrot.lane.b32.xlu0 %v457, 48
  %v638 = vpop.permute.xlu0 %637
  %639 = vrot.lane.b32.xlu0 %v460, 48
  %v640 = vpop.permute.xlu0 %639
  %641 = vrot.lane.b32.xlu0 %v463, 48
  %v642 = vpop.permute.xlu0 %641
  %643 = vrot.lane.b32.xlu0 %v466, 48
  %v644 = vpop.permute.xlu0 %643
  %645 = vrot.lane.b32.xlu0 %v469, 48
  %v646 = vpop.permute.xlu0 %645
  %647 = vrot.lane.b32.xlu0 %v472, 48
  %v648 = vpop.permute.xlu0 %647
  %649 = vrot.lane.b32.xlu0 %v475, 48
  %v650 = vpop.permute.xlu0 %649
  %651 = vrot.lane.b32.xlu0 %v478, 48
  %v652 = vpop.permute.xlu0 %651
  %653 = vrot.lane.b32.xlu0 %v481, 48
  %v654 = vpop.permute.xlu0 %653
  %655 = vrot.lane.b32.xlu0 %v484, 48
  %v656 = vpop.permute.xlu0 %655
  %657 = vrot.lane.b32.xlu0 %v487, 48
  %v658 = vpop.permute.xlu0 %657
  %659 = vrot.lane.b32.xlu0 %v490, 48
  %v660 = vpop.permute.xlu0 %659
  %661 = vrot.lane.b32.xlu0 %v493, 48
  %v662 = vpop.permute.xlu0 %661
  %663 = vrot.lane.b32.xlu0 %v496, 48
  %v664 = vpop.permute.xlu0 %663
  %729 = vrot.lane.b32.xlu0 %v34, 96
  %v730 = vpop.permute.xlu0 %729
  %731 = vrot.lane.b32.xlu0 %v36, 96
  %v732 = vpop.permute.xlu0 %731
  %733 = vrot.lane.b32.xlu0 %v38, 96
  %v734 = vpop.permute.xlu0 %733
  %735 = vrot.lane.b32.xlu0 %v40, 96
  %v736 = vpop.permute.xlu0 %735
  %737 = vrot.lane.b32.xlu0 %v42, 96
  %v738 = vpop.permute.xlu0 %737
  %739 = vrot.lane.b32.xlu0 %v44, 96
  %v740 = vpop.permute.xlu0 %739
  %741 = vrot.lane.b32.xlu0 %v46, 96
  %v742 = vpop.permute.xlu0 %741
  %743 = vrot.lane.b32.xlu0 %v48, 96
  %v744 = vpop.permute.xlu0 %743
  %745 = vrot.lane.b32.xlu0 %v52, 96
  %v746 = vpop.permute.xlu0 %745
  %747 = vrot.lane.b32.xlu0 %v54, 96
  %v748 = vpop.permute.xlu0 %747
  %749 = vrot.lane.b32.xlu0 %v56, 96
  %v750 = vpop.permute.xlu0 %749
  %751 = vrot.lane.b32.xlu0 %v58, 96
  %v752 = vpop.permute.xlu0 %751
  %753 = vrot.lane.b32.xlu0 %v60, 96
  %v754 = vpop.permute.xlu0 %753
  %755 = vrot.lane.b32.xlu0 %v62, 96
  %v756 = vpop.permute.xlu0 %755
  %757 = vrot.lane.b32.xlu0 %v64, 96
  %v758 = vpop.permute.xlu0 %757
  %759 = vrot.lane.b32.xlu0 %v66, 96
  %v760 = vpop.permute.xlu0 %759
  %761 = vrot.lane.b32.xlu0 %v70, 96
  %v762 = vpop.permute.xlu0 %761
  %763 = vrot.lane.b32.xlu0 %v72, 96
  %v764 = vpop.permute.xlu0 %763
  %765 = vrot.lane.b32.xlu0 %v74, 96
  %v766 = vpop.permute.xlu0 %765
  %767 = vrot.lane.b32.xlu0 %v76, 96
  %v768 = vpop.permute.xlu0 %767
  %769 = vrot.lane.b32.xlu0 %v78, 96
  %v770 = vpop.permute.xlu0 %769
  %771 = vrot.lane.b32.xlu0 %v80, 96
  %v772 = vpop.permute.xlu0 %771
  %773 = vrot.lane.b32.xlu0 %v82, 96
  %v774 = vpop.permute.xlu0 %773
  %775 = vrot.lane.b32.xlu0 %v84, 96
  %v776 = vpop.permute.xlu0 %775
  %777 = vrot.lane.b32.xlu0 %v88, 96
  %v778 = vpop.permute.xlu0 %777
  %779 = vrot.lane.b32.xlu0 %v90, 96
  %v780 = vpop.permute.xlu0 %779
  %781 = vrot.lane.b32.xlu0 %v92, 96
  %v782 = vpop.permute.xlu0 %781
  %783 = vrot.lane.b32.xlu0 %v94, 96
  %v784 = vpop.permute.xlu0 %783
  %785 = vrot.lane.b32.xlu0 %v96, 96
  %v786 = vpop.permute.xlu0 %785
  %787 = vrot.lane.b32.xlu0 %v98, 96
  %v788 = vpop.permute.xlu0 %787
  %789 = vrot.lane.b32.xlu0 %v100, 96
  %v790 = vpop.permute.xlu0 %789
  %791 = vrot.lane.b32.xlu0 %v102, 96
  %v792 = vpop.permute.xlu0 %791
  %793 = vrot.lane.b32.xlu0 %v106, 96
  %v794 = vpop.permute.xlu0 %793
  %795 = vrot.lane.b32.xlu0 %v108, 96
  %v796 = vpop.permute.xlu0 %795
  %797 = vrot.lane.b32.xlu0 %v110, 96
  %v798 = vpop.permute.xlu0 %797
  %799 = vrot.lane.b32.xlu0 %v112, 96
  %v800 = vpop.permute.xlu0 %799
  %801 = vrot.lane.b32.xlu0 %v114, 96
  %v802 = vpop.permute.xlu0 %801
  %803 = vrot.lane.b32.xlu0 %v116, 96
  %v804 = vpop.permute.xlu0 %803
  %805 = vrot.lane.b32.xlu0 %v118, 96
  %v806 = vpop.permute.xlu0 %805
  %807 = vrot.lane.b32.xlu0 %v120, 96
  %v808 = vpop.permute.xlu0 %807
  %809 = vrot.lane.b32.xlu0 %v124, 96
  %v810 = vpop.permute.xlu0 %809
  %811 = vrot.lane.b32.xlu0 %v126, 96
  %v812 = vpop.permute.xlu0 %811
  %813 = vrot.lane.b32.xlu0 %v128, 96
  %v814 = vpop.permute.xlu0 %813
  %815 = vrot.lane.b32.xlu0 %v130, 96
  %v816 = vpop.permute.xlu0 %815
  %817 = vrot.lane.b32.xlu0 %v132, 96
  %v818 = vpop.permute.xlu0 %817
  %819 = vrot.lane.b32.xlu0 %v134, 96
  %v820 = vpop.permute.xlu0 %819
  %821 = vrot.lane.b32.xlu0 %v136, 96
  %v822 = vpop.permute.xlu0 %821
  %823 = vrot.lane.b32.xlu0 %v138, 96
  %v824 = vpop.permute.xlu0 %823
  %825 = vrot.lane.b32.xlu0 %v142, 96
  %v826 = vpop.permute.xlu0 %825
  %827 = vrot.lane.b32.xlu0 %v144, 96
  %v828 = vpop.permute.xlu0 %827
  %829 = vrot.lane.b32.xlu0 %v146, 96
  %v830 = vpop.permute.xlu0 %829
  %831 = vrot.lane.b32.xlu0 %v148, 96
  %v832 = vpop.permute.xlu0 %831
  %833 = vrot.lane.b32.xlu0 %v150, 96
  %v834 = vpop.permute.xlu0 %833
  %835 = vrot.lane.b32.xlu0 %v152, 96
  %v836 = vpop.permute.xlu0 %835
  %837 = vrot.lane.b32.xlu0 %v154, 96
  %v838 = vpop.permute.xlu0 %837
  %839 = vrot.lane.b32.xlu0 %v156, 96
  %v840 = vpop.permute.xlu0 %839
  %841 = vrot.lane.b32.xlu0 %v160, 96
  %v842 = vpop.permute.xlu0 %841
  %843 = vrot.lane.b32.xlu0 %v162, 96
  %v844 = vpop.permute.xlu0 %843
  %845 = vrot.lane.b32.xlu0 %v164, 96
  %v846 = vpop.permute.xlu0 %845
  %847 = vrot.lane.b32.xlu0 %v166, 96
  %v848 = vpop.permute.xlu0 %847
  %849 = vrot.lane.b32.xlu0 %v168, 96
  %v850 = vpop.permute.xlu0 %849
  %851 = vrot.lane.b32.xlu0 %v170, 96
  %v852 = vpop.permute.xlu0 %851
  %853 = vrot.lane.b32.xlu0 %v172, 96
  %v854 = vpop.permute.xlu0 %853
  %855 = vrot.lane.b32.xlu0 %v174, 96
  %v856 = vpop.permute.xlu0 %855
  %921 = vrot.lane.b32.xlu0 %v310, 16
  %v922 = vpop.permute.xlu0 %921
  %923 = vrot.lane.b32.xlu0 %v313, 16
  %v924 = vpop.permute.xlu0 %923
  %925 = vrot.lane.b32.xlu0 %v316, 16
  %v926 = vpop.permute.xlu0 %925
  %927 = vrot.lane.b32.xlu0 %v319, 16
  %v928 = vpop.permute.xlu0 %927
  %929 = vrot.lane.b32.xlu0 %v322, 16
  %v930 = vpop.permute.xlu0 %929
  %931 = vrot.lane.b32.xlu0 %v325, 16
  %v932 = vpop.permute.xlu0 %931
  %933 = vrot.lane.b32.xlu0 %v328, 16
  %v934 = vpop.permute.xlu0 %933
  %935 = vrot.lane.b32.xlu0 %v515, 16
  %v936 = vpop.permute.xlu0 %935
  %937 = vrot.lane.b32.xlu0 %v334, 16
  %v938 = vpop.permute.xlu0 %937
  %939 = vrot.lane.b32.xlu0 %v337, 16
  %v940 = vpop.permute.xlu0 %939
  %941 = vrot.lane.b32.xlu0 %v340, 16
  %v942 = vpop.permute.xlu0 %941
  %943 = vrot.lane.b32.xlu0 %v343, 16
  %v944 = vpop.permute.xlu0 %943
  %945 = vrot.lane.b32.xlu0 %v346, 16
  %v946 = vpop.permute.xlu0 %945
  %947 = vrot.lane.b32.xlu0 %v349, 16
  %v948 = vpop.permute.xlu0 %947
  %949 = vrot.lane.b32.xlu0 %v352, 16
  %v950 = vpop.permute.xlu0 %949
  %951 = vrot.lane.b32.xlu0 %v518, 16
  %v952 = vpop.permute.xlu0 %951
  %953 = vrot.lane.b32.xlu0 %v358, 16
  %v954 = vpop.permute.xlu0 %953
  %955 = vrot.lane.b32.xlu0 %v361, 16
  %v956 = vpop.permute.xlu0 %955
  %957 = vrot.lane.b32.xlu0 %v364, 16
  %v958 = vpop.permute.xlu0 %957
  %959 = vrot.lane.b32.xlu0 %v367, 16
  %v960 = vpop.permute.xlu0 %959
  %961 = vrot.lane.b32.xlu0 %v370, 16
  %v962 = vpop.permute.xlu0 %961
  %963 = vrot.lane.b32.xlu0 %v373, 16
  %v964 = vpop.permute.xlu0 %963
  %965 = vrot.lane.b32.xlu0 %v376, 16
  %v966 = vpop.permute.xlu0 %965
  %967 = vrot.lane.b32.xlu0 %v521, 16
  %v968 = vpop.permute.xlu0 %967
  %969 = vrot.lane.b32.xlu0 %v382, 16
  %v970 = vpop.permute.xlu0 %969
  %971 = vrot.lane.b32.xlu0 %v385, 16
  %v972 = vpop.permute.xlu0 %971
  %973 = vrot.lane.b32.xlu0 %v388, 16
  %v974 = vpop.permute.xlu0 %973
  %975 = vrot.lane.b32.xlu0 %v391, 16
  %v976 = vpop.permute.xlu0 %975
  %977 = vrot.lane.b32.xlu0 %v394, 16
  %v978 = vpop.permute.xlu0 %977
  %979 = vrot.lane.b32.xlu0 %v397, 16
  %v980 = vpop.permute.xlu0 %979
  %981 = vrot.lane.b32.xlu0 %v400, 16
  %v982 = vpop.permute.xlu0 %981
  %983 = vrot.lane.b32.xlu0 %v524, 16
  %v984 = vpop.permute.xlu0 %983
  %985 = vrot.lane.b32.xlu0 %v406, 16
  %v986 = vpop.permute.xlu0 %985
  %987 = vrot.lane.b32.xlu0 %v409, 16
  %v988 = vpop.permute.xlu0 %987
  %989 = vrot.lane.b32.xlu0 %v412, 16
  %v990 = vpop.permute.xlu0 %989
  %991 = vrot.lane.b32.xlu0 %v415, 16
  %v992 = vpop.permute.xlu0 %991
  %993 = vrot.lane.b32.xlu0 %v418, 16
  %v994 = vpop.permute.xlu0 %993
  %995 = vrot.lane.b32.xlu0 %v421, 16
  %v996 = vpop.permute.xlu0 %995
  %997 = vrot.lane.b32.xlu0 %v424, 16
  %v998 = vpop.permute.xlu0 %997
  %999 = vrot.lane.b32.xlu0 %v527, 16
  %v1000 = vpop.permute.xlu0 %999
  %1001 = vrot.lane.b32.xlu0 %v430, 16
  %v1002 = vpop.permute.xlu0 %1001
  %1003 = vrot.lane.b32.xlu0 %v433, 16
  %v1004 = vpop.permute.xlu0 %1003
  %1005 = vrot.lane.b32.xlu0 %v436, 16
  %v1006 = vpop.permute.xlu0 %1005
  %1007 = vrot.lane.b32.xlu0 %v439, 16
  %v1008 = vpop.permute.xlu0 %1007
  %1009 = vrot.lane.b32.xlu0 %v442, 16
  %v1010 = vpop.permute.xlu0 %1009
  %1011 = vrot.lane.b32.xlu0 %v445, 16
  %v1012 = vpop.permute.xlu0 %1011
  %1013 = vrot.lane.b32.xlu0 %v448, 16
  %v1014 = vpop.permute.xlu0 %1013
  %1015 = vrot.lane.b32.xlu0 %v530, 16
  %v1016 = vpop.permute.xlu0 %1015
  %1017 = vrot.lane.b32.xlu0 %v454, 16
  %v1018 = vpop.permute.xlu0 %1017
  %1019 = vrot.lane.b32.xlu0 %v457, 16
  %v1020 = vpop.permute.xlu0 %1019
  %1021 = vrot.lane.b32.xlu0 %v460, 16
  %v1022 = vpop.permute.xlu0 %1021
  %1023 = vrot.lane.b32.xlu0 %v463, 16
  %v1024 = vpop.permute.xlu0 %1023
  %1025 = vrot.lane.b32.xlu0 %v466, 16
  %v1026 = vpop.permute.xlu0 %1025
  %1027 = vrot.lane.b32.xlu0 %v469, 16
  %v1028 = vpop.permute.xlu0 %1027
  %1029 = vrot.lane.b32.xlu0 %v472, 16
  %v1030 = vpop.permute.xlu0 %1029
  %1031 = vrot.lane.b32.xlu0 %v533, 16
  %v1032 = vpop.permute.xlu0 %1031
  %1033 = vrot.lane.b32.xlu0 %v478, 16
  %v1034 = vpop.permute.xlu0 %1033
  %1035 = vrot.lane.b32.xlu0 %v481, 16
  %v1036 = vpop.permute.xlu0 %1035
  %1037 = vrot.lane.b32.xlu0 %v484, 16
  %v1038 = vpop.permute.xlu0 %1037
  %1039 = vrot.lane.b32.xlu0 %v487, 16
  %v1040 = vpop.permute.xlu0 %1039
  %1041 = vrot.lane.b32.xlu0 %v490, 16
  %v1042 = vpop.permute.xlu0 %1041
  %1043 = vrot.lane.b32.xlu0 %v493, 16
  %v1044 = vpop.permute.xlu0 %1043
  %1045 = vrot.lane.b32.xlu0 %v496, 16
  %v1046 = vpop.permute.xlu0 %1045
  %1047 = vrot.lane.b32.xlu0 %v536, 16
  %v1048 = vpop.permute.xlu0 %1047
  %vm1113 = vcmask 392192
  %v1114 = vsel %vm1113, %v32, %v538
  %v1115 = vsel %vm1113, %v34, %v540
  %v1116 = vsel %vm1113, %v36, %v542
  %v1117 = vsel %vm1113, %v38, %v544
  %v1118 = vsel %vm1113, %v40, %v546
  %v1119 = vsel %vm1113, %v42, %v548
  %v1120 = vsel %vm1113, %v44, %v550
  %v1121 = vsel %vm1113, %v46, %v552
  %v1122 = vsel %vm1113, %v50, %v554
  %v1123 = vsel %vm1113, %v52, %v556
  %v1124 = vsel %vm1113, %v54, %v558
  %v1125 = vsel %vm1113, %v56, %v560
  %v1126 = vsel %vm1113, %v58, %v562
  %v1127 = vsel %vm1113, %v60, %v564
  %v1128 = vsel %vm1113, %v62, %v566
  %v1129 = vsel %vm1113, %v64, %v568
  %v1130 = vsel %vm1113, %v68, %v570
  %v1131 = vsel %vm1113, %v70, %v572
  %v1132 = vsel %vm1113, %v72, %v574
  %v1133 = vsel %vm1113, %v74, %v576
  %v1134 = vsel %vm1113, %v76, %v578
  %v1135 = vsel %vm1113, %v78, %v580
  %v1136 = vsel %vm1113, %v80, %v582
  %v1137 = vsel %vm1113, %v82, %v584
  %v1138 = vsel %vm1113, %v86, %v586
  %v1139 = vsel %vm1113, %v88, %v588
  %v1140 = vsel %vm1113, %v90, %v590
  %v1141 = vsel %vm1113, %v92, %v592
  %v1142 = vsel %vm1113, %v94, %v594
  %v1143 = vsel %vm1113, %v96, %v596
  %v1144 = vsel %vm1113, %v98, %v598
  %v1145 = vsel %vm1113, %v100, %v600
  %v1146 = vsel %vm1113, %v104, %v602
  %v1147 = vsel %vm1113, %v106, %v604
  %v1148 = vsel %vm1113, %v108, %v606
  %v1149 = vsel %vm1113, %v110, %v608
  %v1150 = vsel %vm1113, %v112, %v610
  %v1151 = vsel %vm1113, %v114, %v612
  %v1152 = vsel %vm1113, %v116, %v614
  %v1153 = vsel %vm1113, %v118, %v616
  %v1154 = vsel %vm1113, %v122, %v618
  %v1155 = vsel %vm1113, %v124, %v620
  %v1156 = vsel %vm1113, %v126, %v622
  %v1157 = vsel %vm1113, %v128, %v624
  %v1158 = vsel %vm1113, %v130, %v626
  %v1159 = vsel %vm1113, %v132, %v628
  %v1160 = vsel %vm1113, %v134, %v630
  %v1161 = vsel %vm1113, %v136, %v632
  %v1162 = vsel %vm1113, %v140, %v634
  %v1163 = vsel %vm1113, %v142, %v636
  %v1164 = vsel %vm1113, %v144, %v638
  %v1165 = vsel %vm1113, %v146, %v640
  %v1166 = vsel %vm1113, %v148, %v642
  %v1167 = vsel %vm1113, %v150, %v644
  %v1168 = vsel %vm1113, %v152, %v646
  %v1169 = vsel %vm1113, %v154, %v648
  %v1170 = vsel %vm1113, %v158, %v650
  %v1171 = vsel %vm1113, %v160, %v652
  %v1172 = vsel %vm1113, %v162, %v654
  %v1173 = vsel %vm1113, %v164, %v656
  %v1174 = vsel %vm1113, %v166, %v658
  %v1175 = vsel %vm1113, %v168, %v660
  %v1176 = vsel %vm1113, %v170, %v662
  %v1177 = vsel %vm1113, %v172, %v664
  %vm1178 = vcmask 785408
  %v1179 = vsel %vm1178, %v1114, %v730
  %v1180 = vsel %vm1178, %v1115, %v732
  %v1181 = vsel %vm1178, %v1116, %v734
  %v1182 = vsel %vm1178, %v1117, %v736
  %v1183 = vsel %vm1178, %v1118, %v738
  %v1184 = vsel %vm1178, %v1119, %v740
  %v1185 = vsel %vm1178, %v1120, %v742
  %v1186 = vsel %vm1178, %v1121, %v744
  %v1187 = vsel %vm1178, %v1122, %v746
  %v1188 = vsel %vm1178, %v1123, %v748
  %v1189 = vsel %vm1178, %v1124, %v750
  %v1190 = vsel %vm1178, %v1125, %v752
  %v1191 = vsel %vm1178, %v1126, %v754
  %v1192 = vsel %vm1178, %v1127, %v756
  %v1193 = vsel %vm1178, %v1128, %v758
  %v1194 = vsel %vm1178, %v1129, %v760
  %v1195 = vsel %vm1178, %v1130, %v762
  %v1196 = vsel %vm1178, %v1131, %v764
  %v1197 = vsel %vm1178, %v1132, %v766
  %v1198 = vsel %vm1178, %v1133, %v768
  %v1199 = vsel %vm1178, %v1134, %v770
  %v1200 = vsel %vm1178, %v1135, %v772
  %v1201 = vsel %vm1178, %v1136, %v774
  %v1202 = vsel %vm1178, %v1137, %v776
  %v1203 = vsel %vm1178, %v1138, %v778
  %v1204 = vsel %vm1178, %v1139, %v780
  %v1205 = vsel %vm1178, %v1140, %v782
  %v1206 = vsel %vm1178, %v1141, %v784
  %v1207 = vsel %vm1178, %v1142, %v786
  %v1208 = vsel %vm1178, %v1143, %v788
  %v1209 = vsel %vm1178, %v1144, %v790
  %v1210 = vsel %vm1178, %v1145, %v792
  %v1211 = vsel %vm1178, %v1146, %v794
  %v1212 = vsel %vm1178, %v1147, %v796
  %v1213 = vsel %vm1178, %v1148, %v798
  %v1214 = vsel %vm1178, %v1149, %v800
  %v1215 = vsel %vm1178, %v1150, %v802
  %v1216 = vsel %vm1178, %v1151, %v804
  %v1217 = vsel %vm1178, %v1152, %v806
  %v1218 = vsel %vm1178, %v1153, %v808
  %v1219 = vsel %vm1178, %v1154, %v810
  %v1220 = vsel %vm1178, %v1155, %v812
  %v1221 = vsel %vm1178, %v1156, %v814
  %v1222 = vsel %vm1178, %v1157, %v816
  %v1223 = vsel %vm1178, %v1158, %v818
  %v1224 = vsel %vm1178, %v1159, %v820
  %v1225 = vsel %vm1178, %v1160, %v822
  %v1226 = vsel %vm1178, %v1161, %v824
  %v1227 = vsel %vm1178, %v1162, %v826
  %v1228 = vsel %vm1178, %v1163, %v828
  %v1229 = vsel %vm1178, %v1164, %v830
  %v1230 = vsel %vm1178, %v1165, %v832
  %v1231 = vsel %vm1178, %v1166, %v834
  %v1232 = vsel %vm1178, %v1167, %v836
  %v1233 = vsel %vm1178, %v1168, %v838
  %v1234 = vsel %vm1178, %v1169, %v840
  %v1235 = vsel %vm1178, %v1170, %v842
  %v1236 = vsel %vm1178, %v1171, %v844
  %v1237 = vsel %vm1178, %v1172, %v846
  %v1238 = vsel %vm1178, %v1173, %v848
  %v1239 = vsel %vm1178, %v1174, %v850
  %v1240 = vsel %vm1178, %v1175, %v852
  %v1241 = vsel %vm1178, %v1176, %v854
  %v1242 = vsel %vm1178, %v1177, %v856
  %vm1243 = vcmask 130048
  %v1244 = vsel %vm1243, %v730, %v922
  %v1245 = vsel %vm1243, %v732, %v924
  %v1246 = vsel %vm1243, %v734, %v926
  %v1247 = vsel %vm1243, %v736, %v928
  %v1248 = vsel %vm1243, %v738, %v930
  %v1249 = vsel %vm1243, %v740, %v932
  %v1250 = vsel %vm1243, %v742, %v934
  %v1251 = vsel %vm1243, %v744, %v936
  %v1252 = vsel %vm1243, %v746, %v938
  %v1253 = vsel %vm1243, %v748, %v940
  %v1254 = vsel %vm1243, %v750, %v942
  %v1255 = vsel %vm1243, %v752, %v944
  %v1256 = vsel %vm1243, %v754, %v946
  %v1257 = vsel %vm1243, %v756, %v948
  %v1258 = vsel %vm1243, %v758, %v950
  %v1259 = vsel %vm1243, %v760, %v952
  %v1260 = vsel %vm1243, %v762, %v954
  %v1261 = vsel %vm1243, %v764, %v956
  %v1262 = vsel %vm1243, %v766, %v958
  %v1263 = vsel %vm1243, %v768, %v960
  %v1264 = vsel %vm1243, %v770, %v962
  %v1265 = vsel %vm1243, %v772, %v964
  %v1266 = vsel %vm1243, %v774, %v966
  %v1267 = vsel %vm1243, %v776, %v968
  %v1268 = vsel %vm1243, %v778, %v970
  %v1269 = vsel %vm1243, %v780, %v972
  %v1270 = vsel %vm1243, %v782, %v974
  %v1271 = vsel %vm1243, %v784, %v976
  %v1272 = vsel %vm1243, %v786, %v978
  %v1273 = vsel %vm1243, %v788, %v980
  %v1274 = vsel %vm1243, %v790, %v982
  %v1275 = vsel %vm1243, %v792, %v984
  %v1276 = vsel %vm1243, %v794, %v986
  %v1277 = vsel %vm1243, %v796, %v988
  %v1278 = vsel %vm1243, %v798, %v990
  %v1279 = vsel %vm1243, %v800, %v992
  %v1280 = vsel %vm1243, %v802, %v994
  %v1281 = vsel %vm1243, %v804, %v996
  %v1282 = vsel %vm1243, %v806, %v998
  %v1283 = vsel %vm1243, %v808, %v1000
  %v1284 = vsel %vm1243, %v810, %v1002
  %v1285 = vsel %vm1243, %v812, %v1004
  %v1286 = vsel %vm1243, %v814, %v1006
  %v1287 = vsel %vm1243, %v816, %v1008
  %v1288 = vsel %vm1243, %v818, %v1010
  %v1289 = vsel %vm1243, %v820, %v1012
  %v1290 = vsel %vm1243, %v822, %v1014
  %v1291 = vsel %vm1243, %v824, %v1016
  %v1292 = vsel %vm1243, %v826, %v1018
  %v1293 = vsel %vm1243, %v828, %v1020
  %v1294 = vsel %vm1243, %v830, %v1022
  %v1295 = vsel %vm1243, %v832, %v1024
  %v1296 = vsel %vm1243, %v834, %v1026
  %v1297 = vsel %vm1243, %v836, %v1028
  %v1298 = vsel %vm1243, %v838, %v1030
  %v1299 = vsel %vm1243, %v840, %v1032
  %v1300 = vsel %vm1243, %v842, %v1034
  %v1301 = vsel %vm1243, %v844, %v1036
  %v1302 = vsel %vm1243, %v846, %v1038
  %v1303 = vsel %vm1243, %v848, %v1040
  %v1304 = vsel %vm1243, %v850, %v1042
  %v1305 = vsel %vm1243, %v852, %v1044
  %v1306 = vsel %vm1243, %v854, %v1046
  %v1307 = vsel %vm1243, %v856, %v1048
  %v1308 = vld [vmem:[%s1] sm:$0xff]
  %v1309 = vld [vmem:[%s1 + $0x8] sm:$0xff]
  %v1310 = vld [vmem:[%s1 + $0x10] sm:$0xff]
  %v1311 = vld [vmem:[%s1 + $0x18] sm:$0xff]
  %v1312 = vld [vmem:[%s1 + $0x20] sm:$0xff]
  %v1313 = vld [vmem:[%s1 + $0x28] sm:$0xff]
  %v1314 = vld [vmem:[%s1 + $0x30] sm:$0xff]
  %v1315 = vld [vmem:[%s1 + $0x38] sm:$0xff]
  %v1316 = vld [vmem:[%s1 + $0x40] sm:$0xff]
  %v1317 = vld [vmem:[%s1 + $0x48] sm:$0xff]
  %v1318 = vld [vmem:[%s1 + $0x50] sm:$0xff]
  %v1319 = vld [vmem:[%s1 + $0x58] sm:$0xff]
  %v1320 = vld [vmem:[%s1 + $0x60] sm:$0xff]
  %v1321 = vld [vmem:[%s1 + $0x68] sm:$0xff]
  %v1322 = vld [vmem:[%s1 + $0x70] sm:$0xff]
  %v1323 = vld [vmem:[%s1 + $0x78] sm:$0xff]
  %v1324 = vld [vmem:[%s1 + $0x80] sm:$0xff]
  %v1325 = vld [vmem:[%s1 + $0x88] sm:$0xff]
  %v1326 = vld [vmem:[%s1 + $0x90] sm:$0xff]
  %v1327 = vld [vmem:[%s1 + $0x98] sm:$0xff]
  %v1328 = vld [vmem:[%s1 + $0xa0] sm:$0xff]
  %v1329 = vld [vmem:[%s1 + $0xa8] sm:$0xff]
  %v1330 = vld [vmem:[%s1 + $0xb0] sm:$0xff]
  %v1331 = vld [vmem:[%s1 + $0xb8] sm:$0xff]
  %v1332 = vld [vmem:[%s1 + $0xc0] sm:$0xff]
  %v1333 = vld [vmem:[%s1 + $0xc8] sm:$0xff]
  %v1334 = vld [vmem:[%s1 + $0xd0] sm:$0xff]
  %v1335 = vld [vmem:[%s1 + $0xd8] sm:$0xff]
  %v1336 = vld [vmem:[%s1 + $0xe0] sm:$0xff]
  %v1337 = vld [vmem:[%s1 + $0xe8] sm:$0xff]
  %v1338 = vld [vmem:[%s1 + $0xf0] sm:$0xff]
  %v1339 = vld [vmem:[%s1 + $0xf8] sm:$0xff]
  %v1340 = vld [vmem:[%s1 + $0x100] sm:$0xff]
  %v1341 = vld [vmem:[%s1 + $0x108] sm:$0xff]
  %v1342 = vld [vmem:[%s1 + $0x110] sm:$0xff]
  %v1343 = vld [vmem:[%s1 + $0x118] sm:$0xff]
  %v1344 = vld [vmem:[%s1 + $0x120] sm:$0xff]
  %v1345 = vld [vmem:[%s1 + $0x128] sm:$0xff]
  %v1346 = vld [vmem:[%s1 + $0x130] sm:$0xff]
  %v1347 = vld [vmem:[%s1 + $0x138] sm:$0xff]
  %v1348 = vld [vmem:[%s1 + $0x140] sm:$0xff]
  %v1349 = vld [vmem:[%s1 + $0x148] sm:$0xff]
  %v1350 = vld [vmem:[%s1 + $0x150] sm:$0xff]
  %v1351 = vld [vmem:[%s1 + $0x158] sm:$0xff]
  %v1352 = vld [vmem:[%s1 + $0x160] sm:$0xff]
  %v1353 = vld [vmem:[%s1 + $0x168] sm:$0xff]
  %v1354 = vld [vmem:[%s1 + $0x170] sm:$0xff]
  %v1355 = vld [vmem:[%s1 + $0x178] sm:$0xff]
  %vm1356 = vcmask 523264
  %v1358 = vsel %vm1356, %v1244, 0
  %v1361 = vsel %vm1356, %v1245, 0
  %v1364 = vsel %vm1356, %v1246, 0
  %v1367 = vsel %vm1356, %v1247, 0
  %v1370 = vsel %vm1356, %v1248, 0
  %v1373 = vsel %vm1356, %v1249, 0
  %v1376 = vsel %vm1356, %v1250, 0
  %v1379 = vsel %vm1356, %v1251, 0
  %v1382 = vsel %vm1356, %v1252, 0
  %v1385 = vsel %vm1356, %v1253, 0
  %v1388 = vsel %vm1356, %v1254, 0
  %v1391 = vsel %vm1356, %v1255, 0
  %v1394 = vsel %vm1356, %v1256, 0
  %v1397 = vsel %vm1356, %v1257, 0
  %v1400 = vsel %vm1356, %v1258, 0
  %v1403 = vsel %vm1356, %v1259, 0
  %v1406 = vsel %vm1356, %v1260, 0
  %v1409 = vsel %vm1356, %v1261, 0
  %v1412 = vsel %vm1356, %v1262, 0
  %v1415 = vsel %vm1356, %v1263, 0
  %v1418 = vsel %vm1356, %v1264, 0
  %v1421 = vsel %vm1356, %v1265, 0
  %v1424 = vsel %vm1356, %v1266, 0
  %v1427 = vsel %vm1356, %v1267, 0
  %v1430 = vsel %vm1356, %v1268, 0
  %v1433 = vsel %vm1356, %v1269, 0
  %v1436 = vsel %vm1356, %v1270, 0
  %v1439 = vsel %vm1356, %v1271, 0
  %v1442 = vsel %vm1356, %v1272, 0
  %v1445 = vsel %vm1356, %v1273, 0
  %v1448 = vsel %vm1356, %v1274, 0
  %v1451 = vsel %vm1356, %v1275, 0
  %v1454 = vsel %vm1356, %v1276, 0
  %v1457 = vsel %vm1356, %v1277, 0
  %v1460 = vsel %vm1356, %v1278, 0
  %v1463 = vsel %vm1356, %v1279, 0
  %v1466 = vsel %vm1356, %v1280, 0
  %v1469 = vsel %vm1356, %v1281, 0
  %v1472 = vsel %vm1356, %v1282, 0
  %v1475 = vsel %vm1356, %v1283, 0
  %v1478 = vsel %vm1356, %v1284, 0
  %v1481 = vsel %vm1356, %v1285, 0
  %v1484 = vsel %vm1356, %v1286, 0
  %v1487 = vsel %vm1356, %v1287, 0
  %v1490 = vsel %vm1356, %v1288, 0
  %v1493 = vsel %vm1356, %v1289, 0
  %v1496 = vsel %vm1356, %v1290, 0
  %v1499 = vsel %vm1356, %v1291, 0
  %v1502 = vsel %vm1356, %v1292, 0
  %v1505 = vsel %vm1356, %v1293, 0
  %v1508 = vsel %vm1356, %v1294, 0
  %v1511 = vsel %vm1356, %v1295, 0
  %v1514 = vsel %vm1356, %v1296, 0
  %v1517 = vsel %vm1356, %v1297, 0
  %v1520 = vsel %vm1356, %v1298, 0
  %v1523 = vsel %vm1356, %v1299, 0
  %v1526 = vsel %vm1356, %v1300, 0
  %v1529 = vsel %vm1356, %v1301, 0
  %v1532 = vsel %vm1356, %v1302, 0
  %v1535 = vsel %vm1356, %v1303, 0
  %v1538 = vsel %vm1356, %v1304, 0
  %v1541 = vsel %vm1356, %v1305, 0
  %v1544 = vsel %vm1356, %v1306, 0
  %v1547 = vsel %vm1356, %v1307, 0
  %1549 = vmatprep.subr.mxu0 %v1309
  %1550 = vmatpush1.msra.mxu0 %v1308
  %1551 = vmatprep.subr.mxu0 %v1311
  %1552 = vmatpush1.msra.mxu0 %v1310
  %1553 = vmatprep.subr.mxu0 %v1313
  %1554 = vmatpush1.msra.mxu0 %v1312
  %1555 = vmatprep.subr.mxu0 %v1315
  %1556 = vmatpush1.msra.mxu0 %v1314
  %1557 = vmatprep.subr.mxu0 %v1317
  %1558 = vmatpush1.msra.mxu0 %v1316
  %1559 = vmatprep.subr.mxu0 %v1319
  %1560 = vmatpush1.msra.mxu0 %v1318
  %1561 = vmatprep.subr.mxu0 %v1321
  %1562 = vmatpush1.msra.mxu0 %v1320
  %1563 = vmatprep.subr.mxu0 %v1323
  %1564 = vmatpush1.msra.mxu0 %v1322
  %1565 = vmatprep.subr.mxu0 %v1325
  %1566 = vmatpush1.msra.mxu0 %v1324
  %1567 = vmatprep.subr.mxu0 %v1327
  %1568 = vmatpush1.msra.mxu0 %v1326
  %1569 = vmatprep.subr.mxu0 %v1329
  %1570 = vmatpush1.msra.mxu0 %v1328
  %1571 = vmatprep.subr.mxu0 %v1331
  %1572 = vmatpush1.msra.mxu0 %v1330
  %1573 = vmatprep.subr.mxu0 %v1333
  %1574 = vmatpush1.msra.mxu0 %v1332
  %1575 = vmatprep.subr.mxu0 %v1335
  %1576 = vmatpush1.msra.mxu0 %v1334
  %1577 = vmatprep.subr.mxu0 %v1337
  %1578 = vmatpush1.msra.mxu0 %v1336
  %1579 = vmatprep.subr.mxu0 %v1339
  %1580 = vmatpush1.msra.mxu0 %v1338
  %1581 = vmatprep.subr.mxu0 %v1341
  %1582 = vmatpush1.msra.mxu0 %v1340
  %1583 = vmatprep.subr.mxu0 %v1343
  %1584 = vmatpush1.msra.mxu0 %v1342
  %1585 = vmatprep.subr.mxu0 %v1345
  %1586 = vmatpush1.msra.mxu0 %v1344
  %1587 = vmatprep.subr.mxu0 %v1347
  %1588 = vmatpush1.msra.mxu0 %v1346
  %1589 = vmatprep.subr.mxu0 %v1349
  %1590 = vmatpush1.msra.mxu0 %v1348
  %1591 = vmatprep.subr.mxu0 %v1351
  %1592 = vmatpush1.msra.mxu0 %v1350
  %1593 = vmatprep.subr.mxu0 %v1353
  %1594 = vmatpush1.msra.mxu0 %v1352
  %1595 = vmatprep.subr.mxu0 %v1355
  %1596 = vmatpush1.msra.mxu0 %v1354
  %1597 = vmatprep.subr.mxu0 0.0
  %1598 = vmatpush1.msra.mxu0 0.0
  %1599 = vmatprep.subr.mxu0 0.0
  %1600 = vmatpush1.msra.mxu0 0.0
  %1601 = vmatprep.subr.mxu0 0.0
  %1602 = vmatpush1.msra.mxu0 0.0
  %1603 = vmatprep.subr.mxu0 0.0
  %1604 = vmatpush1.msra.mxu0 0.0
  %1605 = vmatprep.subr.mxu0 0.0
  %1606 = vmatpush1.msra.mxu0 0.0
  %1607 = vmatprep.subr.mxu0 0.0
  %1608 = vmatpush1.msra.mxu0 0.0
  %1609 = vmatprep.subr.mxu0 0.0
  %1610 = vmatpush1.msra.mxu0 0.0
  %1611 = vmatprep.subr.mxu0 0.0
  %1612 = vmatpush1.msra.mxu0 0.0
  %1613 = vmatprep.mubr.f32.mxu0 %v1358
  %1614 = vmatmul.mubr.f32.gmra.mrb[0].mxu0 %v1179
  %v1615 = vpop.f32.mrb[0].mxu0
  %v1616 = vadd.f32 0.0, %v1615
  %v1617 = vpop.f32.mrb[0].mxu0
  %v1618 = vadd.f32 0.0, %v1617
  %1619 = vmatprep.mubr.f32.mxu0 %v1361
  %1620 = vmatmul.mubr.f32.gmra.mrb[0].mxu0 %v1180
  %v1621 = vpop.f32.mrb[0].mxu0
  %v1622 = vadd.f32 0.0, %v1621
  %v1623 = vpop.f32.mrb[0].mxu0
  %v1624 = vadd.f32 0.0, %v1623
  %1625 = vmatprep.mubr.f32.mxu0 %v1364
  %1626 = vmatmul.mubr.f32.gmra.mrb[0].mxu0 %v1181
  %v1627 = vpop.f32.mrb[0].mxu0
  %v1628 = vadd.f32 0.0, %v1627
  %v1629 = vpop.f32.mrb[0].mxu0
  %v1630 = vadd.f32 0.0, %v1629
  %1631 = vmatprep.mubr.f32.mxu0 %v1367
  %1632 = vmatmul.mubr.f32.gmra.mrb[0].mxu0 %v1182
  %v1633 = vpop.f32.mrb[0].mxu0
  %v1634 = vadd.f32 0.0, %v1633
  %v1635 = vpop.f32.mrb[0].mxu0
  %v1636 = vadd.f32 0.0, %v1635
  %1637 = vmatprep.mubr.f32.mxu0 %v1370
  %1638 = vmatmul.mubr.f32.gmra.mrb[0].mxu0 %v1183
  %v1639 = vpop.f32.mrb[0].mxu0
  %v1640 = vadd.f32 0.0, %v1639
  %v1641 = vpop.f32.mrb[0].mxu0
  %v1642 = vadd.f32 0.0, %v1641
  %1643 = vmatprep.mubr.f32.mxu0 %v1373
  %1644 = vmatmul.mubr.f32.gmra.mrb[0].mxu0 %v1184
  %v1645 = vpop.f32.mrb[0].mxu0
  %v1646 = vadd.f32 0.0, %v1645
  %v1647 = vpop.f32.mrb[0].mxu0
  %v1648 = vadd.f32 0.0, %v1647
  %1649 = vmatprep.mubr.f32.mxu0 %v1376
  %1650 = vmatmul.mubr.f32.gmra.mrb[0].mxu0 %v1185
  %v1651 = vpop.f32.mrb[0].mxu0
  %v1652 = vadd.f32 0.0, %v1651
  %v1653 = vpop.f32.mrb[0].mxu0
  %v1654 = vadd.f32 0.0, %v1653
  %1655 = vmatprep.mubr.f32.mxu0 %v1379
  %1656 = vmatmul.mubr.f32.gmra.mrb[0].mxu0 %v1186
  %v1657 = vpop.f32.mrb[0].mxu0
  %v1658 = vadd.f32 0.0, %v1657
  %v1659 = vpop.f32.mrb[0].mxu0
  %v1660 = vadd.f32 0.0, %v1659
  %1661 = vmatprep.mubr.f32.mxu0 %v1382
  %1662 = vmatmul.mubr.f32.gmra.mrb[0].mxu0 %v1187
  %v1663 = vpop.f32.mrb[0].mxu0
  %v1664 = vadd.f32 0.0, %v1663
  %v1665 = vpop.f32.mrb[0].mxu0
  %v1666 = vadd.f32 0.0, %v1665
  %1667 = vmatprep.mubr.f32.mxu0 %v1385
  %1668 = vmatmul.mubr.f32.gmra.mrb[0].mxu0 %v1188
  %v1669 = vpop.f32.mrb[0].mxu0
  %v1670 = vadd.f32 0.0, %v1669
  %v1671 = vpop.f32.mrb[0].mxu0
  %v1672 = vadd.f32 0.0, %v1671
  %1673 = vmatprep.mubr.f32.mxu0 %v1388
  %1674 = vmatmul.mubr.f32.gmra.mrb[0].mxu0 %v1189
  %v1675 = vpop.f32.mrb[0].mxu0
  %v1676 = vadd.f32 0.0, %v1675
  %v1677 = vpop.f32.mrb[0].mxu0
  %v1678 = vadd.f32 0.0, %v1677
  %1679 = vmatprep.mubr.f32.mxu0 %v1391
  %1680 = vmatmul.mubr.f32.gmra.mrb[0].mxu0 %v1190
  %v1681 = vpop.f32.mrb[0].mxu0
  %v1682 = vadd.f32 0.0, %v1681
  %v1683 = vpop.f32.mrb[0].mxu0
  %v1684 = vadd.f32 0.0, %v1683
  %1685 = vmatprep.mubr.f32.mxu0 %v1394
  %1686 = vmatmul.mubr.f32.gmra.mrb[0].mxu0 %v1191
  %v1687 = vpop.f32.mrb[0].mxu0
  %v1688 = vadd.f32 0.0, %v1687
  %v1689 = vpop.f32.mrb[0].mxu0
  %v1690 = vadd.f32 0.0, %v1689
  %1691 = vmatprep.mubr.f32.mxu0 %v1397
  %1692 = vmatmul.mubr.f32.gmra.mrb[0].mxu0 %v1192
  %v1693 = vpop.f32.mrb[0].mxu0
  %v1694 = vadd.f32 0.0, %v1693
  %v1695 = vpop.f32.mrb[0].mxu0
  %v1696 = vadd.f32 0.0, %v1695
  %1697 = vmatprep.mubr.f32.mxu0 %v1400
  %1698 = vmatmul.mubr.f32.gmra.mrb[0].mxu0 %v1193
  %v1699 = vpop.f32.mrb[0].mxu0
  %v1700 = vadd.f32 0.0, %v1699
  %v1701 = vpop.f32.mrb[0].mxu0
  %v1702 = vadd.f32 0.0, %v1701
  %1703 = vmatprep.mubr.f32.mxu0 %v1403
  %1704 = vmatmul.mubr.f32.gmra.mrb[0].mxu0 %v1194
  %v1705 = vpop.f32.mrb[0].mxu0
  %v1706 = vadd.f32 0.0, %v1705
  %v1707 = vpop.f32.mrb[0].mxu0
  %v1708 = vadd.f32 0.0, %v1707
  %1709 = vmatprep.mubr.f32.mxu0 %v1406
  %1710 = vmatmul.mubr.f32.gmra.mrb[0].mxu0 %v1195
  %v1711 = vpop.f32.mrb[0].mxu0
  %v1712 = vadd.f32 0.0, %v1711
  %v1713 = vpop.f32.mrb[0].mxu0
  %v1714 = vadd.f32 0.0, %v1713
  %1715 = vmatprep.mubr.f32.mxu0 %v1409
  %1716 = vmatmul.mubr.f32.gmra.mrb[0].mxu0 %v1196
  %v1717 = vpop.f32.mrb[0].mxu0
  %v1718 = vadd.f32 0.0, %v1717
  %v1719 = vpop.f32.mrb[0].mxu0
  %v1720 = vadd.f32 0.0, %v1719
  %1721 = vmatprep.mubr.f32.mxu0 %v1412
  %1722 = vmatmul.mubr.f32.gmra.mrb[0].mxu0 %v1197
  %v1723 = vpop.f32.mrb[0].mxu0
  %v1724 = vadd.f32 0.0, %v1723
  %v1725 = vpop.f32.mrb[0].mxu0
  %v1726 = vadd.f32 0.0, %v1725
  %1727 = vmatprep.mubr.f32.mxu0 %v1415
  %1728 = vmatmul.mubr.f32.gmra.mrb[0].mxu0 %v1198
  %v1729 = vpop.f32.mrb[0].mxu0
  %v1730 = vadd.f32 0.0, %v1729
  %v1731 = vpop.f32.mrb[0].mxu0
  %v1732 = vadd.f32 0.0, %v1731
  %1733 = vmatprep.mubr.f32.mxu0 %v1418
  %1734 = vmatmul.mubr.f32.gmra.mrb[0].mxu0 %v1199
  %v1735 = vpop.f32.mrb[0].mxu0
  %v1736 = vadd.f32 0.0, %v1735
  %v1737 = vpop.f32.mrb[0].mxu0
  %v1738 = vadd.f32 0.0, %v1737
  %1739 = vmatprep.mubr.f32.mxu0 %v1421
  %1740 = vmatmul.mubr.f32.gmra.mrb[0].mxu0 %v1200
  %v1741 = vpop.f32.mrb[0].mxu0
  %v1742 = vadd.f32 0.0, %v1741
  %v1743 = vpop.f32.mrb[0].mxu0
  %v1744 = vadd.f32 0.0, %v1743
  %1745 = vmatprep.mubr.f32.mxu0 %v1424
  %1746 = vmatmul.mubr.f32.gmra.mrb[0].mxu0 %v1201
  %v1747 = vpop.f32.mrb[0].mxu0
  %v1748 = vadd.f32 0.0, %v1747
  %v1749 = vpop.f32.mrb[0].mxu0
  %v1750 = vadd.f32 0.0, %v1749
  %1751 = vmatprep.mubr.f32.mxu0 %v1427
  %1752 = vmatmul.mubr.f32.gmra.mrb[0].mxu0 %v1202
  %v1753 = vpop.f32.mrb[0].mxu0
  %v1754 = vadd.f32 0.0, %v1753
  %v1755 = vpop.f32.mrb[0].mxu0
  %v1756 = vadd.f32 0.0, %v1755
  %1757 = vmatprep.mubr.f32.mxu0 %v1430
  %1758 = vmatmul.mubr.f32.gmra.mrb[0].mxu0 %v1203
  %v1759 = vpop.f32.mrb[0].mxu0
  %v1760 = vadd.f32 0.0, %v1759
  %v1761 = vpop.f32.mrb[0].mxu0
  %v1762 = vadd.f32 0.0, %v1761
  %1763 = vmatprep.mubr.f32.mxu0 %v1433
  %1764 = vmatmul.mubr.f32.gmra.mrb[0].mxu0 %v1204
  %v1765 = vpop.f32.mrb[0].mxu0
  %v1766 = vadd.f32 0.0, %v1765
  %v1767 = vpop.f32.mrb[0].mxu0
  %v1768 = vadd.f32 0.0, %v1767
  %1769 = vmatprep.mubr.f32.mxu0 %v1436
  %1770 = vmatmul.mubr.f32.gmra.mrb[0].mxu0 %v1205
  %v1771 = vpop.f32.mrb[0].mxu0
  %v1772 = vadd.f32 0.0, %v1771
  %v1773 = vpop.f32.mrb[0].mxu0
  %v1774 = vadd.f32 0.0, %v1773
  %1775 = vmatprep.mubr.f32.mxu0 %v1439
  %1776 = vmatmul.mubr.f32.gmra.mrb[0].mxu0 %v1206
  %v1777 = vpop.f32.mrb[0].mxu0
  %v1778 = vadd.f32 0.0, %v1777
  %v1779 = vpop.f32.mrb[0].mxu0
  %v1780 = vadd.f32 0.0, %v1779
  %1781 = vmatprep.mubr.f32.mxu0 %v1442
  %1782 = vmatmul.mubr.f32.gmra.mrb[0].mxu0 %v1207
  %v1783 = vpop.f32.mrb[0].mxu0
  %v1784 = vadd.f32 0.0, %v1783
  %v1785 = vpop.f32.mrb[0].mxu0
  %v1786 = vadd.f32 0.0, %v1785
  %1787 = vmatprep.mubr.f32.mxu0 %v1445
  %1788 = vmatmul.mubr.f32.gmra.mrb[0].mxu0 %v1208
  %v1789 = vpop.f32.mrb[0].mxu0
  %v1790 = vadd.f32 0.0, %v1789
  %v1791 = vpop.f32.mrb[0].mxu0
  %v1792 = vadd.f32 0.0, %v1791
  %1793 = vmatprep.mubr.f32.mxu0 %v1448
  %1794 = vmatmul.mubr.f32.gmra.mrb[0].mxu0 %v1209
  %v1795 = vpop.f32.mrb[0].mxu0
  %v1796 = vadd.f32 0.0, %v1795
  %v1797 = vpop.f32.mrb[0].mxu0
  %v1798 = vadd.f32 0.0, %v1797
  %1799 = vmatprep.mubr.f32.mxu0 %v1451
  %1800 = vmatmul.mubr.f32.gmra.mrb[0].mxu0 %v1210
  %v1801 = vpop.f32.mrb[0].mxu0
  %v1802 = vadd.f32 0.0, %v1801
  %v1803 = vpop.f32.mrb[0].mxu0
  %v1804 = vadd.f32 0.0, %v1803
  %1805 = vmatprep.mubr.f32.mxu0 %v1454
  %1806 = vmatmul.mubr.f32.gmra.mrb[0].mxu0 %v1211
  %v1807 = vpop.f32.mrb[0].mxu0
  %v1808 = vadd.f32 0.0, %v1807
  %v1809 = vpop.f32.mrb[0].mxu0
  %v1810 = vadd.f32 0.0, %v1809
  %1811 = vmatprep.mubr.f32.mxu0 %v1457
  %1812 = vmatmul.mubr.f32.gmra.mrb[0].mxu0 %v1212
  %v1813 = vpop.f32.mrb[0].mxu0
  %v1814 = vadd.f32 0.0, %v1813
  %v1815 = vpop.f32.mrb[0].mxu0
  %v1816 = vadd.f32 0.0, %v1815
  %1817 = vmatprep.mubr.f32.mxu0 %v1460
  %1818 = vmatmul.mubr.f32.gmra.mrb[0].mxu0 %v1213
  %v1819 = vpop.f32.mrb[0].mxu0
  %v1820 = vadd.f32 0.0, %v1819
  %v1821 = vpop.f32.mrb[0].mxu0
  %v1822 = vadd.f32 0.0, %v1821
  %1823 = vmatprep.mubr.f32.mxu0 %v1463
  %1824 = vmatmul.mubr.f32.gmra.mrb[0].mxu0 %v1214
  %v1825 = vpop.f32.mrb[0].mxu0
  %v1826 = vadd.f32 0.0, %v1825
  %v1827 = vpop.f32.mrb[0].mxu0
  %v1828 = vadd.f32 0.0, %v1827
  %1829 = vmatprep.mubr.f32.mxu0 %v1466
  %1830 = vmatmul.mubr.f32.gmra.mrb[0].mxu0 %v1215
  %v1831 = vpop.f32.mrb[0].mxu0
  %v1832 = vadd.f32 0.0, %v1831
  %v1833 = vpop.f32.mrb[0].mxu0
  %v1834 = vadd.f32 0.0, %v1833
  %1835 = vmatprep.mubr.f32.mxu0 %v1469
  %1836 = vmatmul.mubr.f32.gmra.mrb[0].mxu0 %v1216
  %v1837 = vpop.f32.mrb[0].mxu0
  %v1838 = vadd.f32 0.0, %v1837
  %v1839 = vpop.f32.mrb[0].mxu0
  %v1840 = vadd.f32 0.0, %v1839
  %1841 = vmatprep.mubr.f32.mxu0 %v1472
  %1842 = vmatmul.mubr.f32.gmra.mrb[0].mxu0 %v1217
  %v1843 = vpop.f32.mrb[0].mxu0
  %v1844 = vadd.f32 0.0, %v1843
  %v1845 = vpop.f32.mrb[0].mxu0
  %v1846 = vadd.f32 0.0, %v1845
  %1847 = vmatprep.mubr.f32.mxu0 %v1475
  %1848 = vmatmul.mubr.f32.gmra.mrb[0].mxu0 %v1218
  %v1849 = vpop.f32.mrb[0].mxu0
  %v1850 = vadd.f32 0.0, %v1849
  %v1851 = vpop.f32.mrb[0].mxu0
  %v1852 = vadd.f32 0.0, %v1851
  %1853 = vmatprep.mubr.f32.mxu0 %v1478
  %1854 = vmatmul.mubr.f32.gmra.mrb[0].mxu0 %v1219
  %v1855 = vpop.f32.mrb[0].mxu0
  %v1856 = vadd.f32 0.0, %v1855
  %v1857 = vpop.f32.mrb[0].mxu0
  %v1858 = vadd.f32 0.0, %v1857
  %1859 = vmatprep.mubr.f32.mxu0 %v1481
  %1860 = vmatmul.mubr.f32.gmra.mrb[0].mxu0 %v1220
  %v1861 = vpop.f32.mrb[0].mxu0
  %v1862 = vadd.f32 0.0, %v1861
  %v1863 = vpop.f32.mrb[0].mxu0
  %v1864 = vadd.f32 0.0, %v1863
  %1865 = vmatprep.mubr.f32.mxu0 %v1484
  %1866 = vmatmul.mubr.f32.gmra.mrb[0].mxu0 %v1221
  %v1867 = vpop.f32.mrb[0].mxu0
  %v1868 = vadd.f32 0.0, %v1867
  %v1869 = vpop.f32.mrb[0].mxu0
  %v1870 = vadd.f32 0.0, %v1869
  %1871 = vmatprep.mubr.f32.mxu0 %v1487
  %1872 = vmatmul.mubr.f32.gmra.mrb[0].mxu0 %v1222
  %v1873 = vpop.f32.mrb[0].mxu0
  %v1874 = vadd.f32 0.0, %v1873
  %v1875 = vpop.f32.mrb[0].mxu0
  %v1876 = vadd.f32 0.0, %v1875
  %1877 = vmatprep.mubr.f32.mxu0 %v1490
  %1878 = vmatmul.mubr.f32.gmra.mrb[0].mxu0 %v1223
  %v1879 = vpop.f32.mrb[0].mxu0
  %v1880 = vadd.f32 0.0, %v1879
  %v1881 = vpop.f32.mrb[0].mxu0
  %v1882 = vadd.f32 0.0, %v1881
  %1883 = vmatprep.mubr.f32.mxu0 %v1493
  %1884 = vmatmul.mubr.f32.gmra.mrb[0].mxu0 %v1224
  %v1885 = vpop.f32.mrb[0].mxu0
  %v1886 = vadd.f32 0.0, %v1885
  %v1887 = vpop.f32.mrb[0].mxu0
  %v1888 = vadd.f32 0.0, %v1887
  %1889 = vmatprep.mubr.f32.mxu0 %v1496
  %1890 = vmatmul.mubr.f32.gmra.mrb[0].mxu0 %v1225
  %v1891 = vpop.f32.mrb[0].mxu0
  %v1892 = vadd.f32 0.0, %v1891
  %v1893 = vpop.f32.mrb[0].mxu0
  %v1894 = vadd.f32 0.0, %v1893
  %1895 = vmatprep.mubr.f32.mxu0 %v1499
  %1896 = vmatmul.mubr.f32.gmra.mrb[0].mxu0 %v1226
  %v1897 = vpop.f32.mrb[0].mxu0
  %v1898 = vadd.f32 0.0, %v1897
  %v1899 = vpop.f32.mrb[0].mxu0
  %v1900 = vadd.f32 0.0, %v1899
  %1901 = vmatprep.mubr.f32.mxu0 %v1502
  %1902 = vmatmul.mubr.f32.gmra.mrb[0].mxu0 %v1227
  %v1903 = vpop.f32.mrb[0].mxu0
  %v1904 = vadd.f32 0.0, %v1903
  %v1905 = vpop.f32.mrb[0].mxu0
  %v1906 = vadd.f32 0.0, %v1905
  %1907 = vmatprep.mubr.f32.mxu0 %v1505
  %1908 = vmatmul.mubr.f32.gmra.mrb[0].mxu0 %v1228
  %v1909 = vpop.f32.mrb[0].mxu0
  %v1910 = vadd.f32 0.0, %v1909
  %v1911 = vpop.f32.mrb[0].mxu0
  %v1912 = vadd.f32 0.0, %v1911
  %1913 = vmatprep.mubr.f32.mxu0 %v1508
  %1914 = vmatmul.mubr.f32.gmra.mrb[0].mxu0 %v1229
  %v1915 = vpop.f32.mrb[0].mxu0
  %v1916 = vadd.f32 0.0, %v1915
  %v1917 = vpop.f32.mrb[0].mxu0
  %v1918 = vadd.f32 0.0, %v1917
  %1919 = vmatprep.mubr.f32.mxu0 %v1511
  %1920 = vmatmul.mubr.f32.gmra.mrb[0].mxu0 %v1230
  %v1921 = vpop.f32.mrb[0].mxu0
  %v1922 = vadd.f32 0.0, %v1921
  %v1923 = vpop.f32.mrb[0].mxu0
  %v1924 = vadd.f32 0.0, %v1923
  %1925 = vmatprep.mubr.f32.mxu0 %v1514
  %1926 = vmatmul.mubr.f32.gmra.mrb[0].mxu0 %v1231
  %v1927 = vpop.f32.mrb[0].mxu0
  %v1928 = vadd.f32 0.0, %v1927
  %v1929 = vpop.f32.mrb[0].mxu0
  %v1930 = vadd.f32 0.0, %v1929
  %1931 = vmatprep.mubr.f32.mxu0 %v1517
  %1932 = vmatmul.mubr.f32.gmra.mrb[0].mxu0 %v1232
  %v1933 = vpop.f32.mrb[0].mxu0
  %v1934 = vadd.f32 0.0, %v1933
  %v1935 = vpop.f32.mrb[0].mxu0
  %v1936 = vadd.f32 0.0, %v1935
  %1937 = vmatprep.mubr.f32.mxu0 %v1520
  %1938 = vmatmul.mubr.f32.gmra.mrb[0].mxu0 %v1233
  %v1939 = vpop.f32.mrb[0].mxu0
  %v1940 = vadd.f32 0.0, %v1939
  %v1941 = vpop.f32.mrb[0].mxu0
  %v1942 = vadd.f32 0.0, %v1941
  %1943 = vmatprep.mubr.f32.mxu0 %v1523
  %1944 = vmatmul.mubr.f32.gmra.mrb[0].mxu0 %v1234
  %v1945 = vpop.f32.mrb[0].mxu0
  %v1946 = vadd.f32 0.0, %v1945
  %v1947 = vpop.f32.mrb[0].mxu0
  %v1948 = vadd.f32 0.0, %v1947
  %1949 = vmatprep.mubr.f32.mxu0 %v1526
  %1950 = vmatmul.mubr.f32.gmra.mrb[0].mxu0 %v1235
  %v1951 = vpop.f32.mrb[0].mxu0
  %v1952 = vadd.f32 0.0, %v1951
  %v1953 = vpop.f32.mrb[0].mxu0
  %v1954 = vadd.f32 0.0, %v1953
  %1955 = vmatprep.mubr.f32.mxu0 %v1529
  %1956 = vmatmul.mubr.f32.gmra.mrb[0].mxu0 %v1236
  %v1957 = vpop.f32.mrb[0].mxu0
  %v1958 = vadd.f32 0.0, %v1957
  %v1959 = vpop.f32.mrb[0].mxu0
  %v1960 = vadd.f32 0.0, %v1959
  %1961 = vmatprep.mubr.f32.mxu0 %v1532
  %1962 = vmatmul.mubr.f32.gmra.mrb[0].mxu0 %v1237
  %v1963 = vpop.f32.mrb[0].mxu0
  %v1964 = vadd.f32 0.0, %v1963
  %v1965 = vpop.f32.mrb[0].mxu0
  %v1966 = vadd.f32 0.0, %v1965
  %1967 = vmatprep.mubr.f32.mxu0 %v1535
  %1968 = vmatmul.mubr.f32.gmra.mrb[0].mxu0 %v1238
  %v1969 = vpop.f32.mrb[0].mxu0
  %v1970 = vadd.f32 0.0, %v1969
  %v1971 = vpop.f32.mrb[0].mxu0
  %v1972 = vadd.f32 0.0, %v1971
  %1973 = vmatprep.mubr.f32.mxu0 %v1538
  %1974 = vmatmul.mubr.f32.gmra.mrb[0].mxu0 %v1239
  %v1975 = vpop.f32.mrb[0].mxu0
  %v1976 = vadd.f32 0.0, %v1975
  %v1977 = vpop.f32.mrb[0].mxu0
  %v1978 = vadd.f32 0.0, %v1977
  %1979 = vmatprep.mubr.f32.mxu0 %v1541
  %1980 = vmatmul.mubr.f32.gmra.mrb[0].mxu0 %v1240
  %v1981 = vpop.f32.mrb[0].mxu0
  %v1982 = vadd.f32 0.0, %v1981
  %v1983 = vpop.f32.mrb[0].mxu0
  %v1984 = vadd.f32 0.0, %v1983
  %1985 = vmatprep.mubr.f32.mxu0 %v1544
  %1986 = vmatmul.mubr.f32.gmra.mrb[0].mxu0 %v1241
  %v1987 = vpop.f32.mrb[0].mxu0
  %v1988 = vadd.f32 0.0, %v1987
  %v1989 = vpop.f32.mrb[0].mxu0
  %v1990 = vadd.f32 0.0, %v1989
  %1991 = vmatprep.mubr.f32.mxu0 %v1547
  %1992 = vmatmul.mubr.f32.gmra.mrb[0].mxu0 %v1242
  %v1993 = vpop.f32.mrb[0].mxu0
  %v1994 = vadd.f32 0.0, %v1993
  %v1995 = vpop.f32.mrb[0].mxu0
  %v1996 = vadd.f32 0.0, %v1995
  %1997 = vdwg.mxu0
  %v1998 = vld [vmem:[%s2] sm:$0x1]
  %2063 = vrot.lane.b32.xlu0 %v1616, 118
  %v2064 = vpop.permute.xlu0 %2063
  %2065 = vrot.lane.b32.xlu0 %v1622, 118
  %v2066 = vpop.permute.xlu0 %2065
  %2067 = vrot.lane.b32.xlu0 %v1628, 118
  %v2068 = vpop.permute.xlu0 %2067
  %2069 = vrot.lane.b32.xlu0 %v1634, 118
  %v2070 = vpop.permute.xlu0 %2069
  %2071 = vrot.lane.b32.xlu0 %v1640, 118
  %v2072 = vpop.permute.xlu0 %2071
  %2073 = vrot.lane.b32.xlu0 %v1646, 118
  %v2074 = vpop.permute.xlu0 %2073
  %2075 = vrot.lane.b32.xlu0 %v1652, 118
  %v2076 = vpop.permute.xlu0 %2075
  %2077 = vrot.lane.b32.xlu0 %v1658, 118
  %v2078 = vpop.permute.xlu0 %2077
  %2079 = vrot.lane.b32.xlu0 %v1664, 118
  %v2080 = vpop.permute.xlu0 %2079
  %2081 = vrot.lane.b32.xlu0 %v1670, 118
  %v2082 = vpop.permute.xlu0 %2081
  %2083 = vrot.lane.b32.xlu0 %v1676, 118
  %v2084 = vpop.permute.xlu0 %2083
  %2085 = vrot.lane.b32.xlu0 %v1682, 118
  %v2086 = vpop.permute.xlu0 %2085
  %2087 = vrot.lane.b32.xlu0 %v1688, 118
  %v2088 = vpop.permute.xlu0 %2087
  %2089 = vrot.lane.b32.xlu0 %v1694, 118
  %v2090 = vpop.permute.xlu0 %2089
  %2091 = vrot.lane.b32.xlu0 %v1700, 118
  %v2092 = vpop.permute.xlu0 %2091
  %2093 = vrot.lane.b32.xlu0 %v1706, 118
  %v2094 = vpop.permute.xlu0 %2093
  %2095 = vrot.lane.b32.xlu0 %v1712, 118
  %v2096 = vpop.permute.xlu0 %2095
  %2097 = vrot.lane.b32.xlu0 %v1718, 118
  %v2098 = vpop.permute.xlu0 %2097
  %2099 = vrot.lane.b32.xlu0 %v1724, 118
  %v2100 = vpop.permute.xlu0 %2099
  %2101 = vrot.lane.b32.xlu0 %v1730, 118
  %v2102 = vpop.permute.xlu0 %2101
  %2103 = vrot.lane.b32.xlu0 %v1736, 118
  %v2104 = vpop.permute.xlu0 %2103
  %2105 = vrot.lane.b32.xlu0 %v1742, 118
  %v2106 = vpop.permute.xlu0 %2105
  %2107 = vrot.lane.b32.xlu0 %v1748, 118
  %v2108 = vpop.permute.xlu0 %2107
  %2109 = vrot.lane.b32.xlu0 %v1754, 118
  %v2110 = vpop.permute.xlu0 %2109
  %2111 = vrot.lane.b32.xlu0 %v1760, 118
  %v2112 = vpop.permute.xlu0 %2111
  %2113 = vrot.lane.b32.xlu0 %v1766, 118
  %v2114 = vpop.permute.xlu0 %2113
  %2115 = vrot.lane.b32.xlu0 %v1772, 118
  %v2116 = vpop.permute.xlu0 %2115
  %2117 = vrot.lane.b32.xlu0 %v1778, 118
  %v2118 = vpop.permute.xlu0 %2117
  %2119 = vrot.lane.b32.xlu0 %v1784, 118
  %v2120 = vpop.permute.xlu0 %2119
  %2121 = vrot.lane.b32.xlu0 %v1790, 118
  %v2122 = vpop.permute.xlu0 %2121
  %2123 = vrot.lane.b32.xlu0 %v1796, 118
  %v2124 = vpop.permute.xlu0 %2123
  %2125 = vrot.lane.b32.xlu0 %v1802, 118
  %v2126 = vpop.permute.xlu0 %2125
  %2127 = vrot.lane.b32.xlu0 %v1808, 118
  %v2128 = vpop.permute.xlu0 %2127
  %2129 = vrot.lane.b32.xlu0 %v1814, 118
  %v2130 = vpop.permute.xlu0 %2129
  %2131 = vrot.lane.b32.xlu0 %v1820, 118
  %v2132 = vpop.permute.xlu0 %2131
  %2133 = vrot.lane.b32.xlu0 %v1826, 118
  %v2134 = vpop.permute.xlu0 %2133
  %2135 = vrot.lane.b32.xlu0 %v1832, 118
  %v2136 = vpop.permute.xlu0 %2135
  %2137 = vrot.lane.b32.xlu0 %v1838, 118
  %v2138 = vpop.permute.xlu0 %2137
  %2139 = vrot.lane.b32.xlu0 %v1844, 118
  %v2140 = vpop.permute.xlu0 %2139
  %2141 = vrot.lane.b32.xlu0 %v1850, 118
  %v2142 = vpop.permute.xlu0 %2141
  %2143 = vrot.lane.b32.xlu0 %v1856, 118
  %v2144 = vpop.permute.xlu0 %2143
  %2145 = vrot.lane.b32.xlu0 %v1862, 118
  %v2146 = vpop.permute.xlu0 %2145
  %2147 = vrot.lane.b32.xlu0 %v1868, 118
  %v2148 = vpop.permute.xlu0 %2147
  %2149 = vrot.lane.b32.xlu0 %v1874, 118
  %v2150 = vpop.permute.xlu0 %2149
  %2151 = vrot.lane.b32.xlu0 %v1880, 118
  %v2152 = vpop.permute.xlu0 %2151
  %2153 = vrot.lane.b32.xlu0 %v1886, 118
  %v2154 = vpop.permute.xlu0 %2153
  %2155 = vrot.lane.b32.xlu0 %v1892, 118
  %v2156 = vpop.permute.xlu0 %2155
  %2157 = vrot.lane.b32.xlu0 %v1898, 118
  %v2158 = vpop.permute.xlu0 %2157
  %2159 = vrot.lane.b32.xlu0 %v1904, 118
  %v2160 = vpop.permute.xlu0 %2159
  %2161 = vrot.lane.b32.xlu0 %v1910, 118
  %v2162 = vpop.permute.xlu0 %2161
  %2163 = vrot.lane.b32.xlu0 %v1916, 118
  %v2164 = vpop.permute.xlu0 %2163
  %2165 = vrot.lane.b32.xlu0 %v1922, 118
  %v2166 = vpop.permute.xlu0 %2165
  %2167 = vrot.lane.b32.xlu0 %v1928, 118
  %v2168 = vpop.permute.xlu0 %2167
  %2169 = vrot.lane.b32.xlu0 %v1934, 118
  %v2170 = vpop.permute.xlu0 %2169
  %2171 = vrot.lane.b32.xlu0 %v1940, 118
  %v2172 = vpop.permute.xlu0 %2171
  %2173 = vrot.lane.b32.xlu0 %v1946, 118
  %v2174 = vpop.permute.xlu0 %2173
  %2175 = vrot.lane.b32.xlu0 %v1952, 118
  %v2176 = vpop.permute.xlu0 %2175
  %2177 = vrot.lane.b32.xlu0 %v1958, 118
  %v2178 = vpop.permute.xlu0 %2177
  %2179 = vrot.lane.b32.xlu0 %v1964, 118
  %v2180 = vpop.permute.xlu0 %2179
  %2181 = vrot.lane.b32.xlu0 %v1970, 118
  %v2182 = vpop.permute.xlu0 %2181
  %2183 = vrot.lane.b32.xlu0 %v1976, 118
  %v2184 = vpop.permute.xlu0 %2183
  %2185 = vrot.lane.b32.xlu0 %v1982, 118
  %v2186 = vpop.permute.xlu0 %2185
  %2187 = vrot.lane.b32.xlu0 %v1988, 118
  %v2188 = vpop.permute.xlu0 %2187
  %2189 = vrot.lane.b32.xlu0 %v1994, 118
  %v2190 = vpop.permute.xlu0 %2189
  %v2255 = vmax.f32 %v1616, %v2064
  %v2256 = vmax.f32 %v1622, %v2066
  %v2257 = vmax.f32 %v1628, %v2068
  %v2258 = vmax.f32 %v1634, %v2070
  %v2259 = vmax.f32 %v1640, %v2072
  %v2260 = vmax.f32 %v1646, %v2074
  %v2261 = vmax.f32 %v1652, %v2076
  %v2262 = vmax.f32 %v1658, %v2078
  %v2263 = vmax.f32 %v1664, %v2080
  %v2264 = vmax.f32 %v1670, %v2082
  %v2265 = vmax.f32 %v1676, %v2084
  %v2266 = vmax.f32 %v1682, %v2086
  %v2267 = vmax.f32 %v1688, %v2088
  %v2268 = vmax.f32 %v1694, %v2090
  %v2269 = vmax.f32 %v1700, %v2092
  %v2270 = vmax.f32 %v1706, %v2094
  %v2271 = vmax.f32 %v1712, %v2096
  %v2272 = vmax.f32 %v1718, %v2098
  %v2273 = vmax.f32 %v1724, %v2100
  %v2274 = vmax.f32 %v1730, %v2102
  %v2275 = vmax.f32 %v1736, %v2104
  %v2276 = vmax.f32 %v1742, %v2106
  %v2277 = vmax.f32 %v1748, %v2108
  %v2278 = vmax.f32 %v1754, %v2110
  %v2279 = vmax.f32 %v1760, %v2112
  %v2280 = vmax.f32 %v1766, %v2114
  %v2281 = vmax.f32 %v1772, %v2116
  %v2282 = vmax.f32 %v1778, %v2118
  %v2283 = vmax.f32 %v1784, %v2120
  %v2284 = vmax.f32 %v1790, %v2122
  %v2285 = vmax.f32 %v1796, %v2124
  %v2286 = vmax.f32 %v1802, %v2126
  %v2287 = vmax.f32 %v1808, %v2128
  %v2288 = vmax.f32 %v1814, %v2130
  %v2289 = vmax.f32 %v1820, %v2132
  %v2290 = vmax.f32 %v1826, %v2134
  %v2291 = vmax.f32 %v1832, %v2136
  %v2292 = vmax.f32 %v1838, %v2138
  %v2293 = vmax.f32 %v1844, %v2140
  %v2294 = vmax.f32 %v1850, %v2142
  %v2295 = vmax.f32 %v1856, %v2144
  %v2296 = vmax.f32 %v1862, %v2146
  %v2297 = vmax.f32 %v1868, %v2148
  %v2298 = vmax.f32 %v1874, %v2150
  %v2299 = vmax.f32 %v1880, %v2152
  %v2300 = vmax.f32 %v1886, %v2154
  %v2301 = vmax.f32 %v1892, %v2156
  %v2302 = vmax.f32 %v1898, %v2158
  %v2303 = vmax.f32 %v1904, %v2160
  %v2304 = vmax.f32 %v1910, %v2162
  %v2305 = vmax.f32 %v1916, %v2164
  %v2306 = vmax.f32 %v1922, %v2166
  %v2307 = vmax.f32 %v1928, %v2168
  %v2308 = vmax.f32 %v1934, %v2170
  %v2309 = vmax.f32 %v1940, %v2172
  %v2310 = vmax.f32 %v1946, %v2174
  %v2311 = vmax.f32 %v1952, %v2176
  %v2312 = vmax.f32 %v1958, %v2178
  %v2313 = vmax.f32 %v1964, %v2180
  %v2314 = vmax.f32 %v1970, %v2182
  %v2315 = vmax.f32 %v1976, %v2184
  %v2316 = vmax.f32 %v1982, %v2186
  %v2317 = vmax.f32 %v1988, %v2188
  %v2318 = vmax.f32 %v1994, %v2190
  %2319 = vrot.lane.b32.xlu0 %v1616, 108
  %v2320 = vpop.permute.xlu0 %2319
  %2321 = vrot.lane.b32.xlu0 %v1622, 108
  %v2322 = vpop.permute.xlu0 %2321
  %2323 = vrot.lane.b32.xlu0 %v1628, 108
  %v2324 = vpop.permute.xlu0 %2323
  %2325 = vrot.lane.b32.xlu0 %v1634, 108
  %v2326 = vpop.permute.xlu0 %2325
  %2327 = vrot.lane.b32.xlu0 %v1640, 108
  %v2328 = vpop.permute.xlu0 %2327
  %2329 = vrot.lane.b32.xlu0 %v1646, 108
  %v2330 = vpop.permute.xlu0 %2329
  %2331 = vrot.lane.b32.xlu0 %v1652, 108
  %v2332 = vpop.permute.xlu0 %2331
  %2333 = vrot.lane.b32.xlu0 %v1658, 108
  %v2334 = vpop.permute.xlu0 %2333
  %2335 = vrot.lane.b32.xlu0 %v1664, 108
  %v2336 = vpop.permute.xlu0 %2335
  %2337 = vrot.lane.b32.xlu0 %v1670, 108
  %v2338 = vpop.permute.xlu0 %2337
  %2339 = vrot.lane.b32.xlu0 %v1676, 108
  %v2340 = vpop.permute.xlu0 %2339
  %2341 = vrot.lane.b32.xlu0 %v1682, 108
  %v2342 = vpop.permute.xlu0 %2341
  %2343 = vrot.lane.b32.xlu0 %v1688, 108
  %v2344 = vpop.permute.xlu0 %2343
  %2345 = vrot.lane.b32.xlu0 %v1694, 108
  %v2346 = vpop.permute.xlu0 %2345
  %2347 = vrot.lane.b32.xlu0 %v1700, 108
  %v2348 = vpop.permute.xlu0 %2347
  %2349 = vrot.lane.b32.xlu0 %v1706, 108
  %v2350 = vpop.permute.xlu0 %2349
  %2351 = vrot.lane.b32.xlu0 %v1712, 108
  %v2352 = vpop.permute.xlu0 %2351
  %2353 = vrot.lane.b32.xlu0 %v1718, 108
  %v2354 = vpop.permute.xlu0 %2353
  %2355 = vrot.lane.b32.xlu0 %v1724, 108
  %v2356 = vpop.permute.xlu0 %2355
  %2357 = vrot.lane.b32.xlu0 %v1730, 108
  %v2358 = vpop.permute.xlu0 %2357
  %2359 = vrot.lane.b32.xlu0 %v1736, 108
  %v2360 = vpop.permute.xlu0 %2359
  %2361 = vrot.lane.b32.xlu0 %v1742, 108
  %v2362 = vpop.permute.xlu0 %2361
  %2363 = vrot.lane.b32.xlu0 %v1748, 108
  %v2364 = vpop.permute.xlu0 %2363
  %2365 = vrot.lane.b32.xlu0 %v1754, 108
  %v2366 = vpop.permute.xlu0 %2365
  %2367 = vrot.lane.b32.xlu0 %v1760, 108
  %v2368 = vpop.permute.xlu0 %2367
  %2369 = vrot.lane.b32.xlu0 %v1766, 108
  %v2370 = vpop.permute.xlu0 %2369
  %2371 = vrot.lane.b32.xlu0 %v1772, 108
  %v2372 = vpop.permute.xlu0 %2371
  %2373 = vrot.lane.b32.xlu0 %v1778, 108
  %v2374 = vpop.permute.xlu0 %2373
  %2375 = vrot.lane.b32.xlu0 %v1784, 108
  %v2376 = vpop.permute.xlu0 %2375
  %2377 = vrot.lane.b32.xlu0 %v1790, 108
  %v2378 = vpop.permute.xlu0 %2377
  %2379 = vrot.lane.b32.xlu0 %v1796, 108
  %v2380 = vpop.permute.xlu0 %2379
  %2381 = vrot.lane.b32.xlu0 %v1802, 108
  %v2382 = vpop.permute.xlu0 %2381
  %2383 = vrot.lane.b32.xlu0 %v1808, 108
  %v2384 = vpop.permute.xlu0 %2383
  %2385 = vrot.lane.b32.xlu0 %v1814, 108
  %v2386 = vpop.permute.xlu0 %2385
  %2387 = vrot.lane.b32.xlu0 %v1820, 108
  %v2388 = vpop.permute.xlu0 %2387
  %2389 = vrot.lane.b32.xlu0 %v1826, 108
  %v2390 = vpop.permute.xlu0 %2389
  %2391 = vrot.lane.b32.xlu0 %v1832, 108
  %v2392 = vpop.permute.xlu0 %2391
  %2393 = vrot.lane.b32.xlu0 %v1838, 108
  %v2394 = vpop.permute.xlu0 %2393
  %2395 = vrot.lane.b32.xlu0 %v1844, 108
  %v2396 = vpop.permute.xlu0 %2395
  %2397 = vrot.lane.b32.xlu0 %v1850, 108
  %v2398 = vpop.permute.xlu0 %2397
  %2399 = vrot.lane.b32.xlu0 %v1856, 108
  %v2400 = vpop.permute.xlu0 %2399
  %2401 = vrot.lane.b32.xlu0 %v1862, 108
  %v2402 = vpop.permute.xlu0 %2401
  %2403 = vrot.lane.b32.xlu0 %v1868, 108
  %v2404 = vpop.permute.xlu0 %2403
  %2405 = vrot.lane.b32.xlu0 %v1874, 108
  %v2406 = vpop.permute.xlu0 %2405
  %2407 = vrot.lane.b32.xlu0 %v1880, 108
  %v2408 = vpop.permute.xlu0 %2407
  %2409 = vrot.lane.b32.xlu0 %v1886, 108
  %v2410 = vpop.permute.xlu0 %2409
  %2411 = vrot.lane.b32.xlu0 %v1892, 108
  %v2412 = vpop.permute.xlu0 %2411
  %2413 = vrot.lane.b32.xlu0 %v1898, 108
  %v2414 = vpop.permute.xlu0 %2413
  %2415 = vrot.lane.b32.xlu0 %v1904, 108
  %v2416 = vpop.permute.xlu0 %2415
  %2417 = vrot.lane.b32.xlu0 %v1910, 108
  %v2418 = vpop.permute.xlu0 %2417
  %2419 = vrot.lane.b32.xlu0 %v1916, 108
  %v2420 = vpop.permute.xlu0 %2419
  %2421 = vrot.lane.b32.xlu0 %v1922, 108
  %v2422 = vpop.permute.xlu0 %2421
  %2423 = vrot.lane.b32.xlu0 %v1928, 108
  %v2424 = vpop.permute.xlu0 %2423
  %2425 = vrot.lane.b32.xlu0 %v1934, 108
  %v2426 = vpop.permute.xlu0 %2425
  %2427 = vrot.lane.b32.xlu0 %v1940, 108
  %v2428 = vpop.permute.xlu0 %2427
  %2429 = vrot.lane.b32.xlu0 %v1946, 108
  %v2430 = vpop.permute.xlu0 %2429
  %2431 = vrot.lane.b32.xlu0 %v1952, 108
  %v2432 = vpop.permute.xlu0 %2431
  %2433 = vrot.lane.b32.xlu0 %v1958, 108
  %v2434 = vpop.permute.xlu0 %2433
  %2435 = vrot.lane.b32.xlu0 %v1964, 108
  %v2436 = vpop.permute.xlu0 %2435
  %2437 = vrot.lane.b32.xlu0 %v1970, 108
  %v2438 = vpop.permute.xlu0 %2437
  %2439 = vrot.lane.b32.xlu0 %v1976, 108
  %v2440 = vpop.permute.xlu0 %2439
  %2441 = vrot.lane.b32.xlu0 %v1982, 108
  %v2442 = vpop.permute.xlu0 %2441
  %2443 = vrot.lane.b32.xlu0 %v1988, 108
  %v2444 = vpop.permute.xlu0 %2443
  %2445 = vrot.lane.b32.xlu0 %v1994, 108
  %v2446 = vpop.permute.xlu0 %2445
  %v2511 = vmax.f32 %v2255, %v2320
  %v2512 = vmax.f32 %v2256, %v2322
  %v2513 = vmax.f32 %v2257, %v2324
  %v2514 = vmax.f32 %v2258, %v2326
  %v2515 = vmax.f32 %v2259, %v2328
  %v2516 = vmax.f32 %v2260, %v2330
  %v2517 = vmax.f32 %v2261, %v2332
  %v2518 = vmax.f32 %v2262, %v2334
  %v2519 = vmax.f32 %v2263, %v2336
  %v2520 = vmax.f32 %v2264, %v2338
  %v2521 = vmax.f32 %v2265, %v2340
  %v2522 = vmax.f32 %v2266, %v2342
  %v2523 = vmax.f32 %v2267, %v2344
  %v2524 = vmax.f32 %v2268, %v2346
  %v2525 = vmax.f32 %v2269, %v2348
  %v2526 = vmax.f32 %v2270, %v2350
  %v2527 = vmax.f32 %v2271, %v2352
  %v2528 = vmax.f32 %v2272, %v2354
  %v2529 = vmax.f32 %v2273, %v2356
  %v2530 = vmax.f32 %v2274, %v2358
  %v2531 = vmax.f32 %v2275, %v2360
  %v2532 = vmax.f32 %v2276, %v2362
  %v2533 = vmax.f32 %v2277, %v2364
  %v2534 = vmax.f32 %v2278, %v2366
  %v2535 = vmax.f32 %v2279, %v2368
  %v2536 = vmax.f32 %v2280, %v2370
  %v2537 = vmax.f32 %v2281, %v2372
  %v2538 = vmax.f32 %v2282, %v2374
  %v2539 = vmax.f32 %v2283, %v2376
  %v2540 = vmax.f32 %v2284, %v2378
  %v2541 = vmax.f32 %v2285, %v2380
  %v2542 = vmax.f32 %v2286, %v2382
  %v2543 = vmax.f32 %v2287, %v2384
  %v2544 = vmax.f32 %v2288, %v2386
  %v2545 = vmax.f32 %v2289, %v2388
  %v2546 = vmax.f32 %v2290, %v2390
  %v2547 = vmax.f32 %v2291, %v2392
  %v2548 = vmax.f32 %v2292, %v2394
  %v2549 = vmax.f32 %v2293, %v2396
  %v2550 = vmax.f32 %v2294, %v2398
  %v2551 = vmax.f32 %v2295, %v2400
  %v2552 = vmax.f32 %v2296, %v2402
  %v2553 = vmax.f32 %v2297, %v2404
  %v2554 = vmax.f32 %v2298, %v2406
  %v2555 = vmax.f32 %v2299, %v2408
  %v2556 = vmax.f32 %v2300, %v2410
  %v2557 = vmax.f32 %v2301, %v2412
  %v2558 = vmax.f32 %v2302, %v2414
  %v2559 = vmax.f32 %v2303, %v2416
  %v2560 = vmax.f32 %v2304, %v2418
  %v2561 = vmax.f32 %v2305, %v2420
  %v2562 = vmax.f32 %v2306, %v2422
  %v2563 = vmax.f32 %v2307, %v2424
  %v2564 = vmax.f32 %v2308, %v2426
  %v2565 = vmax.f32 %v2309, %v2428
  %v2566 = vmax.f32 %v2310, %v2430
  %v2567 = vmax.f32 %v2311, %v2432
  %v2568 = vmax.f32 %v2312, %v2434
  %v2569 = vmax.f32 %v2313, %v2436
  %v2570 = vmax.f32 %v2314, %v2438
  %v2571 = vmax.f32 %v2315, %v2440
  %v2572 = vmax.f32 %v2316, %v2442
  %v2573 = vmax.f32 %v2317, %v2444
  %v2574 = vmax.f32 %v2318, %v2446
  %2575 = vrot.lane.b32.xlu0 %v1616, 98
  %v2576 = vpop.permute.xlu0 %2575
  %2577 = vrot.lane.b32.xlu0 %v1622, 98
  %v2578 = vpop.permute.xlu0 %2577
  %2579 = vrot.lane.b32.xlu0 %v1628, 98
  %v2580 = vpop.permute.xlu0 %2579
  %2581 = vrot.lane.b32.xlu0 %v1634, 98
  %v2582 = vpop.permute.xlu0 %2581
  %2583 = vrot.lane.b32.xlu0 %v1640, 98
  %v2584 = vpop.permute.xlu0 %2583
  %2585 = vrot.lane.b32.xlu0 %v1646, 98
  %v2586 = vpop.permute.xlu0 %2585
  %2587 = vrot.lane.b32.xlu0 %v1652, 98
  %v2588 = vpop.permute.xlu0 %2587
  %2589 = vrot.lane.b32.xlu0 %v1658, 98
  %v2590 = vpop.permute.xlu0 %2589
  %2591 = vrot.lane.b32.xlu0 %v1664, 98
  %v2592 = vpop.permute.xlu0 %2591
  %2593 = vrot.lane.b32.xlu0 %v1670, 98
  %v2594 = vpop.permute.xlu0 %2593
  %2595 = vrot.lane.b32.xlu0 %v1676, 98
  %v2596 = vpop.permute.xlu0 %2595
  %2597 = vrot.lane.b32.xlu0 %v1682, 98
  %v2598 = vpop.permute.xlu0 %2597
  %2599 = vrot.lane.b32.xlu0 %v1688, 98
  %v2600 = vpop.permute.xlu0 %2599
  %2601 = vrot.lane.b32.xlu0 %v1694, 98
  %v2602 = vpop.permute.xlu0 %2601
  %2603 = vrot.lane.b32.xlu0 %v1700, 98
  %v2604 = vpop.permute.xlu0 %2603
  %2605 = vrot.lane.b32.xlu0 %v1706, 98
  %v2606 = vpop.permute.xlu0 %2605
  %2607 = vrot.lane.b32.xlu0 %v1712, 98
  %v2608 = vpop.permute.xlu0 %2607
  %2609 = vrot.lane.b32.xlu0 %v1718, 98
  %v2610 = vpop.permute.xlu0 %2609
  %2611 = vrot.lane.b32.xlu0 %v1724, 98
  %v2612 = vpop.permute.xlu0 %2611
  %2613 = vrot.lane.b32.xlu0 %v1730, 98
  %v2614 = vpop.permute.xlu0 %2613
  %2615 = vrot.lane.b32.xlu0 %v1736, 98
  %v2616 = vpop.permute.xlu0 %2615
  %2617 = vrot.lane.b32.xlu0 %v1742, 98
  %v2618 = vpop.permute.xlu0 %2617
  %2619 = vrot.lane.b32.xlu0 %v1748, 98
  %v2620 = vpop.permute.xlu0 %2619
  %2621 = vrot.lane.b32.xlu0 %v1754, 98
  %v2622 = vpop.permute.xlu0 %2621
  %2623 = vrot.lane.b32.xlu0 %v1760, 98
  %v2624 = vpop.permute.xlu0 %2623
  %2625 = vrot.lane.b32.xlu0 %v1766, 98
  %v2626 = vpop.permute.xlu0 %2625
  %2627 = vrot.lane.b32.xlu0 %v1772, 98
  %v2628 = vpop.permute.xlu0 %2627
  %2629 = vrot.lane.b32.xlu0 %v1778, 98
  %v2630 = vpop.permute.xlu0 %2629
  %2631 = vrot.lane.b32.xlu0 %v1784, 98
  %v2632 = vpop.permute.xlu0 %2631
  %2633 = vrot.lane.b32.xlu0 %v1790, 98
  %v2634 = vpop.permute.xlu0 %2633
  %2635 = vrot.lane.b32.xlu0 %v1796, 98
  %v2636 = vpop.permute.xlu0 %2635
  %2637 = vrot.lane.b32.xlu0 %v1802, 98
  %v2638 = vpop.permute.xlu0 %2637
  %2639 = vrot.lane.b32.xlu0 %v1808, 98
  %v2640 = vpop.permute.xlu0 %2639
  %2641 = vrot.lane.b32.xlu0 %v1814, 98
  %v2642 = vpop.permute.xlu0 %2641
  %2643 = vrot.lane.b32.xlu0 %v1820, 98
  %v2644 = vpop.permute.xlu0 %2643
  %2645 = vrot.lane.b32.xlu0 %v1826, 98
  %v2646 = vpop.permute.xlu0 %2645
  %2647 = vrot.lane.b32.xlu0 %v1832, 98
  %v2648 = vpop.permute.xlu0 %2647
  %2649 = vrot.lane.b32.xlu0 %v1838, 98
  %v2650 = vpop.permute.xlu0 %2649
  %2651 = vrot.lane.b32.xlu0 %v1844, 98
  %v2652 = vpop.permute.xlu0 %2651
  %2653 = vrot.lane.b32.xlu0 %v1850, 98
  %v2654 = vpop.permute.xlu0 %2653
  %2655 = vrot.lane.b32.xlu0 %v1856, 98
  %v2656 = vpop.permute.xlu0 %2655
  %2657 = vrot.lane.b32.xlu0 %v1862, 98
  %v2658 = vpop.permute.xlu0 %2657
  %2659 = vrot.lane.b32.xlu0 %v1868, 98
  %v2660 = vpop.permute.xlu0 %2659
  %2661 = vrot.lane.b32.xlu0 %v1874, 98
  %v2662 = vpop.permute.xlu0 %2661
  %2663 = vrot.lane.b32.xlu0 %v1880, 98
  %v2664 = vpop.permute.xlu0 %2663
  %2665 = vrot.lane.b32.xlu0 %v1886, 98
  %v2666 = vpop.permute.xlu0 %2665
  %2667 = vrot.lane.b32.xlu0 %v1892, 98
  %v2668 = vpop.permute.xlu0 %2667
  %2669 = vrot.lane.b32.xlu0 %v1898, 98
  %v2670 = vpop.permute.xlu0 %2669
  %2671 = vrot.lane.b32.xlu0 %v1904, 98
  %v2672 = vpop.permute.xlu0 %2671
  %2673 = vrot.lane.b32.xlu0 %v1910, 98
  %v2674 = vpop.permute.xlu0 %2673
  %2675 = vrot.lane.b32.xlu0 %v1916, 98
  %v2676 = vpop.permute.xlu0 %2675
  %2677 = vrot.lane.b32.xlu0 %v1922, 98
  %v2678 = vpop.permute.xlu0 %2677
  %2679 = vrot.lane.b32.xlu0 %v1928, 98
  %v2680 = vpop.permute.xlu0 %2679
  %2681 = vrot.lane.b32.xlu0 %v1934, 98
  %v2682 = vpop.permute.xlu0 %2681
  %2683 = vrot.lane.b32.xlu0 %v1940, 98
  %v2684 = vpop.permute.xlu0 %2683
  %2685 = vrot.lane.b32.xlu0 %v1946, 98
  %v2686 = vpop.permute.xlu0 %2685
  %2687 = vrot.lane.b32.xlu0 %v1952, 98
  %v2688 = vpop.permute.xlu0 %2687
  %2689 = vrot.lane.b32.xlu0 %v1958, 98
  %v2690 = vpop.permute.xlu0 %2689
  %2691 = vrot.lane.b32.xlu0 %v1964, 98
  %v2692 = vpop.permute.xlu0 %2691
  %2693 = vrot.lane.b32.xlu0 %v1970, 98
  %v2694 = vpop.permute.xlu0 %2693
  %2695 = vrot.lane.b32.xlu0 %v1976, 98
  %v2696 = vpop.permute.xlu0 %2695
  %2697 = vrot.lane.b32.xlu0 %v1982, 98
  %v2698 = vpop.permute.xlu0 %2697
  %2699 = vrot.lane.b32.xlu0 %v1988, 98
  %v2700 = vpop.permute.xlu0 %2699
  %2701 = vrot.lane.b32.xlu0 %v1994, 98
  %v2702 = vpop.permute.xlu0 %2701
  %v2767 = vmax.f32 %v2511, %v2576
  %v2768 = vmax.f32 %v2512, %v2578
  %v2769 = vmax.f32 %v2513, %v2580
  %v2770 = vmax.f32 %v2514, %v2582
  %v2771 = vmax.f32 %v2515, %v2584
  %v2772 = vmax.f32 %v2516, %v2586
  %v2773 = vmax.f32 %v2517, %v2588
  %v2774 = vmax.f32 %v2518, %v2590
  %v2775 = vmax.f32 %v2519, %v2592
  %v2776 = vmax.f32 %v2520, %v2594
  %v2777 = vmax.f32 %v2521, %v2596
  %v2778 = vmax.f32 %v2522, %v2598
  %v2779 = vmax.f32 %v2523, %v2600
  %v2780 = vmax.f32 %v2524, %v2602
  %v2781 = vmax.f32 %v2525, %v2604
  %v2782 = vmax.f32 %v2526, %v2606
  %v2783 = vmax.f32 %v2527, %v2608
  %v2784 = vmax.f32 %v2528, %v2610
  %v2785 = vmax.f32 %v2529, %v2612
  %v2786 = vmax.f32 %v2530, %v2614
  %v2787 = vmax.f32 %v2531, %v2616
  %v2788 = vmax.f32 %v2532, %v2618
  %v2789 = vmax.f32 %v2533, %v2620
  %v2790 = vmax.f32 %v2534, %v2622
  %v2791 = vmax.f32 %v2535, %v2624
  %v2792 = vmax.f32 %v2536, %v2626
  %v2793 = vmax.f32 %v2537, %v2628
  %v2794 = vmax.f32 %v2538, %v2630
  %v2795 = vmax.f32 %v2539, %v2632
  %v2796 = vmax.f32 %v2540, %v2634
  %v2797 = vmax.f32 %v2541, %v2636
  %v2798 = vmax.f32 %v2542, %v2638
  %v2799 = vmax.f32 %v2543, %v2640
  %v2800 = vmax.f32 %v2544, %v2642
  %v2801 = vmax.f32 %v2545, %v2644
  %v2802 = vmax.f32 %v2546, %v2646
  %v2803 = vmax.f32 %v2547, %v2648
  %v2804 = vmax.f32 %v2548, %v2650
  %v2805 = vmax.f32 %v2549, %v2652
  %v2806 = vmax.f32 %v2550, %v2654
  %v2807 = vmax.f32 %v2551, %v2656
  %v2808 = vmax.f32 %v2552, %v2658
  %v2809 = vmax.f32 %v2553, %v2660
  %v2810 = vmax.f32 %v2554, %v2662
  %v2811 = vmax.f32 %v2555, %v2664
  %v2812 = vmax.f32 %v2556, %v2666
  %v2813 = vmax.f32 %v2557, %v2668
  %v2814 = vmax.f32 %v2558, %v2670
  %v2815 = vmax.f32 %v2559, %v2672
  %v2816 = vmax.f32 %v2560, %v2674
  %v2817 = vmax.f32 %v2561, %v2676
  %v2818 = vmax.f32 %v2562, %v2678
  %v2819 = vmax.f32 %v2563, %v2680
  %v2820 = vmax.f32 %v2564, %v2682
  %v2821 = vmax.f32 %v2565, %v2684
  %v2822 = vmax.f32 %v2566, %v2686
  %v2823 = vmax.f32 %v2567, %v2688
  %v2824 = vmax.f32 %v2568, %v2690
  %v2825 = vmax.f32 %v2569, %v2692
  %v2826 = vmax.f32 %v2570, %v2694
  %v2827 = vmax.f32 %v2571, %v2696
  %v2828 = vmax.f32 %v2572, %v2698
  %v2829 = vmax.f32 %v2573, %v2700
  %v2830 = vmax.f32 %v2574, %v2702
  %v2832 = vlaneseq
  %v2833 = vshrl.u32 %v2832, 7
  %v2834 = vsub.s32 0, %v2833
  %v2835 = vrot.slane %v1998, %v2834
  %v2837 = vadd.f32 %v2767, %v2835
  %v2838 = vadd.f32 %v2768, %v2835
  %v2839 = vadd.f32 %v2769, %v2835
  %v2840 = vadd.f32 %v2770, %v2835
  %v2841 = vadd.f32 %v2771, %v2835
  %v2842 = vadd.f32 %v2772, %v2835
  %v2843 = vadd.f32 %v2773, %v2835
  %v2844 = vadd.f32 %v2774, %v2835
  %v2845 = vadd.f32 %v2775, %v2835
  %v2846 = vadd.f32 %v2776, %v2835
  %v2847 = vadd.f32 %v2777, %v2835
  %v2848 = vadd.f32 %v2778, %v2835
  %v2849 = vadd.f32 %v2779, %v2835
  %v2850 = vadd.f32 %v2780, %v2835
  %v2851 = vadd.f32 %v2781, %v2835
  %v2852 = vadd.f32 %v2782, %v2835
  %v2853 = vadd.f32 %v2783, %v2835
  %v2854 = vadd.f32 %v2784, %v2835
  %v2855 = vadd.f32 %v2785, %v2835
  %v2856 = vadd.f32 %v2786, %v2835
  %v2857 = vadd.f32 %v2787, %v2835
  %v2858 = vadd.f32 %v2788, %v2835
  %v2859 = vadd.f32 %v2789, %v2835
  %v2860 = vadd.f32 %v2790, %v2835
  %v2861 = vadd.f32 %v2791, %v2835
  %v2862 = vadd.f32 %v2792, %v2835
  %v2863 = vadd.f32 %v2793, %v2835
  %v2864 = vadd.f32 %v2794, %v2835
  %v2865 = vadd.f32 %v2795, %v2835
  %v2866 = vadd.f32 %v2796, %v2835
  %v2867 = vadd.f32 %v2797, %v2835
  %v2868 = vadd.f32 %v2798, %v2835
  %v2869 = vadd.f32 %v2799, %v2835
  %v2870 = vadd.f32 %v2800, %v2835
  %v2871 = vadd.f32 %v2801, %v2835
  %v2872 = vadd.f32 %v2802, %v2835
  %v2873 = vadd.f32 %v2803, %v2835
  %v2874 = vadd.f32 %v2804, %v2835
  %v2875 = vadd.f32 %v2805, %v2835
  %v2876 = vadd.f32 %v2806, %v2835
  %v2877 = vadd.f32 %v2807, %v2835
  %v2878 = vadd.f32 %v2808, %v2835
  %v2879 = vadd.f32 %v2809, %v2835
  %v2880 = vadd.f32 %v2810, %v2835
  %v2881 = vadd.f32 %v2811, %v2835
  %v2882 = vadd.f32 %v2812, %v2835
  %v2883 = vadd.f32 %v2813, %v2835
  %v2884 = vadd.f32 %v2814, %v2835
  %v2885 = vadd.f32 %v2815, %v2835
  %v2886 = vadd.f32 %v2816, %v2835
  %v2887 = vadd.f32 %v2817, %v2835
  %v2888 = vadd.f32 %v2818, %v2835
  %v2889 = vadd.f32 %v2819, %v2835
  %v2890 = vadd.f32 %v2820, %v2835
  %v2891 = vadd.f32 %v2821, %v2835
  %v2892 = vadd.f32 %v2822, %v2835
  %v2893 = vadd.f32 %v2823, %v2835
  %v2894 = vadd.f32 %v2824, %v2835
  %v2895 = vadd.f32 %v2825, %v2835
  %v2896 = vadd.f32 %v2826, %v2835
  %v2897 = vadd.f32 %v2827, %v2835
  %v2898 = vadd.f32 %v2828, %v2835
  %v2899 = vadd.f32 %v2829, %v2835
  %v2900 = vadd.f32 %v2830, %v2835
  %v2901 = vmax.f32 %v2837, 0.0
  %v2902 = vmax.f32 %v2838, 0.0
  %v2903 = vmax.f32 %v2839, 0.0
  %v2904 = vmax.f32 %v2840, 0.0
  %v2905 = vmax.f32 %v2841, 0.0
  %v2906 = vmax.f32 %v2842, 0.0
  %v2907 = vmax.f32 %v2843, 0.0
  %v2908 = vmax.f32 %v2844, 0.0
  %v2909 = vmax.f32 %v2845, 0.0
  %v2910 = vmax.f32 %v2846, 0.0
  %v2911 = vmax.f32 %v2847, 0.0
  %v2912 = vmax.f32 %v2848, 0.0
  %v2913 = vmax.f32 %v2849, 0.0
  %v2914 = vmax.f32 %v2850, 0.0
  %v2915 = vmax.f32 %v2851, 0.0
  %v2916 = vmax.f32 %v2852, 0.0
  %v2917 = vmax.f32 %v2853, 0.0
  %v2918 = vmax.f32 %v2854, 0.0
  %v2919 = vmax.f32 %v2855, 0.0
  %v2920 = vmax.f32 %v2856, 0.0
  %v2921 = vmax.f32 %v2857, 0.0
  %v2922 = vmax.f32 %v2858, 0.0
  %v2923 = vmax.f32 %v2859, 0.0
  %v2924 = vmax.f32 %v2860, 0.0
  %v2925 = vmax.f32 %v2861, 0.0
  %v2926 = vmax.f32 %v2862, 0.0
  %v2927 = vmax.f32 %v2863, 0.0
  %v2928 = vmax.f32 %v2864, 0.0
  %v2929 = vmax.f32 %v2865, 0.0
  %v2930 = vmax.f32 %v2866, 0.0
  %v2931 = vmax.f32 %v2867, 0.0
  %v2932 = vmax.f32 %v2868, 0.0
  %v2933 = vmax.f32 %v2869, 0.0
  %v2934 = vmax.f32 %v2870, 0.0
  %v2935 = vmax.f32 %v2871, 0.0
  %v2936 = vmax.f32 %v2872, 0.0
  %v2937 = vmax.f32 %v2873, 0.0
  %v2938 = vmax.f32 %v2874, 0.0
  %v2939 = vmax.f32 %v2875, 0.0
  %v2940 = vmax.f32 %v2876, 0.0
  %v2941 = vmax.f32 %v2877, 0.0
  %v2942 = vmax.f32 %v2878, 0.0
  %v2943 = vmax.f32 %v2879, 0.0
  %v2944 = vmax.f32 %v2880, 0.0
  %v2945 = vmax.f32 %v2881, 0.0
  %v2946 = vmax.f32 %v2882, 0.0
  %v2947 = vmax.f32 %v2883, 0.0
  %v2948 = vmax.f32 %v2884, 0.0
  %v2949 = vmax.f32 %v2885, 0.0
  %v2950 = vmax.f32 %v2886, 0.0
  %v2951 = vmax.f32 %v2887, 0.0
  %v2952 = vmax.f32 %v2888, 0.0
  %v2953 = vmax.f32 %v2889, 0.0
  %v2954 = vmax.f32 %v2890, 0.0
  %v2955 = vmax.f32 %v2891, 0.0
  %v2956 = vmax.f32 %v2892, 0.0
  %v2957 = vmax.f32 %v2893, 0.0
  %v2958 = vmax.f32 %v2894, 0.0
  %v2959 = vmax.f32 %v2895, 0.0
  %v2960 = vmax.f32 %v2896, 0.0
  %v2961 = vmax.f32 %v2897, 0.0
  %v2962 = vmax.f32 %v2898, 0.0
  %v2963 = vmax.f32 %v2899, 0.0
  %v2964 = vmax.f32 %v2900, 0.0
  %2965 = vrot.lane.b32.xlu0 %v2835, 40
  %v2966 = vpop.permute.xlu0 %2965
  %v2968 = vadd.f32 %v2767, %v2966
  %v2969 = vadd.f32 %v2768, %v2966
  %v2970 = vadd.f32 %v2769, %v2966
  %v2971 = vadd.f32 %v2770, %v2966
  %v2972 = vadd.f32 %v2771, %v2966
  %v2973 = vadd.f32 %v2772, %v2966
  %v2974 = vadd.f32 %v2773, %v2966
  %v2975 = vadd.f32 %v2774, %v2966
  %v2976 = vadd.f32 %v2775, %v2966
  %v2977 = vadd.f32 %v2776, %v2966
  %v2978 = vadd.f32 %v2777, %v2966
  %v2979 = vadd.f32 %v2778, %v2966
  %v2980 = vadd.f32 %v2779, %v2966
  %v2981 = vadd.f32 %v2780, %v2966
  %v2982 = vadd.f32 %v2781, %v2966
  %v2983 = vadd.f32 %v2782, %v2966
  %v2984 = vadd.f32 %v2783, %v2966
  %v2985 = vadd.f32 %v2784, %v2966
  %v2986 = vadd.f32 %v2785, %v2966
  %v2987 = vadd.f32 %v2786, %v2966
  %v2988 = vadd.f32 %v2787, %v2966
  %v2989 = vadd.f32 %v2788, %v2966
  %v2990 = vadd.f32 %v2789, %v2966
  %v2991 = vadd.f32 %v2790, %v2966
  %v2992 = vadd.f32 %v2791, %v2966
  %v2993 = vadd.f32 %v2792, %v2966
  %v2994 = vadd.f32 %v2793, %v2966
  %v2995 = vadd.f32 %v2794, %v2966
  %v2996 = vadd.f32 %v2795, %v2966
  %v2997 = vadd.f32 %v2796, %v2966
  %v2998 = vadd.f32 %v2797, %v2966
  %v2999 = vadd.f32 %v2798, %v2966
  %v3000 = vadd.f32 %v2799, %v2966
  %v3001 = vadd.f32 %v2800, %v2966
  %v3002 = vadd.f32 %v2801, %v2966
  %v3003 = vadd.f32 %v2802, %v2966
  %v3004 = vadd.f32 %v2803, %v2966
  %v3005 = vadd.f32 %v2804, %v2966
  %v3006 = vadd.f32 %v2805, %v2966
  %v3007 = vadd.f32 %v2806, %v2966
  %v3008 = vadd.f32 %v2807, %v2966
  %v3009 = vadd.f32 %v2808, %v2966
  %v3010 = vadd.f32 %v2809, %v2966
  %v3011 = vadd.f32 %v2810, %v2966
  %v3012 = vadd.f32 %v2811, %v2966
  %v3013 = vadd.f32 %v2812, %v2966
  %v3014 = vadd.f32 %v2813, %v2966
  %v3015 = vadd.f32 %v2814, %v2966
  %v3016 = vadd.f32 %v2815, %v2966
  %v3017 = vadd.f32 %v2816, %v2966
  %v3018 = vadd.f32 %v2817, %v2966
  %v3019 = vadd.f32 %v2818, %v2966
  %v3020 = vadd.f32 %v2819, %v2966
  %v3021 = vadd.f32 %v2820, %v2966
  %v3022 = vadd.f32 %v2821, %v2966
  %v3023 = vadd.f32 %v2822, %v2966
  %v3024 = vadd.f32 %v2823, %v2966
  %v3025 = vadd.f32 %v2824, %v2966
  %v3026 = vadd.f32 %v2825, %v2966
  %v3027 = vadd.f32 %v2826, %v2966
  %v3028 = vadd.f32 %v2827, %v2966
  %v3029 = vadd.f32 %v2828, %v2966
  %v3030 = vadd.f32 %v2829, %v2966
  %v3031 = vadd.f32 %v2830, %v2966
  %v3032 = vmax.f32 %v2968, 0.0
  %v3033 = vmax.f32 %v2969, 0.0
  %v3034 = vmax.f32 %v2970, 0.0
  %v3035 = vmax.f32 %v2971, 0.0
  %v3036 = vmax.f32 %v2972, 0.0
  %v3037 = vmax.f32 %v2973, 0.0
  %v3038 = vmax.f32 %v2974, 0.0
  %v3039 = vmax.f32 %v2975, 0.0
  %v3040 = vmax.f32 %v2976, 0.0
  %v3041 = vmax.f32 %v2977, 0.0
  %v3042 = vmax.f32 %v2978, 0.0
  %v3043 = vmax.f32 %v2979, 0.0
  %v3044 = vmax.f32 %v2980, 0.0
  %v3045 = vmax.f32 %v2981, 0.0
  %v3046 = vmax.f32 %v2982, 0.0
  %v3047 = vmax.f32 %v2983, 0.0
  %v3048 = vmax.f32 %v2984, 0.0
  %v3049 = vmax.f32 %v2985, 0.0
  %v3050 = vmax.f32 %v2986, 0.0
  %v3051 = vmax.f32 %v2987, 0.0
  %v3052 = vmax.f32 %v2988, 0.0
  %v3053 = vmax.f32 %v2989, 0.0
  %v3054 = vmax.f32 %v2990, 0.0
  %v3055 = vmax.f32 %v2991, 0.0
  %v3056 = vmax.f32 %v2992, 0.0
  %v3057 = vmax.f32 %v2993, 0.0
  %v3058 = vmax.f32 %v2994, 0.0
  %v3059 = vmax.f32 %v2995, 0.0
  %v3060 = vmax.f32 %v2996, 0.0
  %v3061 = vmax.f32 %v2997, 0.0
  %v3062 = vmax.f32 %v2998, 0.0
  %v3063 = vmax.f32 %v2999, 0.0
  %v3064 = vmax.f32 %v3000, 0.0
  %v3065 = vmax.f32 %v3001, 0.0
  %v3066 = vmax.f32 %v3002, 0.0
  %v3067 = vmax.f32 %v3003, 0.0
  %v3068 = vmax.f32 %v3004, 0.0
  %v3069 = vmax.f32 %v3005, 0.0
  %v3070 = vmax.f32 %v3006, 0.0
  %v3071 = vmax.f32 %v3007, 0.0
  %v3072 = vmax.f32 %v3008, 0.0
  %v3073 = vmax.f32 %v3009, 0.0
  %v3074 = vmax.f32 %v3010, 0.0
  %v3075 = vmax.f32 %v3011, 0.0
  %v3076 = vmax.f32 %v3012, 0.0
  %v3077 = vmax.f32 %v3013, 0.0
  %v3078 = vmax.f32 %v3014, 0.0
  %v3079 = vmax.f32 %v3015, 0.0
  %v3080 = vmax.f32 %v3016, 0.0
  %v3081 = vmax.f32 %v3017, 0.0
  %v3082 = vmax.f32 %v3018, 0.0
  %v3083 = vmax.f32 %v3019, 0.0
  %v3084 = vmax.f32 %v3020, 0.0
  %v3085 = vmax.f32 %v3021, 0.0
  %v3086 = vmax.f32 %v3022, 0.0
  %v3087 = vmax.f32 %v3023, 0.0
  %v3088 = vmax.f32 %v3024, 0.0
  %v3089 = vmax.f32 %v3025, 0.0
  %v3090 = vmax.f32 %v3026, 0.0
  %v3091 = vmax.f32 %v3027, 0.0
  %v3092 = vmax.f32 %v3028, 0.0
  %v3093 = vmax.f32 %v3029, 0.0
  %v3094 = vmax.f32 %v3030, 0.0
  %v3095 = vmax.f32 %v3031, 0.0
  %3096 = vrot.lane.b32.xlu0 %v2835, 80
  %v3097 = vpop.permute.xlu0 %3096
  %v3099 = vadd.f32 %v2767, %v3097
  %v3100 = vadd.f32 %v2768, %v3097
  %v3101 = vadd.f32 %v2769, %v3097
  %v3102 = vadd.f32 %v2770, %v3097
  %v3103 = vadd.f32 %v2771, %v3097
  %v3104 = vadd.f32 %v2772, %v3097
  %v3105 = vadd.f32 %v2773, %v3097
  %v3106 = vadd.f32 %v2774, %v3097
  %v3107 = vadd.f32 %v2775, %v3097
  %v3108 = vadd.f32 %v2776, %v3097
  %v3109 = vadd.f32 %v2777, %v3097
  %v3110 = vadd.f32 %v2778, %v3097
  %v3111 = vadd.f32 %v2779, %v3097
  %v3112 = vadd.f32 %v2780, %v3097
  %v3113 = vadd.f32 %v2781, %v3097
  %v3114 = vadd.f32 %v2782, %v3097
  %v3115 = vadd.f32 %v2783, %v3097
  %v3116 = vadd.f32 %v2784, %v3097
  %v3117 = vadd.f32 %v2785, %v3097
  %v3118 = vadd.f32 %v2786, %v3097
  %v3119 = vadd.f32 %v2787, %v3097
  %v3120 = vadd.f32 %v2788, %v3097
  %v3121 = vadd.f32 %v2789, %v3097
  %v3122 = vadd.f32 %v2790, %v3097
  %v3123 = vadd.f32 %v2791, %v3097
  %v3124 = vadd.f32 %v2792, %v3097
  %v3125 = vadd.f32 %v2793, %v3097
  %v3126 = vadd.f32 %v2794, %v3097
  %v3127 = vadd.f32 %v2795, %v3097
  %v3128 = vadd.f32 %v2796, %v3097
  %v3129 = vadd.f32 %v2797, %v3097
  %v3130 = vadd.f32 %v2798, %v3097
  %v3131 = vadd.f32 %v2799, %v3097
  %v3132 = vadd.f32 %v2800, %v3097
  %v3133 = vadd.f32 %v2801, %v3097
  %v3134 = vadd.f32 %v2802, %v3097
  %v3135 = vadd.f32 %v2803, %v3097
  %v3136 = vadd.f32 %v2804, %v3097
  %v3137 = vadd.f32 %v2805, %v3097
  %v3138 = vadd.f32 %v2806, %v3097
  %v3139 = vadd.f32 %v2807, %v3097
  %v3140 = vadd.f32 %v2808, %v3097
  %v3141 = vadd.f32 %v2809, %v3097
  %v3142 = vadd.f32 %v2810, %v3097
  %v3143 = vadd.f32 %v2811, %v3097
  %v3144 = vadd.f32 %v2812, %v3097
  %v3145 = vadd.f32 %v2813, %v3097
  %v3146 = vadd.f32 %v2814, %v3097
  %v3147 = vadd.f32 %v2815, %v3097
  %v3148 = vadd.f32 %v2816, %v3097
  %v3149 = vadd.f32 %v2817, %v3097
  %v3150 = vadd.f32 %v2818, %v3097
  %v3151 = vadd.f32 %v2819, %v3097
  %v3152 = vadd.f32 %v2820, %v3097
  %v3153 = vadd.f32 %v2821, %v3097
  %v3154 = vadd.f32 %v2822, %v3097
  %v3155 = vadd.f32 %v2823, %v3097
  %v3156 = vadd.f32 %v2824, %v3097
  %v3157 = vadd.f32 %v2825, %v3097
  %v3158 = vadd.f32 %v2826, %v3097
  %v3159 = vadd.f32 %v2827, %v3097
  %v3160 = vadd.f32 %v2828, %v3097
  %v3161 = vadd.f32 %v2829, %v3097
  %v3162 = vadd.f32 %v2830, %v3097
  %v3163 = vmax.f32 %v3099, 0.0
  %v3164 = vmax.f32 %v3100, 0.0
  %v3165 = vmax.f32 %v3101, 0.0
  %v3166 = vmax.f32 %v3102, 0.0
  %v3167 = vmax.f32 %v3103, 0.0
  %v3168 = vmax.f32 %v3104, 0.0
  %v3169 = vmax.f32 %v3105, 0.0
  %v3170 = vmax.f32 %v3106, 0.0
  %v3171 = vmax.f32 %v3107, 0.0
  %v3172 = vmax.f32 %v3108, 0.0
  %v3173 = vmax.f32 %v3109, 0.0
  %v3174 = vmax.f32 %v3110, 0.0
  %v3175 = vmax.f32 %v3111, 0.0
  %v3176 = vmax.f32 %v3112, 0.0
  %v3177 = vmax.f32 %v3113, 0.0
  %v3178 = vmax.f32 %v3114, 0.0
  %v3179 = vmax.f32 %v3115, 0.0
  %v3180 = vmax.f32 %v3116, 0.0
  %v3181 = vmax.f32 %v3117, 0.0
  %v3182 = vmax.f32 %v3118, 0.0
  %v3183 = vmax.f32 %v3119, 0.0
  %v3184 = vmax.f32 %v3120, 0.0
  %v3185 = vmax.f32 %v3121, 0.0
  %v3186 = vmax.f32 %v3122, 0.0
  %v3187 = vmax.f32 %v3123, 0.0
  %v3188 = vmax.f32 %v3124, 0.0
  %v3189 = vmax.f32 %v3125, 0.0
  %v3190 = vmax.f32 %v3126, 0.0
  %v3191 = vmax.f32 %v3127, 0.0
  %v3192 = vmax.f32 %v3128, 0.0
  %v3193 = vmax.f32 %v3129, 0.0
  %v3194 = vmax.f32 %v3130, 0.0
  %v3195 = vmax.f32 %v3131, 0.0
  %v3196 = vmax.f32 %v3132, 0.0
  %v3197 = vmax.f32 %v3133, 0.0
  %v3198 = vmax.f32 %v3134, 0.0
  %v3199 = vmax.f32 %v3135, 0.0
  %v3200 = vmax.f32 %v3136, 0.0
  %v3201 = vmax.f32 %v3137, 0.0
  %v3202 = vmax.f32 %v3138, 0.0
  %v3203 = vmax.f32 %v3139, 0.0
  %v3204 = vmax.f32 %v3140, 0.0
  %v3205 = vmax.f32 %v3141, 0.0
  %v3206 = vmax.f32 %v3142, 0.0
  %v3207 = vmax.f32 %v3143, 0.0
  %v3208 = vmax.f32 %v3144, 0.0
  %v3209 = vmax.f32 %v3145, 0.0
  %v3210 = vmax.f32 %v3146, 0.0
  %v3211 = vmax.f32 %v3147, 0.0
  %v3212 = vmax.f32 %v3148, 0.0
  %v3213 = vmax.f32 %v3149, 0.0
  %v3214 = vmax.f32 %v3150, 0.0
  %v3215 = vmax.f32 %v3151, 0.0
  %v3216 = vmax.f32 %v3152, 0.0
  %v3217 = vmax.f32 %v3153, 0.0
  %v3218 = vmax.f32 %v3154, 0.0
  %v3219 = vmax.f32 %v3155, 0.0
  %v3220 = vmax.f32 %v3156, 0.0
  %v3221 = vmax.f32 %v3157, 0.0
  %v3222 = vmax.f32 %v3158, 0.0
  %v3223 = vmax.f32 %v3159, 0.0
  %v3224 = vmax.f32 %v3160, 0.0
  %v3225 = vmax.f32 %v3161, 0.0
  %v3226 = vmax.f32 %v3162, 0.0
  %3291 = vrot.lane.b32.xlu0 %v1618, 118
  %v3292 = vpop.permute.xlu0 %3291
  %3293 = vrot.lane.b32.xlu0 %v1624, 118
  %v3294 = vpop.permute.xlu0 %3293
  %3295 = vrot.lane.b32.xlu0 %v1630, 118
  %v3296 = vpop.permute.xlu0 %3295
  %3297 = vrot.lane.b32.xlu0 %v1636, 118
  %v3298 = vpop.permute.xlu0 %3297
  %3299 = vrot.lane.b32.xlu0 %v1642, 118
  %v3300 = vpop.permute.xlu0 %3299
  %3301 = vrot.lane.b32.xlu0 %v1648, 118
  %v3302 = vpop.permute.xlu0 %3301
  %3303 = vrot.lane.b32.xlu0 %v1654, 118
  %v3304 = vpop.permute.xlu0 %3303
  %3305 = vrot.lane.b32.xlu0 %v1660, 118
  %v3306 = vpop.permute.xlu0 %3305
  %3307 = vrot.lane.b32.xlu0 %v1666, 118
  %v3308 = vpop.permute.xlu0 %3307
  %3309 = vrot.lane.b32.xlu0 %v1672, 118
  %v3310 = vpop.permute.xlu0 %3309
  %3311 = vrot.lane.b32.xlu0 %v1678, 118
  %v3312 = vpop.permute.xlu0 %3311
  %3313 = vrot.lane.b32.xlu0 %v1684, 118
  %v3314 = vpop.permute.xlu0 %3313
  %3315 = vrot.lane.b32.xlu0 %v1690, 118
  %v3316 = vpop.permute.xlu0 %3315
  %3317 = vrot.lane.b32.xlu0 %v1696, 118
  %v3318 = vpop.permute.xlu0 %3317
  %3319 = vrot.lane.b32.xlu0 %v1702, 118
  %v3320 = vpop.permute.xlu0 %3319
  %3321 = vrot.lane.b32.xlu0 %v1708, 118
  %v3322 = vpop.permute.xlu0 %3321
  %3323 = vrot.lane.b32.xlu0 %v1714, 118
  %v3324 = vpop.permute.xlu0 %3323
  %3325 = vrot.lane.b32.xlu0 %v1720, 118
  %v3326 = vpop.permute.xlu0 %3325
  %3327 = vrot.lane.b32.xlu0 %v1726, 118
  %v3328 = vpop.permute.xlu0 %3327
  %3329 = vrot.lane.b32.xlu0 %v1732, 118
  %v3330 = vpop.permute.xlu0 %3329
  %3331 = vrot.lane.b32.xlu0 %v1738, 118
  %v3332 = vpop.permute.xlu0 %3331
  %3333 = vrot.lane.b32.xlu0 %v1744, 118
  %v3334 = vpop.permute.xlu0 %3333
  %3335 = vrot.lane.b32.xlu0 %v1750, 118
  %v3336 = vpop.permute.xlu0 %3335
  %3337 = vrot.lane.b32.xlu0 %v1756, 118
  %v3338 = vpop.permute.xlu0 %3337
  %3339 = vrot.lane.b32.xlu0 %v1762, 118
  %v3340 = vpop.permute.xlu0 %3339
  %3341 = vrot.lane.b32.xlu0 %v1768, 118
  %v3342 = vpop.permute.xlu0 %3341
  %3343 = vrot.lane.b32.xlu0 %v1774, 118
  %v3344 = vpop.permute.xlu0 %3343
  %3345 = vrot.lane.b32.xlu0 %v1780, 118
  %v3346 = vpop.permute.xlu0 %3345
  %3347 = vrot.lane.b32.xlu0 %v1786, 118
  %v3348 = vpop.permute.xlu0 %3347
  %3349 = vrot.lane.b32.xlu0 %v1792, 118
  %v3350 = vpop.permute.xlu0 %3349
  %3351 = vrot.lane.b32.xlu0 %v1798, 118
  %v3352 = vpop.permute.xlu0 %3351
  %3353 = vrot.lane.b32.xlu0 %v1804, 118
  %v3354 = vpop.permute.xlu0 %3353
  %3355 = vrot.lane.b32.xlu0 %v1810, 118
  %v3356 = vpop.permute.xlu0 %3355
  %3357 = vrot.lane.b32.xlu0 %v1816, 118
  %v3358 = vpop.permute.xlu0 %3357
  %3359 = vrot.lane.b32.xlu0 %v1822, 118
  %v3360 = vpop.permute.xlu0 %3359
  %3361 = vrot.lane.b32.xlu0 %v1828, 118
  %v3362 = vpop.permute.xlu0 %3361
  %3363 = vrot.lane.b32.xlu0 %v1834, 118
  %v3364 = vpop.permute.xlu0 %3363
  %3365 = vrot.lane.b32.xlu0 %v1840, 118
  %v3366 = vpop.permute.xlu0 %3365
  %3367 = vrot.lane.b32.xlu0 %v1846, 118
  %v3368 = vpop.permute.xlu0 %3367
  %3369 = vrot.lane.b32.xlu0 %v1852, 118
  %v3370 = vpop.permute.xlu0 %3369
  %3371 = vrot.lane.b32.xlu0 %v1858, 118
  %v3372 = vpop.permute.xlu0 %3371
  %3373 = vrot.lane.b32.xlu0 %v1864, 118
  %v3374 = vpop.permute.xlu0 %3373
  %3375 = vrot.lane.b32.xlu0 %v1870, 118
  %v3376 = vpop.permute.xlu0 %3375
  %3377 = vrot.lane.b32.xlu0 %v1876, 118
  %v3378 = vpop.permute.xlu0 %3377
  %3379 = vrot.lane.b32.xlu0 %v1882, 118
  %v3380 = vpop.permute.xlu0 %3379
  %3381 = vrot.lane.b32.xlu0 %v1888, 118
  %v3382 = vpop.permute.xlu0 %3381
  %3383 = vrot.lane.b32.xlu0 %v1894, 118
  %v3384 = vpop.permute.xlu0 %3383
  %3385 = vrot.lane.b32.xlu0 %v1900, 118
  %v3386 = vpop.permute.xlu0 %3385
  %3387 = vrot.lane.b32.xlu0 %v1906, 118
  %v3388 = vpop.permute.xlu0 %3387
  %3389 = vrot.lane.b32.xlu0 %v1912, 118
  %v3390 = vpop.permute.xlu0 %3389
  %3391 = vrot.lane.b32.xlu0 %v1918, 118
  %v3392 = vpop.permute.xlu0 %3391
  %3393 = vrot.lane.b32.xlu0 %v1924, 118
  %v3394 = vpop.permute.xlu0 %3393
  %3395 = vrot.lane.b32.xlu0 %v1930, 118
  %v3396 = vpop.permute.xlu0 %3395
  %3397 = vrot.lane.b32.xlu0 %v1936, 118
  %v3398 = vpop.permute.xlu0 %3397
  %3399 = vrot.lane.b32.xlu0 %v1942, 118
  %v3400 = vpop.permute.xlu0 %3399
  %3401 = vrot.lane.b32.xlu0 %v1948, 118
  %v3402 = vpop.permute.xlu0 %3401
  %3403 = vrot.lane.b32.xlu0 %v1954, 118
  %v3404 = vpop.permute.xlu0 %3403
  %3405 = vrot.lane.b32.xlu0 %v1960, 118
  %v3406 = vpop.permute.xlu0 %3405
  %3407 = vrot.lane.b32.xlu0 %v1966, 118
  %v3408 = vpop.permute.xlu0 %3407
  %3409 = vrot.lane.b32.xlu0 %v1972, 118
  %v3410 = vpop.permute.xlu0 %3409
  %3411 = vrot.lane.b32.xlu0 %v1978, 118
  %v3412 = vpop.permute.xlu0 %3411
  %3413 = vrot.lane.b32.xlu0 %v1984, 118
  %v3414 = vpop.permute.xlu0 %3413
  %3415 = vrot.lane.b32.xlu0 %v1990, 118
  %v3416 = vpop.permute.xlu0 %3415
  %3417 = vrot.lane.b32.xlu0 %v1996, 118
  %v3418 = vpop.permute.xlu0 %3417
  %v3483 = vmax.f32 %v1616, %v3292
  %v3484 = vmax.f32 %v1618, %v3292
  %v3485 = vmax.f32 %v1622, %v3294
  %v3486 = vmax.f32 %v1624, %v3294
  %v3487 = vmax.f32 %v1628, %v3296
  %v3488 = vmax.f32 %v1630, %v3296
  %v3489 = vmax.f32 %v1634, %v3298
  %v3490 = vmax.f32 %v1636, %v3298
  %v3491 = vmax.f32 %v1640, %v3300
  %v3492 = vmax.f32 %v1642, %v3300
  %v3493 = vmax.f32 %v1646, %v3302
  %v3494 = vmax.f32 %v1648, %v3302
  %v3495 = vmax.f32 %v1652, %v3304
  %v3496 = vmax.f32 %v1654, %v3304
  %v3497 = vmax.f32 %v1658, %v3306
  %v3498 = vmax.f32 %v1660, %v3306
  %v3499 = vmax.f32 %v1664, %v3308
  %v3500 = vmax.f32 %v1666, %v3308
  %v3501 = vmax.f32 %v1670, %v3310
  %v3502 = vmax.f32 %v1672, %v3310
  %v3503 = vmax.f32 %v1676, %v3312
  %v3504 = vmax.f32 %v1678, %v3312
  %v3505 = vmax.f32 %v1682, %v3314
  %v3506 = vmax.f32 %v1684, %v3314
  %v3507 = vmax.f32 %v1688, %v3316
  %v3508 = vmax.f32 %v1690, %v3316
  %v3509 = vmax.f32 %v1694, %v3318
  %v3510 = vmax.f32 %v1696, %v3318
  %v3511 = vmax.f32 %v1700, %v3320
  %v3512 = vmax.f32 %v1702, %v3320
  %v3513 = vmax.f32 %v1706, %v3322
  %v3514 = vmax.f32 %v1708, %v3322
  %v3515 = vmax.f32 %v1712, %v3324
  %v3516 = vmax.f32 %v1714, %v3324
  %v3517 = vmax.f32 %v1718, %v3326
  %v3518 = vmax.f32 %v1720, %v3326
  %v3519 = vmax.f32 %v1724, %v3328
  %v3520 = vmax.f32 %v1726, %v3328
  %v3521 = vmax.f32 %v1730, %v3330
  %v3522 = vmax.f32 %v1732, %v3330
  %v3523 = vmax.f32 %v1736, %v3332
  %v3524 = vmax.f32 %v1738, %v3332
  %v3525 = vmax.f32 %v1742, %v3334
  %v3526 = vmax.f32 %v1744, %v3334
  %v3527 = vmax.f32 %v1748, %v3336
  %v3528 = vmax.f32 %v1750, %v3336
  %v3529 = vmax.f32 %v1754, %v3338
  %v3530 = vmax.f32 %v1756, %v3338
  %v3531 = vmax.f32 %v1760, %v3340
  %v3532 = vmax.f32 %v1762, %v3340
  %v3533 = vmax.f32 %v1766, %v3342
  %v3534 = vmax.f32 %v1768, %v3342
  %v3535 = vmax.f32 %v1772, %v3344
  %v3536 = vmax.f32 %v1774, %v3344
  %v3537 = vmax.f32 %v1778, %v3346
  %v3538 = vmax.f32 %v1780, %v3346
  %v3539 = vmax.f32 %v1784, %v3348
  %v3540 = vmax.f32 %v1786, %v3348
  %v3541 = vmax.f32 %v1790, %v3350
  %v3542 = vmax.f32 %v1792, %v3350
  %v3543 = vmax.f32 %v1796, %v3352
  %v3544 = vmax.f32 %v1798, %v3352
  %v3545 = vmax.f32 %v1802, %v3354
  %v3546 = vmax.f32 %v1804, %v3354
  %v3547 = vmax.f32 %v1808, %v3356
  %v3548 = vmax.f32 %v1810, %v3356
  %v3549 = vmax.f32 %v1814, %v3358
  %v3550 = vmax.f32 %v1816, %v3358
  %v3551 = vmax.f32 %v1820, %v3360
  %v3552 = vmax.f32 %v1822, %v3360
  %v3553 = vmax.f32 %v1826, %v3362
  %v3554 = vmax.f32 %v1828, %v3362
  %v3555 = vmax.f32 %v1832, %v3364
  %v3556 = vmax.f32 %v1834, %v3364
  %v3557 = vmax.f32 %v1838, %v3366
  %v3558 = vmax.f32 %v1840, %v3366
  %v3559 = vmax.f32 %v1844, %v3368
  %v3560 = vmax.f32 %v1846, %v3368
  %v3561 = vmax.f32 %v1850, %v3370
  %v3562 = vmax.f32 %v1852, %v3370
  %v3563 = vmax.f32 %v1856, %v3372
  %v3564 = vmax.f32 %v1858, %v3372
  %v3565 = vmax.f32 %v1862, %v3374
  %v3566 = vmax.f32 %v1864, %v3374
  %v3567 = vmax.f32 %v1868, %v3376
  %v3568 = vmax.f32 %v1870, %v3376
  %v3569 = vmax.f32 %v1874, %v3378
  %v3570 = vmax.f32 %v1876, %v3378
  %v3571 = vmax.f32 %v1880, %v3380
  %v3572 = vmax.f32 %v1882, %v3380
  %v3573 = vmax.f32 %v1886, %v3382
  %v3574 = vmax.f32 %v1888, %v3382
  %v3575 = vmax.f32 %v1892, %v3384
  %v3576 = vmax.f32 %v1894, %v3384
  %v3577 = vmax.f32 %v1898, %v3386
  %v3578 = vmax.f32 %v1900, %v3386
  %v3579 = vmax.f32 %v1904, %v3388
  %v3580 = vmax.f32 %v1906, %v3388
  %v3581 = vmax.f32 %v1910, %v3390
  %v3582 = vmax.f32 %v1912, %v3390
  %v3583 = vmax.f32 %v1916, %v3392
  %v3584 = vmax.f32 %v1918, %v3392
  %v3585 = vmax.f32 %v1922, %v3394
  %v3586 = vmax.f32 %v1924, %v3394
  %v3587 = vmax.f32 %v1928, %v3396
  %v3588 = vmax.f32 %v1930, %v3396
  %v3589 = vmax.f32 %v1934, %v3398
  %v3590 = vmax.f32 %v1936, %v3398
  %v3591 = vmax.f32 %v1940, %v3400
  %v3592 = vmax.f32 %v1942, %v3400
  %v3593 = vmax.f32 %v1946, %v3402
  %v3594 = vmax.f32 %v1948, %v3402
  %v3595 = vmax.f32 %v1952, %v3404
  %v3596 = vmax.f32 %v1954, %v3404
  %v3597 = vmax.f32 %v1958, %v3406
  %v3598 = vmax.f32 %v1960, %v3406
  %v3599 = vmax.f32 %v1964, %v3408
  %v3600 = vmax.f32 %v1966, %v3408
  %v3601 = vmax.f32 %v1970, %v3410
  %v3602 = vmax.f32 %v1972, %v3410
  %v3603 = vmax.f32 %v1976, %v3412
  %v3604 = vmax.f32 %v1978, %v3412
  %v3605 = vmax.f32 %v1982, %v3414
  %v3606 = vmax.f32 %v1984, %v3414
  %v3607 = vmax.f32 %v1988, %v3416
  %v3608 = vmax.f32 %v1990, %v3416
  %v3609 = vmax.f32 %v1994, %v3418
  %v3610 = vmax.f32 %v1996, %v3418
  %3611 = vrot.lane.b32.xlu0 %v1618, 108
  %v3612 = vpop.permute.xlu0 %3611
  %3613 = vrot.lane.b32.xlu0 %v1624, 108
  %v3614 = vpop.permute.xlu0 %3613
  %3615 = vrot.lane.b32.xlu0 %v1630, 108
  %v3616 = vpop.permute.xlu0 %3615
  %3617 = vrot.lane.b32.xlu0 %v1636, 108
  %v3618 = vpop.permute.xlu0 %3617
  %3619 = vrot.lane.b32.xlu0 %v1642, 108
  %v3620 = vpop.permute.xlu0 %3619
  %3621 = vrot.lane.b32.xlu0 %v1648, 108
  %v3622 = vpop.permute.xlu0 %3621
  %3623 = vrot.lane.b32.xlu0 %v1654, 108
  %v3624 = vpop.permute.xlu0 %3623
  %3625 = vrot.lane.b32.xlu0 %v1660, 108
  %v3626 = vpop.permute.xlu0 %3625
  %3627 = vrot.lane.b32.xlu0 %v1666, 108
  %v3628 = vpop.permute.xlu0 %3627
  %3629 = vrot.lane.b32.xlu0 %v1672, 108
  %v3630 = vpop.permute.xlu0 %3629
  %3631 = vrot.lane.b32.xlu0 %v1678, 108
  %v3632 = vpop.permute.xlu0 %3631
  %3633 = vrot.lane.b32.xlu0 %v1684, 108
  %v3634 = vpop.permute.xlu0 %3633
  %3635 = vrot.lane.b32.xlu0 %v1690, 108
  %v3636 = vpop.permute.xlu0 %3635
  %3637 = vrot.lane.b32.xlu0 %v1696, 108
  %v3638 = vpop.permute.xlu0 %3637
  %3639 = vrot.lane.b32.xlu0 %v1702, 108
  %v3640 = vpop.permute.xlu0 %3639
  %3641 = vrot.lane.b32.xlu0 %v1708, 108
  %v3642 = vpop.permute.xlu0 %3641
  %3643 = vrot.lane.b32.xlu0 %v1714, 108
  %v3644 = vpop.permute.xlu0 %3643
  %3645 = vrot.lane.b32.xlu0 %v1720, 108
  %v3646 = vpop.permute.xlu0 %3645
  %3647 = vrot.lane.b32.xlu0 %v1726, 108
  %v3648 = vpop.permute.xlu0 %3647
  %3649 = vrot.lane.b32.xlu0 %v1732, 108
  %v3650 = vpop.permute.xlu0 %3649
  %3651 = vrot.lane.b32.xlu0 %v1738, 108
  %v3652 = vpop.permute.xlu0 %3651
  %3653 = vrot.lane.b32.xlu0 %v1744, 108
  %v3654 = vpop.permute.xlu0 %3653
  %3655 = vrot.lane.b32.xlu0 %v1750, 108
  %v3656 = vpop.permute.xlu0 %3655
  %3657 = vrot.lane.b32.xlu0 %v1756, 108
  %v3658 = vpop.permute.xlu0 %3657
  %3659 = vrot.lane.b32.xlu0 %v1762, 108
  %v3660 = vpop.permute.xlu0 %3659
  %3661 = vrot.lane.b32.xlu0 %v1768, 108
  %v3662 = vpop.permute.xlu0 %3661
  %3663 = vrot.lane.b32.xlu0 %v1774, 108
  %v3664 = vpop.permute.xlu0 %3663
  %3665 = vrot.lane.b32.xlu0 %v1780, 108
  %v3666 = vpop.permute.xlu0 %3665
  %3667 = vrot.lane.b32.xlu0 %v1786, 108
  %v3668 = vpop.permute.xlu0 %3667
  %3669 = vrot.lane.b32.xlu0 %v1792, 108
  %v3670 = vpop.permute.xlu0 %3669
  %3671 = vrot.lane.b32.xlu0 %v1798, 108
  %v3672 = vpop.permute.xlu0 %3671
  %3673 = vrot.lane.b32.xlu0 %v1804, 108
  %v3674 = vpop.permute.xlu0 %3673
  %3675 = vrot.lane.b32.xlu0 %v1810, 108
  %v3676 = vpop.permute.xlu0 %3675
  %3677 = vrot.lane.b32.xlu0 %v1816, 108
  %v3678 = vpop.permute.xlu0 %3677
  %3679 = vrot.lane.b32.xlu0 %v1822, 108
  %v3680 = vpop.permute.xlu0 %3679
  %3681 = vrot.lane.b32.xlu0 %v1828, 108
  %v3682 = vpop.permute.xlu0 %3681
  %3683 = vrot.lane.b32.xlu0 %v1834, 108
  %v3684 = vpop.permute.xlu0 %3683
  %3685 = vrot.lane.b32.xlu0 %v1840, 108
  %v3686 = vpop.permute.xlu0 %3685
  %3687 = vrot.lane.b32.xlu0 %v1846, 108
  %v3688 = vpop.permute.xlu0 %3687
  %3689 = vrot.lane.b32.xlu0 %v1852, 108
  %v3690 = vpop.permute.xlu0 %3689
  %3691 = vrot.lane.b32.xlu0 %v1858, 108
  %v3692 = vpop.permute.xlu0 %3691
  %3693 = vrot.lane.b32.xlu0 %v1864, 108
  %v3694 = vpop.permute.xlu0 %3693
  %3695 = vrot.lane.b32.xlu0 %v1870, 108
  %v3696 = vpop.permute.xlu0 %3695
  %3697 = vrot.lane.b32.xlu0 %v1876, 108
  %v3698 = vpop.permute.xlu0 %3697
  %3699 = vrot.lane.b32.xlu0 %v1882, 108
  %v3700 = vpop.permute.xlu0 %3699
  %3701 = vrot.lane.b32.xlu0 %v1888, 108
  %v3702 = vpop.permute.xlu0 %3701
  %3703 = vrot.lane.b32.xlu0 %v1894, 108
  %v3704 = vpop.permute.xlu0 %3703
  %3705 = vrot.lane.b32.xlu0 %v1900, 108
  %v3706 = vpop.permute.xlu0 %3705
  %3707 = vrot.lane.b32.xlu0 %v1906, 108
  %v3708 = vpop.permute.xlu0 %3707
  %3709 = vrot.lane.b32.xlu0 %v1912, 108
  %v3710 = vpop.permute.xlu0 %3709
  %3711 = vrot.lane.b32.xlu0 %v1918, 108
  %v3712 = vpop.permute.xlu0 %3711
  %3713 = vrot.lane.b32.xlu0 %v1924, 108
  %v3714 = vpop.permute.xlu0 %3713
  %3715 = vrot.lane.b32.xlu0 %v1930, 108
  %v3716 = vpop.permute.xlu0 %3715
  %3717 = vrot.lane.b32.xlu0 %v1936, 108
  %v3718 = vpop.permute.xlu0 %3717
  %3719 = vrot.lane.b32.xlu0 %v1942, 108
  %v3720 = vpop.permute.xlu0 %3719
  %3721 = vrot.lane.b32.xlu0 %v1948, 108
  %v3722 = vpop.permute.xlu0 %3721
  %3723 = vrot.lane.b32.xlu0 %v1954, 108
  %v3724 = vpop.permute.xlu0 %3723
  %3725 = vrot.lane.b32.xlu0 %v1960, 108
  %v3726 = vpop.permute.xlu0 %3725
  %3727 = vrot.lane.b32.xlu0 %v1966, 108
  %v3728 = vpop.permute.xlu0 %3727
  %3729 = vrot.lane.b32.xlu0 %v1972, 108
  %v3730 = vpop.permute.xlu0 %3729
  %3731 = vrot.lane.b32.xlu0 %v1978, 108
  %v3732 = vpop.permute.xlu0 %3731
  %3733 = vrot.lane.b32.xlu0 %v1984, 108
  %v3734 = vpop.permute.xlu0 %3733
  %3735 = vrot.lane.b32.xlu0 %v1990, 108
  %v3736 = vpop.permute.xlu0 %3735
  %3737 = vrot.lane.b32.xlu0 %v1996, 108
  %v3738 = vpop.permute.xlu0 %3737
  %v3803 = vmax.f32 %v3483, %v3612
  %v3804 = vmax.f32 %v3484, %v3612
  %v3805 = vmax.f32 %v3485, %v3614
  %v3806 = vmax.f32 %v3486, %v3614
  %v3807 = vmax.f32 %v3487, %v3616
  %v3808 = vmax.f32 %v3488, %v3616
  %v3809 = vmax.f32 %v3489, %v3618
  %v3810 = vmax.f32 %v3490, %v3618
  %v3811 = vmax.f32 %v3491, %v3620
  %v3812 = vmax.f32 %v3492, %v3620
  %v3813 = vmax.f32 %v3493, %v3622
  %v3814 = vmax.f32 %v3494, %v3622
  %v3815 = vmax.f32 %v3495, %v3624
  %v3816 = vmax.f32 %v3496, %v3624
  %v3817 = vmax.f32 %v3497, %v3626
  %v3818 = vmax.f32 %v3498, %v3626
  %v3819 = vmax.f32 %v3499, %v3628
  %v3820 = vmax.f32 %v3500, %v3628
  %v3821 = vmax.f32 %v3501, %v3630
  %v3822 = vmax.f32 %v3502, %v3630
  %v3823 = vmax.f32 %v3503, %v3632
  %v3824 = vmax.f32 %v3504, %v3632
  %v3825 = vmax.f32 %v3505, %v3634
  %v3826 = vmax.f32 %v3506, %v3634
  %v3827 = vmax.f32 %v3507, %v3636
  %v3828 = vmax.f32 %v3508, %v3636
  %v3829 = vmax.f32 %v3509, %v3638
  %v3830 = vmax.f32 %v3510, %v3638
  %v3831 = vmax.f32 %v3511, %v3640
  %v3832 = vmax.f32 %v3512, %v3640
  %v3833 = vmax.f32 %v3513, %v3642
  %v3834 = vmax.f32 %v3514, %v3642
  %v3835 = vmax.f32 %v3515, %v3644
  %v3836 = vmax.f32 %v3516, %v3644
  %v3837 = vmax.f32 %v3517, %v3646
  %v3838 = vmax.f32 %v3518, %v3646
  %v3839 = vmax.f32 %v3519, %v3648
  %v3840 = vmax.f32 %v3520, %v3648
  %v3841 = vmax.f32 %v3521, %v3650
  %v3842 = vmax.f32 %v3522, %v3650
  %v3843 = vmax.f32 %v3523, %v3652
  %v3844 = vmax.f32 %v3524, %v3652
  %v3845 = vmax.f32 %v3525, %v3654
  %v3846 = vmax.f32 %v3526, %v3654
  %v3847 = vmax.f32 %v3527, %v3656
  %v3848 = vmax.f32 %v3528, %v3656
  %v3849 = vmax.f32 %v3529, %v3658
  %v3850 = vmax.f32 %v3530, %v3658
  %v3851 = vmax.f32 %v3531, %v3660
  %v3852 = vmax.f32 %v3532, %v3660
  %v3853 = vmax.f32 %v3533, %v3662
  %v3854 = vmax.f32 %v3534, %v3662
  %v3855 = vmax.f32 %v3535, %v3664
  %v3856 = vmax.f32 %v3536, %v3664
  %v3857 = vmax.f32 %v3537, %v3666
  %v3858 = vmax.f32 %v3538, %v3666
  %v3859 = vmax.f32 %v3539, %v3668
  %v3860 = vmax.f32 %v3540, %v3668
  %v3861 = vmax.f32 %v3541, %v3670
  %v3862 = vmax.f32 %v3542, %v3670
  %v3863 = vmax.f32 %v3543, %v3672
  %v3864 = vmax.f32 %v3544, %v3672
  %v3865 = vmax.f32 %v3545, %v3674
  %v3866 = vmax.f32 %v3546, %v3674
  %v3867 = vmax.f32 %v3547, %v3676
  %v3868 = vmax.f32 %v3548, %v3676
  %v3869 = vmax.f32 %v3549, %v3678
  %v3870 = vmax.f32 %v3550, %v3678
  %v3871 = vmax.f32 %v3551, %v3680
  %v3872 = vmax.f32 %v3552, %v3680
  %v3873 = vmax.f32 %v3553, %v3682
  %v3874 = vmax.f32 %v3554, %v3682
  %v3875 = vmax.f32 %v3555, %v3684
  %v3876 = vmax.f32 %v3556, %v3684
  %v3877 = vmax.f32 %v3557, %v3686
  %v3878 = vmax.f32 %v3558, %v3686
  %v3879 = vmax.f32 %v3559, %v3688
  %v3880 = vmax.f32 %v3560, %v3688
  %v3881 = vmax.f32 %v3561, %v3690
  %v3882 = vmax.f32 %v3562, %v3690
  %v3883 = vmax.f32 %v3563, %v3692
  %v3884 = vmax.f32 %v3564, %v3692
  %v3885 = vmax.f32 %v3565, %v3694
  %v3886 = vmax.f32 %v3566, %v3694
  %v3887 = vmax.f32 %v3567, %v3696
  %v3888 = vmax.f32 %v3568, %v3696
  %v3889 = vmax.f32 %v3569, %v3698
  %v3890 = vmax.f32 %v3570, %v3698
  %v3891 = vmax.f32 %v3571, %v3700
  %v3892 = vmax.f32 %v3572, %v3700
  %v3893 = vmax.f32 %v3573, %v3702
  %v3894 = vmax.f32 %v3574, %v3702
  %v3895 = vmax.f32 %v3575, %v3704
  %v3896 = vmax.f32 %v3576, %v3704
  %v3897 = vmax.f32 %v3577, %v3706
  %v3898 = vmax.f32 %v3578, %v3706
  %v3899 = vmax.f32 %v3579, %v3708
  %v3900 = vmax.f32 %v3580, %v3708
  %v3901 = vmax.f32 %v3581, %v3710
  %v3902 = vmax.f32 %v3582, %v3710
  %v3903 = vmax.f32 %v3583, %v3712
  %v3904 = vmax.f32 %v3584, %v3712
  %v3905 = vmax.f32 %v3585, %v3714
  %v3906 = vmax.f32 %v3586, %v3714
  %v3907 = vmax.f32 %v3587, %v3716
  %v3908 = vmax.f32 %v3588, %v3716
  %v3909 = vmax.f32 %v3589, %v3718
  %v3910 = vmax.f32 %v3590, %v3718
  %v3911 = vmax.f32 %v3591, %v3720
  %v3912 = vmax.f32 %v3592, %v3720
  %v3913 = vmax.f32 %v3593, %v3722
  %v3914 = vmax.f32 %v3594, %v3722
  %v3915 = vmax.f32 %v3595, %v3724
  %v3916 = vmax.f32 %v3596, %v3724
  %v3917 = vmax.f32 %v3597, %v3726
  %v3918 = vmax.f32 %v3598, %v3726
  %v3919 = vmax.f32 %v3599, %v3728
  %v3920 = vmax.f32 %v3600, %v3728
  %v3921 = vmax.f32 %v3601, %v3730
  %v3922 = vmax.f32 %v3602, %v3730
  %v3923 = vmax.f32 %v3603, %v3732
  %v3924 = vmax.f32 %v3604, %v3732
  %v3925 = vmax.f32 %v3605, %v3734
  %v3926 = vmax.f32 %v3606, %v3734
  %v3927 = vmax.f32 %v3607, %v3736
  %v3928 = vmax.f32 %v3608, %v3736
  %v3929 = vmax.f32 %v3609, %v3738
  %v3930 = vmax.f32 %v3610, %v3738
  %3931 = vrot.lane.b32.xlu0 %v1618, 98
  %v3932 = vpop.permute.xlu0 %3931
  %3933 = vrot.lane.b32.xlu0 %v1624, 98
  %v3934 = vpop.permute.xlu0 %3933
  %3935 = vrot.lane.b32.xlu0 %v1630, 98
  %v3936 = vpop.permute.xlu0 %3935
  %3937 = vrot.lane.b32.xlu0 %v1636, 98
  %v3938 = vpop.permute.xlu0 %3937
  %3939 = vrot.lane.b32.xlu0 %v1642, 98
  %v3940 = vpop.permute.xlu0 %3939
  %3941 = vrot.lane.b32.xlu0 %v1648, 98
  %v3942 = vpop.permute.xlu0 %3941
  %3943 = vrot.lane.b32.xlu0 %v1654, 98
  %v3944 = vpop.permute.xlu0 %3943
  %3945 = vrot.lane.b32.xlu0 %v1660, 98
  %v3946 = vpop.permute.xlu0 %3945
  %3947 = vrot.lane.b32.xlu0 %v1666, 98
  %v3948 = vpop.permute.xlu0 %3947
  %3949 = vrot.lane.b32.xlu0 %v1672, 98
  %v3950 = vpop.permute.xlu0 %3949
  %3951 = vrot.lane.b32.xlu0 %v1678, 98
  %v3952 = vpop.permute.xlu0 %3951
  %3953 = vrot.lane.b32.xlu0 %v1684, 98
  %v3954 = vpop.permute.xlu0 %3953
  %3955 = vrot.lane.b32.xlu0 %v1690, 98
  %v3956 = vpop.permute.xlu0 %3955
  %3957 = vrot.lane.b32.xlu0 %v1696, 98
  %v3958 = vpop.permute.xlu0 %3957
  %3959 = vrot.lane.b32.xlu0 %v1702, 98
  %v3960 = vpop.permute.xlu0 %3959
  %3961 = vrot.lane.b32.xlu0 %v1708, 98
  %v3962 = vpop.permute.xlu0 %3961
  %3963 = vrot.lane.b32.xlu0 %v1714, 98
  %v3964 = vpop.permute.xlu0 %3963
  %3965 = vrot.lane.b32.xlu0 %v1720, 98
  %v3966 = vpop.permute.xlu0 %3965
  %3967 = vrot.lane.b32.xlu0 %v1726, 98
  %v3968 = vpop.permute.xlu0 %3967
  %3969 = vrot.lane.b32.xlu0 %v1732, 98
  %v3970 = vpop.permute.xlu0 %3969
  %3971 = vrot.lane.b32.xlu0 %v1738, 98
  %v3972 = vpop.permute.xlu0 %3971
  %3973 = vrot.lane.b32.xlu0 %v1744, 98
  %v3974 = vpop.permute.xlu0 %3973
  %3975 = vrot.lane.b32.xlu0 %v1750, 98
  %v3976 = vpop.permute.xlu0 %3975
  %3977 = vrot.lane.b32.xlu0 %v1756, 98
  %v3978 = vpop.permute.xlu0 %3977
  %3979 = vrot.lane.b32.xlu0 %v1762, 98
  %v3980 = vpop.permute.xlu0 %3979
  %3981 = vrot.lane.b32.xlu0 %v1768, 98
  %v3982 = vpop.permute.xlu0 %3981
  %3983 = vrot.lane.b32.xlu0 %v1774, 98
  %v3984 = vpop.permute.xlu0 %3983
  %3985 = vrot.lane.b32.xlu0 %v1780, 98
  %v3986 = vpop.permute.xlu0 %3985
  %3987 = vrot.lane.b32.xlu0 %v1786, 98
  %v3988 = vpop.permute.xlu0 %3987
  %3989 = vrot.lane.b32.xlu0 %v1792, 98
  %v3990 = vpop.permute.xlu0 %3989
  %3991 = vrot.lane.b32.xlu0 %v1798, 98
  %v3992 = vpop.permute.xlu0 %3991
  %3993 = vrot.lane.b32.xlu0 %v1804, 98
  %v3994 = vpop.permute.xlu0 %3993
  %3995 = vrot.lane.b32.xlu0 %v1810, 98
  %v3996 = vpop.permute.xlu0 %3995
  %3997 = vrot.lane.b32.xlu0 %v1816, 98
  %v3998 = vpop.permute.xlu0 %3997
  %3999 = vrot.lane.b32.xlu0 %v1822, 98
  %v4000 = vpop.permute.xlu0 %3999
  %4001 = vrot.lane.b32.xlu0 %v1828, 98
  %v4002 = vpop.permute.xlu0 %4001
  %4003 = vrot.lane.b32.xlu0 %v1834, 98
  %v4004 = vpop.permute.xlu0 %4003
  %4005 = vrot.lane.b32.xlu0 %v1840, 98
  %v4006 = vpop.permute.xlu0 %4005
  %4007 = vrot.lane.b32.xlu0 %v1846, 98
  %v4008 = vpop.permute.xlu0 %4007
  %4009 = vrot.lane.b32.xlu0 %v1852, 98
  %v4010 = vpop.permute.xlu0 %4009
  %4011 = vrot.lane.b32.xlu0 %v1858, 98
  %v4012 = vpop.permute.xlu0 %4011
  %4013 = vrot.lane.b32.xlu0 %v1864, 98
  %v4014 = vpop.permute.xlu0 %4013
  %4015 = vrot.lane.b32.xlu0 %v1870, 98
  %v4016 = vpop.permute.xlu0 %4015
  %4017 = vrot.lane.b32.xlu0 %v1876, 98
  %v4018 = vpop.permute.xlu0 %4017
  %4019 = vrot.lane.b32.xlu0 %v1882, 98
  %v4020 = vpop.permute.xlu0 %4019
  %4021 = vrot.lane.b32.xlu0 %v1888, 98
  %v4022 = vpop.permute.xlu0 %4021
  %4023 = vrot.lane.b32.xlu0 %v1894, 98
  %v4024 = vpop.permute.xlu0 %4023
  %4025 = vrot.lane.b32.xlu0 %v1900, 98
  %v4026 = vpop.permute.xlu0 %4025
  %4027 = vrot.lane.b32.xlu0 %v1906, 98
  %v4028 = vpop.permute.xlu0 %4027
  %4029 = vrot.lane.b32.xlu0 %v1912, 98
  %v4030 = vpop.permute.xlu0 %4029
  %4031 = vrot.lane.b32.xlu0 %v1918, 98
  %v4032 = vpop.permute.xlu0 %4031
  %4033 = vrot.lane.b32.xlu0 %v1924, 98
  %v4034 = vpop.permute.xlu0 %4033
  %4035 = vrot.lane.b32.xlu0 %v1930, 98
  %v4036 = vpop.permute.xlu0 %4035
  %4037 = vrot.lane.b32.xlu0 %v1936, 98
  %v4038 = vpop.permute.xlu0 %4037
  %4039 = vrot.lane.b32.xlu0 %v1942, 98
  %v4040 = vpop.permute.xlu0 %4039
  %4041 = vrot.lane.b32.xlu0 %v1948, 98
  %v4042 = vpop.permute.xlu0 %4041
  %4043 = vrot.lane.b32.xlu0 %v1954, 98
  %v4044 = vpop.permute.xlu0 %4043
  %4045 = vrot.lane.b32.xlu0 %v1960, 98
  %v4046 = vpop.permute.xlu0 %4045
  %4047 = vrot.lane.b32.xlu0 %v1966, 98
  %v4048 = vpop.permute.xlu0 %4047
  %4049 = vrot.lane.b32.xlu0 %v1972, 98
  %v4050 = vpop.permute.xlu0 %4049
  %4051 = vrot.lane.b32.xlu0 %v1978, 98
  %v4052 = vpop.permute.xlu0 %4051
  %4053 = vrot.lane.b32.xlu0 %v1984, 98
  %v4054 = vpop.permute.xlu0 %4053
  %4055 = vrot.lane.b32.xlu0 %v1990, 98
  %v4056 = vpop.permute.xlu0 %4055
  %4057 = vrot.lane.b32.xlu0 %v1996, 98
  %v4058 = vpop.permute.xlu0 %4057
  %v4123 = vmax.f32 %v3803, %v3932
  %v4124 = vmax.f32 %v3804, %v3932
  %v4125 = vmax.f32 %v3805, %v3934
  %v4126 = vmax.f32 %v3806, %v3934
  %v4127 = vmax.f32 %v3807, %v3936
  %v4128 = vmax.f32 %v3808, %v3936
  %v4129 = vmax.f32 %v3809, %v3938
  %v4130 = vmax.f32 %v3810, %v3938
  %v4131 = vmax.f32 %v3811, %v3940
  %v4132 = vmax.f32 %v3812, %v3940
  %v4133 = vmax.f32 %v3813, %v3942
  %v4134 = vmax.f32 %v3814, %v3942
  %v4135 = vmax.f32 %v3815, %v3944
  %v4136 = vmax.f32 %v3816, %v3944
  %v4137 = vmax.f32 %v3817, %v3946
  %v4138 = vmax.f32 %v3818, %v3946
  %v4139 = vmax.f32 %v3819, %v3948
  %v4140 = vmax.f32 %v3820, %v3948
  %v4141 = vmax.f32 %v3821, %v3950
  %v4142 = vmax.f32 %v3822, %v3950
  %v4143 = vmax.f32 %v3823, %v3952
  %v4144 = vmax.f32 %v3824, %v3952
  %v4145 = vmax.f32 %v3825, %v3954
  %v4146 = vmax.f32 %v3826, %v3954
  %v4147 = vmax.f32 %v3827, %v3956
  %v4148 = vmax.f32 %v3828, %v3956
  %v4149 = vmax.f32 %v3829, %v3958
  %v4150 = vmax.f32 %v3830, %v3958
  %v4151 = vmax.f32 %v3831, %v3960
  %v4152 = vmax.f32 %v3832, %v3960
  %v4153 = vmax.f32 %v3833, %v3962
  %v4154 = vmax.f32 %v3834, %v3962
  %v4155 = vmax.f32 %v3835, %v3964
  %v4156 = vmax.f32 %v3836, %v3964
  %v4157 = vmax.f32 %v3837, %v3966
  %v4158 = vmax.f32 %v3838, %v3966
  %v4159 = vmax.f32 %v3839, %v3968
  %v4160 = vmax.f32 %v3840, %v3968
  %v4161 = vmax.f32 %v3841, %v3970
  %v4162 = vmax.f32 %v3842, %v3970
  %v4163 = vmax.f32 %v3843, %v3972
  %v4164 = vmax.f32 %v3844, %v3972
  %v4165 = vmax.f32 %v3845, %v3974
  %v4166 = vmax.f32 %v3846, %v3974
  %v4167 = vmax.f32 %v3847, %v3976
  %v4168 = vmax.f32 %v3848, %v3976
  %v4169 = vmax.f32 %v3849, %v3978
  %v4170 = vmax.f32 %v3850, %v3978
  %v4171 = vmax.f32 %v3851, %v3980
  %v4172 = vmax.f32 %v3852, %v3980
  %v4173 = vmax.f32 %v3853, %v3982
  %v4174 = vmax.f32 %v3854, %v3982
  %v4175 = vmax.f32 %v3855, %v3984
  %v4176 = vmax.f32 %v3856, %v3984
  %v4177 = vmax.f32 %v3857, %v3986
  %v4178 = vmax.f32 %v3858, %v3986
  %v4179 = vmax.f32 %v3859, %v3988
  %v4180 = vmax.f32 %v3860, %v3988
  %v4181 = vmax.f32 %v3861, %v3990
  %v4182 = vmax.f32 %v3862, %v3990
  %v4183 = vmax.f32 %v3863, %v3992
  %v4184 = vmax.f32 %v3864, %v3992
  %v4185 = vmax.f32 %v3865, %v3994
  %v4186 = vmax.f32 %v3866, %v3994
  %v4187 = vmax.f32 %v3867, %v3996
  %v4188 = vmax.f32 %v3868, %v3996
  %v4189 = vmax.f32 %v3869, %v3998
  %v4190 = vmax.f32 %v3870, %v3998
  %v4191 = vmax.f32 %v3871, %v4000
  %v4192 = vmax.f32 %v3872, %v4000
  %v4193 = vmax.f32 %v3873, %v4002
  %v4194 = vmax.f32 %v3874, %v4002
  %v4195 = vmax.f32 %v3875, %v4004
  %v4196 = vmax.f32 %v3876, %v4004
  %v4197 = vmax.f32 %v3877, %v4006
  %v4198 = vmax.f32 %v3878, %v4006
  %v4199 = vmax.f32 %v3879, %v4008
  %v4200 = vmax.f32 %v3880, %v4008
  %v4201 = vmax.f32 %v3881, %v4010
  %v4202 = vmax.f32 %v3882, %v4010
  %v4203 = vmax.f32 %v3883, %v4012
  %v4204 = vmax.f32 %v3884, %v4012
  %v4205 = vmax.f32 %v3885, %v4014
  %v4206 = vmax.f32 %v3886, %v4014
  %v4207 = vmax.f32 %v3887, %v4016
  %v4208 = vmax.f32 %v3888, %v4016
  %v4209 = vmax.f32 %v3889, %v4018
  %v4210 = vmax.f32 %v3890, %v4018
  %v4211 = vmax.f32 %v3891, %v4020
  %v4212 = vmax.f32 %v3892, %v4020
  %v4213 = vmax.f32 %v3893, %v4022
  %v4214 = vmax.f32 %v3894, %v4022
  %v4215 = vmax.f32 %v3895, %v4024
  %v4216 = vmax.f32 %v3896, %v4024
  %v4217 = vmax.f32 %v3897, %v4026
  %v4218 = vmax.f32 %v3898, %v4026
  %v4219 = vmax.f32 %v3899, %v4028
  %v4220 = vmax.f32 %v3900, %v4028
  %v4221 = vmax.f32 %v3901, %v4030
  %v4222 = vmax.f32 %v3902, %v4030
  %v4223 = vmax.f32 %v3903, %v4032
  %v4224 = vmax.f32 %v3904, %v4032
  %v4225 = vmax.f32 %v3905, %v4034
  %v4226 = vmax.f32 %v3906, %v4034
  %v4227 = vmax.f32 %v3907, %v4036
  %v4228 = vmax.f32 %v3908, %v4036
  %v4229 = vmax.f32 %v3909, %v4038
  %v4230 = vmax.f32 %v3910, %v4038
  %v4231 = vmax.f32 %v3911, %v4040
  %v4232 = vmax.f32 %v3912, %v4040
  %v4233 = vmax.f32 %v3913, %v4042
  %v4234 = vmax.f32 %v3914, %v4042
  %v4235 = vmax.f32 %v3915, %v4044
  %v4236 = vmax.f32 %v3916, %v4044
  %v4237 = vmax.f32 %v3917, %v4046
  %v4238 = vmax.f32 %v3918, %v4046
  %v4239 = vmax.f32 %v3919, %v4048
  %v4240 = vmax.f32 %v3920, %v4048
  %v4241 = vmax.f32 %v3921, %v4050
  %v4242 = vmax.f32 %v3922, %v4050
  %v4243 = vmax.f32 %v3923, %v4052
  %v4244 = vmax.f32 %v3924, %v4052
  %v4245 = vmax.f32 %v3925, %v4054
  %v4246 = vmax.f32 %v3926, %v4054
  %v4247 = vmax.f32 %v3927, %v4056
  %v4248 = vmax.f32 %v3928, %v4056
  %v4249 = vmax.f32 %v3929, %v4058
  %v4250 = vmax.f32 %v3930, %v4058
  %4251 = vrot.lane.b32.xlu0 %v2835, 120
  %v4252 = vpop.permute.xlu0 %4251
  %v4254 = vadd.f32 %v4123, %v4252
  %v4255 = vadd.f32 %v4124, %v4252
  %v4256 = vadd.f32 %v4125, %v4252
  %v4257 = vadd.f32 %v4126, %v4252
  %v4258 = vadd.f32 %v4127, %v4252
  %v4259 = vadd.f32 %v4128, %v4252
  %v4260 = vadd.f32 %v4129, %v4252
  %v4261 = vadd.f32 %v4130, %v4252
  %v4262 = vadd.f32 %v4131, %v4252
  %v4263 = vadd.f32 %v4132, %v4252
  %v4264 = vadd.f32 %v4133, %v4252
  %v4265 = vadd.f32 %v4134, %v4252
  %v4266 = vadd.f32 %v4135, %v4252
  %v4267 = vadd.f32 %v4136, %v4252
  %v4268 = vadd.f32 %v4137, %v4252
  %v4269 = vadd.f32 %v4138, %v4252
  %v4270 = vadd.f32 %v4139, %v4252
  %v4271 = vadd.f32 %v4140, %v4252
  %v4272 = vadd.f32 %v4141, %v4252
  %v4273 = vadd.f32 %v4142, %v4252
  %v4274 = vadd.f32 %v4143, %v4252
  %v4275 = vadd.f32 %v4144, %v4252
  %v4276 = vadd.f32 %v4145, %v4252
  %v4277 = vadd.f32 %v4146, %v4252
  %v4278 = vadd.f32 %v4147, %v4252
  %v4279 = vadd.f32 %v4148, %v4252
  %v4280 = vadd.f32 %v4149, %v4252
  %v4281 = vadd.f32 %v4150, %v4252
  %v4282 = vadd.f32 %v4151, %v4252
  %v4283 = vadd.f32 %v4152, %v4252
  %v4284 = vadd.f32 %v4153, %v4252
  %v4285 = vadd.f32 %v4154, %v4252
  %v4286 = vadd.f32 %v4155, %v4252
  %v4287 = vadd.f32 %v4156, %v4252
  %v4288 = vadd.f32 %v4157, %v4252
  %v4289 = vadd.f32 %v4158, %v4252
  %v4290 = vadd.f32 %v4159, %v4252
  %v4291 = vadd.f32 %v4160, %v4252
  %v4292 = vadd.f32 %v4161, %v4252
  %v4293 = vadd.f32 %v4162, %v4252
  %v4294 = vadd.f32 %v4163, %v4252
  %v4295 = vadd.f32 %v4164, %v4252
  %v4296 = vadd.f32 %v4165, %v4252
  %v4297 = vadd.f32 %v4166, %v4252
  %v4298 = vadd.f32 %v4167, %v4252
  %v4299 = vadd.f32 %v4168, %v4252
  %v4300 = vadd.f32 %v4169, %v4252
  %v4301 = vadd.f32 %v4170, %v4252
  %v4302 = vadd.f32 %v4171, %v4252
  %v4303 = vadd.f32 %v4172, %v4252
  %v4304 = vadd.f32 %v4173, %v4252
  %v4305 = vadd.f32 %v4174, %v4252
  %v4306 = vadd.f32 %v4175, %v4252
  %v4307 = vadd.f32 %v4176, %v4252
  %v4308 = vadd.f32 %v4177, %v4252
  %v4309 = vadd.f32 %v4178, %v4252
  %v4310 = vadd.f32 %v4179, %v4252
  %v4311 = vadd.f32 %v4180, %v4252
  %v4312 = vadd.f32 %v4181, %v4252
  %v4313 = vadd.f32 %v4182, %v4252
  %v4314 = vadd.f32 %v4183, %v4252
  %v4315 = vadd.f32 %v4184, %v4252
  %v4316 = vadd.f32 %v4185, %v4252
  %v4317 = vadd.f32 %v4186, %v4252
  %v4318 = vadd.f32 %v4187, %v4252
  %v4319 = vadd.f32 %v4188, %v4252
  %v4320 = vadd.f32 %v4189, %v4252
  %v4321 = vadd.f32 %v4190, %v4252
  %v4322 = vadd.f32 %v4191, %v4252
  %v4323 = vadd.f32 %v4192, %v4252
  %v4324 = vadd.f32 %v4193, %v4252
  %v4325 = vadd.f32 %v4194, %v4252
  %v4326 = vadd.f32 %v4195, %v4252
  %v4327 = vadd.f32 %v4196, %v4252
  %v4328 = vadd.f32 %v4197, %v4252
  %v4329 = vadd.f32 %v4198, %v4252
  %v4330 = vadd.f32 %v4199, %v4252
  %v4331 = vadd.f32 %v4200, %v4252
  %v4332 = vadd.f32 %v4201, %v4252
  %v4333 = vadd.f32 %v4202, %v4252
  %v4334 = vadd.f32 %v4203, %v4252
  %v4335 = vadd.f32 %v4204, %v4252
  %v4336 = vadd.f32 %v4205, %v4252
  %v4337 = vadd.f32 %v4206, %v4252
  %v4338 = vadd.f32 %v4207, %v4252
  %v4339 = vadd.f32 %v4208, %v4252
  %v4340 = vadd.f32 %v4209, %v4252
  %v4341 = vadd.f32 %v4210, %v4252
  %v4342 = vadd.f32 %v4211, %v4252
  %v4343 = vadd.f32 %v4212, %v4252
  %v4344 = vadd.f32 %v4213, %v4252
  %v4345 = vadd.f32 %v4214, %v4252
  %v4346 = vadd.f32 %v4215, %v4252
  %v4347 = vadd.f32 %v4216, %v4252
  %v4348 = vadd.f32 %v4217, %v4252
  %v4349 = vadd.f32 %v4218, %v4252
  %v4350 = vadd.f32 %v4219, %v4252
  %v4351 = vadd.f32 %v4220, %v4252
  %v4352 = vadd.f32 %v4221, %v4252
  %v4353 = vadd.f32 %v4222, %v4252
  %v4354 = vadd.f32 %v4223, %v4252
  %v4355 = vadd.f32 %v4224, %v4252
  %v4356 = vadd.f32 %v4225, %v4252
  %v4357 = vadd.f32 %v4226, %v4252
  %v4358 = vadd.f32 %v4227, %v4252
  %v4359 = vadd.f32 %v4228, %v4252
  %v4360 = vadd.f32 %v4229, %v4252
  %v4361 = vadd.f32 %v4230, %v4252
  %v4362 = vadd.f32 %v4231, %v4252
  %v4363 = vadd.f32 %v4232, %v4252
  %v4364 = vadd.f32 %v4233, %v4252
  %v4365 = vadd.f32 %v4234, %v4252
  %v4366 = vadd.f32 %v4235, %v4252
  %v4367 = vadd.f32 %v4236, %v4252
  %v4368 = vadd.f32 %v4237, %v4252
  %v4369 = vadd.f32 %v4238, %v4252
  %v4370 = vadd.f32 %v4239, %v4252
  %v4371 = vadd.f32 %v4240, %v4252
  %v4372 = vadd.f32 %v4241, %v4252
  %v4373 = vadd.f32 %v4242, %v4252
  %v4374 = vadd.f32 %v4243, %v4252
  %v4375 = vadd.f32 %v4244, %v4252
  %v4376 = vadd.f32 %v4245, %v4252
  %v4377 = vadd.f32 %v4246, %v4252
  %v4378 = vadd.f32 %v4247, %v4252
  %v4379 = vadd.f32 %v4248, %v4252
  %v4380 = vadd.f32 %v4249, %v4252
  %v4381 = vadd.f32 %v4250, %v4252
  %v4382 = vmax.f32 %v4254, 0.0
  %v4383 = vmax.f32 %v4255, 0.0
  %v4384 = vmax.f32 %v4256, 0.0
  %v4385 = vmax.f32 %v4257, 0.0
  %v4386 = vmax.f32 %v4258, 0.0
  %v4387 = vmax.f32 %v4259, 0.0
  %v4388 = vmax.f32 %v4260, 0.0
  %v4389 = vmax.f32 %v4261, 0.0
  %v4390 = vmax.f32 %v4262, 0.0
  %v4391 = vmax.f32 %v4263, 0.0
  %v4392 = vmax.f32 %v4264, 0.0
  %v4393 = vmax.f32 %v4265, 0.0
  %v4394 = vmax.f32 %v4266, 0.0
  %v4395 = vmax.f32 %v4267, 0.0
  %v4396 = vmax.f32 %v4268, 0.0
  %v4397 = vmax.f32 %v4269, 0.0
  %v4398 = vmax.f32 %v4270, 0.0
  %v4399 = vmax.f32 %v4271, 0.0
  %v4400 = vmax.f32 %v4272, 0.0
  %v4401 = vmax.f32 %v4273, 0.0
  %v4402 = vmax.f32 %v4274, 0.0
  %v4403 = vmax.f32 %v4275, 0.0
  %v4404 = vmax.f32 %v4276, 0.0
  %v4405 = vmax.f32 %v4277, 0.0
  %v4406 = vmax.f32 %v4278, 0.0
  %v4407 = vmax.f32 %v4279, 0.0
  %v4408 = vmax.f32 %v4280, 0.0
  %v4409 = vmax.f32 %v4281, 0.0
  %v4410 = vmax.f32 %v4282, 0.0
  %v4411 = vmax.f32 %v4283, 0.0
  %v4412 = vmax.f32 %v4284, 0.0
  %v4413 = vmax.f32 %v4285, 0.0
  %v4414 = vmax.f32 %v4286, 0.0
  %v4415 = vmax.f32 %v4287, 0.0
  %v4416 = vmax.f32 %v4288, 0.0
  %v4417 = vmax.f32 %v4289, 0.0
  %v4418 = vmax.f32 %v4290, 0.0
  %v4419 = vmax.f32 %v4291, 0.0
  %v4420 = vmax.f32 %v4292, 0.0
  %v4421 = vmax.f32 %v4293, 0.0
  %v4422 = vmax.f32 %v4294, 0.0
  %v4423 = vmax.f32 %v4295, 0.0
  %v4424 = vmax.f32 %v4296, 0.0
  %v4425 = vmax.f32 %v4297, 0.0
  %v4426 = vmax.f32 %v4298, 0.0
  %v4427 = vmax.f32 %v4299, 0.0
  %v4428 = vmax.f32 %v4300, 0.0
  %v4429 = vmax.f32 %v4301, 0.0
  %v4430 = vmax.f32 %v4302, 0.0
  %v4431 = vmax.f32 %v4303, 0.0
  %v4432 = vmax.f32 %v4304, 0.0
  %v4433 = vmax.f32 %v4305, 0.0
  %v4434 = vmax.f32 %v4306, 0.0
  %v4435 = vmax.f32 %v4307, 0.0
  %v4436 = vmax.f32 %v4308, 0.0
  %v4437 = vmax.f32 %v4309, 0.0
  %v4438 = vmax.f32 %v4310, 0.0
  %v4439 = vmax.f32 %v4311, 0.0
  %v4440 = vmax.f32 %v4312, 0.0
  %v4441 = vmax.f32 %v4313, 0.0
  %v4442 = vmax.f32 %v4314, 0.0
  %v4443 = vmax.f32 %v4315, 0.0
  %v4444 = vmax.f32 %v4316, 0.0
  %v4445 = vmax.f32 %v4317, 0.0
  %v4446 = vmax.f32 %v4318, 0.0
  %v4447 = vmax.f32 %v4319, 0.0
  %v4448 = vmax.f32 %v4320, 0.0
  %v4449 = vmax.f32 %v4321, 0.0
  %v4450 = vmax.f32 %v4322, 0.0
  %v4451 = vmax.f32 %v4323, 0.0
  %v4452 = vmax.f32 %v4324, 0.0
  %v4453 = vmax.f32 %v4325, 0.0
  %v4454 = vmax.f32 %v4326, 0.0
  %v4455 = vmax.f32 %v4327, 0.0
  %v4456 = vmax.f32 %v4328, 0.0
  %v4457 = vmax.f32 %v4329, 0.0
  %v4458 = vmax.f32 %v4330, 0.0
  %v4459 = vmax.f32 %v4331, 0.0
  %v4460 = vmax.f32 %v4332, 0.0
  %v4461 = vmax.f32 %v4333, 0.0
  %v4462 = vmax.f32 %v4334, 0.0
  %v4463 = vmax.f32 %v4335, 0.0
  %v4464 = vmax.f32 %v4336, 0.0
  %v4465 = vmax.f32 %v4337, 0.0
  %v4466 = vmax.f32 %v4338, 0.0
  %v4467 = vmax.f32 %v4339, 0.0
  %v4468 = vmax.f32 %v4340, 0.0
  %v4469 = vmax.f32 %v4341, 0.0
  %v4470 = vmax.f32 %v4342, 0.0
  %v4471 = vmax.f32 %v4343, 0.0
  %v4472 = vmax.f32 %v4344, 0.0
  %v4473 = vmax.f32 %v4345, 0.0
  %v4474 = vmax.f32 %v4346, 0.0
  %v4475 = vmax.f32 %v4347, 0.0
  %v4476 = vmax.f32 %v4348, 0.0
  %v4477 = vmax.f32 %v4349, 0.0
  %v4478 = vmax.f32 %v4350, 0.0
  %v4479 = vmax.f32 %v4351, 0.0
  %v4480 = vmax.f32 %v4352, 0.0
  %v4481 = vmax.f32 %v4353, 0.0
  %v4482 = vmax.f32 %v4354, 0.0
  %v4483 = vmax.f32 %v4355, 0.0
  %v4484 = vmax.f32 %v4356, 0.0
  %v4485 = vmax.f32 %v4357, 0.0
  %v4486 = vmax.f32 %v4358, 0.0
  %v4487 = vmax.f32 %v4359, 0.0
  %v4488 = vmax.f32 %v4360, 0.0
  %v4489 = vmax.f32 %v4361, 0.0
  %v4490 = vmax.f32 %v4362, 0.0
  %v4491 = vmax.f32 %v4363, 0.0
  %v4492 = vmax.f32 %v4364, 0.0
  %v4493 = vmax.f32 %v4365, 0.0
  %v4494 = vmax.f32 %v4366, 0.0
  %v4495 = vmax.f32 %v4367, 0.0
  %v4496 = vmax.f32 %v4368, 0.0
  %v4497 = vmax.f32 %v4369, 0.0
  %v4498 = vmax.f32 %v4370, 0.0
  %v4499 = vmax.f32 %v4371, 0.0
  %v4500 = vmax.f32 %v4372, 0.0
  %v4501 = vmax.f32 %v4373, 0.0
  %v4502 = vmax.f32 %v4374, 0.0
  %v4503 = vmax.f32 %v4375, 0.0
  %v4504 = vmax.f32 %v4376, 0.0
  %v4505 = vmax.f32 %v4377, 0.0
  %v4506 = vmax.f32 %v4378, 0.0
  %v4507 = vmax.f32 %v4379, 0.0
  %v4508 = vmax.f32 %v4380, 0.0
  %v4509 = vmax.f32 %v4381, 0.0
  %v4574 = vrot.slane %v2901, 7
  %v4575 = vrot.slane %v2902, 7
  %v4576 = vrot.slane %v2903, 7
  %v4577 = vrot.slane %v2904, 7
  %v4578 = vrot.slane %v2905, 7
  %v4579 = vrot.slane %v2906, 7
  %v4580 = vrot.slane %v2907, 7
  %v4581 = vrot.slane %v2908, 7
  %v4582 = vrot.slane %v2909, 7
  %v4583 = vrot.slane %v2910, 7
  %v4584 = vrot.slane %v2911, 7
  %v4585 = vrot.slane %v2912, 7
  %v4586 = vrot.slane %v2913, 7
  %v4587 = vrot.slane %v2914, 7
  %v4588 = vrot.slane %v2915, 7
  %v4589 = vrot.slane %v2916, 7
  %v4590 = vrot.slane %v2917, 7
  %v4591 = vrot.slane %v2918, 7
  %v4592 = vrot.slane %v2919, 7
  %v4593 = vrot.slane %v2920, 7
  %v4594 = vrot.slane %v2921, 7
  %v4595 = vrot.slane %v2922, 7
  %v4596 = vrot.slane %v2923, 7
  %v4597 = vrot.slane %v2924, 7
  %v4598 = vrot.slane %v2925, 7
  %v4599 = vrot.slane %v2926, 7
  %v4600 = vrot.slane %v2927, 7
  %v4601 = vrot.slane %v2928, 7
  %v4602 = vrot.slane %v2929, 7
  %v4603 = vrot.slane %v2930, 7
  %v4604 = vrot.slane %v2931, 7
  %v4605 = vrot.slane %v2932, 7
  %v4606 = vrot.slane %v2933, 7
  %v4607 = vrot.slane %v2934, 7
  %v4608 = vrot.slane %v2935, 7
  %v4609 = vrot.slane %v2936, 7
  %v4610 = vrot.slane %v2937, 7
  %v4611 = vrot.slane %v2938, 7
  %v4612 = vrot.slane %v2939, 7
  %v4613 = vrot.slane %v2940, 7
  %v4614 = vrot.slane %v2941, 7
  %v4615 = vrot.slane %v2942, 7
  %v4616 = vrot.slane %v2943, 7
  %v4617 = vrot.slane %v2944, 7
  %v4618 = vrot.slane %v2945, 7
  %v4619 = vrot.slane %v2946, 7
  %v4620 = vrot.slane %v2947, 7
  %v4621 = vrot.slane %v2948, 7
  %v4622 = vrot.slane %v2949, 7
  %v4623 = vrot.slane %v2950, 7
  %v4624 = vrot.slane %v2951, 7
  %v4625 = vrot.slane %v2952, 7
  %v4626 = vrot.slane %v2953, 7
  %v4627 = vrot.slane %v2954, 7
  %v4628 = vrot.slane %v2955, 7
  %v4629 = vrot.slane %v2956, 7
  %v4630 = vrot.slane %v2957, 7
  %v4631 = vrot.slane %v2958, 7
  %v4632 = vrot.slane %v2959, 7
  %v4633 = vrot.slane %v2960, 7
  %v4634 = vrot.slane %v2961, 7
  %v4635 = vrot.slane %v2962, 7
  %v4636 = vrot.slane %v2963, 7
  %v4637 = vrot.slane %v2964, 7
  %vm4702 = vcmask 1040384
  %v4703 = vsel %vm4702, 0.0, %v4574
  %v4704 = vsel %vm4702, 0.0, %v4575
  %v4705 = vsel %vm4702, 0.0, %v4576
  %v4706 = vsel %vm4702, 0.0, %v4577
  %v4707 = vsel %vm4702, 0.0, %v4578
  %v4708 = vsel %vm4702, 0.0, %v4579
  %v4709 = vsel %vm4702, 0.0, %v4580
  %v4710 = vsel %vm4702, 0.0, %v4581
  %v4711 = vsel %vm4702, 0.0, %v4582
  %v4712 = vsel %vm4702, 0.0, %v4583
  %v4713 = vsel %vm4702, 0.0, %v4584
  %v4714 = vsel %vm4702, 0.0, %v4585
  %v4715 = vsel %vm4702, 0.0, %v4586
  %v4716 = vsel %vm4702, 0.0, %v4587
  %v4717 = vsel %vm4702, 0.0, %v4588
  %v4718 = vsel %vm4702, 0.0, %v4589
  %v4719 = vsel %vm4702, 0.0, %v4590
  %v4720 = vsel %vm4702, 0.0, %v4591
  %v4721 = vsel %vm4702, 0.0, %v4592
  %v4722 = vsel %vm4702, 0.0, %v4593
  %v4723 = vsel %vm4702, 0.0, %v4594
  %v4724 = vsel %vm4702, 0.0, %v4595
  %v4725 = vsel %vm4702, 0.0, %v4596
  %v4726 = vsel %vm4702, 0.0, %v4597
  %v4727 = vsel %vm4702, 0.0, %v4598
  %v4728 = vsel %vm4702, 0.0, %v4599
  %v4729 = vsel %vm4702, 0.0, %v4600
  %v4730 = vsel %vm4702, 0.0, %v4601
  %v4731 = vsel %vm4702, 0.0, %v4602
  %v4732 = vsel %vm4702, 0.0, %v4603
  %v4733 = vsel %vm4702, 0.0, %v4604
  %v4734 = vsel %vm4702, 0.0, %v4605
  %v4735 = vsel %vm4702, 0.0, %v4606
  %v4736 = vsel %vm4702, 0.0, %v4607
  %v4737 = vsel %vm4702, 0.0, %v4608
  %v4738 = vsel %vm4702, 0.0, %v4609
  %v4739 = vsel %vm4702, 0.0, %v4610
  %v4740 = vsel %vm4702, 0.0, %v4611
  %v4741 = vsel %vm4702, 0.0, %v4612
  %v4742 = vsel %vm4702, 0.0, %v4613
  %v4743 = vsel %vm4702, 0.0, %v4614
  %v4744 = vsel %vm4702, 0.0, %v4615
  %v4745 = vsel %vm4702, 0.0, %v4616
  %v4746 = vsel %vm4702, 0.0, %v4617
  %v4747 = vsel %vm4702, 0.0, %v4618
  %v4748 = vsel %vm4702, 0.0, %v4619
  %v4749 = vsel %vm4702, 0.0, %v4620
  %v4750 = vsel %vm4702, 0.0, %v4621
  %v4751 = vsel %vm4702, 0.0, %v4622
  %v4752 = vsel %vm4702, 0.0, %v4623
  %v4753 = vsel %vm4702, 0.0, %v4624
  %v4754 = vsel %vm4702, 0.0, %v4625
  %v4755 = vsel %vm4702, 0.0, %v4626
  %v4756 = vsel %vm4702, 0.0, %v4627
  %v4757 = vsel %vm4702, 0.0, %v4628
  %v4758 = vsel %vm4702, 0.0, %v4629
  %v4759 = vsel %vm4702, 0.0, %v4630
  %v4760 = vsel %vm4702, 0.0, %v4631
  %v4761 = vsel %vm4702, 0.0, %v4632
  %v4762 = vsel %vm4702, 0.0, %v4633
  %v4763 = vsel %vm4702, 0.0, %v4634
  %v4764 = vsel %vm4702, 0.0, %v4635
  %v4765 = vsel %vm4702, 0.0, %v4636
  %v4766 = vsel %vm4702, 0.0, %v4637
  %v4767 = vsel %vm4702, %v4574, 0.0
  %v4768 = vsel %vm4702, %v4575, 0.0
  %v4769 = vsel %vm4702, %v4576, 0.0
  %v4770 = vsel %vm4702, %v4577, 0.0
  %v4771 = vsel %vm4702, %v4578, 0.0
  %v4772 = vsel %vm4702, %v4579, 0.0
  %v4773 = vsel %vm4702, %v4580, 0.0
  %v4774 = vsel %vm4702, %v4581, 0.0
  %v4775 = vsel %vm4702, %v4582, 0.0
  %v4776 = vsel %vm4702, %v4583, 0.0
  %v4777 = vsel %vm4702, %v4584, 0.0
  %v4778 = vsel %vm4702, %v4585, 0.0
  %v4779 = vsel %vm4702, %v4586, 0.0
  %v4780 = vsel %vm4702, %v4587, 0.0
  %v4781 = vsel %vm4702, %v4588, 0.0
  %v4782 = vsel %vm4702, %v4589, 0.0
  %v4783 = vsel %vm4702, %v4590, 0.0
  %v4784 = vsel %vm4702, %v4591, 0.0
  %v4785 = vsel %vm4702, %v4592, 0.0
  %v4786 = vsel %vm4702, %v4593, 0.0
  %v4787 = vsel %vm4702, %v4594, 0.0
  %v4788 = vsel %vm4702, %v4595, 0.0
  %v4789 = vsel %vm4702, %v4596, 0.0
  %v4790 = vsel %vm4702, %v4597, 0.0
  %v4791 = vsel %vm4702, %v4598, 0.0
  %v4792 = vsel %vm4702, %v4599, 0.0
  %v4793 = vsel %vm4702, %v4600, 0.0
  %v4794 = vsel %vm4702, %v4601, 0.0
  %v4795 = vsel %vm4702, %v4602, 0.0
  %v4796 = vsel %vm4702, %v4603, 0.0
  %v4797 = vsel %vm4702, %v4604, 0.0
  %v4798 = vsel %vm4702, %v4605, 0.0
  %v4799 = vsel %vm4702, %v4606, 0.0
  %v4800 = vsel %vm4702, %v4607, 0.0
  %v4801 = vsel %vm4702, %v4608, 0.0
  %v4802 = vsel %vm4702, %v4609, 0.0
  %v4803 = vsel %vm4702, %v4610, 0.0
  %v4804 = vsel %vm4702, %v4611, 0.0
  %v4805 = vsel %vm4702, %v4612, 0.0
  %v4806 = vsel %vm4702, %v4613, 0.0
  %v4807 = vsel %vm4702, %v4614, 0.0
  %v4808 = vsel %vm4702, %v4615, 0.0
  %v4809 = vsel %vm4702, %v4616, 0.0
  %v4810 = vsel %vm4702, %v4617, 0.0
  %v4811 = vsel %vm4702, %v4618, 0.0
  %v4812 = vsel %vm4702, %v4619, 0.0
  %v4813 = vsel %vm4702, %v4620, 0.0
  %v4814 = vsel %vm4702, %v4621, 0.0
  %v4815 = vsel %vm4702, %v4622, 0.0
  %v4816 = vsel %vm4702, %v4623, 0.0
  %v4817 = vsel %vm4702, %v4624, 0.0
  %v4818 = vsel %vm4702, %v4625, 0.0
  %v4819 = vsel %vm4702, %v4626, 0.0
  %v4820 = vsel %vm4702, %v4627, 0.0
  %v4821 = vsel %vm4702, %v4628, 0.0
  %v4822 = vsel %vm4702, %v4629, 0.0
  %v4823 = vsel %vm4702, %v4630, 0.0
  %v4824 = vsel %vm4702, %v4631, 0.0
  %v4825 = vsel %vm4702, %v4632, 0.0
  %v4826 = vsel %vm4702, %v4633, 0.0
  %v4827 = vsel %vm4702, %v4634, 0.0
  %v4828 = vsel %vm4702, %v4635, 0.0
  %v4829 = vsel %vm4702, %v4636, 0.0
  %v4830 = vsel %vm4702, %v4637, 0.0
  %v4895 = vrot.slane %v3032, 7
  %v4896 = vrot.slane %v3033, 7
  %v4897 = vrot.slane %v3034, 7
  %v4898 = vrot.slane %v3035, 7
  %v4899 = vrot.slane %v3036, 7
  %v4900 = vrot.slane %v3037, 7
  %v4901 = vrot.slane %v3038, 7
  %v4902 = vrot.slane %v3039, 7
  %v4903 = vrot.slane %v3040, 7
  %v4904 = vrot.slane %v3041, 7
  %v4905 = vrot.slane %v3042, 7
  %v4906 = vrot.slane %v3043, 7
  %v4907 = vrot.slane %v3044, 7
  %v4908 = vrot.slane %v3045, 7
  %v4909 = vrot.slane %v3046, 7
  %v4910 = vrot.slane %v3047, 7
  %v4911 = vrot.slane %v3048, 7
  %v4912 = vrot.slane %v3049, 7
  %v4913 = vrot.slane %v3050, 7
  %v4914 = vrot.slane %v3051, 7
  %v4915 = vrot.slane %v3052, 7
  %v4916 = vrot.slane %v3053, 7
  %v4917 = vrot.slane %v3054, 7
  %v4918 = vrot.slane %v3055, 7
  %v4919 = vrot.slane %v3056, 7
  %v4920 = vrot.slane %v3057, 7
  %v4921 = vrot.slane %v3058, 7
  %v4922 = vrot.slane %v3059, 7
  %v4923 = vrot.slane %v3060, 7
  %v4924 = vrot.slane %v3061, 7
  %v4925 = vrot.slane %v3062, 7
  %v4926 = vrot.slane %v3063, 7
  %v4927 = vrot.slane %v3064, 7
  %v4928 = vrot.slane %v3065, 7
  %v4929 = vrot.slane %v3066, 7
  %v4930 = vrot.slane %v3067, 7
  %v4931 = vrot.slane %v3068, 7
  %v4932 = vrot.slane %v3069, 7
  %v4933 = vrot.slane %v3070, 7
  %v4934 = vrot.slane %v3071, 7
  %v4935 = vrot.slane %v3072, 7
  %v4936 = vrot.slane %v3073, 7
  %v4937 = vrot.slane %v3074, 7
  %v4938 = vrot.slane %v3075, 7
  %v4939 = vrot.slane %v3076, 7
  %v4940 = vrot.slane %v3077, 7
  %v4941 = vrot.slane %v3078, 7
  %v4942 = vrot.slane %v3079, 7
  %v4943 = vrot.slane %v3080, 7
  %v4944 = vrot.slane %v3081, 7
  %v4945 = vrot.slane %v3082, 7
  %v4946 = vrot.slane %v3083, 7
  %v4947 = vrot.slane %v3084, 7
  %v4948 = vrot.slane %v3085, 7
  %v4949 = vrot.slane %v3086, 7
  %v4950 = vrot.slane %v3087, 7
  %v4951 = vrot.slane %v3088, 7
  %v4952 = vrot.slane %v3089, 7
  %v4953 = vrot.slane %v3090, 7
  %v4954 = vrot.slane %v3091, 7
  %v4955 = vrot.slane %v3092, 7
  %v4956 = vrot.slane %v3093, 7
  %v4957 = vrot.slane %v3094, 7
  %v4958 = vrot.slane %v3095, 7
  %4959 = vrot.lane.b32.xlu0 %v4895, 88
  %v4960 = vpop.permute.xlu0 %4959
  %4961 = vrot.lane.b32.xlu0 %v4896, 88
  %v4962 = vpop.permute.xlu0 %4961
  %4963 = vrot.lane.b32.xlu0 %v4897, 88
  %v4964 = vpop.permute.xlu0 %4963
  %4965 = vrot.lane.b32.xlu0 %v4898, 88
  %v4966 = vpop.permute.xlu0 %4965
  %4967 = vrot.lane.b32.xlu0 %v4899, 88
  %v4968 = vpop.permute.xlu0 %4967
  %4969 = vrot.lane.b32.xlu0 %v4900, 88
  %v4970 = vpop.permute.xlu0 %4969
  %4971 = vrot.lane.b32.xlu0 %v4901, 88
  %v4972 = vpop.permute.xlu0 %4971
  %4973 = vrot.lane.b32.xlu0 %v4902, 88
  %v4974 = vpop.permute.xlu0 %4973
  %4975 = vrot.lane.b32.xlu0 %v4903, 88
  %v4976 = vpop.permute.xlu0 %4975
  %4977 = vrot.lane.b32.xlu0 %v4904, 88
  %v4978 = vpop.permute.xlu0 %4977
  %4979 = vrot.lane.b32.xlu0 %v4905, 88
  %v4980 = vpop.permute.xlu0 %4979
  %4981 = vrot.lane.b32.xlu0 %v4906, 88
  %v4982 = vpop.permute.xlu0 %4981
  %4983 = vrot.lane.b32.xlu0 %v4907, 88
  %v4984 = vpop.permute.xlu0 %4983
  %4985 = vrot.lane.b32.xlu0 %v4908, 88
  %v4986 = vpop.permute.xlu0 %4985
  %4987 = vrot.lane.b32.xlu0 %v4909, 88
  %v4988 = vpop.permute.xlu0 %4987
  %4989 = vrot.lane.b32.xlu0 %v4910, 88
  %v4990 = vpop.permute.xlu0 %4989
  %4991 = vrot.lane.b32.xlu0 %v4911, 88
  %v4992 = vpop.permute.xlu0 %4991
  %4993 = vrot.lane.b32.xlu0 %v4912, 88
  %v4994 = vpop.permute.xlu0 %4993
  %4995 = vrot.lane.b32.xlu0 %v4913, 88
  %v4996 = vpop.permute.xlu0 %4995
  %4997 = vrot.lane.b32.xlu0 %v4914, 88
  %v4998 = vpop.permute.xlu0 %4997
  %4999 = vrot.lane.b32.xlu0 %v4915, 88
  %v5000 = vpop.permute.xlu0 %4999
  %5001 = vrot.lane.b32.xlu0 %v4916, 88
  %v5002 = vpop.permute.xlu0 %5001
  %5003 = vrot.lane.b32.xlu0 %v4917, 88
  %v5004 = vpop.permute.xlu0 %5003
  %5005 = vrot.lane.b32.xlu0 %v4918, 88
  %v5006 = vpop.permute.xlu0 %5005
  %5007 = vrot.lane.b32.xlu0 %v4919, 88
  %v5008 = vpop.permute.xlu0 %5007
  %5009 = vrot.lane.b32.xlu0 %v4920, 88
  %v5010 = vpop.permute.xlu0 %5009
  %5011 = vrot.lane.b32.xlu0 %v4921, 88
  %v5012 = vpop.permute.xlu0 %5011
  %5013 = vrot.lane.b32.xlu0 %v4922, 88
  %v5014 = vpop.permute.xlu0 %5013
  %5015 = vrot.lane.b32.xlu0 %v4923, 88
  %v5016 = vpop.permute.xlu0 %5015
  %5017 = vrot.lane.b32.xlu0 %v4924, 88
  %v5018 = vpop.permute.xlu0 %5017
  %5019 = vrot.lane.b32.xlu0 %v4925, 88
  %v5020 = vpop.permute.xlu0 %5019
  %5021 = vrot.lane.b32.xlu0 %v4926, 88
  %v5022 = vpop.permute.xlu0 %5021
  %5023 = vrot.lane.b32.xlu0 %v4927, 88
  %v5024 = vpop.permute.xlu0 %5023
  %5025 = vrot.lane.b32.xlu0 %v4928, 88
  %v5026 = vpop.permute.xlu0 %5025
  %5027 = vrot.lane.b32.xlu0 %v4929, 88
  %v5028 = vpop.permute.xlu0 %5027
  %5029 = vrot.lane.b32.xlu0 %v4930, 88
  %v5030 = vpop.permute.xlu0 %5029
  %5031 = vrot.lane.b32.xlu0 %v4931, 88
  %v5032 = vpop.permute.xlu0 %5031
  %5033 = vrot.lane.b32.xlu0 %v4932, 88
  %v5034 = vpop.permute.xlu0 %5033
  %5035 = vrot.lane.b32.xlu0 %v4933, 88
  %v5036 = vpop.permute.xlu0 %5035
  %5037 = vrot.lane.b32.xlu0 %v4934, 88
  %v5038 = vpop.permute.xlu0 %5037
  %5039 = vrot.lane.b32.xlu0 %v4935, 88
  %v5040 = vpop.permute.xlu0 %5039
  %5041 = vrot.lane.b32.xlu0 %v4936, 88
  %v5042 = vpop.permute.xlu0 %5041
  %5043 = vrot.lane.b32.xlu0 %v4937, 88
  %v5044 = vpop.permute.xlu0 %5043
  %5045 = vrot.lane.b32.xlu0 %v4938, 88
  %v5046 = vpop.permute.xlu0 %5045
  %5047 = vrot.lane.b32.xlu0 %v4939, 88
  %v5048 = vpop.permute.xlu0 %5047
  %5049 = vrot.lane.b32.xlu0 %v4940, 88
  %v5050 = vpop.permute.xlu0 %5049
  %5051 = vrot.lane.b32.xlu0 %v4941, 88
  %v5052 = vpop.permute.xlu0 %5051
  %5053 = vrot.lane.b32.xlu0 %v4942, 88
  %v5054 = vpop.permute.xlu0 %5053
  %5055 = vrot.lane.b32.xlu0 %v4943, 88
  %v5056 = vpop.permute.xlu0 %5055
  %5057 = vrot.lane.b32.xlu0 %v4944, 88
  %v5058 = vpop.permute.xlu0 %5057
  %5059 = vrot.lane.b32.xlu0 %v4945, 88
  %v5060 = vpop.permute.xlu0 %5059
  %5061 = vrot.lane.b32.xlu0 %v4946, 88
  %v5062 = vpop.permute.xlu0 %5061
  %5063 = vrot.lane.b32.xlu0 %v4947, 88
  %v5064 = vpop.permute.xlu0 %5063
  %5065 = vrot.lane.b32.xlu0 %v4948, 88
  %v5066 = vpop.permute.xlu0 %5065
  %5067 = vrot.lane.b32.xlu0 %v4949, 88
  %v5068 = vpop.permute.xlu0 %5067
  %5069 = vrot.lane.b32.xlu0 %v4950, 88
  %v5070 = vpop.permute.xlu0 %5069
  %5071 = vrot.lane.b32.xlu0 %v4951, 88
  %v5072 = vpop.permute.xlu0 %5071
  %5073 = vrot.lane.b32.xlu0 %v4952, 88
  %v5074 = vpop.permute.xlu0 %5073
  %5075 = vrot.lane.b32.xlu0 %v4953, 88
  %v5076 = vpop.permute.xlu0 %5075
  %5077 = vrot.lane.b32.xlu0 %v4954, 88
  %v5078 = vpop.permute.xlu0 %5077
  %5079 = vrot.lane.b32.xlu0 %v4955, 88
  %v5080 = vpop.permute.xlu0 %5079
  %5081 = vrot.lane.b32.xlu0 %v4956, 88
  %v5082 = vpop.permute.xlu0 %5081
  %5083 = vrot.lane.b32.xlu0 %v4957, 88
  %v5084 = vpop.permute.xlu0 %5083
  %5085 = vrot.lane.b32.xlu0 %v4958, 88
  %v5086 = vpop.permute.xlu0 %5085
  %v5151 = vsel %vm4702, 0.0, %v4960
  %v5152 = vsel %vm4702, 0.0, %v4962
  %v5153 = vsel %vm4702, 0.0, %v4964
  %v5154 = vsel %vm4702, 0.0, %v4966
  %v5155 = vsel %vm4702, 0.0, %v4968
  %v5156 = vsel %vm4702, 0.0, %v4970
  %v5157 = vsel %vm4702, 0.0, %v4972
  %v5158 = vsel %vm4702, 0.0, %v4974
  %v5159 = vsel %vm4702, 0.0, %v4976
  %v5160 = vsel %vm4702, 0.0, %v4978
  %v5161 = vsel %vm4702, 0.0, %v4980
  %v5162 = vsel %vm4702, 0.0, %v4982
  %v5163 = vsel %vm4702, 0.0, %v4984
  %v5164 = vsel %vm4702, 0.0, %v4986
  %v5165 = vsel %vm4702, 0.0, %v4988
  %v5166 = vsel %vm4702, 0.0, %v4990
  %v5167 = vsel %vm4702, 0.0, %v4992
  %v5168 = vsel %vm4702, 0.0, %v4994
  %v5169 = vsel %vm4702, 0.0, %v4996
  %v5170 = vsel %vm4702, 0.0, %v4998
  %v5171 = vsel %vm4702, 0.0, %v5000
  %v5172 = vsel %vm4702, 0.0, %v5002
  %v5173 = vsel %vm4702, 0.0, %v5004
  %v5174 = vsel %vm4702, 0.0, %v5006
  %v5175 = vsel %vm4702, 0.0, %v5008
  %v5176 = vsel %vm4702, 0.0, %v5010
  %v5177 = vsel %vm4702, 0.0, %v5012
  %v5178 = vsel %vm4702, 0.0, %v5014
  %v5179 = vsel %vm4702, 0.0, %v5016
  %v5180 = vsel %vm4702, 0.0, %v5018
  %v5181 = vsel %vm4702, 0.0, %v5020
  %v5182 = vsel %vm4702, 0.0, %v5022
  %v5183 = vsel %vm4702, 0.0, %v5024
  %v5184 = vsel %vm4702, 0.0, %v5026
  %v5185 = vsel %vm4702, 0.0, %v5028
  %v5186 = vsel %vm4702, 0.0, %v5030
  %v5187 = vsel %vm4702, 0.0, %v5032
  %v5188 = vsel %vm4702, 0.0, %v5034
  %v5189 = vsel %vm4702, 0.0, %v5036
  %v5190 = vsel %vm4702, 0.0, %v5038
  %v5191 = vsel %vm4702, 0.0, %v5040
  %v5192 = vsel %vm4702, 0.0, %v5042
  %v5193 = vsel %vm4702, 0.0, %v5044
  %v5194 = vsel %vm4702, 0.0, %v5046
  %v5195 = vsel %vm4702, 0.0, %v5048
  %v5196 = vsel %vm4702, 0.0, %v5050
  %v5197 = vsel %vm4702, 0.0, %v5052
  %v5198 = vsel %vm4702, 0.0, %v5054
  %v5199 = vsel %vm4702, 0.0, %v5056
  %v5200 = vsel %vm4702, 0.0, %v5058
  %v5201 = vsel %vm4702, 0.0, %v5060
  %v5202 = vsel %vm4702, 0.0, %v5062
  %v5203 = vsel %vm4702, 0.0, %v5064
  %v5204 = vsel %vm4702, 0.0, %v5066
  %v5205 = vsel %vm4702, 0.0, %v5068
  %v5206 = vsel %vm4702, 0.0, %v5070
  %v5207 = vsel %vm4702, 0.0, %v5072
  %v5208 = vsel %vm4702, 0.0, %v5074
  %v5209 = vsel %vm4702, 0.0, %v5076
  %v5210 = vsel %vm4702, 0.0, %v5078
  %v5211 = vsel %vm4702, 0.0, %v5080
  %v5212 = vsel %vm4702, 0.0, %v5082
  %v5213 = vsel %vm4702, 0.0, %v5084
  %v5214 = vsel %vm4702, 0.0, %v5086
  %v5215 = vsel %vm4702, %v4960, 0.0
  %v5216 = vsel %vm4702, %v4962, 0.0
  %v5217 = vsel %vm4702, %v4964, 0.0
  %v5218 = vsel %vm4702, %v4966, 0.0
  %v5219 = vsel %vm4702, %v4968, 0.0
  %v5220 = vsel %vm4702, %v4970, 0.0
  %v5221 = vsel %vm4702, %v4972, 0.0
  %v5222 = vsel %vm4702, %v4974, 0.0
  %v5223 = vsel %vm4702, %v4976, 0.0
  %v5224 = vsel %vm4702, %v4978, 0.0
  %v5225 = vsel %vm4702, %v4980, 0.0
  %v5226 = vsel %vm4702, %v4982, 0.0
  %v5227 = vsel %vm4702, %v4984, 0.0
  %v5228 = vsel %vm4702, %v4986, 0.0
  %v5229 = vsel %vm4702, %v4988, 0.0
  %v5230 = vsel %vm4702, %v4990, 0.0
  %v5231 = vsel %vm4702, %v4992, 0.0
  %v5232 = vsel %vm4702, %v4994, 0.0
  %v5233 = vsel %vm4702, %v4996, 0.0
  %v5234 = vsel %vm4702, %v4998, 0.0
  %v5235 = vsel %vm4702, %v5000, 0.0
  %v5236 = vsel %vm4702, %v5002, 0.0
  %v5237 = vsel %vm4702, %v5004, 0.0
  %v5238 = vsel %vm4702, %v5006, 0.0
  %v5239 = vsel %vm4702, %v5008, 0.0
  %v5240 = vsel %vm4702, %v5010, 0.0
  %v5241 = vsel %vm4702, %v5012, 0.0
  %v5242 = vsel %vm4702, %v5014, 0.0
  %v5243 = vsel %vm4702, %v5016, 0.0
  %v5244 = vsel %vm4702, %v5018, 0.0
  %v5245 = vsel %vm4702, %v5020, 0.0
  %v5246 = vsel %vm4702, %v5022, 0.0
  %v5247 = vsel %vm4702, %v5024, 0.0
  %v5248 = vsel %vm4702, %v5026, 0.0
  %v5249 = vsel %vm4702, %v5028, 0.0
  %v5250 = vsel %vm4702, %v5030, 0.0
  %v5251 = vsel %vm4702, %v5032, 0.0
  %v5252 = vsel %vm4702, %v5034, 0.0
  %v5253 = vsel %vm4702, %v5036, 0.0
  %v5254 = vsel %vm4702, %v5038, 0.0
  %v5255 = vsel %vm4702, %v5040, 0.0
  %v5256 = vsel %vm4702, %v5042, 0.0
  %v5257 = vsel %vm4702, %v5044, 0.0
  %v5258 = vsel %vm4702, %v5046, 0.0
  %v5259 = vsel %vm4702, %v5048, 0.0
  %v5260 = vsel %vm4702, %v5050, 0.0
  %v5261 = vsel %vm4702, %v5052, 0.0
  %v5262 = vsel %vm4702, %v5054, 0.0
  %v5263 = vsel %vm4702, %v5056, 0.0
  %v5264 = vsel %vm4702, %v5058, 0.0
  %v5265 = vsel %vm4702, %v5060, 0.0
  %v5266 = vsel %vm4702, %v5062, 0.0
  %v5267 = vsel %vm4702, %v5064, 0.0
  %v5268 = vsel %vm4702, %v5066, 0.0
  %v5269 = vsel %vm4702, %v5068, 0.0
  %v5270 = vsel %vm4702, %v5070, 0.0
  %v5271 = vsel %vm4702, %v5072, 0.0
  %v5272 = vsel %vm4702, %v5074, 0.0
  %v5273 = vsel %vm4702, %v5076, 0.0
  %v5274 = vsel %vm4702, %v5078, 0.0
  %v5275 = vsel %vm4702, %v5080, 0.0
  %v5276 = vsel %vm4702, %v5082, 0.0
  %v5277 = vsel %vm4702, %v5084, 0.0
  %v5278 = vsel %vm4702, %v5086, 0.0
  %v5343 = vrot.slane %v3163, 7
  %v5344 = vrot.slane %v3164, 7
  %v5345 = vrot.slane %v3165, 7
  %v5346 = vrot.slane %v3166, 7
  %v5347 = vrot.slane %v3167, 7
  %v5348 = vrot.slane %v3168, 7
  %v5349 = vrot.slane %v3169, 7
  %v5350 = vrot.slane %v3170, 7
  %v5351 = vrot.slane %v3171, 7
  %v5352 = vrot.slane %v3172, 7
  %v5353 = vrot.slane %v3173, 7
  %v5354 = vrot.slane %v3174, 7
  %v5355 = vrot.slane %v3175, 7
  %v5356 = vrot.slane %v3176, 7
  %v5357 = vrot.slane %v3177, 7
  %v5358 = vrot.slane %v3178, 7
  %v5359 = vrot.slane %v3179, 7
  %v5360 = vrot.slane %v3180, 7
  %v5361 = vrot.slane %v3181, 7
  %v5362 = vrot.slane %v3182, 7
  %v5363 = vrot.slane %v3183, 7
  %v5364 = vrot.slane %v3184, 7
  %v5365 = vrot.slane %v3185, 7
  %v5366 = vrot.slane %v3186, 7
  %v5367 = vrot.slane %v3187, 7
  %v5368 = vrot.slane %v3188, 7
  %v5369 = vrot.slane %v3189, 7
  %v5370 = vrot.slane %v3190, 7
  %v5371 = vrot.slane %v3191, 7
  %v5372 = vrot.slane %v3192, 7
  %v5373 = vrot.slane %v3193, 7
  %v5374 = vrot.slane %v3194, 7
  %v5375 = vrot.slane %v3195, 7
  %v5376 = vrot.slane %v3196, 7
  %v5377 = vrot.slane %v3197, 7
  %v5378 = vrot.slane %v3198, 7
  %v5379 = vrot.slane %v3199, 7
  %v5380 = vrot.slane %v3200, 7
  %v5381 = vrot.slane %v3201, 7
  %v5382 = vrot.slane %v3202, 7
  %v5383 = vrot.slane %v3203, 7
  %v5384 = vrot.slane %v3204, 7
  %v5385 = vrot.slane %v3205, 7
  %v5386 = vrot.slane %v3206, 7
  %v5387 = vrot.slane %v3207, 7
  %v5388 = vrot.slane %v3208, 7
  %v5389 = vrot.slane %v3209, 7
  %v5390 = vrot.slane %v3210, 7
  %v5391 = vrot.slane %v3211, 7
  %v5392 = vrot.slane %v3212, 7
  %v5393 = vrot.slane %v3213, 7
  %v5394 = vrot.slane %v3214, 7
  %v5395 = vrot.slane %v3215, 7
  %v5396 = vrot.slane %v3216, 7
  %v5397 = vrot.slane %v3217, 7
  %v5398 = vrot.slane %v3218, 7
  %v5399 = vrot.slane %v3219, 7
  %v5400 = vrot.slane %v3220, 7
  %v5401 = vrot.slane %v3221, 7
  %v5402 = vrot.slane %v3222, 7
  %v5403 = vrot.slane %v3223, 7
  %v5404 = vrot.slane %v3224, 7
  %v5405 = vrot.slane %v3225, 7
  %v5406 = vrot.slane %v3226, 7
  %5407 = vrot.lane.b32.xlu0 %v5343, 48
  %v5408 = vpop.permute.xlu0 %5407
  %5409 = vrot.lane.b32.xlu0 %v5344, 48
  %v5410 = vpop.permute.xlu0 %5409
  %5411 = vrot.lane.b32.xlu0 %v5345, 48
  %v5412 = vpop.permute.xlu0 %5411
  %5413 = vrot.lane.b32.xlu0 %v5346, 48
  %v5414 = vpop.permute.xlu0 %5413
  %5415 = vrot.lane.b32.xlu0 %v5347, 48
  %v5416 = vpop.permute.xlu0 %5415
  %5417 = vrot.lane.b32.xlu0 %v5348, 48
  %v5418 = vpop.permute.xlu0 %5417
  %5419 = vrot.lane.b32.xlu0 %v5349, 48
  %v5420 = vpop.permute.xlu0 %5419
  %5421 = vrot.lane.b32.xlu0 %v5350, 48
  %v5422 = vpop.permute.xlu0 %5421
  %5423 = vrot.lane.b32.xlu0 %v5351, 48
  %v5424 = vpop.permute.xlu0 %5423
  %5425 = vrot.lane.b32.xlu0 %v5352, 48
  %v5426 = vpop.permute.xlu0 %5425
  %5427 = vrot.lane.b32.xlu0 %v5353, 48
  %v5428 = vpop.permute.xlu0 %5427
  %5429 = vrot.lane.b32.xlu0 %v5354, 48
  %v5430 = vpop.permute.xlu0 %5429
  %5431 = vrot.lane.b32.xlu0 %v5355, 48
  %v5432 = vpop.permute.xlu0 %5431
  %5433 = vrot.lane.b32.xlu0 %v5356, 48
  %v5434 = vpop.permute.xlu0 %5433
  %5435 = vrot.lane.b32.xlu0 %v5357, 48
  %v5436 = vpop.permute.xlu0 %5435
  %5437 = vrot.lane.b32.xlu0 %v5358, 48
  %v5438 = vpop.permute.xlu0 %5437
  %5439 = vrot.lane.b32.xlu0 %v5359, 48
  %v5440 = vpop.permute.xlu0 %5439
  %5441 = vrot.lane.b32.xlu0 %v5360, 48
  %v5442 = vpop.permute.xlu0 %5441
  %5443 = vrot.lane.b32.xlu0 %v5361, 48
  %v5444 = vpop.permute.xlu0 %5443
  %5445 = vrot.lane.b32.xlu0 %v5362, 48
  %v5446 = vpop.permute.xlu0 %5445
  %5447 = vrot.lane.b32.xlu0 %v5363, 48
  %v5448 = vpop.permute.xlu0 %5447
  %5449 = vrot.lane.b32.xlu0 %v5364, 48
  %v5450 = vpop.permute.xlu0 %5449
  %5451 = vrot.lane.b32.xlu0 %v5365, 48
  %v5452 = vpop.permute.xlu0 %5451
  %5453 = vrot.lane.b32.xlu0 %v5366, 48
  %v5454 = vpop.permute.xlu0 %5453
  %5455 = vrot.lane.b32.xlu0 %v5367, 48
  %v5456 = vpop.permute.xlu0 %5455
  %5457 = vrot.lane.b32.xlu0 %v5368, 48
  %v5458 = vpop.permute.xlu0 %5457
  %5459 = vrot.lane.b32.xlu0 %v5369, 48
  %v5460 = vpop.permute.xlu0 %5459
  %5461 = vrot.lane.b32.xlu0 %v5370, 48
  %v5462 = vpop.permute.xlu0 %5461
  %5463 = vrot.lane.b32.xlu0 %v5371, 48
  %v5464 = vpop.permute.xlu0 %5463
  %5465 = vrot.lane.b32.xlu0 %v5372, 48
  %v5466 = vpop.permute.xlu0 %5465
  %5467 = vrot.lane.b32.xlu0 %v5373, 48
  %v5468 = vpop.permute.xlu0 %5467
  %5469 = vrot.lane.b32.xlu0 %v5374, 48
  %v5470 = vpop.permute.xlu0 %5469
  %5471 = vrot.lane.b32.xlu0 %v5375, 48
  %v5472 = vpop.permute.xlu0 %5471
  %5473 = vrot.lane.b32.xlu0 %v5376, 48
  %v5474 = vpop.permute.xlu0 %5473
  %5475 = vrot.lane.b32.xlu0 %v5377, 48
  %v5476 = vpop.permute.xlu0 %5475
  %5477 = vrot.lane.b32.xlu0 %v5378, 48
  %v5478 = vpop.permute.xlu0 %5477
  %5479 = vrot.lane.b32.xlu0 %v5379, 48
  %v5480 = vpop.permute.xlu0 %5479
  %5481 = vrot.lane.b32.xlu0 %v5380, 48
  %v5482 = vpop.permute.xlu0 %5481
  %5483 = vrot.lane.b32.xlu0 %v5381, 48
  %v5484 = vpop.permute.xlu0 %5483
  %5485 = vrot.lane.b32.xlu0 %v5382, 48
  %v5486 = vpop.permute.xlu0 %5485
  %5487 = vrot.lane.b32.xlu0 %v5383, 48
  %v5488 = vpop.permute.xlu0 %5487
  %5489 = vrot.lane.b32.xlu0 %v5384, 48
  %v5490 = vpop.permute.xlu0 %5489
  %5491 = vrot.lane.b32.xlu0 %v5385, 48
  %v5492 = vpop.permute.xlu0 %5491
  %5493 = vrot.lane.b32.xlu0 %v5386, 48
  %v5494 = vpop.permute.xlu0 %5493
  %5495 = vrot.lane.b32.xlu0 %v5387, 48
  %v5496 = vpop.permute.xlu0 %5495
  %5497 = vrot.lane.b32.xlu0 %v5388, 48
  %v5498 = vpop.permute.xlu0 %5497
  %5499 = vrot.lane.b32.xlu0 %v5389, 48
  %v5500 = vpop.permute.xlu0 %5499
  %5501 = vrot.lane.b32.xlu0 %v5390, 48
  %v5502 = vpop.permute.xlu0 %5501
  %5503 = vrot.lane.b32.xlu0 %v5391, 48
  %v5504 = vpop.permute.xlu0 %5503
  %5505 = vrot.lane.b32.xlu0 %v5392, 48
  %v5506 = vpop.permute.xlu0 %5505
  %5507 = vrot.lane.b32.xlu0 %v5393, 48
  %v5508 = vpop.permute.xlu0 %5507
  %5509 = vrot.lane.b32.xlu0 %v5394, 48
  %v5510 = vpop.permute.xlu0 %5509
  %5511 = vrot.lane.b32.xlu0 %v5395, 48
  %v5512 = vpop.permute.xlu0 %5511
  %5513 = vrot.lane.b32.xlu0 %v5396, 48
  %v5514 = vpop.permute.xlu0 %5513
  %5515 = vrot.lane.b32.xlu0 %v5397, 48
  %v5516 = vpop.permute.xlu0 %5515
  %5517 = vrot.lane.b32.xlu0 %v5398, 48
  %v5518 = vpop.permute.xlu0 %5517
  %5519 = vrot.lane.b32.xlu0 %v5399, 48
  %v5520 = vpop.permute.xlu0 %5519
  %5521 = vrot.lane.b32.xlu0 %v5400, 48
  %v5522 = vpop.permute.xlu0 %5521
  %5523 = vrot.lane.b32.xlu0 %v5401, 48
  %v5524 = vpop.permute.xlu0 %5523
  %5525 = vrot.lane.b32.xlu0 %v5402, 48
  %v5526 = vpop.permute.xlu0 %5525
  %5527 = vrot.lane.b32.xlu0 %v5403, 48
  %v5528 = vpop.permute.xlu0 %5527
  %5529 = vrot.lane.b32.xlu0 %v5404, 48
  %v5530 = vpop.permute.xlu0 %5529
  %5531 = vrot.lane.b32.xlu0 %v5405, 48
  %v5532 = vpop.permute.xlu0 %5531
  %5533 = vrot.lane.b32.xlu0 %v5406, 48
  %v5534 = vpop.permute.xlu0 %5533
  %v5599 = vsel %vm4702, 0.0, %v5408
  %v5600 = vsel %vm4702, 0.0, %v5410
  %v5601 = vsel %vm4702, 0.0, %v5412
  %v5602 = vsel %vm4702, 0.0, %v5414
  %v5603 = vsel %vm4702, 0.0, %v5416
  %v5604 = vsel %vm4702, 0.0, %v5418
  %v5605 = vsel %vm4702, 0.0, %v5420
  %v5606 = vsel %vm4702, 0.0, %v5422
  %v5607 = vsel %vm4702, 0.0, %v5424
  %v5608 = vsel %vm4702, 0.0, %v5426
  %v5609 = vsel %vm4702, 0.0, %v5428
  %v5610 = vsel %vm4702, 0.0, %v5430
  %v5611 = vsel %vm4702, 0.0, %v5432
  %v5612 = vsel %vm4702, 0.0, %v5434
  %v5613 = vsel %vm4702, 0.0, %v5436
  %v5614 = vsel %vm4702, 0.0, %v5438
  %v5615 = vsel %vm4702, 0.0, %v5440
  %v5616 = vsel %vm4702, 0.0, %v5442
  %v5617 = vsel %vm4702, 0.0, %v5444
  %v5618 = vsel %vm4702, 0.0, %v5446
  %v5619 = vsel %vm4702, 0.0, %v5448
  %v5620 = vsel %vm4702, 0.0, %v5450
  %v5621 = vsel %vm4702, 0.0, %v5452
  %v5622 = vsel %vm4702, 0.0, %v5454
  %v5623 = vsel %vm4702, 0.0, %v5456
  %v5624 = vsel %vm4702, 0.0, %v5458
  %v5625 = vsel %vm4702, 0.0, %v5460
  %v5626 = vsel %vm4702, 0.0, %v5462
  %v5627 = vsel %vm4702, 0.0, %v5464
  %v5628 = vsel %vm4702, 0.0, %v5466
  %v5629 = vsel %vm4702, 0.0, %v5468
  %v5630 = vsel %vm4702, 0.0, %v5470
  %v5631 = vsel %vm4702, 0.0, %v5472
  %v5632 = vsel %vm4702, 0.0, %v5474
  %v5633 = vsel %vm4702, 0.0, %v5476
  %v5634 = vsel %vm4702, 0.0, %v5478
  %v5635 = vsel %vm4702, 0.0, %v5480
  %v5636 = vsel %vm4702, 0.0, %v5482
  %v5637 = vsel %vm4702, 0.0, %v5484
  %v5638 = vsel %vm4702, 0.0, %v5486
  %v5639 = vsel %vm4702, 0.0, %v5488
  %v5640 = vsel %vm4702, 0.0, %v5490
  %v5641 = vsel %vm4702, 0.0, %v5492
  %v5642 = vsel %vm4702, 0.0, %v5494
  %v5643 = vsel %vm4702, 0.0, %v5496
  %v5644 = vsel %vm4702, 0.0, %v5498
  %v5645 = vsel %vm4702, 0.0, %v5500
  %v5646 = vsel %vm4702, 0.0, %v5502
  %v5647 = vsel %vm4702, 0.0, %v5504
  %v5648 = vsel %vm4702, 0.0, %v5506
  %v5649 = vsel %vm4702, 0.0, %v5508
  %v5650 = vsel %vm4702, 0.0, %v5510
  %v5651 = vsel %vm4702, 0.0, %v5512
  %v5652 = vsel %vm4702, 0.0, %v5514
  %v5653 = vsel %vm4702, 0.0, %v5516
  %v5654 = vsel %vm4702, 0.0, %v5518
  %v5655 = vsel %vm4702, 0.0, %v5520
  %v5656 = vsel %vm4702, 0.0, %v5522
  %v5657 = vsel %vm4702, 0.0, %v5524
  %v5658 = vsel %vm4702, 0.0, %v5526
  %v5659 = vsel %vm4702, 0.0, %v5528
  %v5660 = vsel %vm4702, 0.0, %v5530
  %v5661 = vsel %vm4702, 0.0, %v5532
  %v5662 = vsel %vm4702, 0.0, %v5534
  %v5663 = vsel %vm4702, %v5408, 0.0
  %v5664 = vsel %vm4702, %v5410, 0.0
  %v5665 = vsel %vm4702, %v5412, 0.0
  %v5666 = vsel %vm4702, %v5414, 0.0
  %v5667 = vsel %vm4702, %v5416, 0.0
  %v5668 = vsel %vm4702, %v5418, 0.0
  %v5669 = vsel %vm4702, %v5420, 0.0
  %v5670 = vsel %vm4702, %v5422, 0.0
  %v5671 = vsel %vm4702, %v5424, 0.0
  %v5672 = vsel %vm4702, %v5426, 0.0
  %v5673 = vsel %vm4702, %v5428, 0.0
  %v5674 = vsel %vm4702, %v5430, 0.0
  %v5675 = vsel %vm4702, %v5432, 0.0
  %v5676 = vsel %vm4702, %v5434, 0.0
  %v5677 = vsel %vm4702, %v5436, 0.0
  %v5678 = vsel %vm4702, %v5438, 0.0
  %v5679 = vsel %vm4702, %v5440, 0.0
  %v5680 = vsel %vm4702, %v5442, 0.0
  %v5681 = vsel %vm4702, %v5444, 0.0
  %v5682 = vsel %vm4702, %v5446, 0.0
  %v5683 = vsel %vm4702, %v5448, 0.0
  %v5684 = vsel %vm4702, %v5450, 0.0
  %v5685 = vsel %vm4702, %v5452, 0.0
  %v5686 = vsel %vm4702, %v5454, 0.0
  %v5687 = vsel %vm4702, %v5456, 0.0
  %v5688 = vsel %vm4702, %v5458, 0.0
  %v5689 = vsel %vm4702, %v5460, 0.0
  %v5690 = vsel %vm4702, %v5462, 0.0
  %v5691 = vsel %vm4702, %v5464, 0.0
  %v5692 = vsel %vm4702, %v5466, 0.0
  %v5693 = vsel %vm4702, %v5468, 0.0
  %v5694 = vsel %vm4702, %v5470, 0.0
  %v5695 = vsel %vm4702, %v5472, 0.0
  %v5696 = vsel %vm4702, %v5474, 0.0
  %v5697 = vsel %vm4702, %v5476, 0.0
  %v5698 = vsel %vm4702, %v5478, 0.0
  %v5699 = vsel %vm4702, %v5480, 0.0
  %v5700 = vsel %vm4702, %v5482, 0.0
  %v5701 = vsel %vm4702, %v5484, 0.0
  %v5702 = vsel %vm4702, %v5486, 0.0
  %v5703 = vsel %vm4702, %v5488, 0.0
  %v5704 = vsel %vm4702, %v5490, 0.0
  %v5705 = vsel %vm4702, %v5492, 0.0
  %v5706 = vsel %vm4702, %v5494, 0.0
  %v5707 = vsel %vm4702, %v5496, 0.0
  %v5708 = vsel %vm4702, %v5498, 0.0
  %v5709 = vsel %vm4702, %v5500, 0.0
  %v5710 = vsel %vm4702, %v5502, 0.0
  %v5711 = vsel %vm4702, %v5504, 0.0
  %v5712 = vsel %vm4702, %v5506, 0.0
  %v5713 = vsel %vm4702, %v5508, 0.0
  %v5714 = vsel %vm4702, %v5510, 0.0
  %v5715 = vsel %vm4702, %v5512, 0.0
  %v5716 = vsel %vm4702, %v5514, 0.0
  %v5717 = vsel %vm4702, %v5516, 0.0
  %v5718 = vsel %vm4702, %v5518, 0.0
  %v5719 = vsel %vm4702, %v5520, 0.0
  %v5720 = vsel %vm4702, %v5522, 0.0
  %v5721 = vsel %vm4702, %v5524, 0.0
  %v5722 = vsel %vm4702, %v5526, 0.0
  %v5723 = vsel %vm4702, %v5528, 0.0
  %v5724 = vsel %vm4702, %v5530, 0.0
  %v5725 = vsel %vm4702, %v5532, 0.0
  %v5726 = vsel %vm4702, %v5534, 0.0
  %v5855 = vrot.slane %v4382, 7
  %v5856 = vrot.slane %v4383, 7
  %v5857 = vrot.slane %v4384, 7
  %v5858 = vrot.slane %v4385, 7
  %v5859 = vrot.slane %v4386, 7
  %v5860 = vrot.slane %v4387, 7
  %v5861 = vrot.slane %v4388, 7
  %v5862 = vrot.slane %v4389, 7
  %v5863 = vrot.slane %v4390, 7
  %v5864 = vrot.slane %v4391, 7
  %v5865 = vrot.slane %v4392, 7
  %v5866 = vrot.slane %v4393, 7
  %v5867 = vrot.slane %v4394, 7
  %v5868 = vrot.slane %v4395, 7
  %v5869 = vrot.slane %v4396, 7
  %v5870 = vrot.slane %v4397, 7
  %v5871 = vrot.slane %v4398, 7
  %v5872 = vrot.slane %v4399, 7
  %v5873 = vrot.slane %v4400, 7
  %v5874 = vrot.slane %v4401, 7
  %v5875 = vrot.slane %v4402, 7
  %v5876 = vrot.slane %v4403, 7
  %v5877 = vrot.slane %v4404, 7
  %v5878 = vrot.slane %v4405, 7
  %v5879 = vrot.slane %v4406, 7
  %v5880 = vrot.slane %v4407, 7
  %v5881 = vrot.slane %v4408, 7
  %v5882 = vrot.slane %v4409, 7
  %v5883 = vrot.slane %v4410, 7
  %v5884 = vrot.slane %v4411, 7
  %v5885 = vrot.slane %v4412, 7
  %v5886 = vrot.slane %v4413, 7
  %v5887 = vrot.slane %v4414, 7
  %v5888 = vrot.slane %v4415, 7
  %v5889 = vrot.slane %v4416, 7
  %v5890 = vrot.slane %v4417, 7
  %v5891 = vrot.slane %v4418, 7
  %v5892 = vrot.slane %v4419, 7
  %v5893 = vrot.slane %v4420, 7
  %v5894 = vrot.slane %v4421, 7
  %v5895 = vrot.slane %v4422, 7
  %v5896 = vrot.slane %v4423, 7
  %v5897 = vrot.slane %v4424, 7
  %v5898 = vrot.slane %v4425, 7
  %v5899 = vrot.slane %v4426, 7
  %v5900 = vrot.slane %v4427, 7
  %v5901 = vrot.slane %v4428, 7
  %v5902 = vrot.slane %v4429, 7
  %v5903 = vrot.slane %v4430, 7
  %v5904 = vrot.slane %v4431, 7
  %v5905 = vrot.slane %v4432, 7
  %v5906 = vrot.slane %v4433, 7
  %v5907 = vrot.slane %v4434, 7
  %v5908 = vrot.slane %v4435, 7
  %v5909 = vrot.slane %v4436, 7
  %v5910 = vrot.slane %v4437, 7
  %v5911 = vrot.slane %v4438, 7
  %v5912 = vrot.slane %v4439, 7
  %v5913 = vrot.slane %v4440, 7
  %v5914 = vrot.slane %v4441, 7
  %v5915 = vrot.slane %v4442, 7
  %v5916 = vrot.slane %v4443, 7
  %v5917 = vrot.slane %v4444, 7
  %v5918 = vrot.slane %v4445, 7
  %v5919 = vrot.slane %v4446, 7
  %v5920 = vrot.slane %v4447, 7
  %v5921 = vrot.slane %v4448, 7
  %v5922 = vrot.slane %v4449, 7
  %v5923 = vrot.slane %v4450, 7
  %v5924 = vrot.slane %v4451, 7
  %v5925 = vrot.slane %v4452, 7
  %v5926 = vrot.slane %v4453, 7
  %v5927 = vrot.slane %v4454, 7
  %v5928 = vrot.slane %v4455, 7
  %v5929 = vrot.slane %v4456, 7
  %v5930 = vrot.slane %v4457, 7
  %v5931 = vrot.slane %v4458, 7
  %v5932 = vrot.slane %v4459, 7
  %v5933 = vrot.slane %v4460, 7
  %v5934 = vrot.slane %v4461, 7
  %v5935 = vrot.slane %v4462, 7
  %v5936 = vrot.slane %v4463, 7
  %v5937 = vrot.slane %v4464, 7
  %v5938 = vrot.slane %v4465, 7
  %v5939 = vrot.slane %v4466, 7
  %v5940 = vrot.slane %v4467, 7
  %v5941 = vrot.slane %v4468, 7
  %v5942 = vrot.slane %v4469, 7
  %v5943 = vrot.slane %v4470, 7
  %v5944 = vrot.slane %v4471, 7
  %v5945 = vrot.slane %v4472, 7
  %v5946 = vrot.slane %v4473, 7
  %v5947 = vrot.slane %v4474, 7
  %v5948 = vrot.slane %v4475, 7
  %v5949 = vrot.slane %v4476, 7
  %v5950 = vrot.slane %v4477, 7
  %v5951 = vrot.slane %v4478, 7
  %v5952 = vrot.slane %v4479, 7
  %v5953 = vrot.slane %v4480, 7
  %v5954 = vrot.slane %v4481, 7
  %v5955 = vrot.slane %v4482, 7
  %v5956 = vrot.slane %v4483, 7
  %v5957 = vrot.slane %v4484, 7
  %v5958 = vrot.slane %v4485, 7
  %v5959 = vrot.slane %v4486, 7
  %v5960 = vrot.slane %v4487, 7
  %v5961 = vrot.slane %v4488, 7
  %v5962 = vrot.slane %v4489, 7
  %v5963 = vrot.slane %v4490, 7
  %v5964 = vrot.slane %v4491, 7
  %v5965 = vrot.slane %v4492, 7
  %v5966 = vrot.slane %v4493, 7
  %v5967 = vrot.slane %v4494, 7
  %v5968 = vrot.slane %v4495, 7
  %v5969 = vrot.slane %v4496, 7
  %v5970 = vrot.slane %v4497, 7
  %v5971 = vrot.slane %v4498, 7
  %v5972 = vrot.slane %v4499, 7
  %v5973 = vrot.slane %v4500, 7
  %v5974 = vrot.slane %v4501, 7
  %v5975 = vrot.slane %v4502, 7
  %v5976 = vrot.slane %v4503, 7
  %v5977 = vrot.slane %v4504, 7
  %v5978 = vrot.slane %v4505, 7
  %v5979 = vrot.slane %v4506, 7
  %v5980 = vrot.slane %v4507, 7
  %v5981 = vrot.slane %v4508, 7
  %v5982 = vrot.slane %v4509, 7
  %5983 = vrot.lane.b32.xlu0 %v5855, 8
  %v5984 = vpop.permute.xlu0 %5983
  %5985 = vrot.lane.b32.xlu0 %v5856, 8
  %v5986 = vpop.permute.xlu0 %5985
  %5987 = vrot.lane.b32.xlu0 %v5857, 8
  %v5988 = vpop.permute.xlu0 %5987
  %5989 = vrot.lane.b32.xlu0 %v5858, 8
  %v5990 = vpop.permute.xlu0 %5989
  %5991 = vrot.lane.b32.xlu0 %v5859, 8
  %v5992 = vpop.permute.xlu0 %5991
  %5993 = vrot.lane.b32.xlu0 %v5860, 8
  %v5994 = vpop.permute.xlu0 %5993
  %5995 = vrot.lane.b32.xlu0 %v5861, 8
  %v5996 = vpop.permute.xlu0 %5995
  %5997 = vrot.lane.b32.xlu0 %v5862, 8
  %v5998 = vpop.permute.xlu0 %5997
  %5999 = vrot.lane.b32.xlu0 %v5863, 8
  %v6000 = vpop.permute.xlu0 %5999
  %6001 = vrot.lane.b32.xlu0 %v5864, 8
  %v6002 = vpop.permute.xlu0 %6001
  %6003 = vrot.lane.b32.xlu0 %v5865, 8
  %v6004 = vpop.permute.xlu0 %6003
  %6005 = vrot.lane.b32.xlu0 %v5866, 8
  %v6006 = vpop.permute.xlu0 %6005
  %6007 = vrot.lane.b32.xlu0 %v5867, 8
  %v6008 = vpop.permute.xlu0 %6007
  %6009 = vrot.lane.b32.xlu0 %v5868, 8
  %v6010 = vpop.permute.xlu0 %6009
  %6011 = vrot.lane.b32.xlu0 %v5869, 8
  %v6012 = vpop.permute.xlu0 %6011
  %6013 = vrot.lane.b32.xlu0 %v5870, 8
  %v6014 = vpop.permute.xlu0 %6013
  %6015 = vrot.lane.b32.xlu0 %v5871, 8
  %v6016 = vpop.permute.xlu0 %6015
  %6017 = vrot.lane.b32.xlu0 %v5872, 8
  %v6018 = vpop.permute.xlu0 %6017
  %6019 = vrot.lane.b32.xlu0 %v5873, 8
  %v6020 = vpop.permute.xlu0 %6019
  %6021 = vrot.lane.b32.xlu0 %v5874, 8
  %v6022 = vpop.permute.xlu0 %6021
  %6023 = vrot.lane.b32.xlu0 %v5875, 8
  %v6024 = vpop.permute.xlu0 %6023
  %6025 = vrot.lane.b32.xlu0 %v5876, 8
  %v6026 = vpop.permute.xlu0 %6025
  %6027 = vrot.lane.b32.xlu0 %v5877, 8
  %v6028 = vpop.permute.xlu0 %6027
  %6029 = vrot.lane.b32.xlu0 %v5878, 8
  %v6030 = vpop.permute.xlu0 %6029
  %6031 = vrot.lane.b32.xlu0 %v5879, 8
  %v6032 = vpop.permute.xlu0 %6031
  %6033 = vrot.lane.b32.xlu0 %v5880, 8
  %v6034 = vpop.permute.xlu0 %6033
  %6035 = vrot.lane.b32.xlu0 %v5881, 8
  %v6036 = vpop.permute.xlu0 %6035
  %6037 = vrot.lane.b32.xlu0 %v5882, 8
  %v6038 = vpop.permute.xlu0 %6037
  %6039 = vrot.lane.b32.xlu0 %v5883, 8
  %v6040 = vpop.permute.xlu0 %6039
  %6041 = vrot.lane.b32.xlu0 %v5884, 8
  %v6042 = vpop.permute.xlu0 %6041
  %6043 = vrot.lane.b32.xlu0 %v5885, 8
  %v6044 = vpop.permute.xlu0 %6043
  %6045 = vrot.lane.b32.xlu0 %v5886, 8
  %v6046 = vpop.permute.xlu0 %6045
  %6047 = vrot.lane.b32.xlu0 %v5887, 8
  %v6048 = vpop.permute.xlu0 %6047
  %6049 = vrot.lane.b32.xlu0 %v5888, 8
  %v6050 = vpop.permute.xlu0 %6049
  %6051 = vrot.lane.b32.xlu0 %v5889, 8
  %v6052 = vpop.permute.xlu0 %6051
  %6053 = vrot.lane.b32.xlu0 %v5890, 8
  %v6054 = vpop.permute.xlu0 %6053
  %6055 = vrot.lane.b32.xlu0 %v5891, 8
  %v6056 = vpop.permute.xlu0 %6055
  %6057 = vrot.lane.b32.xlu0 %v5892, 8
  %v6058 = vpop.permute.xlu0 %6057
  %6059 = vrot.lane.b32.xlu0 %v5893, 8
  %v6060 = vpop.permute.xlu0 %6059
  %6061 = vrot.lane.b32.xlu0 %v5894, 8
  %v6062 = vpop.permute.xlu0 %6061
  %6063 = vrot.lane.b32.xlu0 %v5895, 8
  %v6064 = vpop.permute.xlu0 %6063
  %6065 = vrot.lane.b32.xlu0 %v5896, 8
  %v6066 = vpop.permute.xlu0 %6065
  %6067 = vrot.lane.b32.xlu0 %v5897, 8
  %v6068 = vpop.permute.xlu0 %6067
  %6069 = vrot.lane.b32.xlu0 %v5898, 8
  %v6070 = vpop.permute.xlu0 %6069
  %6071 = vrot.lane.b32.xlu0 %v5899, 8
  %v6072 = vpop.permute.xlu0 %6071
  %6073 = vrot.lane.b32.xlu0 %v5900, 8
  %v6074 = vpop.permute.xlu0 %6073
  %6075 = vrot.lane.b32.xlu0 %v5901, 8
  %v6076 = vpop.permute.xlu0 %6075
  %6077 = vrot.lane.b32.xlu0 %v5902, 8
  %v6078 = vpop.permute.xlu0 %6077
  %6079 = vrot.lane.b32.xlu0 %v5903, 8
  %v6080 = vpop.permute.xlu0 %6079
  %6081 = vrot.lane.b32.xlu0 %v5904, 8
  %v6082 = vpop.permute.xlu0 %6081
  %6083 = vrot.lane.b32.xlu0 %v5905, 8
  %v6084 = vpop.permute.xlu0 %6083
  %6085 = vrot.lane.b32.xlu0 %v5906, 8
  %v6086 = vpop.permute.xlu0 %6085
  %6087 = vrot.lane.b32.xlu0 %v5907, 8
  %v6088 = vpop.permute.xlu0 %6087
  %6089 = vrot.lane.b32.xlu0 %v5908, 8
  %v6090 = vpop.permute.xlu0 %6089
  %6091 = vrot.lane.b32.xlu0 %v5909, 8
  %v6092 = vpop.permute.xlu0 %6091
  %6093 = vrot.lane.b32.xlu0 %v5910, 8
  %v6094 = vpop.permute.xlu0 %6093
  %6095 = vrot.lane.b32.xlu0 %v5911, 8
  %v6096 = vpop.permute.xlu0 %6095
  %6097 = vrot.lane.b32.xlu0 %v5912, 8
  %v6098 = vpop.permute.xlu0 %6097
  %6099 = vrot.lane.b32.xlu0 %v5913, 8
  %v6100 = vpop.permute.xlu0 %6099
  %6101 = vrot.lane.b32.xlu0 %v5914, 8
  %v6102 = vpop.permute.xlu0 %6101
  %6103 = vrot.lane.b32.xlu0 %v5915, 8
  %v6104 = vpop.permute.xlu0 %6103
  %6105 = vrot.lane.b32.xlu0 %v5916, 8
  %v6106 = vpop.permute.xlu0 %6105
  %6107 = vrot.lane.b32.xlu0 %v5917, 8
  %v6108 = vpop.permute.xlu0 %6107
  %6109 = vrot.lane.b32.xlu0 %v5918, 8
  %v6110 = vpop.permute.xlu0 %6109
  %6111 = vrot.lane.b32.xlu0 %v5919, 8
  %v6112 = vpop.permute.xlu0 %6111
  %6113 = vrot.lane.b32.xlu0 %v5920, 8
  %v6114 = vpop.permute.xlu0 %6113
  %6115 = vrot.lane.b32.xlu0 %v5921, 8
  %v6116 = vpop.permute.xlu0 %6115
  %6117 = vrot.lane.b32.xlu0 %v5922, 8
  %v6118 = vpop.permute.xlu0 %6117
  %6119 = vrot.lane.b32.xlu0 %v5923, 8
  %v6120 = vpop.permute.xlu0 %6119
  %6121 = vrot.lane.b32.xlu0 %v5924, 8
  %v6122 = vpop.permute.xlu0 %6121
  %6123 = vrot.lane.b32.xlu0 %v5925, 8
  %v6124 = vpop.permute.xlu0 %6123
  %6125 = vrot.lane.b32.xlu0 %v5926, 8
  %v6126 = vpop.permute.xlu0 %6125
  %6127 = vrot.lane.b32.xlu0 %v5927, 8
  %v6128 = vpop.permute.xlu0 %6127
  %6129 = vrot.lane.b32.xlu0 %v5928, 8
  %v6130 = vpop.permute.xlu0 %6129
  %6131 = vrot.lane.b32.xlu0 %v5929, 8
  %v6132 = vpop.permute.xlu0 %6131
  %6133 = vrot.lane.b32.xlu0 %v5930, 8
  %v6134 = vpop.permute.xlu0 %6133
  %6135 = vrot.lane.b32.xlu0 %v5931, 8
  %v6136 = vpop.permute.xlu0 %6135
  %6137 = vrot.lane.b32.xlu0 %v5932, 8
  %v6138 = vpop.permute.xlu0 %6137
  %6139 = vrot.lane.b32.xlu0 %v5933, 8
  %v6140 = vpop.permute.xlu0 %6139
  %6141 = vrot.lane.b32.xlu0 %v5934, 8
  %v6142 = vpop.permute.xlu0 %6141
  %6143 = vrot.lane.b32.xlu0 %v5935, 8
  %v6144 = vpop.permute.xlu0 %6143
  %6145 = vrot.lane.b32.xlu0 %v5936, 8
  %v6146 = vpop.permute.xlu0 %6145
  %6147 = vrot.lane.b32.xlu0 %v5937, 8
  %v6148 = vpop.permute.xlu0 %6147
  %6149 = vrot.lane.b32.xlu0 %v5938, 8
  %v6150 = vpop.permute.xlu0 %6149
  %6151 = vrot.lane.b32.xlu0 %v5939, 8
  %v6152 = vpop.permute.xlu0 %6151
  %6153 = vrot.lane.b32.xlu0 %v5940, 8
  %v6154 = vpop.permute.xlu0 %6153
  %6155 = vrot.lane.b32.xlu0 %v5941, 8
  %v6156 = vpop.permute.xlu0 %6155
  %6157 = vrot.lane.b32.xlu0 %v5942, 8
  %v6158 = vpop.permute.xlu0 %6157
  %6159 = vrot.lane.b32.xlu0 %v5943, 8
  %v6160 = vpop.permute.xlu0 %6159
  %6161 = vrot.lane.b32.xlu0 %v5944, 8
  %v6162 = vpop.permute.xlu0 %6161
  %6163 = vrot.lane.b32.xlu0 %v5945, 8
  %v6164 = vpop.permute.xlu0 %6163
  %6165 = vrot.lane.b32.xlu0 %v5946, 8
  %v6166 = vpop.permute.xlu0 %6165
  %6167 = vrot.lane.b32.xlu0 %v5947, 8
  %v6168 = vpop.permute.xlu0 %6167
  %6169 = vrot.lane.b32.xlu0 %v5948, 8
  %v6170 = vpop.permute.xlu0 %6169
  %6171 = vrot.lane.b32.xlu0 %v5949, 8
  %v6172 = vpop.permute.xlu0 %6171
  %6173 = vrot.lane.b32.xlu0 %v5950, 8
  %v6174 = vpop.permute.xlu0 %6173
  %6175 = vrot.lane.b32.xlu0 %v5951, 8
  %v6176 = vpop.permute.xlu0 %6175
  %6177 = vrot.lane.b32.xlu0 %v5952, 8
  %v6178 = vpop.permute.xlu0 %6177
  %6179 = vrot.lane.b32.xlu0 %v5953, 8
  %v6180 = vpop.permute.xlu0 %6179
  %6181 = vrot.lane.b32.xlu0 %v5954, 8
  %v6182 = vpop.permute.xlu0 %6181
  %6183 = vrot.lane.b32.xlu0 %v5955, 8
  %v6184 = vpop.permute.xlu0 %6183
  %6185 = vrot.lane.b32.xlu0 %v5956, 8
  %v6186 = vpop.permute.xlu0 %6185
  %6187 = vrot.lane.b32.xlu0 %v5957, 8
  %v6188 = vpop.permute.xlu0 %6187
  %6189 = vrot.lane.b32.xlu0 %v5958, 8
  %v6190 = vpop.permute.xlu0 %6189
  %6191 = vrot.lane.b32.xlu0 %v5959, 8
  %v6192 = vpop.permute.xlu0 %6191
  %6193 = vrot.lane.b32.xlu0 %v5960, 8
  %v6194 = vpop.permute.xlu0 %6193
  %6195 = vrot.lane.b32.xlu0 %v5961, 8
  %v6196 = vpop.permute.xlu0 %6195
  %6197 = vrot.lane.b32.xlu0 %v5962, 8
  %v6198 = vpop.permute.xlu0 %6197
  %6199 = vrot.lane.b32.xlu0 %v5963, 8
  %v6200 = vpop.permute.xlu0 %6199
  %6201 = vrot.lane.b32.xlu0 %v5964, 8
  %v6202 = vpop.permute.xlu0 %6201
  %6203 = vrot.lane.b32.xlu0 %v5965, 8
  %v6204 = vpop.permute.xlu0 %6203
  %6205 = vrot.lane.b32.xlu0 %v5966, 8
  %v6206 = vpop.permute.xlu0 %6205
  %6207 = vrot.lane.b32.xlu0 %v5967, 8
  %v6208 = vpop.permute.xlu0 %6207
  %6209 = vrot.lane.b32.xlu0 %v5968, 8
  %v6210 = vpop.permute.xlu0 %6209
  %6211 = vrot.lane.b32.xlu0 %v5969, 8
  %v6212 = vpop.permute.xlu0 %6211
  %6213 = vrot.lane.b32.xlu0 %v5970, 8
  %v6214 = vpop.permute.xlu0 %6213
  %6215 = vrot.lane.b32.xlu0 %v5971, 8
  %v6216 = vpop.permute.xlu0 %6215
  %6217 = vrot.lane.b32.xlu0 %v5972, 8
  %v6218 = vpop.permute.xlu0 %6217
  %6219 = vrot.lane.b32.xlu0 %v5973, 8
  %v6220 = vpop.permute.xlu0 %6219
  %6221 = vrot.lane.b32.xlu0 %v5974, 8
  %v6222 = vpop.permute.xlu0 %6221
  %6223 = vrot.lane.b32.xlu0 %v5975, 8
  %v6224 = vpop.permute.xlu0 %6223
  %6225 = vrot.lane.b32.xlu0 %v5976, 8
  %v6226 = vpop.permute.xlu0 %6225
  %6227 = vrot.lane.b32.xlu0 %v5977, 8
  %v6228 = vpop.permute.xlu0 %6227
  %6229 = vrot.lane.b32.xlu0 %v5978, 8
  %v6230 = vpop.permute.xlu0 %6229
  %6231 = vrot.lane.b32.xlu0 %v5979, 8
  %v6232 = vpop.permute.xlu0 %6231
  %6233 = vrot.lane.b32.xlu0 %v5980, 8
  %v6234 = vpop.permute.xlu0 %6233
  %6235 = vrot.lane.b32.xlu0 %v5981, 8
  %v6236 = vpop.permute.xlu0 %6235
  %6237 = vrot.lane.b32.xlu0 %v5982, 8
  %v6238 = vpop.permute.xlu0 %6237
  %vm6239 = vcmask 64512
  %v6240 = vsel %vm6239, %v5984, %v5986
  %v6241 = vsel %vm6239, %v5988, %v5990
  %v6242 = vsel %vm6239, %v5992, %v5994
  %v6243 = vsel %vm6239, %v5996, %v5998
  %v6244 = vsel %vm6239, %v6000, %v6002
  %v6245 = vsel %vm6239, %v6004, %v6006
  %v6246 = vsel %vm6239, %v6008, %v6010
  %v6247 = vsel %vm6239, %v6012, %v6014
  %v6248 = vsel %vm6239, %v6016, %v6018
  %v6249 = vsel %vm6239, %v6020, %v6022
  %v6250 = vsel %vm6239, %v6024, %v6026
  %v6251 = vsel %vm6239, %v6028, %v6030
  %v6252 = vsel %vm6239, %v6032, %v6034
  %v6253 = vsel %vm6239, %v6036, %v6038
  %v6254 = vsel %vm6239, %v6040, %v6042
  %v6255 = vsel %vm6239, %v6044, %v6046
  %v6256 = vsel %vm6239, %v6048, %v6050
  %v6257 = vsel %vm6239, %v6052, %v6054
  %v6258 = vsel %vm6239, %v6056, %v6058
  %v6259 = vsel %vm6239, %v6060, %v6062
  %v6260 = vsel %vm6239, %v6064, %v6066
  %v6261 = vsel %vm6239, %v6068, %v6070
  %v6262 = vsel %vm6239, %v6072, %v6074
  %v6263 = vsel %vm6239, %v6076, %v6078
  %v6264 = vsel %vm6239, %v6080, %v6082
  %v6265 = vsel %vm6239, %v6084, %v6086
  %v6266 = vsel %vm6239, %v6088, %v6090
  %v6267 = vsel %vm6239, %v6092, %v6094
  %v6268 = vsel %vm6239, %v6096, %v6098
  %v6269 = vsel %vm6239, %v6100, %v6102
  %v6270 = vsel %vm6239, %v6104, %v6106
  %v6271 = vsel %vm6239, %v6108, %v6110
  %v6272 = vsel %vm6239, %v6112, %v6114
  %v6273 = vsel %vm6239, %v6116, %v6118
  %v6274 = vsel %vm6239, %v6120, %v6122
  %v6275 = vsel %vm6239, %v6124, %v6126
  %v6276 = vsel %vm6239, %v6128, %v6130
  %v6277 = vsel %vm6239, %v6132, %v6134
  %v6278 = vsel %vm6239, %v6136, %v6138
  %v6279 = vsel %vm6239, %v6140, %v6142
  %v6280 = vsel %vm6239, %v6144, %v6146
  %v6281 = vsel %vm6239, %v6148, %v6150
  %v6282 = vsel %vm6239, %v6152, %v6154
  %v6283 = vsel %vm6239, %v6156, %v6158
  %v6284 = vsel %vm6239, %v6160, %v6162
  %v6285 = vsel %vm6239, %v6164, %v6166
  %v6286 = vsel %vm6239, %v6168, %v6170
  %v6287 = vsel %vm6239, %v6172, %v6174
  %v6288 = vsel %vm6239, %v6176, %v6178
  %v6289 = vsel %vm6239, %v6180, %v6182
  %v6290 = vsel %vm6239, %v6184, %v6186
  %v6291 = vsel %vm6239, %v6188, %v6190
  %v6292 = vsel %vm6239, %v6192, %v6194
  %v6293 = vsel %vm6239, %v6196, %v6198
  %v6294 = vsel %vm6239, %v6200, %v6202
  %v6295 = vsel %vm6239, %v6204, %v6206
  %v6296 = vsel %vm6239, %v6208, %v6210
  %v6297 = vsel %vm6239, %v6212, %v6214
  %v6298 = vsel %vm6239, %v6216, %v6218
  %v6299 = vsel %vm6239, %v6220, %v6222
  %v6300 = vsel %vm6239, %v6224, %v6226
  %v6301 = vsel %vm6239, %v6228, %v6230
  %v6302 = vsel %vm6239, %v6232, %v6234
  %v6303 = vsel %vm6239, %v6236, %v6238
  %v6368 = vsel %vm4702, 0.0, %v6240
  %v6369 = vsel %vm4702, 0.0, %v6241
  %v6370 = vsel %vm4702, 0.0, %v6242
  %v6371 = vsel %vm4702, 0.0, %v6243
  %v6372 = vsel %vm4702, 0.0, %v6244
  %v6373 = vsel %vm4702, 0.0, %v6245
  %v6374 = vsel %vm4702, 0.0, %v6246
  %v6375 = vsel %vm4702, 0.0, %v6247
  %v6376 = vsel %vm4702, 0.0, %v6248
  %v6377 = vsel %vm4702, 0.0, %v6249
  %v6378 = vsel %vm4702, 0.0, %v6250
  %v6379 = vsel %vm4702, 0.0, %v6251
  %v6380 = vsel %vm4702, 0.0, %v6252
  %v6381 = vsel %vm4702, 0.0, %v6253
  %v6382 = vsel %vm4702, 0.0, %v6254
  %v6383 = vsel %vm4702, 0.0, %v6255
  %v6384 = vsel %vm4702, 0.0, %v6256
  %v6385 = vsel %vm4702, 0.0, %v6257
  %v6386 = vsel %vm4702, 0.0, %v6258
  %v6387 = vsel %vm4702, 0.0, %v6259
  %v6388 = vsel %vm4702, 0.0, %v6260
  %v6389 = vsel %vm4702, 0.0, %v6261
  %v6390 = vsel %vm4702, 0.0, %v6262
  %v6391 = vsel %vm4702, 0.0, %v6263
  %v6392 = vsel %vm4702, 0.0, %v6264
  %v6393 = vsel %vm4702, 0.0, %v6265
  %v6394 = vsel %vm4702, 0.0, %v6266
  %v6395 = vsel %vm4702, 0.0, %v6267
  %v6396 = vsel %vm4702, 0.0, %v6268
  %v6397 = vsel %vm4702, 0.0, %v6269
  %v6398 = vsel %vm4702, 0.0, %v6270
  %v6399 = vsel %vm4702, 0.0, %v6271
  %v6400 = vsel %vm4702, 0.0, %v6272
  %v6401 = vsel %vm4702, 0.0, %v6273
  %v6402 = vsel %vm4702, 0.0, %v6274
  %v6403 = vsel %vm4702, 0.0, %v6275
  %v6404 = vsel %vm4702, 0.0, %v6276
  %v6405 = vsel %vm4702, 0.0, %v6277
  %v6406 = vsel %vm4702, 0.0, %v6278
  %v6407 = vsel %vm4702, 0.0, %v6279
  %v6408 = vsel %vm4702, 0.0, %v6280
  %v6409 = vsel %vm4702, 0.0, %v6281
  %v6410 = vsel %vm4702, 0.0, %v6282
  %v6411 = vsel %vm4702, 0.0, %v6283
  %v6412 = vsel %vm4702, 0.0, %v6284
  %v6413 = vsel %vm4702, 0.0, %v6285
  %v6414 = vsel %vm4702, 0.0, %v6286
  %v6415 = vsel %vm4702, 0.0, %v6287
  %v6416 = vsel %vm4702, 0.0, %v6288
  %v6417 = vsel %vm4702, 0.0, %v6289
  %v6418 = vsel %vm4702, 0.0, %v6290
  %v6419 = vsel %vm4702, 0.0, %v6291
  %v6420 = vsel %vm4702, 0.0, %v6292
  %v6421 = vsel %vm4702, 0.0, %v6293
  %v6422 = vsel %vm4702, 0.0, %v6294
  %v6423 = vsel %vm4702, 0.0, %v6295
  %v6424 = vsel %vm4702, 0.0, %v6296
  %v6425 = vsel %vm4702, 0.0, %v6297
  %v6426 = vsel %vm4702, 0.0, %v6298
  %v6427 = vsel %vm4702, 0.0, %v6299
  %v6428 = vsel %vm4702, 0.0, %v6300
  %v6429 = vsel %vm4702, 0.0, %v6301
  %v6430 = vsel %vm4702, 0.0, %v6302
  %v6431 = vsel %vm4702, 0.0, %v6303
  %v6432 = vsel %vm4702, %v6240, 0.0
  %v6433 = vsel %vm4702, %v6241, 0.0
  %v6434 = vsel %vm4702, %v6242, 0.0
  %v6435 = vsel %vm4702, %v6243, 0.0
  %v6436 = vsel %vm4702, %v6244, 0.0
  %v6437 = vsel %vm4702, %v6245, 0.0
  %v6438 = vsel %vm4702, %v6246, 0.0
  %v6439 = vsel %vm4702, %v6247, 0.0
  %v6440 = vsel %vm4702, %v6248, 0.0
  %v6441 = vsel %vm4702, %v6249, 0.0
  %v6442 = vsel %vm4702, %v6250, 0.0
  %v6443 = vsel %vm4702, %v6251, 0.0
  %v6444 = vsel %vm4702, %v6252, 0.0
  %v6445 = vsel %vm4702, %v6253, 0.0
  %v6446 = vsel %vm4702, %v6254, 0.0
  %v6447 = vsel %vm4702, %v6255, 0.0
  %v6448 = vsel %vm4702, %v6256, 0.0
  %v6449 = vsel %vm4702, %v6257, 0.0
  %v6450 = vsel %vm4702, %v6258, 0.0
  %v6451 = vsel %vm4702, %v6259, 0.0
  %v6452 = vsel %vm4702, %v6260, 0.0
  %v6453 = vsel %vm4702, %v6261, 0.0
  %v6454 = vsel %vm4702, %v6262, 0.0
  %v6455 = vsel %vm4702, %v6263, 0.0
  %v6456 = vsel %vm4702, %v6264, 0.0
  %v6457 = vsel %vm4702, %v6265, 0.0
  %v6458 = vsel %vm4702, %v6266, 0.0
  %v6459 = vsel %vm4702, %v6267, 0.0
  %v6460 = vsel %vm4702, %v6268, 0.0
  %v6461 = vsel %vm4702, %v6269, 0.0
  %v6462 = vsel %vm4702, %v6270, 0.0
  %v6463 = vsel %vm4702, %v6271, 0.0
  %v6464 = vsel %vm4702, %v6272, 0.0
  %v6465 = vsel %vm4702, %v6273, 0.0
  %v6466 = vsel %vm4702, %v6274, 0.0
  %v6467 = vsel %vm4702, %v6275, 0.0
  %v6468 = vsel %vm4702, %v6276, 0.0
  %v6469 = vsel %vm4702, %v6277, 0.0
  %v6470 = vsel %vm4702, %v6278, 0.0
  %v6471 = vsel %vm4702, %v6279, 0.0
  %v6472 = vsel %vm4702, %v6280, 0.0
  %v6473 = vsel %vm4702, %v6281, 0.0
  %v6474 = vsel %vm4702, %v6282, 0.0
  %v6475 = vsel %vm4702, %v6283, 0.0
  %v6476 = vsel %vm4702, %v6284, 0.0
  %v6477 = vsel %vm4702, %v6285, 0.0
  %v6478 = vsel %vm4702, %v6286, 0.0
  %v6479 = vsel %vm4702, %v6287, 0.0
  %v6480 = vsel %vm4702, %v6288, 0.0
  %v6481 = vsel %vm4702, %v6289, 0.0
  %v6482 = vsel %vm4702, %v6290, 0.0
  %v6483 = vsel %vm4702, %v6291, 0.0
  %v6484 = vsel %vm4702, %v6292, 0.0
  %v6485 = vsel %vm4702, %v6293, 0.0
  %v6486 = vsel %vm4702, %v6294, 0.0
  %v6487 = vsel %vm4702, %v6295, 0.0
  %v6488 = vsel %vm4702, %v6296, 0.0
  %v6489 = vsel %vm4702, %v6297, 0.0
  %v6490 = vsel %vm4702, %v6298, 0.0
  %v6491 = vsel %vm4702, %v6299, 0.0
  %v6492 = vsel %vm4702, %v6300, 0.0
  %v6493 = vsel %vm4702, %v6301, 0.0
  %v6494 = vsel %vm4702, %v6302, 0.0
  %v6495 = vsel %vm4702, %v6303, 0.0
  %v6624 = vrot.slane %v4703, 1
  %v6625 = vrot.slane %v4767, 1
  %v6626 = vsel %vm304, %v6624, %v6625
  %v6627 = vrot.slane %v4704, 1
  %v6628 = vrot.slane %v4768, 1
  %v6629 = vsel %vm304, %v6627, %v6628
  %v6630 = vrot.slane %v4705, 1
  %v6631 = vrot.slane %v4769, 1
  %v6632 = vsel %vm304, %v6630, %v6631
  %v6633 = vrot.slane %v4706, 1
  %v6634 = vrot.slane %v4770, 1
  %v6635 = vsel %vm304, %v6633, %v6634
  %v6636 = vrot.slane %v4707, 1
  %v6637 = vrot.slane %v4771, 1
  %v6638 = vsel %vm304, %v6636, %v6637
  %v6639 = vrot.slane %v4708, 1
  %v6640 = vrot.slane %v4772, 1
  %v6641 = vsel %vm304, %v6639, %v6640
  %v6642 = vrot.slane %v4709, 1
  %v6643 = vrot.slane %v4773, 1
  %v6644 = vsel %vm304, %v6642, %v6643
  %v6645 = vrot.slane %v4710, 1
  %v6646 = vrot.slane %v4774, 1
  %v6647 = vsel %vm304, %v6645, %v6646
  %v6648 = vrot.slane %v4711, 1
  %v6649 = vrot.slane %v4775, 1
  %v6650 = vsel %vm304, %v6648, %v6649
  %v6651 = vrot.slane %v4712, 1
  %v6652 = vrot.slane %v4776, 1
  %v6653 = vsel %vm304, %v6651, %v6652
  %v6654 = vrot.slane %v4713, 1
  %v6655 = vrot.slane %v4777, 1
  %v6656 = vsel %vm304, %v6654, %v6655
  %v6657 = vrot.slane %v4714, 1
  %v6658 = vrot.slane %v4778, 1
  %v6659 = vsel %vm304, %v6657, %v6658
  %v6660 = vrot.slane %v4715, 1
  %v6661 = vrot.slane %v4779, 1
  %v6662 = vsel %vm304, %v6660, %v6661
  %v6663 = vrot.slane %v4716, 1
  %v6664 = vrot.slane %v4780, 1
  %v6665 = vsel %vm304, %v6663, %v6664
  %v6666 = vrot.slane %v4717, 1
  %v6667 = vrot.slane %v4781, 1
  %v6668 = vsel %vm304, %v6666, %v6667
  %v6669 = vrot.slane %v4718, 1
  %v6670 = vrot.slane %v4782, 1
  %v6671 = vsel %vm304, %v6669, %v6670
  %v6672 = vrot.slane %v4719, 1
  %v6673 = vrot.slane %v4783, 1
  %v6674 = vsel %vm304, %v6672, %v6673
  %v6675 = vrot.slane %v4720, 1
  %v6676 = vrot.slane %v4784, 1
  %v6677 = vsel %vm304, %v6675, %v6676
  %v6678 = vrot.slane %v4721, 1
  %v6679 = vrot.slane %v4785, 1
  %v6680 = vsel %vm304, %v6678, %v6679
  %v6681 = vrot.slane %v4722, 1
  %v6682 = vrot.slane %v4786, 1
  %v6683 = vsel %vm304, %v6681, %v6682
  %v6684 = vrot.slane %v4723, 1
  %v6685 = vrot.slane %v4787, 1
  %v6686 = vsel %vm304, %v6684, %v6685
  %v6687 = vrot.slane %v4724, 1
  %v6688 = vrot.slane %v4788, 1
  %v6689 = vsel %vm304, %v6687, %v6688
  %v6690 = vrot.slane %v4725, 1
  %v6691 = vrot.slane %v4789, 1
  %v6692 = vsel %vm304, %v6690, %v6691
  %v6693 = vrot.slane %v4726, 1
  %v6694 = vrot.slane %v4790, 1
  %v6695 = vsel %vm304, %v6693, %v6694
  %v6696 = vrot.slane %v4727, 1
  %v6697 = vrot.slane %v4791, 1
  %v6698 = vsel %vm304, %v6696, %v6697
  %v6699 = vrot.slane %v4728, 1
  %v6700 = vrot.slane %v4792, 1
  %v6701 = vsel %vm304, %v6699, %v6700
  %v6702 = vrot.slane %v4729, 1
  %v6703 = vrot.slane %v4793, 1
  %v6704 = vsel %vm304, %v6702, %v6703
  %v6705 = vrot.slane %v4730, 1
  %v6706 = vrot.slane %v4794, 1
  %v6707 = vsel %vm304, %v6705, %v6706
  %v6708 = vrot.slane %v4731, 1
  %v6709 = vrot.slane %v4795, 1
  %v6710 = vsel %vm304, %v6708, %v6709
  %v6711 = vrot.slane %v4732, 1
  %v6712 = vrot.slane %v4796, 1
  %v6713 = vsel %vm304, %v6711, %v6712
  %v6714 = vrot.slane %v4733, 1
  %v6715 = vrot.slane %v4797, 1
  %v6716 = vsel %vm304, %v6714, %v6715
  %v6717 = vrot.slane %v4734, 1
  %v6718 = vrot.slane %v4798, 1
  %v6719 = vsel %vm304, %v6717, %v6718
  %v6720 = vrot.slane %v4735, 1
  %v6721 = vrot.slane %v4799, 1
  %v6722 = vsel %vm304, %v6720, %v6721
  %v6723 = vrot.slane %v4736, 1
  %v6724 = vrot.slane %v4800, 1
  %v6725 = vsel %vm304, %v6723, %v6724
  %v6726 = vrot.slane %v4737, 1
  %v6727 = vrot.slane %v4801, 1
  %v6728 = vsel %vm304, %v6726, %v6727
  %v6729 = vrot.slane %v4738, 1
  %v6730 = vrot.slane %v4802, 1
  %v6731 = vsel %vm304, %v6729, %v6730
  %v6732 = vrot.slane %v4739, 1
  %v6733 = vrot.slane %v4803, 1
  %v6734 = vsel %vm304, %v6732, %v6733
  %v6735 = vrot.slane %v4740, 1
  %v6736 = vrot.slane %v4804, 1
  %v6737 = vsel %vm304, %v6735, %v6736
  %v6738 = vrot.slane %v4741, 1
  %v6739 = vrot.slane %v4805, 1
  %v6740 = vsel %vm304, %v6738, %v6739
  %v6741 = vrot.slane %v4742, 1
  %v6742 = vrot.slane %v4806, 1
  %v6743 = vsel %vm304, %v6741, %v6742
  %v6744 = vrot.slane %v4743, 1
  %v6745 = vrot.slane %v4807, 1
  %v6746 = vsel %vm304, %v6744, %v6745
  %v6747 = vrot.slane %v4744, 1
  %v6748 = vrot.slane %v4808, 1
  %v6749 = vsel %vm304, %v6747, %v6748
  %v6750 = vrot.slane %v4745, 1
  %v6751 = vrot.slane %v4809, 1
  %v6752 = vsel %vm304, %v6750, %v6751
  %v6753 = vrot.slane %v4746, 1
  %v6754 = vrot.slane %v4810, 1
  %v6755 = vsel %vm304, %v6753, %v6754
  %v6756 = vrot.slane %v4747, 1
  %v6757 = vrot.slane %v4811, 1
  %v6758 = vsel %vm304, %v6756, %v6757
  %v6759 = vrot.slane %v4748, 1
  %v6760 = vrot.slane %v4812, 1
  %v6761 = vsel %vm304, %v6759, %v6760
  %v6762 = vrot.slane %v4749, 1
  %v6763 = vrot.slane %v4813, 1
  %v6764 = vsel %vm304, %v6762, %v6763
  %v6765 = vrot.slane %v4750, 1
  %v6766 = vrot.slane %v4814, 1
  %v6767 = vsel %vm304, %v6765, %v6766
  %v6768 = vrot.slane %v4751, 1
  %v6769 = vrot.slane %v4815, 1
  %v6770 = vsel %vm304, %v6768, %v6769
  %v6771 = vrot.slane %v4752, 1
  %v6772 = vrot.slane %v4816, 1
  %v6773 = vsel %vm304, %v6771, %v6772
  %v6774 = vrot.slane %v4753, 1
  %v6775 = vrot.slane %v4817, 1
  %v6776 = vsel %vm304, %v6774, %v6775
  %v6777 = vrot.slane %v4754, 1
  %v6778 = vrot.slane %v4818, 1
  %v6779 = vsel %vm304, %v6777, %v6778
  %v6780 = vrot.slane %v4755, 1
  %v6781 = vrot.slane %v4819, 1
  %v6782 = vsel %vm304, %v6780, %v6781
  %v6783 = vrot.slane %v4756, 1
  %v6784 = vrot.slane %v4820, 1
  %v6785 = vsel %vm304, %v6783, %v6784
  %v6786 = vrot.slane %v4757, 1
  %v6787 = vrot.slane %v4821, 1
  %v6788 = vsel %vm304, %v6786, %v6787
  %v6789 = vrot.slane %v4758, 1
  %v6790 = vrot.slane %v4822, 1
  %v6791 = vsel %vm304, %v6789, %v6790
  %v6792 = vrot.slane %v4759, 1
  %v6793 = vrot.slane %v4823, 1
  %v6794 = vsel %vm304, %v6792, %v6793
  %v6795 = vrot.slane %v4760, 1
  %v6796 = vrot.slane %v4824, 1
  %v6797 = vsel %vm304, %v6795, %v6796
  %v6798 = vrot.slane %v4761, 1
  %v6799 = vrot.slane %v4825, 1
  %v6800 = vsel %vm304, %v6798, %v6799
  %v6801 = vrot.slane %v4762, 1
  %v6802 = vrot.slane %v4826, 1
  %v6803 = vsel %vm304, %v6801, %v6802
  %v6804 = vrot.slane %v4763, 1
  %v6805 = vrot.slane %v4827, 1
  %v6806 = vsel %vm304, %v6804, %v6805
  %v6807 = vrot.slane %v4764, 1
  %v6808 = vrot.slane %v4828, 1
  %v6809 = vsel %vm304, %v6807, %v6808
  %v6810 = vrot.slane %v4765, 1
  %v6811 = vrot.slane %v4829, 1
  %v6812 = vsel %vm304, %v6810, %v6811
  %v6813 = vrot.slane %v4766, 1
  %v6814 = vrot.slane %v4830, 1
  %v6815 = vsel %vm304, %v6813, %v6814
  %vm6880 = vcmask 1045504
  %v6881 = vrot.slane %v4703, 2
  %v6882 = vrot.slane %v4767, 2
  %v6883 = vsel %vm6880, %v6881, %v6882
  %v6884 = vrot.slane %v4704, 2
  %v6885 = vrot.slane %v4768, 2
  %v6886 = vsel %vm6880, %v6884, %v6885
  %v6887 = vrot.slane %v4705, 2
  %v6888 = vrot.slane %v4769, 2
  %v6889 = vsel %vm6880, %v6887, %v6888
  %v6890 = vrot.slane %v4706, 2
  %v6891 = vrot.slane %v4770, 2
  %v6892 = vsel %vm6880, %v6890, %v6891
  %v6893 = vrot.slane %v4707, 2
  %v6894 = vrot.slane %v4771, 2
  %v6895 = vsel %vm6880, %v6893, %v6894
  %v6896 = vrot.slane %v4708, 2
  %v6897 = vrot.slane %v4772, 2
  %v6898 = vsel %vm6880, %v6896, %v6897
  %v6899 = vrot.slane %v4709, 2
  %v6900 = vrot.slane %v4773, 2
  %v6901 = vsel %vm6880, %v6899, %v6900
  %v6902 = vrot.slane %v4710, 2
  %v6903 = vrot.slane %v4774, 2
  %v6904 = vsel %vm6880, %v6902, %v6903
  %v6905 = vrot.slane %v4711, 2
  %v6906 = vrot.slane %v4775, 2
  %v6907 = vsel %vm6880, %v6905, %v6906
  %v6908 = vrot.slane %v4712, 2
  %v6909 = vrot.slane %v4776, 2
  %v6910 = vsel %vm6880, %v6908, %v6909
  %v6911 = vrot.slane %v4713, 2
  %v6912 = vrot.slane %v4777, 2
  %v6913 = vsel %vm6880, %v6911, %v6912
  %v6914 = vrot.slane %v4714, 2
  %v6915 = vrot.slane %v4778, 2
  %v6916 = vsel %vm6880, %v6914, %v6915
  %v6917 = vrot.slane %v4715, 2
  %v6918 = vrot.slane %v4779, 2
  %v6919 = vsel %vm6880, %v6917, %v6918
  %v6920 = vrot.slane %v4716, 2
  %v6921 = vrot.slane %v4780, 2
  %v6922 = vsel %vm6880, %v6920, %v6921
  %v6923 = vrot.slane %v4717, 2
  %v6924 = vrot.slane %v4781, 2
  %v6925 = vsel %vm6880, %v6923, %v6924
  %v6926 = vrot.slane %v4718, 2
  %v6927 = vrot.slane %v4782, 2
  %v6928 = vsel %vm6880, %v6926, %v6927
  %v6929 = vrot.slane %v4719, 2
  %v6930 = vrot.slane %v4783, 2
  %v6931 = vsel %vm6880, %v6929, %v6930
  %v6932 = vrot.slane %v4720, 2
  %v6933 = vrot.slane %v4784, 2
  %v6934 = vsel %vm6880, %v6932, %v6933
  %v6935 = vrot.slane %v4721, 2
  %v6936 = vrot.slane %v4785, 2
  %v6937 = vsel %vm6880, %v6935, %v6936
  %v6938 = vrot.slane %v4722, 2
  %v6939 = vrot.slane %v4786, 2
  %v6940 = vsel %vm6880, %v6938, %v6939
  %v6941 = vrot.slane %v4723, 2
  %v6942 = vrot.slane %v4787, 2
  %v6943 = vsel %vm6880, %v6941, %v6942
  %v6944 = vrot.slane %v4724, 2
  %v6945 = vrot.slane %v4788, 2
  %v6946 = vsel %vm6880, %v6944, %v6945
  %v6947 = vrot.slane %v4725, 2
  %v6948 = vrot.slane %v4789, 2
  %v6949 = vsel %vm6880, %v6947, %v6948
  %v6950 = vrot.slane %v4726, 2
  %v6951 = vrot.slane %v4790, 2
  %v6952 = vsel %vm6880, %v6950, %v6951
  %v6953 = vrot.slane %v4727, 2
  %v6954 = vrot.slane %v4791, 2
  %v6955 = vsel %vm6880, %v6953, %v6954
  %v6956 = vrot.slane %v4728, 2
  %v6957 = vrot.slane %v4792, 2
  %v6958 = vsel %vm6880, %v6956, %v6957
  %v6959 = vrot.slane %v4729, 2
  %v6960 = vrot.slane %v4793, 2
  %v6961 = vsel %vm6880, %v6959, %v6960
  %v6962 = vrot.slane %v4730, 2
  %v6963 = vrot.slane %v4794, 2
  %v6964 = vsel %vm6880, %v6962, %v6963
  %v6965 = vrot.slane %v4731, 2
  %v6966 = vrot.slane %v4795, 2
  %v6967 = vsel %vm6880, %v6965, %v6966
  %v6968 = vrot.slane %v4732, 2
  %v6969 = vrot.slane %v4796, 2
  %v6970 = vsel %vm6880, %v6968, %v6969
  %v6971 = vrot.slane %v4733, 2
  %v6972 = vrot.slane %v4797, 2
  %v6973 = vsel %vm6880, %v6971, %v6972
  %v6974 = vrot.slane %v4734, 2
  %v6975 = vrot.slane %v4798, 2
  %v6976 = vsel %vm6880, %v6974, %v6975
  %v6977 = vrot.slane %v4735, 2
  %v6978 = vrot.slane %v4799, 2
  %v6979 = vsel %vm6880, %v6977, %v6978
  %v6980 = vrot.slane %v4736, 2
  %v6981 = vrot.slane %v4800, 2
  %v6982 = vsel %vm6880, %v6980, %v6981
  %v6983 = vrot.slane %v4737, 2
  %v6984 = vrot.slane %v4801, 2
  %v6985 = vsel %vm6880, %v6983, %v6984
  %v6986 = vrot.slane %v4738, 2
  %v6987 = vrot.slane %v4802, 2
  %v6988 = vsel %vm6880, %v6986, %v6987
  %v6989 = vrot.slane %v4739, 2
  %v6990 = vrot.slane %v4803, 2
  %v6991 = vsel %vm6880, %v6989, %v6990
  %v6992 = vrot.slane %v4740, 2
  %v6993 = vrot.slane %v4804, 2
  %v6994 = vsel %vm6880, %v6992, %v6993
  %v6995 = vrot.slane %v4741, 2
  %v6996 = vrot.slane %v4805, 2
  %v6997 = vsel %vm6880, %v6995, %v6996
  %v6998 = vrot.slane %v4742, 2
  %v6999 = vrot.slane %v4806, 2
  %v7000 = vsel %vm6880, %v6998, %v6999
  %v7001 = vrot.slane %v4743, 2
  %v7002 = vrot.slane %v4807, 2
  %v7003 = vsel %vm6880, %v7001, %v7002
  %v7004 = vrot.slane %v4744, 2
  %v7005 = vrot.slane %v4808, 2
  %v7006 = vsel %vm6880, %v7004, %v7005
  %v7007 = vrot.slane %v4745, 2
  %v7008 = vrot.slane %v4809, 2
  %v7009 = vsel %vm6880, %v7007, %v7008
  %v7010 = vrot.slane %v4746, 2
  %v7011 = vrot.slane %v4810, 2
  %v7012 = vsel %vm6880, %v7010, %v7011
  %v7013 = vrot.slane %v4747, 2
  %v7014 = vrot.slane %v4811, 2
  %v7015 = vsel %vm6880, %v7013, %v7014
  %v7016 = vrot.slane %v4748, 2
  %v7017 = vrot.slane %v4812, 2
  %v7018 = vsel %vm6880, %v7016, %v7017
  %v7019 = vrot.slane %v4749, 2
  %v7020 = vrot.slane %v4813, 2
  %v7021 = vsel %vm6880, %v7019, %v7020
  %v7022 = vrot.slane %v4750, 2
  %v7023 = vrot.slane %v4814, 2
  %v7024 = vsel %vm6880, %v7022, %v7023
  %v7025 = vrot.slane %v4751, 2
  %v7026 = vrot.slane %v4815, 2
  %v7027 = vsel %vm6880, %v7025, %v7026
  %v7028 = vrot.slane %v4752, 2
  %v7029 = vrot.slane %v4816, 2
  %v7030 = vsel %vm6880, %v7028, %v7029
  %v7031 = vrot.slane %v4753, 2
  %v7032 = vrot.slane %v4817, 2
  %v7033 = vsel %vm6880, %v7031, %v7032
  %v7034 = vrot.slane %v4754, 2
  %v7035 = vrot.slane %v4818, 2
  %v7036 = vsel %vm6880, %v7034, %v7035
  %v7037 = vrot.slane %v4755, 2
  %v7038 = vrot.slane %v4819, 2
  %v7039 = vsel %vm6880, %v7037, %v7038
  %v7040 = vrot.slane %v4756, 2
  %v7041 = vrot.slane %v4820, 2
  %v7042 = vsel %vm6880, %v7040, %v7041
  %v7043 = vrot.slane %v4757, 2
  %v7044 = vrot.slane %v4821, 2
  %v7045 = vsel %vm6880, %v7043, %v7044
  %v7046 = vrot.slane %v4758, 2
  %v7047 = vrot.slane %v4822, 2
  %v7048 = vsel %vm6880, %v7046, %v7047
  %v7049 = vrot.slane %v4759, 2
  %v7050 = vrot.slane %v4823, 2
  %v7051 = vsel %vm6880, %v7049, %v7050
  %v7052 = vrot.slane %v4760, 2
  %v7053 = vrot.slane %v4824, 2
  %v7054 = vsel %vm6880, %v7052, %v7053
  %v7055 = vrot.slane %v4761, 2
  %v7056 = vrot.slane %v4825, 2
  %v7057 = vsel %vm6880, %v7055, %v7056
  %v7058 = vrot.slane %v4762, 2
  %v7059 = vrot.slane %v4826, 2
  %v7060 = vsel %vm6880, %v7058, %v7059
  %v7061 = vrot.slane %v4763, 2
  %v7062 = vrot.slane %v4827, 2
  %v7063 = vsel %vm6880, %v7061, %v7062
  %v7064 = vrot.slane %v4764, 2
  %v7065 = vrot.slane %v4828, 2
  %v7066 = vsel %vm6880, %v7064, %v7065
  %v7067 = vrot.slane %v4765, 2
  %v7068 = vrot.slane %v4829, 2
  %v7069 = vsel %vm6880, %v7067, %v7068
  %v7070 = vrot.slane %v4766, 2
  %v7071 = vrot.slane %v4830, 2
  %v7072 = vsel %vm6880, %v7070, %v7071
  %v7201 = vrot.slane %v5151, 1
  %v7202 = vrot.slane %v5215, 1
  %v7203 = vsel %vm304, %v7201, %v7202
  %v7204 = vrot.slane %v5152, 1
  %v7205 = vrot.slane %v5216, 1
  %v7206 = vsel %vm304, %v7204, %v7205
  %v7207 = vrot.slane %v5153, 1
  %v7208 = vrot.slane %v5217, 1
  %v7209 = vsel %vm304, %v7207, %v7208
  %v7210 = vrot.slane %v5154, 1
  %v7211 = vrot.slane %v5218, 1
  %v7212 = vsel %vm304, %v7210, %v7211
  %v7213 = vrot.slane %v5155, 1
  %v7214 = vrot.slane %v5219, 1
  %v7215 = vsel %vm304, %v7213, %v7214
  %v7216 = vrot.slane %v5156, 1
  %v7217 = vrot.slane %v5220, 1
  %v7218 = vsel %vm304, %v7216, %v7217
  %v7219 = vrot.slane %v5157, 1
  %v7220 = vrot.slane %v5221, 1
  %v7221 = vsel %vm304, %v7219, %v7220
  %v7222 = vrot.slane %v5158, 1
  %v7223 = vrot.slane %v5222, 1
  %v7224 = vsel %vm304, %v7222, %v7223
  %v7225 = vrot.slane %v5159, 1
  %v7226 = vrot.slane %v5223, 1
  %v7227 = vsel %vm304, %v7225, %v7226
  %v7228 = vrot.slane %v5160, 1
  %v7229 = vrot.slane %v5224, 1
  %v7230 = vsel %vm304, %v7228, %v7229
  %v7231 = vrot.slane %v5161, 1
  %v7232 = vrot.slane %v5225, 1
  %v7233 = vsel %vm304, %v7231, %v7232
  %v7234 = vrot.slane %v5162, 1
  %v7235 = vrot.slane %v5226, 1
  %v7236 = vsel %vm304, %v7234, %v7235
  %v7237 = vrot.slane %v5163, 1
  %v7238 = vrot.slane %v5227, 1
  %v7239 = vsel %vm304, %v7237, %v7238
  %v7240 = vrot.slane %v5164, 1
  %v7241 = vrot.slane %v5228, 1
  %v7242 = vsel %vm304, %v7240, %v7241
  %v7243 = vrot.slane %v5165, 1
  %v7244 = vrot.slane %v5229, 1
  %v7245 = vsel %vm304, %v7243, %v7244
  %v7246 = vrot.slane %v5166, 1
  %v7247 = vrot.slane %v5230, 1
  %v7248 = vsel %vm304, %v7246, %v7247
  %v7249 = vrot.slane %v5167, 1
  %v7250 = vrot.slane %v5231, 1
  %v7251 = vsel %vm304, %v7249, %v7250
  %v7252 = vrot.slane %v5168, 1
  %v7253 = vrot.slane %v5232, 1
  %v7254 = vsel %vm304, %v7252, %v7253
  %v7255 = vrot.slane %v5169, 1
  %v7256 = vrot.slane %v5233, 1
  %v7257 = vsel %vm304, %v7255, %v7256
  %v7258 = vrot.slane %v5170, 1
  %v7259 = vrot.slane %v5234, 1
  %v7260 = vsel %vm304, %v7258, %v7259
  %v7261 = vrot.slane %v5171, 1
  %v7262 = vrot.slane %v5235, 1
  %v7263 = vsel %vm304, %v7261, %v7262
  %v7264 = vrot.slane %v5172, 1
  %v7265 = vrot.slane %v5236, 1
  %v7266 = vsel %vm304, %v7264, %v7265
  %v7267 = vrot.slane %v5173, 1
  %v7268 = vrot.slane %v5237, 1
  %v7269 = vsel %vm304, %v7267, %v7268
  %v7270 = vrot.slane %v5174, 1
  %v7271 = vrot.slane %v5238, 1
  %v7272 = vsel %vm304, %v7270, %v7271
  %v7273 = vrot.slane %v5175, 1
  %v7274 = vrot.slane %v5239, 1
  %v7275 = vsel %vm304, %v7273, %v7274
  %v7276 = vrot.slane %v5176, 1
  %v7277 = vrot.slane %v5240, 1
  %v7278 = vsel %vm304, %v7276, %v7277
  %v7279 = vrot.slane %v5177, 1
  %v7280 = vrot.slane %v5241, 1
  %v7281 = vsel %vm304, %v7279, %v7280
  %v7282 = vrot.slane %v5178, 1
  %v7283 = vrot.slane %v5242, 1
  %v7284 = vsel %vm304, %v7282, %v7283
  %v7285 = vrot.slane %v5179, 1
  %v7286 = vrot.slane %v5243, 1
  %v7287 = vsel %vm304, %v7285, %v7286
  %v7288 = vrot.slane %v5180, 1
  %v7289 = vrot.slane %v5244, 1
  %v7290 = vsel %vm304, %v7288, %v7289
  %v7291 = vrot.slane %v5181, 1
  %v7292 = vrot.slane %v5245, 1
  %v7293 = vsel %vm304, %v7291, %v7292
  %v7294 = vrot.slane %v5182, 1
  %v7295 = vrot.slane %v5246, 1
  %v7296 = vsel %vm304, %v7294, %v7295
  %v7297 = vrot.slane %v5183, 1
  %v7298 = vrot.slane %v5247, 1
  %v7299 = vsel %vm304, %v7297, %v7298
  %v7300 = vrot.slane %v5184, 1
  %v7301 = vrot.slane %v5248, 1
  %v7302 = vsel %vm304, %v7300, %v7301
  %v7303 = vrot.slane %v5185, 1
  %v7304 = vrot.slane %v5249, 1
  %v7305 = vsel %vm304, %v7303, %v7304
  %v7306 = vrot.slane %v5186, 1
  %v7307 = vrot.slane %v5250, 1
  %v7308 = vsel %vm304, %v7306, %v7307
  %v7309 = vrot.slane %v5187, 1
  %v7310 = vrot.slane %v5251, 1
  %v7311 = vsel %vm304, %v7309, %v7310
  %v7312 = vrot.slane %v5188, 1
  %v7313 = vrot.slane %v5252, 1
  %v7314 = vsel %vm304, %v7312, %v7313
  %v7315 = vrot.slane %v5189, 1
  %v7316 = vrot.slane %v5253, 1
  %v7317 = vsel %vm304, %v7315, %v7316
  %v7318 = vrot.slane %v5190, 1
  %v7319 = vrot.slane %v5254, 1
  %v7320 = vsel %vm304, %v7318, %v7319
  %v7321 = vrot.slane %v5191, 1
  %v7322 = vrot.slane %v5255, 1
  %v7323 = vsel %vm304, %v7321, %v7322
  %v7324 = vrot.slane %v5192, 1
  %v7325 = vrot.slane %v5256, 1
  %v7326 = vsel %vm304, %v7324, %v7325
  %v7327 = vrot.slane %v5193, 1
  %v7328 = vrot.slane %v5257, 1
  %v7329 = vsel %vm304, %v7327, %v7328
  %v7330 = vrot.slane %v5194, 1
  %v7331 = vrot.slane %v5258, 1
  %v7332 = vsel %vm304, %v7330, %v7331
  %v7333 = vrot.slane %v5195, 1
  %v7334 = vrot.slane %v5259, 1
  %v7335 = vsel %vm304, %v7333, %v7334
  %v7336 = vrot.slane %v5196, 1
  %v7337 = vrot.slane %v5260, 1
  %v7338 = vsel %vm304, %v7336, %v7337
  %v7339 = vrot.slane %v5197, 1
  %v7340 = vrot.slane %v5261, 1
  %v7341 = vsel %vm304, %v7339, %v7340
  %v7342 = vrot.slane %v5198, 1
  %v7343 = vrot.slane %v5262, 1
  %v7344 = vsel %vm304, %v7342, %v7343
  %v7345 = vrot.slane %v5199, 1
  %v7346 = vrot.slane %v5263, 1
  %v7347 = vsel %vm304, %v7345, %v7346
  %v7348 = vrot.slane %v5200, 1
  %v7349 = vrot.slane %v5264, 1
  %v7350 = vsel %vm304, %v7348, %v7349
  %v7351 = vrot.slane %v5201, 1
  %v7352 = vrot.slane %v5265, 1
  %v7353 = vsel %vm304, %v7351, %v7352
  %v7354 = vrot.slane %v5202, 1
  %v7355 = vrot.slane %v5266, 1
  %v7356 = vsel %vm304, %v7354, %v7355
  %v7357 = vrot.slane %v5203, 1
  %v7358 = vrot.slane %v5267, 1
  %v7359 = vsel %vm304, %v7357, %v7358
  %v7360 = vrot.slane %v5204, 1
  %v7361 = vrot.slane %v5268, 1
  %v7362 = vsel %vm304, %v7360, %v7361
  %v7363 = vrot.slane %v5205, 1
  %v7364 = vrot.slane %v5269, 1
  %v7365 = vsel %vm304, %v7363, %v7364
  %v7366 = vrot.slane %v5206, 1
  %v7367 = vrot.slane %v5270, 1
  %v7368 = vsel %vm304, %v7366, %v7367
  %v7369 = vrot.slane %v5207, 1
  %v7370 = vrot.slane %v5271, 1
  %v7371 = vsel %vm304, %v7369, %v7370
  %v7372 = vrot.slane %v5208, 1
  %v7373 = vrot.slane %v5272, 1
  %v7374 = vsel %vm304, %v7372, %v7373
  %v7375 = vrot.slane %v5209, 1
  %v7376 = vrot.slane %v5273, 1
  %v7377 = vsel %vm304, %v7375, %v7376
  %v7378 = vrot.slane %v5210, 1
  %v7379 = vrot.slane %v5274, 1
  %v7380 = vsel %vm304, %v7378, %v7379
  %v7381 = vrot.slane %v5211, 1
  %v7382 = vrot.slane %v5275, 1
  %v7383 = vsel %vm304, %v7381, %v7382
  %v7384 = vrot.slane %v5212, 1
  %v7385 = vrot.slane %v5276, 1
  %v7386 = vsel %vm304, %v7384, %v7385
  %v7387 = vrot.slane %v5213, 1
  %v7388 = vrot.slane %v5277, 1
  %v7389 = vsel %vm304, %v7387, %v7388
  %v7390 = vrot.slane %v5214, 1
  %v7391 = vrot.slane %v5278, 1
  %v7392 = vsel %vm304, %v7390, %v7391
  %v7394 = vrot.slane 0.0, 1
  %v7395 = vsel %vm304, %v7394, %v7394
  %v7396 = vrot.slane 0.0, 2
  %v7397 = vsel %vm6880, %v7396, %v7396
  %v7510 = vrot.slane %v5599, 1
  %v7511 = vrot.slane %v5663, 1
  %v7512 = vsel %vm304, %v7510, %v7511
  %v7513 = vrot.slane %v5600, 1
  %v7514 = vrot.slane %v5664, 1
  %v7515 = vsel %vm304, %v7513, %v7514
  %v7516 = vrot.slane %v5601, 1
  %v7517 = vrot.slane %v5665, 1
  %v7518 = vsel %vm304, %v7516, %v7517
  %v7519 = vrot.slane %v5602, 1
  %v7520 = vrot.slane %v5666, 1
  %v7521 = vsel %vm304, %v7519, %v7520
  %v7522 = vrot.slane %v5603, 1
  %v7523 = vrot.slane %v5667, 1
  %v7524 = vsel %vm304, %v7522, %v7523
  %v7525 = vrot.slane %v5604, 1
  %v7526 = vrot.slane %v5668, 1
  %v7527 = vsel %vm304, %v7525, %v7526
  %v7528 = vrot.slane %v5605, 1
  %v7529 = vrot.slane %v5669, 1
  %v7530 = vsel %vm304, %v7528, %v7529
  %v7531 = vrot.slane %v5607, 1
  %v7532 = vrot.slane %v5671, 1
  %v7533 = vsel %vm304, %v7531, %v7532
  %v7534 = vrot.slane %v5608, 1
  %v7535 = vrot.slane %v5672, 1
  %v7536 = vsel %vm304, %v7534, %v7535
  %v7537 = vrot.slane %v5609, 1
  %v7538 = vrot.slane %v5673, 1
  %v7539 = vsel %vm304, %v7537, %v7538
  %v7540 = vrot.slane %v5610, 1
  %v7541 = vrot.slane %v5674, 1
  %v7542 = vsel %vm304, %v7540, %v7541
  %v7543 = vrot.slane %v5611, 1
  %v7544 = vrot.slane %v5675, 1
  %v7545 = vsel %vm304, %v7543, %v7544
  %v7546 = vrot.slane %v5612, 1
  %v7547 = vrot.slane %v5676, 1
  %v7548 = vsel %vm304, %v7546, %v7547
  %v7549 = vrot.slane %v5613, 1
  %v7550 = vrot.slane %v5677, 1
  %v7551 = vsel %vm304, %v7549, %v7550
  %v7552 = vrot.slane %v5615, 1
  %v7553 = vrot.slane %v5679, 1
  %v7554 = vsel %vm304, %v7552, %v7553
  %v7555 = vrot.slane %v5616, 1
  %v7556 = vrot.slane %v5680, 1
  %v7557 = vsel %vm304, %v7555, %v7556
  %v7558 = vrot.slane %v5617, 1
  %v7559 = vrot.slane %v5681, 1
  %v7560 = vsel %vm304, %v7558, %v7559
  %v7561 = vrot.slane %v5618, 1
  %v7562 = vrot.slane %v5682, 1
  %v7563 = vsel %vm304, %v7561, %v7562
  %v7564 = vrot.slane %v5619, 1
  %v7565 = vrot.slane %v5683, 1
  %v7566 = vsel %vm304, %v7564, %v7565
  %v7567 = vrot.slane %v5620, 1
  %v7568 = vrot.slane %v5684, 1
  %v7569 = vsel %vm304, %v7567, %v7568
  %v7570 = vrot.slane %v5621, 1
  %v7571 = vrot.slane %v5685, 1
  %v7572 = vsel %vm304, %v7570, %v7571
  %v7573 = vrot.slane %v5623, 1
  %v7574 = vrot.slane %v5687, 1
  %v7575 = vsel %vm304, %v7573, %v7574
  %v7576 = vrot.slane %v5624, 1
  %v7577 = vrot.slane %v5688, 1
  %v7578 = vsel %vm304, %v7576, %v7577
  %v7579 = vrot.slane %v5625, 1
  %v7580 = vrot.slane %v5689, 1
  %v7581 = vsel %vm304, %v7579, %v7580
  %v7582 = vrot.slane %v5626, 1
  %v7583 = vrot.slane %v5690, 1
  %v7584 = vsel %vm304, %v7582, %v7583
  %v7585 = vrot.slane %v5627, 1
  %v7586 = vrot.slane %v5691, 1
  %v7587 = vsel %vm304, %v7585, %v7586
  %v7588 = vrot.slane %v5628, 1
  %v7589 = vrot.slane %v5692, 1
  %v7590 = vsel %vm304, %v7588, %v7589
  %v7591 = vrot.slane %v5629, 1
  %v7592 = vrot.slane %v5693, 1
  %v7593 = vsel %vm304, %v7591, %v7592
  %v7594 = vrot.slane %v5631, 1
  %v7595 = vrot.slane %v5695, 1
  %v7596 = vsel %vm304, %v7594, %v7595
  %v7597 = vrot.slane %v5632, 1
  %v7598 = vrot.slane %v5696, 1
  %v7599 = vsel %vm304, %v7597, %v7598
  %v7600 = vrot.slane %v5633, 1
  %v7601 = vrot.slane %v5697, 1
  %v7602 = vsel %vm304, %v7600, %v7601
  %v7603 = vrot.slane %v5634, 1
  %v7604 = vrot.slane %v5698, 1
  %v7605 = vsel %vm304, %v7603, %v7604
  %v7606 = vrot.slane %v5635, 1
  %v7607 = vrot.slane %v5699, 1
  %v7608 = vsel %vm304, %v7606, %v7607
  %v7609 = vrot.slane %v5636, 1
  %v7610 = vrot.slane %v5700, 1
  %v7611 = vsel %vm304, %v7609, %v7610
  %v7612 = vrot.slane %v5637, 1
  %v7613 = vrot.slane %v5701, 1
  %v7614 = vsel %vm304, %v7612, %v7613
  %v7615 = vrot.slane %v5639, 1
  %v7616 = vrot.slane %v5703, 1
  %v7617 = vsel %vm304, %v7615, %v7616
  %v7618 = vrot.slane %v5640, 1
  %v7619 = vrot.slane %v5704, 1
  %v7620 = vsel %vm304, %v7618, %v7619
  %v7621 = vrot.slane %v5641, 1
  %v7622 = vrot.slane %v5705, 1
  %v7623 = vsel %vm304, %v7621, %v7622
  %v7624 = vrot.slane %v5642, 1
  %v7625 = vrot.slane %v5706, 1
  %v7626 = vsel %vm304, %v7624, %v7625
  %v7627 = vrot.slane %v5643, 1
  %v7628 = vrot.slane %v5707, 1
  %v7629 = vsel %vm304, %v7627, %v7628
  %v7630 = vrot.slane %v5644, 1
  %v7631 = vrot.slane %v5708, 1
  %v7632 = vsel %vm304, %v7630, %v7631
  %v7633 = vrot.slane %v5645, 1
  %v7634 = vrot.slane %v5709, 1
  %v7635 = vsel %vm304, %v7633, %v7634
  %v7636 = vrot.slane %v5647, 1
  %v7637 = vrot.slane %v5711, 1
  %v7638 = vsel %vm304, %v7636, %v7637
  %v7639 = vrot.slane %v5648, 1
  %v7640 = vrot.slane %v5712, 1
  %v7641 = vsel %vm304, %v7639, %v7640
  %v7642 = vrot.slane %v5649, 1
  %v7643 = vrot.slane %v5713, 1
  %v7644 = vsel %vm304, %v7642, %v7643
  %v7645 = vrot.slane %v5650, 1
  %v7646 = vrot.slane %v5714, 1
  %v7647 = vsel %vm304, %v7645, %v7646
  %v7648 = vrot.slane %v5651, 1
  %v7649 = vrot.slane %v5715, 1
  %v7650 = vsel %vm304, %v7648, %v7649
  %v7651 = vrot.slane %v5652, 1
  %v7652 = vrot.slane %v5716, 1
  %v7653 = vsel %vm304, %v7651, %v7652
  %v7654 = vrot.slane %v5653, 1
  %v7655 = vrot.slane %v5717, 1
  %v7656 = vsel %vm304, %v7654, %v7655
  %v7657 = vrot.slane %v5655, 1
  %v7658 = vrot.slane %v5719, 1
  %v7659 = vsel %vm304, %v7657, %v7658
  %v7660 = vrot.slane %v5656, 1
  %v7661 = vrot.slane %v5720, 1
  %v7662 = vsel %vm304, %v7660, %v7661
  %v7663 = vrot.slane %v5657, 1
  %v7664 = vrot.slane %v5721, 1
  %v7665 = vsel %vm304, %v7663, %v7664
  %v7666 = vrot.slane %v5658, 1
  %v7667 = vrot.slane %v5722, 1
  %v7668 = vsel %vm304, %v7666, %v7667
  %v7669 = vrot.slane %v5659, 1
  %v7670 = vrot.slane %v5723, 1
  %v7671 = vsel %vm304, %v7669, %v7670
  %v7672 = vrot.slane %v5660, 1
  %v7673 = vrot.slane %v5724, 1
  %v7674 = vsel %vm304, %v7672, %v7673
  %v7675 = vrot.slane %v5661, 1
  %v7676 = vrot.slane %v5725, 1
  %v7677 = vsel %vm304, %v7675, %v7676
  %v7678 = vrot.slane %v5599, 2
  %v7679 = vrot.slane %v5663, 2
  %v7680 = vsel %vm6880, %v7678, %v7679
  %v7681 = vrot.slane %v5600, 2
  %v7682 = vrot.slane %v5664, 2
  %v7683 = vsel %vm6880, %v7681, %v7682
  %v7684 = vrot.slane %v5601, 2
  %v7685 = vrot.slane %v5665, 2
  %v7686 = vsel %vm6880, %v7684, %v7685
  %v7687 = vrot.slane %v5602, 2
  %v7688 = vrot.slane %v5666, 2
  %v7689 = vsel %vm6880, %v7687, %v7688
  %v7690 = vrot.slane %v5603, 2
  %v7691 = vrot.slane %v5667, 2
  %v7692 = vsel %vm6880, %v7690, %v7691
  %v7693 = vrot.slane %v5604, 2
  %v7694 = vrot.slane %v5668, 2
  %v7695 = vsel %vm6880, %v7693, %v7694
  %v7696 = vrot.slane %v5605, 2
  %v7697 = vrot.slane %v5669, 2
  %v7698 = vsel %vm6880, %v7696, %v7697
  %v7699 = vrot.slane %v5607, 2
  %v7700 = vrot.slane %v5671, 2
  %v7701 = vsel %vm6880, %v7699, %v7700
  %v7702 = vrot.slane %v5608, 2
  %v7703 = vrot.slane %v5672, 2
  %v7704 = vsel %vm6880, %v7702, %v7703
  %v7705 = vrot.slane %v5609, 2
  %v7706 = vrot.slane %v5673, 2
  %v7707 = vsel %vm6880, %v7705, %v7706
  %v7708 = vrot.slane %v5610, 2
  %v7709 = vrot.slane %v5674, 2
  %v7710 = vsel %vm6880, %v7708, %v7709
  %v7711 = vrot.slane %v5611, 2
  %v7712 = vrot.slane %v5675, 2
  %v7713 = vsel %vm6880, %v7711, %v7712
  %v7714 = vrot.slane %v5612, 2
  %v7715 = vrot.slane %v5676, 2
  %v7716 = vsel %vm6880, %v7714, %v7715
  %v7717 = vrot.slane %v5613, 2
  %v7718 = vrot.slane %v5677, 2
  %v7719 = vsel %vm6880, %v7717, %v7718
  %v7720 = vrot.slane %v5615, 2
  %v7721 = vrot.slane %v5679, 2
  %v7722 = vsel %vm6880, %v7720, %v7721
  %v7723 = vrot.slane %v5616, 2
  %v7724 = vrot.slane %v5680, 2
  %v7725 = vsel %vm6880, %v7723, %v7724
  %v7726 = vrot.slane %v5617, 2
  %v7727 = vrot.slane %v5681, 2
  %v7728 = vsel %vm6880, %v7726, %v7727
  %v7729 = vrot.slane %v5618, 2
  %v7730 = vrot.slane %v5682, 2
  %v7731 = vsel %vm6880, %v7729, %v7730
  %v7732 = vrot.slane %v5619, 2
  %v7733 = vrot.slane %v5683, 2
  %v7734 = vsel %vm6880, %v7732, %v7733
  %v7735 = vrot.slane %v5620, 2
  %v7736 = vrot.slane %v5684, 2
  %v7737 = vsel %vm6880, %v7735, %v7736
  %v7738 = vrot.slane %v5621, 2
  %v7739 = vrot.slane %v5685, 2
  %v7740 = vsel %vm6880, %v7738, %v7739
  %v7741 = vrot.slane %v5623, 2
  %v7742 = vrot.slane %v5687, 2
  %v7743 = vsel %vm6880, %v7741, %v7742
  %v7744 = vrot.slane %v5624, 2
  %v7745 = vrot.slane %v5688, 2
  %v7746 = vsel %vm6880, %v7744, %v7745
  %v7747 = vrot.slane %v5625, 2
  %v7748 = vrot.slane %v5689, 2
  %v7749 = vsel %vm6880, %v7747, %v7748
  %v7750 = vrot.slane %v5626, 2
  %v7751 = vrot.slane %v5690, 2
  %v7752 = vsel %vm6880, %v7750, %v7751
  %v7753 = vrot.slane %v5627, 2
  %v7754 = vrot.slane %v5691, 2
  %v7755 = vsel %vm6880, %v7753, %v7754
  %v7756 = vrot.slane %v5628, 2
  %v7757 = vrot.slane %v5692, 2
  %v7758 = vsel %vm6880, %v7756, %v7757
  %v7759 = vrot.slane %v5629, 2
  %v7760 = vrot.slane %v5693, 2
  %v7761 = vsel %vm6880, %v7759, %v7760
  %v7762 = vrot.slane %v5631, 2
  %v7763 = vrot.slane %v5695, 2
  %v7764 = vsel %vm6880, %v7762, %v7763
  %v7765 = vrot.slane %v5632, 2
  %v7766 = vrot.slane %v5696, 2
  %v7767 = vsel %vm6880, %v7765, %v7766
  %v7768 = vrot.slane %v5633, 2
  %v7769 = vrot.slane %v5697, 2
  %v7770 = vsel %vm6880, %v7768, %v7769
  %v7771 = vrot.slane %v5634, 2
  %v7772 = vrot.slane %v5698, 2
  %v7773 = vsel %vm6880, %v7771, %v7772
  %v7774 = vrot.slane %v5635, 2
  %v7775 = vrot.slane %v5699, 2
  %v7776 = vsel %vm6880, %v7774, %v7775
  %v7777 = vrot.slane %v5636, 2
  %v7778 = vrot.slane %v5700, 2
  %v7779 = vsel %vm6880, %v7777, %v7778
  %v7780 = vrot.slane %v5637, 2
  %v7781 = vrot.slane %v5701, 2
  %v7782 = vsel %vm6880, %v7780, %v7781
  %v7783 = vrot.slane %v5639, 2
  %v7784 = vrot.slane %v5703, 2
  %v7785 = vsel %vm6880, %v7783, %v7784
  %v7786 = vrot.slane %v5640, 2
  %v7787 = vrot.slane %v5704, 2
  %v7788 = vsel %vm6880, %v7786, %v7787
  %v7789 = vrot.slane %v5641, 2
  %v7790 = vrot.slane %v5705, 2
  %v7791 = vsel %vm6880, %v7789, %v7790
  %v7792 = vrot.slane %v5642, 2
  %v7793 = vrot.slane %v5706, 2
  %v7794 = vsel %vm6880, %v7792, %v7793
  %v7795 = vrot.slane %v5643, 2
  %v7796 = vrot.slane %v5707, 2
  %v7797 = vsel %vm6880, %v7795, %v7796
  %v7798 = vrot.slane %v5644, 2
  %v7799 = vrot.slane %v5708, 2
  %v7800 = vsel %vm6880, %v7798, %v7799
  %v7801 = vrot.slane %v5645, 2
  %v7802 = vrot.slane %v5709, 2
  %v7803 = vsel %vm6880, %v7801, %v7802
  %v7804 = vrot.slane %v5647, 2
  %v7805 = vrot.slane %v5711, 2
  %v7806 = vsel %vm6880, %v7804, %v7805
  %v7807 = vrot.slane %v5648, 2
  %v7808 = vrot.slane %v5712, 2
  %v7809 = vsel %vm6880, %v7807, %v7808
  %v7810 = vrot.slane %v5649, 2
  %v7811 = vrot.slane %v5713, 2
  %v7812 = vsel %vm6880, %v7810, %v7811
  %v7813 = vrot.slane %v5650, 2
  %v7814 = vrot.slane %v5714, 2
  %v7815 = vsel %vm6880, %v7813, %v7814
  %v7816 = vrot.slane %v5651, 2
  %v7817 = vrot.slane %v5715, 2
  %v7818 = vsel %vm6880, %v7816, %v7817
  %v7819 = vrot.slane %v5652, 2
  %v7820 = vrot.slane %v5716, 2
  %v7821 = vsel %vm6880, %v7819, %v7820
  %v7822 = vrot.slane %v5653, 2
  %v7823 = vrot.slane %v5717, 2
  %v7824 = vsel %vm6880, %v7822, %v7823
  %v7825 = vrot.slane %v5655, 2
  %v7826 = vrot.slane %v5719, 2
  %v7827 = vsel %vm6880, %v7825, %v7826
  %v7828 = vrot.slane %v5656, 2
  %v7829 = vrot.slane %v5720, 2
  %v7830 = vsel %vm6880, %v7828, %v7829
  %v7831 = vrot.slane %v5657, 2
  %v7832 = vrot.slane %v5721, 2
  %v7833 = vsel %vm6880, %v7831, %v7832
  %v7834 = vrot.slane %v5658, 2
  %v7835 = vrot.slane %v5722, 2
  %v7836 = vsel %vm6880, %v7834, %v7835
  %v7837 = vrot.slane %v5659, 2
  %v7838 = vrot.slane %v5723, 2
  %v7839 = vsel %vm6880, %v7837, %v7838
  %v7840 = vrot.slane %v5660, 2
  %v7841 = vrot.slane %v5724, 2
  %v7842 = vsel %vm6880, %v7840, %v7841
  %v7843 = vrot.slane %v5661, 2
  %v7844 = vrot.slane %v5725, 2
  %v7845 = vsel %vm6880, %v7843, %v7844
  %v7958 = vrot.slane %v6368, 1
  %v7959 = vrot.slane %v6432, 1
  %v7960 = vsel %vm304, %v7958, %v7959
  %v7961 = vrot.slane %v6369, 1
  %v7962 = vrot.slane %v6433, 1
  %v7963 = vsel %vm304, %v7961, %v7962
  %v7964 = vrot.slane %v6370, 1
  %v7965 = vrot.slane %v6434, 1
  %v7966 = vsel %vm304, %v7964, %v7965
  %v7967 = vrot.slane %v6371, 1
  %v7968 = vrot.slane %v6435, 1
  %v7969 = vsel %vm304, %v7967, %v7968
  %v7970 = vrot.slane %v6372, 1
  %v7971 = vrot.slane %v6436, 1
  %v7972 = vsel %vm304, %v7970, %v7971
  %v7973 = vrot.slane %v6373, 1
  %v7974 = vrot.slane %v6437, 1
  %v7975 = vsel %vm304, %v7973, %v7974
  %v7976 = vrot.slane %v6374, 1
  %v7977 = vrot.slane %v6438, 1
  %v7978 = vsel %vm304, %v7976, %v7977
  %v7979 = vrot.slane %v6376, 1
  %v7980 = vrot.slane %v6440, 1
  %v7981 = vsel %vm304, %v7979, %v7980
  %v7982 = vrot.slane %v6377, 1
  %v7983 = vrot.slane %v6441, 1
  %v7984 = vsel %vm304, %v7982, %v7983
  %v7985 = vrot.slane %v6378, 1
  %v7986 = vrot.slane %v6442, 1
  %v7987 = vsel %vm304, %v7985, %v7986
  %v7988 = vrot.slane %v6379, 1
  %v7989 = vrot.slane %v6443, 1
  %v7990 = vsel %vm304, %v7988, %v7989
  %v7991 = vrot.slane %v6380, 1
  %v7992 = vrot.slane %v6444, 1
  %v7993 = vsel %vm304, %v7991, %v7992
  %v7994 = vrot.slane %v6381, 1
  %v7995 = vrot.slane %v6445, 1
  %v7996 = vsel %vm304, %v7994, %v7995
  %v7997 = vrot.slane %v6382, 1
  %v7998 = vrot.slane %v6446, 1
  %v7999 = vsel %vm304, %v7997, %v7998
  %v8000 = vrot.slane %v6384, 1
  %v8001 = vrot.slane %v6448, 1
  %v8002 = vsel %vm304, %v8000, %v8001
  %v8003 = vrot.slane %v6385, 1
  %v8004 = vrot.slane %v6449, 1
  %v8005 = vsel %vm304, %v8003, %v8004
  %v8006 = vrot.slane %v6386, 1
  %v8007 = vrot.slane %v6450, 1
  %v8008 = vsel %vm304, %v8006, %v8007
  %v8009 = vrot.slane %v6387, 1
  %v8010 = vrot.slane %v6451, 1
  %v8011 = vsel %vm304, %v8009, %v8010
  %v8012 = vrot.slane %v6388, 1
  %v8013 = vrot.slane %v6452, 1
  %v8014 = vsel %vm304, %v8012, %v8013
  %v8015 = vrot.slane %v6389, 1
  %v8016 = vrot.slane %v6453, 1
  %v8017 = vsel %vm304, %v8015, %v8016
  %v8018 = vrot.slane %v6390, 1
  %v8019 = vrot.slane %v6454, 1
  %v8020 = vsel %vm304, %v8018, %v8019
  %v8021 = vrot.slane %v6392, 1
  %v8022 = vrot.slane %v6456, 1
  %v8023 = vsel %vm304, %v8021, %v8022
  %v8024 = vrot.slane %v6393, 1
  %v8025 = vrot.slane %v6457, 1
  %v8026 = vsel %vm304, %v8024, %v8025
  %v8027 = vrot.slane %v6394, 1
  %v8028 = vrot.slane %v6458, 1
  %v8029 = vsel %vm304, %v8027, %v8028
  %v8030 = vrot.slane %v6395, 1
  %v8031 = vrot.slane %v6459, 1
  %v8032 = vsel %vm304, %v8030, %v8031
  %v8033 = vrot.slane %v6396, 1
  %v8034 = vrot.slane %v6460, 1
  %v8035 = vsel %vm304, %v8033, %v8034
  %v8036 = vrot.slane %v6397, 1
  %v8037 = vrot.slane %v6461, 1
  %v8038 = vsel %vm304, %v8036, %v8037
  %v8039 = vrot.slane %v6398, 1
  %v8040 = vrot.slane %v6462, 1
  %v8041 = vsel %vm304, %v8039, %v8040
  %v8042 = vrot.slane %v6400, 1
  %v8043 = vrot.slane %v6464, 1
  %v8044 = vsel %vm304, %v8042, %v8043
  %v8045 = vrot.slane %v6401, 1
  %v8046 = vrot.slane %v6465, 1
  %v8047 = vsel %vm304, %v8045, %v8046
  %v8048 = vrot.slane %v6402, 1
  %v8049 = vrot.slane %v6466, 1
  %v8050 = vsel %vm304, %v8048, %v8049
  %v8051 = vrot.slane %v6403, 1
  %v8052 = vrot.slane %v6467, 1
  %v8053 = vsel %vm304, %v8051, %v8052
  %v8054 = vrot.slane %v6404, 1
  %v8055 = vrot.slane %v6468, 1
  %v8056 = vsel %vm304, %v8054, %v8055
  %v8057 = vrot.slane %v6405, 1
  %v8058 = vrot.slane %v6469, 1
  %v8059 = vsel %vm304, %v8057, %v8058
  %v8060 = vrot.slane %v6406, 1
  %v8061 = vrot.slane %v6470, 1
  %v8062 = vsel %vm304, %v8060, %v8061
  %v8063 = vrot.slane %v6408, 1
  %v8064 = vrot.slane %v6472, 1
  %v8065 = vsel %vm304, %v8063, %v8064
  %v8066 = vrot.slane %v6409, 1
  %v8067 = vrot.slane %v6473, 1
  %v8068 = vsel %vm304, %v8066, %v8067
  %v8069 = vrot.slane %v6410, 1
  %v8070 = vrot.slane %v6474, 1
  %v8071 = vsel %vm304, %v8069, %v8070
  %v8072 = vrot.slane %v6411, 1
  %v8073 = vrot.slane %v6475, 1
  %v8074 = vsel %vm304, %v8072, %v8073
  %v8075 = vrot.slane %v6412, 1
  %v8076 = vrot.slane %v6476, 1
  %v8077 = vsel %vm304, %v8075, %v8076
  %v8078 = vrot.slane %v6413, 1
  %v8079 = vrot.slane %v6477, 1
  %v8080 = vsel %vm304, %v8078, %v8079
  %v8081 = vrot.slane %v6414, 1
  %v8082 = vrot.slane %v6478, 1
  %v8083 = vsel %vm304, %v8081, %v8082
  %v8084 = vrot.slane %v6416, 1
  %v8085 = vrot.slane %v6480, 1
  %v8086 = vsel %vm304, %v8084, %v8085
  %v8087 = vrot.slane %v6417, 1
  %v8088 = vrot.slane %v6481, 1
  %v8089 = vsel %vm304, %v8087, %v8088
  %v8090 = vrot.slane %v6418, 1
  %v8091 = vrot.slane %v6482, 1
  %v8092 = vsel %vm304, %v8090, %v8091
  %v8093 = vrot.slane %v6419, 1
  %v8094 = vrot.slane %v6483, 1
  %v8095 = vsel %vm304, %v8093, %v8094
  %v8096 = vrot.slane %v6420, 1
  %v8097 = vrot.slane %v6484, 1
  %v8098 = vsel %vm304, %v8096, %v8097
  %v8099 = vrot.slane %v6421, 1
  %v8100 = vrot.slane %v6485, 1
  %v8101 = vsel %vm304, %v8099, %v8100
  %v8102 = vrot.slane %v6422, 1
  %v8103 = vrot.slane %v6486, 1
  %v8104 = vsel %vm304, %v8102, %v8103
  %v8105 = vrot.slane %v6424, 1
  %v8106 = vrot.slane %v6488, 1
  %v8107 = vsel %vm304, %v8105, %v8106
  %v8108 = vrot.slane %v6425, 1
  %v8109 = vrot.slane %v6489, 1
  %v8110 = vsel %vm304, %v8108, %v8109
  %v8111 = vrot.slane %v6426, 1
  %v8112 = vrot.slane %v6490, 1
  %v8113 = vsel %vm304, %v8111, %v8112
  %v8114 = vrot.slane %v6427, 1
  %v8115 = vrot.slane %v6491, 1
  %v8116 = vsel %vm304, %v8114, %v8115
  %v8117 = vrot.slane %v6428, 1
  %v8118 = vrot.slane %v6492, 1
  %v8119 = vsel %vm304, %v8117, %v8118
  %v8120 = vrot.slane %v6429, 1
  %v8121 = vrot.slane %v6493, 1
  %v8122 = vsel %vm304, %v8120, %v8121
  %v8123 = vrot.slane %v6430, 1
  %v8124 = vrot.slane %v6494, 1
  %v8125 = vsel %vm304, %v8123, %v8124
  %v8142 = vrot.slane %v5606, 1
  %v8143 = vrot.slane %v5670, 1
  %v8144 = vsel %vm304, %v8142, %v8143
  %v8145 = vrot.slane %v5614, 1
  %v8146 = vrot.slane %v5678, 1
  %v8147 = vsel %vm304, %v8145, %v8146
  %v8148 = vrot.slane %v5622, 1
  %v8149 = vrot.slane %v5686, 1
  %v8150 = vsel %vm304, %v8148, %v8149
  %v8151 = vrot.slane %v5630, 1
  %v8152 = vrot.slane %v5694, 1
  %v8153 = vsel %vm304, %v8151, %v8152
  %v8154 = vrot.slane %v5638, 1
  %v8155 = vrot.slane %v5702, 1
  %v8156 = vsel %vm304, %v8154, %v8155
  %v8157 = vrot.slane %v5646, 1
  %v8158 = vrot.slane %v5710, 1
  %v8159 = vsel %vm304, %v8157, %v8158
  %v8160 = vrot.slane %v5654, 1
  %v8161 = vrot.slane %v5718, 1
  %v8162 = vsel %vm304, %v8160, %v8161
  %v8163 = vrot.slane %v5662, 1
  %v8164 = vrot.slane %v5726, 1
  %v8165 = vsel %vm304, %v8163, %v8164
  %v8166 = vrot.slane %v5606, 2
  %v8167 = vrot.slane %v5670, 2
  %v8168 = vsel %vm6880, %v8166, %v8167
  %v8169 = vrot.slane %v5614, 2
  %v8170 = vrot.slane %v5678, 2
  %v8171 = vsel %vm6880, %v8169, %v8170
  %v8172 = vrot.slane %v5622, 2
  %v8173 = vrot.slane %v5686, 2
  %v8174 = vsel %vm6880, %v8172, %v8173
  %v8175 = vrot.slane %v5630, 2
  %v8176 = vrot.slane %v5694, 2
  %v8177 = vsel %vm6880, %v8175, %v8176
  %v8178 = vrot.slane %v5638, 2
  %v8179 = vrot.slane %v5702, 2
  %v8180 = vsel %vm6880, %v8178, %v8179
  %v8181 = vrot.slane %v5646, 2
  %v8182 = vrot.slane %v5710, 2
  %v8183 = vsel %vm6880, %v8181, %v8182
  %v8184 = vrot.slane %v5654, 2
  %v8185 = vrot.slane %v5718, 2
  %v8186 = vsel %vm6880, %v8184, %v8185
  %v8187 = vrot.slane %v5662, 2
  %v8188 = vrot.slane %v5726, 2
  %v8189 = vsel %vm6880, %v8187, %v8188
  %v8206 = vrot.slane %v6375, 1
  %v8207 = vrot.slane %v6439, 1
  %v8208 = vsel %vm304, %v8206, %v8207
  %v8209 = vrot.slane %v6383, 1
  %v8210 = vrot.slane %v6447, 1
  %v8211 = vsel %vm304, %v8209, %v8210
  %v8212 = vrot.slane %v6391, 1
  %v8213 = vrot.slane %v6455, 1
  %v8214 = vsel %vm304, %v8212, %v8213
  %v8215 = vrot.slane %v6399, 1
  %v8216 = vrot.slane %v6463, 1
  %v8217 = vsel %vm304, %v8215, %v8216
  %v8218 = vrot.slane %v6407, 1
  %v8219 = vrot.slane %v6471, 1
  %v8220 = vsel %vm304, %v8218, %v8219
  %v8221 = vrot.slane %v6415, 1
  %v8222 = vrot.slane %v6479, 1
  %v8223 = vsel %vm304, %v8221, %v8222
  %v8224 = vrot.slane %v6423, 1
  %v8225 = vrot.slane %v6487, 1
  %v8226 = vsel %vm304, %v8224, %v8225
  %v8227 = vrot.slane %v6431, 1
  %v8228 = vrot.slane %v6495, 1
  %v8229 = vsel %vm304, %v8227, %v8228
  %8230 = vrot.lane.b32.xlu0 %v6883, 10
  %v8231 = vpop.permute.xlu0 %8230
  %8232 = vrot.lane.b32.xlu0 %v6886, 10
  %v8233 = vpop.permute.xlu0 %8232
  %8234 = vrot.lane.b32.xlu0 %v6889, 10
  %v8235 = vpop.permute.xlu0 %8234
  %8236 = vrot.lane.b32.xlu0 %v6892, 10
  %v8237 = vpop.permute.xlu0 %8236
  %8238 = vrot.lane.b32.xlu0 %v6895, 10
  %v8239 = vpop.permute.xlu0 %8238
  %8240 = vrot.lane.b32.xlu0 %v6898, 10
  %v8241 = vpop.permute.xlu0 %8240
  %8242 = vrot.lane.b32.xlu0 %v6901, 10
  %v8243 = vpop.permute.xlu0 %8242
  %8244 = vrot.lane.b32.xlu0 %v6904, 10
  %v8245 = vpop.permute.xlu0 %8244
  %8246 = vrot.lane.b32.xlu0 %v6907, 10
  %v8247 = vpop.permute.xlu0 %8246
  %8248 = vrot.lane.b32.xlu0 %v6910, 10
  %v8249 = vpop.permute.xlu0 %8248
  %8250 = vrot.lane.b32.xlu0 %v6913, 10
  %v8251 = vpop.permute.xlu0 %8250
  %8252 = vrot.lane.b32.xlu0 %v6916, 10
  %v8253 = vpop.permute.xlu0 %8252
  %8254 = vrot.lane.b32.xlu0 %v6919, 10
  %v8255 = vpop.permute.xlu0 %8254
  %8256 = vrot.lane.b32.xlu0 %v6922, 10
  %v8257 = vpop.permute.xlu0 %8256
  %8258 = vrot.lane.b32.xlu0 %v6925, 10
  %v8259 = vpop.permute.xlu0 %8258
  %8260 = vrot.lane.b32.xlu0 %v6928, 10
  %v8261 = vpop.permute.xlu0 %8260
  %8262 = vrot.lane.b32.xlu0 %v6931, 10
  %v8263 = vpop.permute.xlu0 %8262
  %8264 = vrot.lane.b32.xlu0 %v6934, 10
  %v8265 = vpop.permute.xlu0 %8264
  %8266 = vrot.lane.b32.xlu0 %v6937, 10
  %v8267 = vpop.permute.xlu0 %8266
  %8268 = vrot.lane.b32.xlu0 %v6940, 10
  %v8269 = vpop.permute.xlu0 %8268
  %8270 = vrot.lane.b32.xlu0 %v6943, 10
  %v8271 = vpop.permute.xlu0 %8270
  %8272 = vrot.lane.b32.xlu0 %v6946, 10
  %v8273 = vpop.permute.xlu0 %8272
  %8274 = vrot.lane.b32.xlu0 %v6949, 10
  %v8275 = vpop.permute.xlu0 %8274
  %8276 = vrot.lane.b32.xlu0 %v6952, 10
  %v8277 = vpop.permute.xlu0 %8276
  %8278 = vrot.lane.b32.xlu0 %v6955, 10
  %v8279 = vpop.permute.xlu0 %8278
  %8280 = vrot.lane.b32.xlu0 %v6958, 10
  %v8281 = vpop.permute.xlu0 %8280
  %8282 = vrot.lane.b32.xlu0 %v6961, 10
  %v8283 = vpop.permute.xlu0 %8282
  %8284 = vrot.lane.b32.xlu0 %v6964, 10
  %v8285 = vpop.permute.xlu0 %8284
  %8286 = vrot.lane.b32.xlu0 %v6967, 10
  %v8287 = vpop.permute.xlu0 %8286
  %8288 = vrot.lane.b32.xlu0 %v6970, 10
  %v8289 = vpop.permute.xlu0 %8288
  %8290 = vrot.lane.b32.xlu0 %v6973, 10
  %v8291 = vpop.permute.xlu0 %8290
  %8292 = vrot.lane.b32.xlu0 %v6976, 10
  %v8293 = vpop.permute.xlu0 %8292
  %8294 = vrot.lane.b32.xlu0 %v6979, 10
  %v8295 = vpop.permute.xlu0 %8294
  %8296 = vrot.lane.b32.xlu0 %v6982, 10
  %v8297 = vpop.permute.xlu0 %8296
  %8298 = vrot.lane.b32.xlu0 %v6985, 10
  %v8299 = vpop.permute.xlu0 %8298
  %8300 = vrot.lane.b32.xlu0 %v6988, 10
  %v8301 = vpop.permute.xlu0 %8300
  %8302 = vrot.lane.b32.xlu0 %v6991, 10
  %v8303 = vpop.permute.xlu0 %8302
  %8304 = vrot.lane.b32.xlu0 %v6994, 10
  %v8305 = vpop.permute.xlu0 %8304
  %8306 = vrot.lane.b32.xlu0 %v6997, 10
  %v8307 = vpop.permute.xlu0 %8306
  %8308 = vrot.lane.b32.xlu0 %v7000, 10
  %v8309 = vpop.permute.xlu0 %8308
  %8310 = vrot.lane.b32.xlu0 %v7003, 10
  %v8311 = vpop.permute.xlu0 %8310
  %8312 = vrot.lane.b32.xlu0 %v7006, 10
  %v8313 = vpop.permute.xlu0 %8312
  %8314 = vrot.lane.b32.xlu0 %v7009, 10
  %v8315 = vpop.permute.xlu0 %8314
  %8316 = vrot.lane.b32.xlu0 %v7012, 10
  %v8317 = vpop.permute.xlu0 %8316
  %8318 = vrot.lane.b32.xlu0 %v7015, 10
  %v8319 = vpop.permute.xlu0 %8318
  %8320 = vrot.lane.b32.xlu0 %v7018, 10
  %v8321 = vpop.permute.xlu0 %8320
  %8322 = vrot.lane.b32.xlu0 %v7021, 10
  %v8323 = vpop.permute.xlu0 %8322
  %8324 = vrot.lane.b32.xlu0 %v7024, 10
  %v8325 = vpop.permute.xlu0 %8324
  %8326 = vrot.lane.b32.xlu0 %v7027, 10
  %v8327 = vpop.permute.xlu0 %8326
  %8328 = vrot.lane.b32.xlu0 %v7030, 10
  %v8329 = vpop.permute.xlu0 %8328
  %8330 = vrot.lane.b32.xlu0 %v7033, 10
  %v8331 = vpop.permute.xlu0 %8330
  %8332 = vrot.lane.b32.xlu0 %v7036, 10
  %v8333 = vpop.permute.xlu0 %8332
  %8334 = vrot.lane.b32.xlu0 %v7039, 10
  %v8335 = vpop.permute.xlu0 %8334
  %8336 = vrot.lane.b32.xlu0 %v7042, 10
  %v8337 = vpop.permute.xlu0 %8336
  %8338 = vrot.lane.b32.xlu0 %v7045, 10
  %v8339 = vpop.permute.xlu0 %8338
  %8340 = vrot.lane.b32.xlu0 %v7048, 10
  %v8341 = vpop.permute.xlu0 %8340
  %8342 = vrot.lane.b32.xlu0 %v7051, 10
  %v8343 = vpop.permute.xlu0 %8342
  %8344 = vrot.lane.b32.xlu0 %v7054, 10
  %v8345 = vpop.permute.xlu0 %8344
  %8346 = vrot.lane.b32.xlu0 %v7057, 10
  %v8347 = vpop.permute.xlu0 %8346
  %8348 = vrot.lane.b32.xlu0 %v7060, 10
  %v8349 = vpop.permute.xlu0 %8348
  %8350 = vrot.lane.b32.xlu0 %v7063, 10
  %v8351 = vpop.permute.xlu0 %8350
  %8352 = vrot.lane.b32.xlu0 %v7066, 10
  %v8353 = vpop.permute.xlu0 %8352
  %8354 = vrot.lane.b32.xlu0 %v7069, 10
  %v8355 = vpop.permute.xlu0 %8354
  %8356 = vrot.lane.b32.xlu0 %v7072, 10
  %v8357 = vpop.permute.xlu0 %8356
  %8422 = vrot.lane.b32.xlu0 %v5151, 20
  %v8423 = vpop.permute.xlu0 %8422
  %8424 = vrot.lane.b32.xlu0 %v5152, 20
  %v8425 = vpop.permute.xlu0 %8424
  %8426 = vrot.lane.b32.xlu0 %v5153, 20
  %v8427 = vpop.permute.xlu0 %8426
  %8428 = vrot.lane.b32.xlu0 %v5154, 20
  %v8429 = vpop.permute.xlu0 %8428
  %8430 = vrot.lane.b32.xlu0 %v5155, 20
  %v8431 = vpop.permute.xlu0 %8430
  %8432 = vrot.lane.b32.xlu0 %v5156, 20
  %v8433 = vpop.permute.xlu0 %8432
  %8434 = vrot.lane.b32.xlu0 %v5157, 20
  %v8435 = vpop.permute.xlu0 %8434
  %8436 = vrot.lane.b32.xlu0 %v5158, 20
  %v8437 = vpop.permute.xlu0 %8436
  %8438 = vrot.lane.b32.xlu0 %v5159, 20
  %v8439 = vpop.permute.xlu0 %8438
  %8440 = vrot.lane.b32.xlu0 %v5160, 20
  %v8441 = vpop.permute.xlu0 %8440
  %8442 = vrot.lane.b32.xlu0 %v5161, 20
  %v8443 = vpop.permute.xlu0 %8442
  %8444 = vrot.lane.b32.xlu0 %v5162, 20
  %v8445 = vpop.permute.xlu0 %8444
  %8446 = vrot.lane.b32.xlu0 %v5163, 20
  %v8447 = vpop.permute.xlu0 %8446
  %8448 = vrot.lane.b32.xlu0 %v5164, 20
  %v8449 = vpop.permute.xlu0 %8448
  %8450 = vrot.lane.b32.xlu0 %v5165, 20
  %v8451 = vpop.permute.xlu0 %8450
  %8452 = vrot.lane.b32.xlu0 %v5166, 20
  %v8453 = vpop.permute.xlu0 %8452
  %8454 = vrot.lane.b32.xlu0 %v5167, 20
  %v8455 = vpop.permute.xlu0 %8454
  %8456 = vrot.lane.b32.xlu0 %v5168, 20
  %v8457 = vpop.permute.xlu0 %8456
  %8458 = vrot.lane.b32.xlu0 %v5169, 20
  %v8459 = vpop.permute.xlu0 %8458
  %8460 = vrot.lane.b32.xlu0 %v5170, 20
  %v8461 = vpop.permute.xlu0 %8460
  %8462 = vrot.lane.b32.xlu0 %v5171, 20
  %v8463 = vpop.permute.xlu0 %8462
  %8464 = vrot.lane.b32.xlu0 %v5172, 20
  %v8465 = vpop.permute.xlu0 %8464
  %8466 = vrot.lane.b32.xlu0 %v5173, 20
  %v8467 = vpop.permute.xlu0 %8466
  %8468 = vrot.lane.b32.xlu0 %v5174, 20
  %v8469 = vpop.permute.xlu0 %8468
  %8470 = vrot.lane.b32.xlu0 %v5175, 20
  %v8471 = vpop.permute.xlu0 %8470
  %8472 = vrot.lane.b32.xlu0 %v5176, 20
  %v8473 = vpop.permute.xlu0 %8472
  %8474 = vrot.lane.b32.xlu0 %v5177, 20
  %v8475 = vpop.permute.xlu0 %8474
  %8476 = vrot.lane.b32.xlu0 %v5178, 20
  %v8477 = vpop.permute.xlu0 %8476
  %8478 = vrot.lane.b32.xlu0 %v5179, 20
  %v8479 = vpop.permute.xlu0 %8478
  %8480 = vrot.lane.b32.xlu0 %v5180, 20
  %v8481 = vpop.permute.xlu0 %8480
  %8482 = vrot.lane.b32.xlu0 %v5181, 20
  %v8483 = vpop.permute.xlu0 %8482
  %8484 = vrot.lane.b32.xlu0 %v5182, 20
  %v8485 = vpop.permute.xlu0 %8484
  %8486 = vrot.lane.b32.xlu0 %v5183, 20
  %v8487 = vpop.permute.xlu0 %8486
  %8488 = vrot.lane.b32.xlu0 %v5184, 20
  %v8489 = vpop.permute.xlu0 %8488
  %8490 = vrot.lane.b32.xlu0 %v5185, 20
  %v8491 = vpop.permute.xlu0 %8490
  %8492 = vrot.lane.b32.xlu0 %v5186, 20
  %v8493 = vpop.permute.xlu0 %8492
  %8494 = vrot.lane.b32.xlu0 %v5187, 20
  %v8495 = vpop.permute.xlu0 %8494
  %8496 = vrot.lane.b32.xlu0 %v5188, 20
  %v8497 = vpop.permute.xlu0 %8496
  %8498 = vrot.lane.b32.xlu0 %v5189, 20
  %v8499 = vpop.permute.xlu0 %8498
  %8500 = vrot.lane.b32.xlu0 %v5190, 20
  %v8501 = vpop.permute.xlu0 %8500
  %8502 = vrot.lane.b32.xlu0 %v5191, 20
  %v8503 = vpop.permute.xlu0 %8502
  %8504 = vrot.lane.b32.xlu0 %v5192, 20
  %v8505 = vpop.permute.xlu0 %8504
  %8506 = vrot.lane.b32.xlu0 %v5193, 20
  %v8507 = vpop.permute.xlu0 %8506
  %8508 = vrot.lane.b32.xlu0 %v5194, 20
  %v8509 = vpop.permute.xlu0 %8508
  %8510 = vrot.lane.b32.xlu0 %v5195, 20
  %v8511 = vpop.permute.xlu0 %8510
  %8512 = vrot.lane.b32.xlu0 %v5196, 20
  %v8513 = vpop.permute.xlu0 %8512
  %8514 = vrot.lane.b32.xlu0 %v5197, 20
  %v8515 = vpop.permute.xlu0 %8514
  %8516 = vrot.lane.b32.xlu0 %v5198, 20
  %v8517 = vpop.permute.xlu0 %8516
  %8518 = vrot.lane.b32.xlu0 %v5199, 20
  %v8519 = vpop.permute.xlu0 %8518
  %8520 = vrot.lane.b32.xlu0 %v5200, 20
  %v8521 = vpop.permute.xlu0 %8520
  %8522 = vrot.lane.b32.xlu0 %v5201, 20
  %v8523 = vpop.permute.xlu0 %8522
  %8524 = vrot.lane.b32.xlu0 %v5202, 20
  %v8525 = vpop.permute.xlu0 %8524
  %8526 = vrot.lane.b32.xlu0 %v5203, 20
  %v8527 = vpop.permute.xlu0 %8526
  %8528 = vrot.lane.b32.xlu0 %v5204, 20
  %v8529 = vpop.permute.xlu0 %8528
  %8530 = vrot.lane.b32.xlu0 %v5205, 20
  %v8531 = vpop.permute.xlu0 %8530
  %8532 = vrot.lane.b32.xlu0 %v5206, 20
  %v8533 = vpop.permute.xlu0 %8532
  %8534 = vrot.lane.b32.xlu0 %v5207, 20
  %v8535 = vpop.permute.xlu0 %8534
  %8536 = vrot.lane.b32.xlu0 %v5208, 20
  %v8537 = vpop.permute.xlu0 %8536
  %8538 = vrot.lane.b32.xlu0 %v5209, 20
  %v8539 = vpop.permute.xlu0 %8538
  %8540 = vrot.lane.b32.xlu0 %v5210, 20
  %v8541 = vpop.permute.xlu0 %8540
  %8542 = vrot.lane.b32.xlu0 %v5211, 20
  %v8543 = vpop.permute.xlu0 %8542
  %8544 = vrot.lane.b32.xlu0 %v5212, 20
  %v8545 = vpop.permute.xlu0 %8544
  %8546 = vrot.lane.b32.xlu0 %v5213, 20
  %v8547 = vpop.permute.xlu0 %8546
  %8548 = vrot.lane.b32.xlu0 %v5214, 20
  %v8549 = vpop.permute.xlu0 %8548
  %8614 = vrot.lane.b32.xlu0 %v7203, 30
  %v8615 = vpop.permute.xlu0 %8614
  %8616 = vrot.lane.b32.xlu0 %v7206, 30
  %v8617 = vpop.permute.xlu0 %8616
  %8618 = vrot.lane.b32.xlu0 %v7209, 30
  %v8619 = vpop.permute.xlu0 %8618
  %8620 = vrot.lane.b32.xlu0 %v7212, 30
  %v8621 = vpop.permute.xlu0 %8620
  %8622 = vrot.lane.b32.xlu0 %v7215, 30
  %v8623 = vpop.permute.xlu0 %8622
  %8624 = vrot.lane.b32.xlu0 %v7218, 30
  %v8625 = vpop.permute.xlu0 %8624
  %8626 = vrot.lane.b32.xlu0 %v7221, 30
  %v8627 = vpop.permute.xlu0 %8626
  %8628 = vrot.lane.b32.xlu0 %v7224, 30
  %v8629 = vpop.permute.xlu0 %8628
  %8630 = vrot.lane.b32.xlu0 %v7227, 30
  %v8631 = vpop.permute.xlu0 %8630
  %8632 = vrot.lane.b32.xlu0 %v7230, 30
  %v8633 = vpop.permute.xlu0 %8632
  %8634 = vrot.lane.b32.xlu0 %v7233, 30
  %v8635 = vpop.permute.xlu0 %8634
  %8636 = vrot.lane.b32.xlu0 %v7236, 30
  %v8637 = vpop.permute.xlu0 %8636
  %8638 = vrot.lane.b32.xlu0 %v7239, 30
  %v8639 = vpop.permute.xlu0 %8638
  %8640 = vrot.lane.b32.xlu0 %v7242, 30
  %v8641 = vpop.permute.xlu0 %8640
  %8642 = vrot.lane.b32.xlu0 %v7245, 30
  %v8643 = vpop.permute.xlu0 %8642
  %8644 = vrot.lane.b32.xlu0 %v7248, 30
  %v8645 = vpop.permute.xlu0 %8644
  %8646 = vrot.lane.b32.xlu0 %v7251, 30
  %v8647 = vpop.permute.xlu0 %8646
  %8648 = vrot.lane.b32.xlu0 %v7254, 30
  %v8649 = vpop.permute.xlu0 %8648
  %8650 = vrot.lane.b32.xlu0 %v7257, 30
  %v8651 = vpop.permute.xlu0 %8650
  %8652 = vrot.lane.b32.xlu0 %v7260, 30
  %v8653 = vpop.permute.xlu0 %8652
  %8654 = vrot.lane.b32.xlu0 %v7263, 30
  %v8655 = vpop.permute.xlu0 %8654
  %8656 = vrot.lane.b32.xlu0 %v7266, 30
  %v8657 = vpop.permute.xlu0 %8656
  %8658 = vrot.lane.b32.xlu0 %v7269, 30
  %v8659 = vpop.permute.xlu0 %8658
  %8660 = vrot.lane.b32.xlu0 %v7272, 30
  %v8661 = vpop.permute.xlu0 %8660
  %8662 = vrot.lane.b32.xlu0 %v7275, 30
  %v8663 = vpop.permute.xlu0 %8662
  %8664 = vrot.lane.b32.xlu0 %v7278, 30
  %v8665 = vpop.permute.xlu0 %8664
  %8666 = vrot.lane.b32.xlu0 %v7281, 30
  %v8667 = vpop.permute.xlu0 %8666
  %8668 = vrot.lane.b32.xlu0 %v7284, 30
  %v8669 = vpop.permute.xlu0 %8668
  %8670 = vrot.lane.b32.xlu0 %v7287, 30
  %v8671 = vpop.permute.xlu0 %8670
  %8672 = vrot.lane.b32.xlu0 %v7290, 30
  %v8673 = vpop.permute.xlu0 %8672
  %8674 = vrot.lane.b32.xlu0 %v7293, 30
  %v8675 = vpop.permute.xlu0 %8674
  %8676 = vrot.lane.b32.xlu0 %v7296, 30
  %v8677 = vpop.permute.xlu0 %8676
  %8678 = vrot.lane.b32.xlu0 %v7299, 30
  %v8679 = vpop.permute.xlu0 %8678
  %8680 = vrot.lane.b32.xlu0 %v7302, 30
  %v8681 = vpop.permute.xlu0 %8680
  %8682 = vrot.lane.b32.xlu0 %v7305, 30
  %v8683 = vpop.permute.xlu0 %8682
  %8684 = vrot.lane.b32.xlu0 %v7308, 30
  %v8685 = vpop.permute.xlu0 %8684
  %8686 = vrot.lane.b32.xlu0 %v7311, 30
  %v8687 = vpop.permute.xlu0 %8686
  %8688 = vrot.lane.b32.xlu0 %v7314, 30
  %v8689 = vpop.permute.xlu0 %8688
  %8690 = vrot.lane.b32.xlu0 %v7317, 30
  %v8691 = vpop.permute.xlu0 %8690
  %8692 = vrot.lane.b32.xlu0 %v7320, 30
  %v8693 = vpop.permute.xlu0 %8692
  %8694 = vrot.lane.b32.xlu0 %v7323, 30
  %v8695 = vpop.permute.xlu0 %8694
  %8696 = vrot.lane.b32.xlu0 %v7326, 30
  %v8697 = vpop.permute.xlu0 %8696
  %8698 = vrot.lane.b32.xlu0 %v7329, 30
  %v8699 = vpop.permute.xlu0 %8698
  %8700 = vrot.lane.b32.xlu0 %v7332, 30
  %v8701 = vpop.permute.xlu0 %8700
  %8702 = vrot.lane.b32.xlu0 %v7335, 30
  %v8703 = vpop.permute.xlu0 %8702
  %8704 = vrot.lane.b32.xlu0 %v7338, 30
  %v8705 = vpop.permute.xlu0 %8704
  %8706 = vrot.lane.b32.xlu0 %v7341, 30
  %v8707 = vpop.permute.xlu0 %8706
  %8708 = vrot.lane.b32.xlu0 %v7344, 30
  %v8709 = vpop.permute.xlu0 %8708
  %8710 = vrot.lane.b32.xlu0 %v7347, 30
  %v8711 = vpop.permute.xlu0 %8710
  %8712 = vrot.lane.b32.xlu0 %v7350, 30
  %v8713 = vpop.permute.xlu0 %8712
  %8714 = vrot.lane.b32.xlu0 %v7353, 30
  %v8715 = vpop.permute.xlu0 %8714
  %8716 = vrot.lane.b32.xlu0 %v7356, 30
  %v8717 = vpop.permute.xlu0 %8716
  %8718 = vrot.lane.b32.xlu0 %v7359, 30
  %v8719 = vpop.permute.xlu0 %8718
  %8720 = vrot.lane.b32.xlu0 %v7362, 30
  %v8721 = vpop.permute.xlu0 %8720
  %8722 = vrot.lane.b32.xlu0 %v7365, 30
  %v8723 = vpop.permute.xlu0 %8722
  %8724 = vrot.lane.b32.xlu0 %v7368, 30
  %v8725 = vpop.permute.xlu0 %8724
  %8726 = vrot.lane.b32.xlu0 %v7371, 30
  %v8727 = vpop.permute.xlu0 %8726
  %8728 = vrot.lane.b32.xlu0 %v7374, 30
  %v8729 = vpop.permute.xlu0 %8728
  %8730 = vrot.lane.b32.xlu0 %v7377, 30
  %v8731 = vpop.permute.xlu0 %8730
  %8732 = vrot.lane.b32.xlu0 %v7380, 30
  %v8733 = vpop.permute.xlu0 %8732
  %8734 = vrot.lane.b32.xlu0 %v7383, 30
  %v8735 = vpop.permute.xlu0 %8734
  %8736 = vrot.lane.b32.xlu0 %v7386, 30
  %v8737 = vpop.permute.xlu0 %8736
  %8738 = vrot.lane.b32.xlu0 %v7389, 30
  %v8739 = vpop.permute.xlu0 %8738
  %8740 = vrot.lane.b32.xlu0 %v7392, 30
  %v8741 = vpop.permute.xlu0 %8740
  %8806 = vrot.lane.b32.xlu0 %v6629, 40
  %v8807 = vpop.permute.xlu0 %8806
  %8808 = vrot.lane.b32.xlu0 %v6632, 40
  %v8809 = vpop.permute.xlu0 %8808
  %8810 = vrot.lane.b32.xlu0 %v6635, 40
  %v8811 = vpop.permute.xlu0 %8810
  %8812 = vrot.lane.b32.xlu0 %v6638, 40
  %v8813 = vpop.permute.xlu0 %8812
  %8814 = vrot.lane.b32.xlu0 %v6641, 40
  %v8815 = vpop.permute.xlu0 %8814
  %8816 = vrot.lane.b32.xlu0 %v6644, 40
  %v8817 = vpop.permute.xlu0 %8816
  %8818 = vrot.lane.b32.xlu0 %v6647, 40
  %v8819 = vpop.permute.xlu0 %8818
  %8820 = vrot.lane.b32.xlu0 %v7395, 40
  %v8821 = vpop.permute.xlu0 %8820
  %8822 = vrot.lane.b32.xlu0 %v6653, 40
  %v8823 = vpop.permute.xlu0 %8822
  %8824 = vrot.lane.b32.xlu0 %v6656, 40
  %v8825 = vpop.permute.xlu0 %8824
  %8826 = vrot.lane.b32.xlu0 %v6659, 40
  %v8827 = vpop.permute.xlu0 %8826
  %8828 = vrot.lane.b32.xlu0 %v6662, 40
  %v8829 = vpop.permute.xlu0 %8828
  %8830 = vrot.lane.b32.xlu0 %v6665, 40
  %v8831 = vpop.permute.xlu0 %8830
  %8832 = vrot.lane.b32.xlu0 %v6668, 40
  %v8833 = vpop.permute.xlu0 %8832
  %8834 = vrot.lane.b32.xlu0 %v6671, 40
  %v8835 = vpop.permute.xlu0 %8834
  %8836 = vrot.lane.b32.xlu0 %v6677, 40
  %v8837 = vpop.permute.xlu0 %8836
  %8838 = vrot.lane.b32.xlu0 %v6680, 40
  %v8839 = vpop.permute.xlu0 %8838
  %8840 = vrot.lane.b32.xlu0 %v6683, 40
  %v8841 = vpop.permute.xlu0 %8840
  %8842 = vrot.lane.b32.xlu0 %v6686, 40
  %v8843 = vpop.permute.xlu0 %8842
  %8844 = vrot.lane.b32.xlu0 %v6689, 40
  %v8845 = vpop.permute.xlu0 %8844
  %8846 = vrot.lane.b32.xlu0 %v6692, 40
  %v8847 = vpop.permute.xlu0 %8846
  %8848 = vrot.lane.b32.xlu0 %v6695, 40
  %v8849 = vpop.permute.xlu0 %8848
  %8850 = vrot.lane.b32.xlu0 %v6701, 40
  %v8851 = vpop.permute.xlu0 %8850
  %8852 = vrot.lane.b32.xlu0 %v6704, 40
  %v8853 = vpop.permute.xlu0 %8852
  %8854 = vrot.lane.b32.xlu0 %v6707, 40
  %v8855 = vpop.permute.xlu0 %8854
  %8856 = vrot.lane.b32.xlu0 %v6710, 40
  %v8857 = vpop.permute.xlu0 %8856
  %8858 = vrot.lane.b32.xlu0 %v6713, 40
  %v8859 = vpop.permute.xlu0 %8858
  %8860 = vrot.lane.b32.xlu0 %v6716, 40
  %v8861 = vpop.permute.xlu0 %8860
  %8862 = vrot.lane.b32.xlu0 %v6719, 40
  %v8863 = vpop.permute.xlu0 %8862
  %8864 = vrot.lane.b32.xlu0 %v6725, 40
  %v8865 = vpop.permute.xlu0 %8864
  %8866 = vrot.lane.b32.xlu0 %v6728, 40
  %v8867 = vpop.permute.xlu0 %8866
  %8868 = vrot.lane.b32.xlu0 %v6731, 40
  %v8869 = vpop.permute.xlu0 %8868
  %8870 = vrot.lane.b32.xlu0 %v6734, 40
  %v8871 = vpop.permute.xlu0 %8870
  %8872 = vrot.lane.b32.xlu0 %v6737, 40
  %v8873 = vpop.permute.xlu0 %8872
  %8874 = vrot.lane.b32.xlu0 %v6740, 40
  %v8875 = vpop.permute.xlu0 %8874
  %8876 = vrot.lane.b32.xlu0 %v6743, 40
  %v8877 = vpop.permute.xlu0 %8876
  %8878 = vrot.lane.b32.xlu0 %v6749, 40
  %v8879 = vpop.permute.xlu0 %8878
  %8880 = vrot.lane.b32.xlu0 %v6752, 40
  %v8881 = vpop.permute.xlu0 %8880
  %8882 = vrot.lane.b32.xlu0 %v6755, 40
  %v8883 = vpop.permute.xlu0 %8882
  %8884 = vrot.lane.b32.xlu0 %v6758, 40
  %v8885 = vpop.permute.xlu0 %8884
  %8886 = vrot.lane.b32.xlu0 %v6761, 40
  %v8887 = vpop.permute.xlu0 %8886
  %8888 = vrot.lane.b32.xlu0 %v6764, 40
  %v8889 = vpop.permute.xlu0 %8888
  %8890 = vrot.lane.b32.xlu0 %v6767, 40
  %v8891 = vpop.permute.xlu0 %8890
  %8892 = vrot.lane.b32.xlu0 %v6773, 40
  %v8893 = vpop.permute.xlu0 %8892
  %8894 = vrot.lane.b32.xlu0 %v6776, 40
  %v8895 = vpop.permute.xlu0 %8894
  %8896 = vrot.lane.b32.xlu0 %v6779, 40
  %v8897 = vpop.permute.xlu0 %8896
  %8898 = vrot.lane.b32.xlu0 %v6782, 40
  %v8899 = vpop.permute.xlu0 %8898
  %8900 = vrot.lane.b32.xlu0 %v6785, 40
  %v8901 = vpop.permute.xlu0 %8900
  %8902 = vrot.lane.b32.xlu0 %v6788, 40
  %v8903 = vpop.permute.xlu0 %8902
  %8904 = vrot.lane.b32.xlu0 %v6791, 40
  %v8905 = vpop.permute.xlu0 %8904
  %8906 = vrot.lane.b32.xlu0 %v6797, 40
  %v8907 = vpop.permute.xlu0 %8906
  %8908 = vrot.lane.b32.xlu0 %v6800, 40
  %v8909 = vpop.permute.xlu0 %8908
  %8910 = vrot.lane.b32.xlu0 %v6803, 40
  %v8911 = vpop.permute.xlu0 %8910
  %8912 = vrot.lane.b32.xlu0 %v6806, 40
  %v8913 = vpop.permute.xlu0 %8912
  %8914 = vrot.lane.b32.xlu0 %v6809, 40
  %v8915 = vpop.permute.xlu0 %8914
  %8916 = vrot.lane.b32.xlu0 %v6812, 40
  %v8917 = vpop.permute.xlu0 %8916
  %8918 = vrot.lane.b32.xlu0 %v6815, 40
  %v8919 = vpop.permute.xlu0 %8918
  %8977 = vrot.lane.b32.xlu0 %v6886, 50
  %v8978 = vpop.permute.xlu0 %8977
  %8979 = vrot.lane.b32.xlu0 %v6889, 50
  %v8980 = vpop.permute.xlu0 %8979
  %8981 = vrot.lane.b32.xlu0 %v6892, 50
  %v8982 = vpop.permute.xlu0 %8981
  %8983 = vrot.lane.b32.xlu0 %v6895, 50
  %v8984 = vpop.permute.xlu0 %8983
  %8985 = vrot.lane.b32.xlu0 %v6898, 50
  %v8986 = vpop.permute.xlu0 %8985
  %8987 = vrot.lane.b32.xlu0 %v6901, 50
  %v8988 = vpop.permute.xlu0 %8987
  %8989 = vrot.lane.b32.xlu0 %v6904, 50
  %v8990 = vpop.permute.xlu0 %8989
  %8991 = vrot.lane.b32.xlu0 %v7397, 50
  %v8992 = vpop.permute.xlu0 %8991
  %8993 = vrot.lane.b32.xlu0 %v6910, 50
  %v8994 = vpop.permute.xlu0 %8993
  %8995 = vrot.lane.b32.xlu0 %v6913, 50
  %v8996 = vpop.permute.xlu0 %8995
  %8997 = vrot.lane.b32.xlu0 %v6916, 50
  %v8998 = vpop.permute.xlu0 %8997
  %8999 = vrot.lane.b32.xlu0 %v6919, 50
  %v9000 = vpop.permute.xlu0 %8999
  %9001 = vrot.lane.b32.xlu0 %v6922, 50
  %v9002 = vpop.permute.xlu0 %9001
  %9003 = vrot.lane.b32.xlu0 %v6925, 50
  %v9004 = vpop.permute.xlu0 %9003
  %9005 = vrot.lane.b32.xlu0 %v6928, 50
  %v9006 = vpop.permute.xlu0 %9005
  %9007 = vrot.lane.b32.xlu0 %v6934, 50
  %v9008 = vpop.permute.xlu0 %9007
  %9009 = vrot.lane.b32.xlu0 %v6937, 50
  %v9010 = vpop.permute.xlu0 %9009
  %9011 = vrot.lane.b32.xlu0 %v6940, 50
  %v9012 = vpop.permute.xlu0 %9011
  %9013 = vrot.lane.b32.xlu0 %v6943, 50
  %v9014 = vpop.permute.xlu0 %9013
  %9015 = vrot.lane.b32.xlu0 %v6946, 50
  %v9016 = vpop.permute.xlu0 %9015
  %9017 = vrot.lane.b32.xlu0 %v6949, 50
  %v9018 = vpop.permute.xlu0 %9017
  %9019 = vrot.lane.b32.xlu0 %v6952, 50
  %v9020 = vpop.permute.xlu0 %9019
  %9021 = vrot.lane.b32.xlu0 %v6958, 50
  %v9022 = vpop.permute.xlu0 %9021
  %9023 = vrot.lane.b32.xlu0 %v6961, 50
  %v9024 = vpop.permute.xlu0 %9023
  %9025 = vrot.lane.b32.xlu0 %v6964, 50
  %v9026 = vpop.permute.xlu0 %9025
  %9027 = vrot.lane.b32.xlu0 %v6967, 50
  %v9028 = vpop.permute.xlu0 %9027
  %9029 = vrot.lane.b32.xlu0 %v6970, 50
  %v9030 = vpop.permute.xlu0 %9029
  %9031 = vrot.lane.b32.xlu0 %v6973, 50
  %v9032 = vpop.permute.xlu0 %9031
  %9033 = vrot.lane.b32.xlu0 %v6976, 50
  %v9034 = vpop.permute.xlu0 %9033
  %9035 = vrot.lane.b32.xlu0 %v6982, 50
  %v9036 = vpop.permute.xlu0 %9035
  %9037 = vrot.lane.b32.xlu0 %v6985, 50
  %v9038 = vpop.permute.xlu0 %9037
  %9039 = vrot.lane.b32.xlu0 %v6988, 50
  %v9040 = vpop.permute.xlu0 %9039
  %9041 = vrot.lane.b32.xlu0 %v6991, 50
  %v9042 = vpop.permute.xlu0 %9041
  %9043 = vrot.lane.b32.xlu0 %v6994, 50
  %v9044 = vpop.permute.xlu0 %9043
  %9045 = vrot.lane.b32.xlu0 %v6997, 50
  %v9046 = vpop.permute.xlu0 %9045
  %9047 = vrot.lane.b32.xlu0 %v7000, 50
  %v9048 = vpop.permute.xlu0 %9047
  %9049 = vrot.lane.b32.xlu0 %v7006, 50
  %v9050 = vpop.permute.xlu0 %9049
  %9051 = vrot.lane.b32.xlu0 %v7009, 50
  %v9052 = vpop.permute.xlu0 %9051
  %9053 = vrot.lane.b32.xlu0 %v7012, 50
  %v9054 = vpop.permute.xlu0 %9053
  %9055 = vrot.lane.b32.xlu0 %v7015, 50
  %v9056 = vpop.permute.xlu0 %9055
  %9057 = vrot.lane.b32.xlu0 %v7018, 50
  %v9058 = vpop.permute.xlu0 %9057
  %9059 = vrot.lane.b32.xlu0 %v7021, 50
  %v9060 = vpop.permute.xlu0 %9059
  %9061 = vrot.lane.b32.xlu0 %v7024, 50
  %v9062 = vpop.permute.xlu0 %9061
  %9063 = vrot.lane.b32.xlu0 %v7030, 50
  %v9064 = vpop.permute.xlu0 %9063
  %9065 = vrot.lane.b32.xlu0 %v7033, 50
  %v9066 = vpop.permute.xlu0 %9065
  %9067 = vrot.lane.b32.xlu0 %v7036, 50
  %v9068 = vpop.permute.xlu0 %9067
  %9069 = vrot.lane.b32.xlu0 %v7039, 50
  %v9070 = vpop.permute.xlu0 %9069
  %9071 = vrot.lane.b32.xlu0 %v7042, 50
  %v9072 = vpop.permute.xlu0 %9071
  %9073 = vrot.lane.b32.xlu0 %v7045, 50
  %v9074 = vpop.permute.xlu0 %9073
  %9075 = vrot.lane.b32.xlu0 %v7048, 50
  %v9076 = vpop.permute.xlu0 %9075
  %9077 = vrot.lane.b32.xlu0 %v7054, 50
  %v9078 = vpop.permute.xlu0 %9077
  %9079 = vrot.lane.b32.xlu0 %v7057, 50
  %v9080 = vpop.permute.xlu0 %9079
  %9081 = vrot.lane.b32.xlu0 %v7060, 50
  %v9082 = vpop.permute.xlu0 %9081
  %9083 = vrot.lane.b32.xlu0 %v7063, 50
  %v9084 = vpop.permute.xlu0 %9083
  %9085 = vrot.lane.b32.xlu0 %v7066, 50
  %v9086 = vpop.permute.xlu0 %9085
  %9087 = vrot.lane.b32.xlu0 %v7069, 50
  %v9088 = vpop.permute.xlu0 %9087
  %9089 = vrot.lane.b32.xlu0 %v7072, 50
  %v9090 = vpop.permute.xlu0 %9089
  %9148 = vrot.lane.b32.xlu0 %v5152, 60
  %v9149 = vpop.permute.xlu0 %9148
  %9150 = vrot.lane.b32.xlu0 %v5153, 60
  %v9151 = vpop.permute.xlu0 %9150
  %9152 = vrot.lane.b32.xlu0 %v5154, 60
  %v9153 = vpop.permute.xlu0 %9152
  %9154 = vrot.lane.b32.xlu0 %v5155, 60
  %v9155 = vpop.permute.xlu0 %9154
  %9156 = vrot.lane.b32.xlu0 %v5156, 60
  %v9157 = vpop.permute.xlu0 %9156
  %9158 = vrot.lane.b32.xlu0 %v5157, 60
  %v9159 = vpop.permute.xlu0 %9158
  %9160 = vrot.lane.b32.xlu0 %v5158, 60
  %v9161 = vpop.permute.xlu0 %9160
  %9162 = vrot.lane.b32.xlu0 0.0, 60
  %v9163 = vpop.permute.xlu0 %9162
  %9164 = vrot.lane.b32.xlu0 %v5160, 60
  %v9165 = vpop.permute.xlu0 %9164
  %9166 = vrot.lane.b32.xlu0 %v5161, 60
  %v9167 = vpop.permute.xlu0 %9166
  %9168 = vrot.lane.b32.xlu0 %v5162, 60
  %v9169 = vpop.permute.xlu0 %9168
  %9170 = vrot.lane.b32.xlu0 %v5163, 60
  %v9171 = vpop.permute.xlu0 %9170
  %9172 = vrot.lane.b32.xlu0 %v5164, 60
  %v9173 = vpop.permute.xlu0 %9172
  %9174 = vrot.lane.b32.xlu0 %v5165, 60
  %v9175 = vpop.permute.xlu0 %9174
  %9176 = vrot.lane.b32.xlu0 %v5166, 60
  %v9177 = vpop.permute.xlu0 %9176
  %9178 = vrot.lane.b32.xlu0 %v5168, 60
  %v9179 = vpop.permute.xlu0 %9178
  %9180 = vrot.lane.b32.xlu0 %v5169, 60
  %v9181 = vpop.permute.xlu0 %9180
  %9182 = vrot.lane.b32.xlu0 %v5170, 60
  %v9183 = vpop.permute.xlu0 %9182
  %9184 = vrot.lane.b32.xlu0 %v5171, 60
  %v9185 = vpop.permute.xlu0 %9184
  %9186 = vrot.lane.b32.xlu0 %v5172, 60
  %v9187 = vpop.permute.xlu0 %9186
  %9188 = vrot.lane.b32.xlu0 %v5173, 60
  %v9189 = vpop.permute.xlu0 %9188
  %9190 = vrot.lane.b32.xlu0 %v5174, 60
  %v9191 = vpop.permute.xlu0 %9190
  %9192 = vrot.lane.b32.xlu0 %v5176, 60
  %v9193 = vpop.permute.xlu0 %9192
  %9194 = vrot.lane.b32.xlu0 %v5177, 60
  %v9195 = vpop.permute.xlu0 %9194
  %9196 = vrot.lane.b32.xlu0 %v5178, 60
  %v9197 = vpop.permute.xlu0 %9196
  %9198 = vrot.lane.b32.xlu0 %v5179, 60
  %v9199 = vpop.permute.xlu0 %9198
  %9200 = vrot.lane.b32.xlu0 %v5180, 60
  %v9201 = vpop.permute.xlu0 %9200
  %9202 = vrot.lane.b32.xlu0 %v5181, 60
  %v9203 = vpop.permute.xlu0 %9202
  %9204 = vrot.lane.b32.xlu0 %v5182, 60
  %v9205 = vpop.permute.xlu0 %9204
  %9206 = vrot.lane.b32.xlu0 %v5184, 60
  %v9207 = vpop.permute.xlu0 %9206
  %9208 = vrot.lane.b32.xlu0 %v5185, 60
  %v9209 = vpop.permute.xlu0 %9208
  %9210 = vrot.lane.b32.xlu0 %v5186, 60
  %v9211 = vpop.permute.xlu0 %9210
  %9212 = vrot.lane.b32.xlu0 %v5187, 60
  %v9213 = vpop.permute.xlu0 %9212
  %9214 = vrot.lane.b32.xlu0 %v5188, 60
  %v9215 = vpop.permute.xlu0 %9214
  %9216 = vrot.lane.b32.xlu0 %v5189, 60
  %v9217 = vpop.permute.xlu0 %9216
  %9218 = vrot.lane.b32.xlu0 %v5190, 60
  %v9219 = vpop.permute.xlu0 %9218
  %9220 = vrot.lane.b32.xlu0 %v5192, 60
  %v9221 = vpop.permute.xlu0 %9220
  %9222 = vrot.lane.b32.xlu0 %v5193, 60
  %v9223 = vpop.permute.xlu0 %9222
  %9224 = vrot.lane.b32.xlu0 %v5194, 60
  %v9225 = vpop.permute.xlu0 %9224
  %9226 = vrot.lane.b32.xlu0 %v5195, 60
  %v9227 = vpop.permute.xlu0 %9226
  %9228 = vrot.lane.b32.xlu0 %v5196, 60
  %v9229 = vpop.permute.xlu0 %9228
  %9230 = vrot.lane.b32.xlu0 %v5197, 60
  %v9231 = vpop.permute.xlu0 %9230
  %9232 = vrot.lane.b32.xlu0 %v5198, 60
  %v9233 = vpop.permute.xlu0 %9232
  %9234 = vrot.lane.b32.xlu0 %v5200, 60
  %v9235 = vpop.permute.xlu0 %9234
  %9236 = vrot.lane.b32.xlu0 %v5201, 60
  %v9237 = vpop.permute.xlu0 %9236
  %9238 = vrot.lane.b32.xlu0 %v5202, 60
  %v9239 = vpop.permute.xlu0 %9238
  %9240 = vrot.lane.b32.xlu0 %v5203, 60
  %v9241 = vpop.permute.xlu0 %9240
  %9242 = vrot.lane.b32.xlu0 %v5204, 60
  %v9243 = vpop.permute.xlu0 %9242
  %9244 = vrot.lane.b32.xlu0 %v5205, 60
  %v9245 = vpop.permute.xlu0 %9244
  %9246 = vrot.lane.b32.xlu0 %v5206, 60
  %v9247 = vpop.permute.xlu0 %9246
  %9248 = vrot.lane.b32.xlu0 %v5208, 60
  %v9249 = vpop.permute.xlu0 %9248
  %9250 = vrot.lane.b32.xlu0 %v5209, 60
  %v9251 = vpop.permute.xlu0 %9250
  %9252 = vrot.lane.b32.xlu0 %v5210, 60
  %v9253 = vpop.permute.xlu0 %9252
  %9254 = vrot.lane.b32.xlu0 %v5211, 60
  %v9255 = vpop.permute.xlu0 %9254
  %9256 = vrot.lane.b32.xlu0 %v5212, 60
  %v9257 = vpop.permute.xlu0 %9256
  %9258 = vrot.lane.b32.xlu0 %v5213, 60
  %v9259 = vpop.permute.xlu0 %9258
  %9260 = vrot.lane.b32.xlu0 %v5214, 60
  %v9261 = vpop.permute.xlu0 %9260
  %9319 = vrot.lane.b32.xlu0 %v7206, 70
  %v9320 = vpop.permute.xlu0 %9319
  %9321 = vrot.lane.b32.xlu0 %v7209, 70
  %v9322 = vpop.permute.xlu0 %9321
  %9323 = vrot.lane.b32.xlu0 %v7212, 70
  %v9324 = vpop.permute.xlu0 %9323
  %9325 = vrot.lane.b32.xlu0 %v7215, 70
  %v9326 = vpop.permute.xlu0 %9325
  %9327 = vrot.lane.b32.xlu0 %v7218, 70
  %v9328 = vpop.permute.xlu0 %9327
  %9329 = vrot.lane.b32.xlu0 %v7221, 70
  %v9330 = vpop.permute.xlu0 %9329
  %9331 = vrot.lane.b32.xlu0 %v7224, 70
  %v9332 = vpop.permute.xlu0 %9331
  %9333 = vrot.lane.b32.xlu0 %v7395, 70
  %v9334 = vpop.permute.xlu0 %9333
  %9335 = vrot.lane.b32.xlu0 %v7230, 70
  %v9336 = vpop.permute.xlu0 %9335
  %9337 = vrot.lane.b32.xlu0 %v7233, 70
  %v9338 = vpop.permute.xlu0 %9337
  %9339 = vrot.lane.b32.xlu0 %v7236, 70
  %v9340 = vpop.permute.xlu0 %9339
  %9341 = vrot.lane.b32.xlu0 %v7239, 70
  %v9342 = vpop.permute.xlu0 %9341
  %9343 = vrot.lane.b32.xlu0 %v7242, 70
  %v9344 = vpop.permute.xlu0 %9343
  %9345 = vrot.lane.b32.xlu0 %v7245, 70
  %v9346 = vpop.permute.xlu0 %9345
  %9347 = vrot.lane.b32.xlu0 %v7248, 70
  %v9348 = vpop.permute.xlu0 %9347
  %9349 = vrot.lane.b32.xlu0 %v7254, 70
  %v9350 = vpop.permute.xlu0 %9349
  %9351 = vrot.lane.b32.xlu0 %v7257, 70
  %v9352 = vpop.permute.xlu0 %9351
  %9353 = vrot.lane.b32.xlu0 %v7260, 70
  %v9354 = vpop.permute.xlu0 %9353
  %9355 = vrot.lane.b32.xlu0 %v7263, 70
  %v9356 = vpop.permute.xlu0 %9355
  %9357 = vrot.lane.b32.xlu0 %v7266, 70
  %v9358 = vpop.permute.xlu0 %9357
  %9359 = vrot.lane.b32.xlu0 %v7269, 70
  %v9360 = vpop.permute.xlu0 %9359
  %9361 = vrot.lane.b32.xlu0 %v7272, 70
  %v9362 = vpop.permute.xlu0 %9361
  %9363 = vrot.lane.b32.xlu0 %v7278, 70
  %v9364 = vpop.permute.xlu0 %9363
  %9365 = vrot.lane.b32.xlu0 %v7281, 70
  %v9366 = vpop.permute.xlu0 %9365
  %9367 = vrot.lane.b32.xlu0 %v7284, 70
  %v9368 = vpop.permute.xlu0 %9367
  %9369 = vrot.lane.b32.xlu0 %v7287, 70
  %v9370 = vpop.permute.xlu0 %9369
  %9371 = vrot.lane.b32.xlu0 %v7290, 70
  %v9372 = vpop.permute.xlu0 %9371
  %9373 = vrot.lane.b32.xlu0 %v7293, 70
  %v9374 = vpop.permute.xlu0 %9373
  %9375 = vrot.lane.b32.xlu0 %v7296, 70
  %v9376 = vpop.permute.xlu0 %9375
  %9377 = vrot.lane.b32.xlu0 %v7302, 70
  %v9378 = vpop.permute.xlu0 %9377
  %9379 = vrot.lane.b32.xlu0 %v7305, 70
  %v9380 = vpop.permute.xlu0 %9379
  %9381 = vrot.lane.b32.xlu0 %v7308, 70
  %v9382 = vpop.permute.xlu0 %9381
  %9383 = vrot.lane.b32.xlu0 %v7311, 70
  %v9384 = vpop.permute.xlu0 %9383
  %9385 = vrot.lane.b32.xlu0 %v7314, 70
  %v9386 = vpop.permute.xlu0 %9385
  %9387 = vrot.lane.b32.xlu0 %v7317, 70
  %v9388 = vpop.permute.xlu0 %9387
  %9389 = vrot.lane.b32.xlu0 %v7320, 70
  %v9390 = vpop.permute.xlu0 %9389
  %9391 = vrot.lane.b32.xlu0 %v7326, 70
  %v9392 = vpop.permute.xlu0 %9391
  %9393 = vrot.lane.b32.xlu0 %v7329, 70
  %v9394 = vpop.permute.xlu0 %9393
  %9395 = vrot.lane.b32.xlu0 %v7332, 70
  %v9396 = vpop.permute.xlu0 %9395
  %9397 = vrot.lane.b32.xlu0 %v7335, 70
  %v9398 = vpop.permute.xlu0 %9397
  %9399 = vrot.lane.b32.xlu0 %v7338, 70
  %v9400 = vpop.permute.xlu0 %9399
  %9401 = vrot.lane.b32.xlu0 %v7341, 70
  %v9402 = vpop.permute.xlu0 %9401
  %9403 = vrot.lane.b32.xlu0 %v7344, 70
  %v9404 = vpop.permute.xlu0 %9403
  %9405 = vrot.lane.b32.xlu0 %v7350, 70
  %v9406 = vpop.permute.xlu0 %9405
  %9407 = vrot.lane.b32.xlu0 %v7353, 70
  %v9408 = vpop.permute.xlu0 %9407
  %9409 = vrot.lane.b32.xlu0 %v7356, 70
  %v9410 = vpop.permute.xlu0 %9409
  %9411 = vrot.lane.b32.xlu0 %v7359, 70
  %v9412 = vpop.permute.xlu0 %9411
  %9413 = vrot.lane.b32.xlu0 %v7362, 70
  %v9414 = vpop.permute.xlu0 %9413
  %9415 = vrot.lane.b32.xlu0 %v7365, 70
  %v9416 = vpop.permute.xlu0 %9415
  %9417 = vrot.lane.b32.xlu0 %v7368, 70
  %v9418 = vpop.permute.xlu0 %9417
  %9419 = vrot.lane.b32.xlu0 %v7374, 70
  %v9420 = vpop.permute.xlu0 %9419
  %9421 = vrot.lane.b32.xlu0 %v7377, 70
  %v9422 = vpop.permute.xlu0 %9421
  %9423 = vrot.lane.b32.xlu0 %v7380, 70
  %v9424 = vpop.permute.xlu0 %9423
  %9425 = vrot.lane.b32.xlu0 %v7383, 70
  %v9426 = vpop.permute.xlu0 %9425
  %9427 = vrot.lane.b32.xlu0 %v7386, 70
  %v9428 = vpop.permute.xlu0 %9427
  %9429 = vrot.lane.b32.xlu0 %v7389, 70
  %v9430 = vpop.permute.xlu0 %9429
  %9431 = vrot.lane.b32.xlu0 %v7392, 70
  %v9432 = vpop.permute.xlu0 %9431
  %9490 = vrot.lane.b32.xlu0 %v7395, 80
  %v9491 = vpop.permute.xlu0 %9490
  %9492 = vrot.lane.b32.xlu0 %v7512, 80
  %v9493 = vpop.permute.xlu0 %9492
  %9494 = vrot.lane.b32.xlu0 %v7515, 80
  %v9495 = vpop.permute.xlu0 %9494
  %9496 = vrot.lane.b32.xlu0 %v7518, 80
  %v9497 = vpop.permute.xlu0 %9496
  %9498 = vrot.lane.b32.xlu0 %v7521, 80
  %v9499 = vpop.permute.xlu0 %9498
  %9500 = vrot.lane.b32.xlu0 %v7524, 80
  %v9501 = vpop.permute.xlu0 %9500
  %9502 = vrot.lane.b32.xlu0 %v7527, 80
  %v9503 = vpop.permute.xlu0 %9502
  %9504 = vrot.lane.b32.xlu0 %v7530, 80
  %v9505 = vpop.permute.xlu0 %9504
  %9506 = vrot.lane.b32.xlu0 %v7533, 80
  %v9507 = vpop.permute.xlu0 %9506
  %9508 = vrot.lane.b32.xlu0 %v7536, 80
  %v9509 = vpop.permute.xlu0 %9508
  %9510 = vrot.lane.b32.xlu0 %v7539, 80
  %v9511 = vpop.permute.xlu0 %9510
  %9512 = vrot.lane.b32.xlu0 %v7542, 80
  %v9513 = vpop.permute.xlu0 %9512
  %9514 = vrot.lane.b32.xlu0 %v7545, 80
  %v9515 = vpop.permute.xlu0 %9514
  %9516 = vrot.lane.b32.xlu0 %v7548, 80
  %v9517 = vpop.permute.xlu0 %9516
  %9518 = vrot.lane.b32.xlu0 %v7551, 80
  %v9519 = vpop.permute.xlu0 %9518
  %9520 = vrot.lane.b32.xlu0 %v7554, 80
  %v9521 = vpop.permute.xlu0 %9520
  %9522 = vrot.lane.b32.xlu0 %v7557, 80
  %v9523 = vpop.permute.xlu0 %9522
  %9524 = vrot.lane.b32.xlu0 %v7560, 80
  %v9525 = vpop.permute.xlu0 %9524
  %9526 = vrot.lane.b32.xlu0 %v7563, 80
  %v9527 = vpop.permute.xlu0 %9526
  %9528 = vrot.lane.b32.xlu0 %v7566, 80
  %v9529 = vpop.permute.xlu0 %9528
  %9530 = vrot.lane.b32.xlu0 %v7569, 80
  %v9531 = vpop.permute.xlu0 %9530
  %9532 = vrot.lane.b32.xlu0 %v7572, 80
  %v9533 = vpop.permute.xlu0 %9532
  %9534 = vrot.lane.b32.xlu0 %v7575, 80
  %v9535 = vpop.permute.xlu0 %9534
  %9536 = vrot.lane.b32.xlu0 %v7578, 80
  %v9537 = vpop.permute.xlu0 %9536
  %9538 = vrot.lane.b32.xlu0 %v7581, 80
  %v9539 = vpop.permute.xlu0 %9538
  %9540 = vrot.lane.b32.xlu0 %v7584, 80
  %v9541 = vpop.permute.xlu0 %9540
  %9542 = vrot.lane.b32.xlu0 %v7587, 80
  %v9543 = vpop.permute.xlu0 %9542
  %9544 = vrot.lane.b32.xlu0 %v7590, 80
  %v9545 = vpop.permute.xlu0 %9544
  %9546 = vrot.lane.b32.xlu0 %v7593, 80
  %v9547 = vpop.permute.xlu0 %9546
  %9548 = vrot.lane.b32.xlu0 %v7596, 80
  %v9549 = vpop.permute.xlu0 %9548
  %9550 = vrot.lane.b32.xlu0 %v7599, 80
  %v9551 = vpop.permute.xlu0 %9550
  %9552 = vrot.lane.b32.xlu0 %v7602, 80
  %v9553 = vpop.permute.xlu0 %9552
  %9554 = vrot.lane.b32.xlu0 %v7605, 80
  %v9555 = vpop.permute.xlu0 %9554
  %9556 = vrot.lane.b32.xlu0 %v7608, 80
  %v9557 = vpop.permute.xlu0 %9556
  %9558 = vrot.lane.b32.xlu0 %v7611, 80
  %v9559 = vpop.permute.xlu0 %9558
  %9560 = vrot.lane.b32.xlu0 %v7614, 80
  %v9561 = vpop.permute.xlu0 %9560
  %9562 = vrot.lane.b32.xlu0 %v7617, 80
  %v9563 = vpop.permute.xlu0 %9562
  %9564 = vrot.lane.b32.xlu0 %v7620, 80
  %v9565 = vpop.permute.xlu0 %9564
  %9566 = vrot.lane.b32.xlu0 %v7623, 80
  %v9567 = vpop.permute.xlu0 %9566
  %9568 = vrot.lane.b32.xlu0 %v7626, 80
  %v9569 = vpop.permute.xlu0 %9568
  %9570 = vrot.lane.b32.xlu0 %v7629, 80
  %v9571 = vpop.permute.xlu0 %9570
  %9572 = vrot.lane.b32.xlu0 %v7632, 80
  %v9573 = vpop.permute.xlu0 %9572
  %9574 = vrot.lane.b32.xlu0 %v7635, 80
  %v9575 = vpop.permute.xlu0 %9574
  %9576 = vrot.lane.b32.xlu0 %v7638, 80
  %v9577 = vpop.permute.xlu0 %9576
  %9578 = vrot.lane.b32.xlu0 %v7641, 80
  %v9579 = vpop.permute.xlu0 %9578
  %9580 = vrot.lane.b32.xlu0 %v7644, 80
  %v9581 = vpop.permute.xlu0 %9580
  %9582 = vrot.lane.b32.xlu0 %v7647, 80
  %v9583 = vpop.permute.xlu0 %9582
  %9584 = vrot.lane.b32.xlu0 %v7650, 80
  %v9585 = vpop.permute.xlu0 %9584
  %9586 = vrot.lane.b32.xlu0 %v7653, 80
  %v9587 = vpop.permute.xlu0 %9586
  %9588 = vrot.lane.b32.xlu0 %v7656, 80
  %v9589 = vpop.permute.xlu0 %9588
  %9590 = vrot.lane.b32.xlu0 %v7659, 80
  %v9591 = vpop.permute.xlu0 %9590
  %9592 = vrot.lane.b32.xlu0 %v7662, 80
  %v9593 = vpop.permute.xlu0 %9592
  %9594 = vrot.lane.b32.xlu0 %v7665, 80
  %v9595 = vpop.permute.xlu0 %9594
  %9596 = vrot.lane.b32.xlu0 %v7668, 80
  %v9597 = vpop.permute.xlu0 %9596
  %9598 = vrot.lane.b32.xlu0 %v7671, 80
  %v9599 = vpop.permute.xlu0 %9598
  %9600 = vrot.lane.b32.xlu0 %v7674, 80
  %v9601 = vpop.permute.xlu0 %9600
  %9602 = vrot.lane.b32.xlu0 %v7677, 80
  %v9603 = vpop.permute.xlu0 %9602
  %9661 = vrot.lane.b32.xlu0 %v7397, 90
  %v9662 = vpop.permute.xlu0 %9661
  %9663 = vrot.lane.b32.xlu0 %v7680, 90
  %v9664 = vpop.permute.xlu0 %9663
  %9665 = vrot.lane.b32.xlu0 %v7683, 90
  %v9666 = vpop.permute.xlu0 %9665
  %9667 = vrot.lane.b32.xlu0 %v7686, 90
  %v9668 = vpop.permute.xlu0 %9667
  %9669 = vrot.lane.b32.xlu0 %v7689, 90
  %v9670 = vpop.permute.xlu0 %9669
  %9671 = vrot.lane.b32.xlu0 %v7692, 90
  %v9672 = vpop.permute.xlu0 %9671
  %9673 = vrot.lane.b32.xlu0 %v7695, 90
  %v9674 = vpop.permute.xlu0 %9673
  %9675 = vrot.lane.b32.xlu0 %v7698, 90
  %v9676 = vpop.permute.xlu0 %9675
  %9677 = vrot.lane.b32.xlu0 %v7701, 90
  %v9678 = vpop.permute.xlu0 %9677
  %9679 = vrot.lane.b32.xlu0 %v7704, 90
  %v9680 = vpop.permute.xlu0 %9679
  %9681 = vrot.lane.b32.xlu0 %v7707, 90
  %v9682 = vpop.permute.xlu0 %9681
  %9683 = vrot.lane.b32.xlu0 %v7710, 90
  %v9684 = vpop.permute.xlu0 %9683
  %9685 = vrot.lane.b32.xlu0 %v7713, 90
  %v9686 = vpop.permute.xlu0 %9685
  %9687 = vrot.lane.b32.xlu0 %v7716, 90
  %v9688 = vpop.permute.xlu0 %9687
  %9689 = vrot.lane.b32.xlu0 %v7719, 90
  %v9690 = vpop.permute.xlu0 %9689
  %9691 = vrot.lane.b32.xlu0 %v7722, 90
  %v9692 = vpop.permute.xlu0 %9691
  %9693 = vrot.lane.b32.xlu0 %v7725, 90
  %v9694 = vpop.permute.xlu0 %9693
  %9695 = vrot.lane.b32.xlu0 %v7728, 90
  %v9696 = vpop.permute.xlu0 %9695
  %9697 = vrot.lane.b32.xlu0 %v7731, 90
  %v9698 = vpop.permute.xlu0 %9697
  %9699 = vrot.lane.b32.xlu0 %v7734, 90
  %v9700 = vpop.permute.xlu0 %9699
  %9701 = vrot.lane.b32.xlu0 %v7737, 90
  %v9702 = vpop.permute.xlu0 %9701
  %9703 = vrot.lane.b32.xlu0 %v7740, 90
  %v9704 = vpop.permute.xlu0 %9703
  %9705 = vrot.lane.b32.xlu0 %v7743, 90
  %v9706 = vpop.permute.xlu0 %9705
  %9707 = vrot.lane.b32.xlu0 %v7746, 90
  %v9708 = vpop.permute.xlu0 %9707
  %9709 = vrot.lane.b32.xlu0 %v7749, 90
  %v9710 = vpop.permute.xlu0 %9709
  %9711 = vrot.lane.b32.xlu0 %v7752, 90
  %v9712 = vpop.permute.xlu0 %9711
  %9713 = vrot.lane.b32.xlu0 %v7755, 90
  %v9714 = vpop.permute.xlu0 %9713
  %9715 = vrot.lane.b32.xlu0 %v7758, 90
  %v9716 = vpop.permute.xlu0 %9715
  %9717 = vrot.lane.b32.xlu0 %v7761, 90
  %v9718 = vpop.permute.xlu0 %9717
  %9719 = vrot.lane.b32.xlu0 %v7764, 90
  %v9720 = vpop.permute.xlu0 %9719
  %9721 = vrot.lane.b32.xlu0 %v7767, 90
  %v9722 = vpop.permute.xlu0 %9721
  %9723 = vrot.lane.b32.xlu0 %v7770, 90
  %v9724 = vpop.permute.xlu0 %9723
  %9725 = vrot.lane.b32.xlu0 %v7773, 90
  %v9726 = vpop.permute.xlu0 %9725
  %9727 = vrot.lane.b32.xlu0 %v7776, 90
  %v9728 = vpop.permute.xlu0 %9727
  %9729 = vrot.lane.b32.xlu0 %v7779, 90
  %v9730 = vpop.permute.xlu0 %9729
  %9731 = vrot.lane.b32.xlu0 %v7782, 90
  %v9732 = vpop.permute.xlu0 %9731
  %9733 = vrot.lane.b32.xlu0 %v7785, 90
  %v9734 = vpop.permute.xlu0 %9733
  %9735 = vrot.lane.b32.xlu0 %v7788, 90
  %v9736 = vpop.permute.xlu0 %9735
  %9737 = vrot.lane.b32.xlu0 %v7791, 90
  %v9738 = vpop.permute.xlu0 %9737
  %9739 = vrot.lane.b32.xlu0 %v7794, 90
  %v9740 = vpop.permute.xlu0 %9739
  %9741 = vrot.lane.b32.xlu0 %v7797, 90
  %v9742 = vpop.permute.xlu0 %9741
  %9743 = vrot.lane.b32.xlu0 %v7800, 90
  %v9744 = vpop.permute.xlu0 %9743
  %9745 = vrot.lane.b32.xlu0 %v7803, 90
  %v9746 = vpop.permute.xlu0 %9745
  %9747 = vrot.lane.b32.xlu0 %v7806, 90
  %v9748 = vpop.permute.xlu0 %9747
  %9749 = vrot.lane.b32.xlu0 %v7809, 90
  %v9750 = vpop.permute.xlu0 %9749
  %9751 = vrot.lane.b32.xlu0 %v7812, 90
  %v9752 = vpop.permute.xlu0 %9751
  %9753 = vrot.lane.b32.xlu0 %v7815, 90
  %v9754 = vpop.permute.xlu0 %9753
  %9755 = vrot.lane.b32.xlu0 %v7818, 90
  %v9756 = vpop.permute.xlu0 %9755
  %9757 = vrot.lane.b32.xlu0 %v7821, 90
  %v9758 = vpop.permute.xlu0 %9757
  %9759 = vrot.lane.b32.xlu0 %v7824, 90
  %v9760 = vpop.permute.xlu0 %9759
  %9761 = vrot.lane.b32.xlu0 %v7827, 90
  %v9762 = vpop.permute.xlu0 %9761
  %9763 = vrot.lane.b32.xlu0 %v7830, 90
  %v9764 = vpop.permute.xlu0 %9763
  %9765 = vrot.lane.b32.xlu0 %v7833, 90
  %v9766 = vpop.permute.xlu0 %9765
  %9767 = vrot.lane.b32.xlu0 %v7836, 90
  %v9768 = vpop.permute.xlu0 %9767
  %9769 = vrot.lane.b32.xlu0 %v7839, 90
  %v9770 = vpop.permute.xlu0 %9769
  %9771 = vrot.lane.b32.xlu0 %v7842, 90
  %v9772 = vpop.permute.xlu0 %9771
  %9773 = vrot.lane.b32.xlu0 %v7845, 90
  %v9774 = vpop.permute.xlu0 %9773
  %9832 = vrot.lane.b32.xlu0 0.0, 100
  %v9833 = vpop.permute.xlu0 %9832
  %9834 = vrot.lane.b32.xlu0 %v6368, 100
  %v9835 = vpop.permute.xlu0 %9834
  %9836 = vrot.lane.b32.xlu0 %v6369, 100
  %v9837 = vpop.permute.xlu0 %9836
  %9838 = vrot.lane.b32.xlu0 %v6370, 100
  %v9839 = vpop.permute.xlu0 %9838
  %9840 = vrot.lane.b32.xlu0 %v6371, 100
  %v9841 = vpop.permute.xlu0 %9840
  %9842 = vrot.lane.b32.xlu0 %v6372, 100
  %v9843 = vpop.permute.xlu0 %9842
  %9844 = vrot.lane.b32.xlu0 %v6373, 100
  %v9845 = vpop.permute.xlu0 %9844
  %9846 = vrot.lane.b32.xlu0 %v6374, 100
  %v9847 = vpop.permute.xlu0 %9846
  %9848 = vrot.lane.b32.xlu0 %v6376, 100
  %v9849 = vpop.permute.xlu0 %9848
  %9850 = vrot.lane.b32.xlu0 %v6377, 100
  %v9851 = vpop.permute.xlu0 %9850
  %9852 = vrot.lane.b32.xlu0 %v6378, 100
  %v9853 = vpop.permute.xlu0 %9852
  %9854 = vrot.lane.b32.xlu0 %v6379, 100
  %v9855 = vpop.permute.xlu0 %9854
  %9856 = vrot.lane.b32.xlu0 %v6380, 100
  %v9857 = vpop.permute.xlu0 %9856
  %9858 = vrot.lane.b32.xlu0 %v6381, 100
  %v9859 = vpop.permute.xlu0 %9858
  %9860 = vrot.lane.b32.xlu0 %v6382, 100
  %v9861 = vpop.permute.xlu0 %9860
  %9862 = vrot.lane.b32.xlu0 %v6384, 100
  %v9863 = vpop.permute.xlu0 %9862
  %9864 = vrot.lane.b32.xlu0 %v6385, 100
  %v9865 = vpop.permute.xlu0 %9864
  %9866 = vrot.lane.b32.xlu0 %v6386, 100
  %v9867 = vpop.permute.xlu0 %9866
  %9868 = vrot.lane.b32.xlu0 %v6387, 100
  %v9869 = vpop.permute.xlu0 %9868
  %9870 = vrot.lane.b32.xlu0 %v6388, 100
  %v9871 = vpop.permute.xlu0 %9870
  %9872 = vrot.lane.b32.xlu0 %v6389, 100
  %v9873 = vpop.permute.xlu0 %9872
  %9874 = vrot.lane.b32.xlu0 %v6390, 100
  %v9875 = vpop.permute.xlu0 %9874
  %9876 = vrot.lane.b32.xlu0 %v6392, 100
  %v9877 = vpop.permute.xlu0 %9876
  %9878 = vrot.lane.b32.xlu0 %v6393, 100
  %v9879 = vpop.permute.xlu0 %9878
  %9880 = vrot.lane.b32.xlu0 %v6394, 100
  %v9881 = vpop.permute.xlu0 %9880
  %9882 = vrot.lane.b32.xlu0 %v6395, 100
  %v9883 = vpop.permute.xlu0 %9882
  %9884 = vrot.lane.b32.xlu0 %v6396, 100
  %v9885 = vpop.permute.xlu0 %9884
  %9886 = vrot.lane.b32.xlu0 %v6397, 100
  %v9887 = vpop.permute.xlu0 %9886
  %9888 = vrot.lane.b32.xlu0 %v6398, 100
  %v9889 = vpop.permute.xlu0 %9888
  %9890 = vrot.lane.b32.xlu0 %v6400, 100
  %v9891 = vpop.permute.xlu0 %9890
  %9892 = vrot.lane.b32.xlu0 %v6401, 100
  %v9893 = vpop.permute.xlu0 %9892
  %9894 = vrot.lane.b32.xlu0 %v6402, 100
  %v9895 = vpop.permute.xlu0 %9894
  %9896 = vrot.lane.b32.xlu0 %v6403, 100
  %v9897 = vpop.permute.xlu0 %9896
  %9898 = vrot.lane.b32.xlu0 %v6404, 100
  %v9899 = vpop.permute.xlu0 %9898
  %9900 = vrot.lane.b32.xlu0 %v6405, 100
  %v9901 = vpop.permute.xlu0 %9900
  %9902 = vrot.lane.b32.xlu0 %v6406, 100
  %v9903 = vpop.permute.xlu0 %9902
  %9904 = vrot.lane.b32.xlu0 %v6408, 100
  %v9905 = vpop.permute.xlu0 %9904
  %9906 = vrot.lane.b32.xlu0 %v6409, 100
  %v9907 = vpop.permute.xlu0 %9906
  %9908 = vrot.lane.b32.xlu0 %v6410, 100
  %v9909 = vpop.permute.xlu0 %9908
  %9910 = vrot.lane.b32.xlu0 %v6411, 100
  %v9911 = vpop.permute.xlu0 %9910
  %9912 = vrot.lane.b32.xlu0 %v6412, 100
  %v9913 = vpop.permute.xlu0 %9912
  %9914 = vrot.lane.b32.xlu0 %v6413, 100
  %v9915 = vpop.permute.xlu0 %9914
  %9916 = vrot.lane.b32.xlu0 %v6414, 100
  %v9917 = vpop.permute.xlu0 %9916
  %9918 = vrot.lane.b32.xlu0 %v6416, 100
  %v9919 = vpop.permute.xlu0 %9918
  %9920 = vrot.lane.b32.xlu0 %v6417, 100
  %v9921 = vpop.permute.xlu0 %9920
  %9922 = vrot.lane.b32.xlu0 %v6418, 100
  %v9923 = vpop.permute.xlu0 %9922
  %9924 = vrot.lane.b32.xlu0 %v6419, 100
  %v9925 = vpop.permute.xlu0 %9924
  %9926 = vrot.lane.b32.xlu0 %v6420, 100
  %v9927 = vpop.permute.xlu0 %9926
  %9928 = vrot.lane.b32.xlu0 %v6421, 100
  %v9929 = vpop.permute.xlu0 %9928
  %9930 = vrot.lane.b32.xlu0 %v6422, 100
  %v9931 = vpop.permute.xlu0 %9930
  %9932 = vrot.lane.b32.xlu0 %v6424, 100
  %v9933 = vpop.permute.xlu0 %9932
  %9934 = vrot.lane.b32.xlu0 %v6425, 100
  %v9935 = vpop.permute.xlu0 %9934
  %9936 = vrot.lane.b32.xlu0 %v6426, 100
  %v9937 = vpop.permute.xlu0 %9936
  %9938 = vrot.lane.b32.xlu0 %v6427, 100
  %v9939 = vpop.permute.xlu0 %9938
  %9940 = vrot.lane.b32.xlu0 %v6428, 100
  %v9941 = vpop.permute.xlu0 %9940
  %9942 = vrot.lane.b32.xlu0 %v6429, 100
  %v9943 = vpop.permute.xlu0 %9942
  %9944 = vrot.lane.b32.xlu0 %v6430, 100
  %v9945 = vpop.permute.xlu0 %9944
  %10003 = vrot.lane.b32.xlu0 %v7395, 110
  %v10004 = vpop.permute.xlu0 %10003
  %10005 = vrot.lane.b32.xlu0 %v7960, 110
  %v10006 = vpop.permute.xlu0 %10005
  %10007 = vrot.lane.b32.xlu0 %v7963, 110
  %v10008 = vpop.permute.xlu0 %10007
  %10009 = vrot.lane.b32.xlu0 %v7966, 110
  %v10010 = vpop.permute.xlu0 %10009
  %10011 = vrot.lane.b32.xlu0 %v7969, 110
  %v10012 = vpop.permute.xlu0 %10011
  %10013 = vrot.lane.b32.xlu0 %v7972, 110
  %v10014 = vpop.permute.xlu0 %10013
  %10015 = vrot.lane.b32.xlu0 %v7975, 110
  %v10016 = vpop.permute.xlu0 %10015
  %10017 = vrot.lane.b32.xlu0 %v7978, 110
  %v10018 = vpop.permute.xlu0 %10017
  %10019 = vrot.lane.b32.xlu0 %v7981, 110
  %v10020 = vpop.permute.xlu0 %10019
  %10021 = vrot.lane.b32.xlu0 %v7984, 110
  %v10022 = vpop.permute.xlu0 %10021
  %10023 = vrot.lane.b32.xlu0 %v7987, 110
  %v10024 = vpop.permute.xlu0 %10023
  %10025 = vrot.lane.b32.xlu0 %v7990, 110
  %v10026 = vpop.permute.xlu0 %10025
  %10027 = vrot.lane.b32.xlu0 %v7993, 110
  %v10028 = vpop.permute.xlu0 %10027
  %10029 = vrot.lane.b32.xlu0 %v7996, 110
  %v10030 = vpop.permute.xlu0 %10029
  %10031 = vrot.lane.b32.xlu0 %v7999, 110
  %v10032 = vpop.permute.xlu0 %10031
  %10033 = vrot.lane.b32.xlu0 %v8002, 110
  %v10034 = vpop.permute.xlu0 %10033
  %10035 = vrot.lane.b32.xlu0 %v8005, 110
  %v10036 = vpop.permute.xlu0 %10035
  %10037 = vrot.lane.b32.xlu0 %v8008, 110
  %v10038 = vpop.permute.xlu0 %10037
  %10039 = vrot.lane.b32.xlu0 %v8011, 110
  %v10040 = vpop.permute.xlu0 %10039
  %10041 = vrot.lane.b32.xlu0 %v8014, 110
  %v10042 = vpop.permute.xlu0 %10041
  %10043 = vrot.lane.b32.xlu0 %v8017, 110
  %v10044 = vpop.permute.xlu0 %10043
  %10045 = vrot.lane.b32.xlu0 %v8020, 110
  %v10046 = vpop.permute.xlu0 %10045
  %10047 = vrot.lane.b32.xlu0 %v8023, 110
  %v10048 = vpop.permute.xlu0 %10047
  %10049 = vrot.lane.b32.xlu0 %v8026, 110
  %v10050 = vpop.permute.xlu0 %10049
  %10051 = vrot.lane.b32.xlu0 %v8029, 110
  %v10052 = vpop.permute.xlu0 %10051
  %10053 = vrot.lane.b32.xlu0 %v8032, 110
  %v10054 = vpop.permute.xlu0 %10053
  %10055 = vrot.lane.b32.xlu0 %v8035, 110
  %v10056 = vpop.permute.xlu0 %10055
  %10057 = vrot.lane.b32.xlu0 %v8038, 110
  %v10058 = vpop.permute.xlu0 %10057
  %10059 = vrot.lane.b32.xlu0 %v8041, 110
  %v10060 = vpop.permute.xlu0 %10059
  %10061 = vrot.lane.b32.xlu0 %v8044, 110
  %v10062 = vpop.permute.xlu0 %10061
  %10063 = vrot.lane.b32.xlu0 %v8047, 110
  %v10064 = vpop.permute.xlu0 %10063
  %10065 = vrot.lane.b32.xlu0 %v8050, 110
  %v10066 = vpop.permute.xlu0 %10065
  %10067 = vrot.lane.b32.xlu0 %v8053, 110
  %v10068 = vpop.permute.xlu0 %10067
  %10069 = vrot.lane.b32.xlu0 %v8056, 110
  %v10070 = vpop.permute.xlu0 %10069
  %10071 = vrot.lane.b32.xlu0 %v8059, 110
  %v10072 = vpop.permute.xlu0 %10071
  %10073 = vrot.lane.b32.xlu0 %v8062, 110
  %v10074 = vpop.permute.xlu0 %10073
  %10075 = vrot.lane.b32.xlu0 %v8065, 110
  %v10076 = vpop.permute.xlu0 %10075
  %10077 = vrot.lane.b32.xlu0 %v8068, 110
  %v10078 = vpop.permute.xlu0 %10077
  %10079 = vrot.lane.b32.xlu0 %v8071, 110
  %v10080 = vpop.permute.xlu0 %10079
  %10081 = vrot.lane.b32.xlu0 %v8074, 110
  %v10082 = vpop.permute.xlu0 %10081
  %10083 = vrot.lane.b32.xlu0 %v8077, 110
  %v10084 = vpop.permute.xlu0 %10083
  %10085 = vrot.lane.b32.xlu0 %v8080, 110
  %v10086 = vpop.permute.xlu0 %10085
  %10087 = vrot.lane.b32.xlu0 %v8083, 110
  %v10088 = vpop.permute.xlu0 %10087
  %10089 = vrot.lane.b32.xlu0 %v8086, 110
  %v10090 = vpop.permute.xlu0 %10089
  %10091 = vrot.lane.b32.xlu0 %v8089, 110
  %v10092 = vpop.permute.xlu0 %10091
  %10093 = vrot.lane.b32.xlu0 %v8092, 110
  %v10094 = vpop.permute.xlu0 %10093
  %10095 = vrot.lane.b32.xlu0 %v8095, 110
  %v10096 = vpop.permute.xlu0 %10095
  %10097 = vrot.lane.b32.xlu0 %v8098, 110
  %v10098 = vpop.permute.xlu0 %10097
  %10099 = vrot.lane.b32.xlu0 %v8101, 110
  %v10100 = vpop.permute.xlu0 %10099
  %10101 = vrot.lane.b32.xlu0 %v8104, 110
  %v10102 = vpop.permute.xlu0 %10101
  %10103 = vrot.lane.b32.xlu0 %v8107, 110
  %v10104 = vpop.permute.xlu0 %10103
  %10105 = vrot.lane.b32.xlu0 %v8110, 110
  %v10106 = vpop.permute.xlu0 %10105
  %10107 = vrot.lane.b32.xlu0 %v8113, 110
  %v10108 = vpop.permute.xlu0 %10107
  %10109 = vrot.lane.b32.xlu0 %v8116, 110
  %v10110 = vpop.permute.xlu0 %10109
  %10111 = vrot.lane.b32.xlu0 %v8119, 110
  %v10112 = vpop.permute.xlu0 %10111
  %10113 = vrot.lane.b32.xlu0 %v8122, 110
  %v10114 = vpop.permute.xlu0 %10113
  %10115 = vrot.lane.b32.xlu0 %v8125, 110
  %v10116 = vpop.permute.xlu0 %10115
  %10174 = vrot.lane.b32.xlu0 %v7512, 120
  %v10175 = vpop.permute.xlu0 %10174
  %10176 = vrot.lane.b32.xlu0 %v7515, 120
  %v10177 = vpop.permute.xlu0 %10176
  %10178 = vrot.lane.b32.xlu0 %v7518, 120
  %v10179 = vpop.permute.xlu0 %10178
  %10180 = vrot.lane.b32.xlu0 %v7521, 120
  %v10181 = vpop.permute.xlu0 %10180
  %10182 = vrot.lane.b32.xlu0 %v7524, 120
  %v10183 = vpop.permute.xlu0 %10182
  %10184 = vrot.lane.b32.xlu0 %v7527, 120
  %v10185 = vpop.permute.xlu0 %10184
  %10186 = vrot.lane.b32.xlu0 %v7530, 120
  %v10187 = vpop.permute.xlu0 %10186
  %10188 = vrot.lane.b32.xlu0 %v8144, 120
  %v10189 = vpop.permute.xlu0 %10188
  %10190 = vrot.lane.b32.xlu0 %v7533, 120
  %v10191 = vpop.permute.xlu0 %10190
  %10192 = vrot.lane.b32.xlu0 %v7536, 120
  %v10193 = vpop.permute.xlu0 %10192
  %10194 = vrot.lane.b32.xlu0 %v7539, 120
  %v10195 = vpop.permute.xlu0 %10194
  %10196 = vrot.lane.b32.xlu0 %v7542, 120
  %v10197 = vpop.permute.xlu0 %10196
  %10198 = vrot.lane.b32.xlu0 %v7545, 120
  %v10199 = vpop.permute.xlu0 %10198
  %10200 = vrot.lane.b32.xlu0 %v7548, 120
  %v10201 = vpop.permute.xlu0 %10200
  %10202 = vrot.lane.b32.xlu0 %v7551, 120
  %v10203 = vpop.permute.xlu0 %10202
  %10204 = vrot.lane.b32.xlu0 %v8147, 120
  %v10205 = vpop.permute.xlu0 %10204
  %10206 = vrot.lane.b32.xlu0 %v7554, 120
  %v10207 = vpop.permute.xlu0 %10206
  %10208 = vrot.lane.b32.xlu0 %v7557, 120
  %v10209 = vpop.permute.xlu0 %10208
  %10210 = vrot.lane.b32.xlu0 %v7560, 120
  %v10211 = vpop.permute.xlu0 %10210
  %10212 = vrot.lane.b32.xlu0 %v7563, 120
  %v10213 = vpop.permute.xlu0 %10212
  %10214 = vrot.lane.b32.xlu0 %v7566, 120
  %v10215 = vpop.permute.xlu0 %10214
  %10216 = vrot.lane.b32.xlu0 %v7569, 120
  %v10217 = vpop.permute.xlu0 %10216
  %10218 = vrot.lane.b32.xlu0 %v7572, 120
  %v10219 = vpop.permute.xlu0 %10218
  %10220 = vrot.lane.b32.xlu0 %v8150, 120
  %v10221 = vpop.permute.xlu0 %10220
  %10222 = vrot.lane.b32.xlu0 %v7575, 120
  %v10223 = vpop.permute.xlu0 %10222
  %10224 = vrot.lane.b32.xlu0 %v7578, 120
  %v10225 = vpop.permute.xlu0 %10224
  %10226 = vrot.lane.b32.xlu0 %v7581, 120
  %v10227 = vpop.permute.xlu0 %10226
  %10228 = vrot.lane.b32.xlu0 %v7584, 120
  %v10229 = vpop.permute.xlu0 %10228
  %10230 = vrot.lane.b32.xlu0 %v7587, 120
  %v10231 = vpop.permute.xlu0 %10230
  %10232 = vrot.lane.b32.xlu0 %v7590, 120
  %v10233 = vpop.permute.xlu0 %10232
  %10234 = vrot.lane.b32.xlu0 %v7593, 120
  %v10235 = vpop.permute.xlu0 %10234
  %10236 = vrot.lane.b32.xlu0 %v8153, 120
  %v10237 = vpop.permute.xlu0 %10236
  %10238 = vrot.lane.b32.xlu0 %v7596, 120
  %v10239 = vpop.permute.xlu0 %10238
  %10240 = vrot.lane.b32.xlu0 %v7599, 120
  %v10241 = vpop.permute.xlu0 %10240
  %10242 = vrot.lane.b32.xlu0 %v7602, 120
  %v10243 = vpop.permute.xlu0 %10242
  %10244 = vrot.lane.b32.xlu0 %v7605, 120
  %v10245 = vpop.permute.xlu0 %10244
  %10246 = vrot.lane.b32.xlu0 %v7608, 120
  %v10247 = vpop.permute.xlu0 %10246
  %10248 = vrot.lane.b32.xlu0 %v7611, 120
  %v10249 = vpop.permute.xlu0 %10248
  %10250 = vrot.lane.b32.xlu0 %v7614, 120
  %v10251 = vpop.permute.xlu0 %10250
  %10252 = vrot.lane.b32.xlu0 %v8156, 120
  %v10253 = vpop.permute.xlu0 %10252
  %10254 = vrot.lane.b32.xlu0 %v7617, 120
  %v10255 = vpop.permute.xlu0 %10254
  %10256 = vrot.lane.b32.xlu0 %v7620, 120
  %v10257 = vpop.permute.xlu0 %10256
  %10258 = vrot.lane.b32.xlu0 %v7623, 120
  %v10259 = vpop.permute.xlu0 %10258
  %10260 = vrot.lane.b32.xlu0 %v7626, 120
  %v10261 = vpop.permute.xlu0 %10260
  %10262 = vrot.lane.b32.xlu0 %v7629, 120
  %v10263 = vpop.permute.xlu0 %10262
  %10264 = vrot.lane.b32.xlu0 %v7632, 120
  %v10265 = vpop.permute.xlu0 %10264
  %10266 = vrot.lane.b32.xlu0 %v7635, 120
  %v10267 = vpop.permute.xlu0 %10266
  %10268 = vrot.lane.b32.xlu0 %v8159, 120
  %v10269 = vpop.permute.xlu0 %10268
  %10270 = vrot.lane.b32.xlu0 %v7638, 120
  %v10271 = vpop.permute.xlu0 %10270
  %10272 = vrot.lane.b32.xlu0 %v7641, 120
  %v10273 = vpop.permute.xlu0 %10272
  %10274 = vrot.lane.b32.xlu0 %v7644, 120
  %v10275 = vpop.permute.xlu0 %10274
  %10276 = vrot.lane.b32.xlu0 %v7647, 120
  %v10277 = vpop.permute.xlu0 %10276
  %10278 = vrot.lane.b32.xlu0 %v7650, 120
  %v10279 = vpop.permute.xlu0 %10278
  %10280 = vrot.lane.b32.xlu0 %v7653, 120
  %v10281 = vpop.permute.xlu0 %10280
  %10282 = vrot.lane.b32.xlu0 %v7656, 120
  %v10283 = vpop.permute.xlu0 %10282
  %10284 = vrot.lane.b32.xlu0 %v8162, 120
  %v10285 = vpop.permute.xlu0 %10284
  %10286 = vrot.lane.b32.xlu0 %v7659, 120
  %v10287 = vpop.permute.xlu0 %10286
  %10288 = vrot.lane.b32.xlu0 %v7662, 120
  %v10289 = vpop.permute.xlu0 %10288
  %10290 = vrot.lane.b32.xlu0 %v7665, 120
  %v10291 = vpop.permute.xlu0 %10290
  %10292 = vrot.lane.b32.xlu0 %v7668, 120
  %v10293 = vpop.permute.xlu0 %10292
  %10294 = vrot.lane.b32.xlu0 %v7671, 120
  %v10295 = vpop.permute.xlu0 %10294
  %10296 = vrot.lane.b32.xlu0 %v7674, 120
  %v10297 = vpop.permute.xlu0 %10296
  %10298 = vrot.lane.b32.xlu0 %v7677, 120
  %v10299 = vpop.permute.xlu0 %10298
  %10300 = vrot.lane.b32.xlu0 %v8165, 120
  %v10301 = vpop.permute.xlu0 %10300
  %10366 = vrot.lane.b32.xlu0 %v7680, 2
  %v10367 = vpop.permute.xlu0 %10366
  %10368 = vrot.lane.b32.xlu0 %v7683, 2
  %v10369 = vpop.permute.xlu0 %10368
  %10370 = vrot.lane.b32.xlu0 %v7686, 2
  %v10371 = vpop.permute.xlu0 %10370
  %10372 = vrot.lane.b32.xlu0 %v7689, 2
  %v10373 = vpop.permute.xlu0 %10372
  %10374 = vrot.lane.b32.xlu0 %v7692, 2
  %v10375 = vpop.permute.xlu0 %10374
  %10376 = vrot.lane.b32.xlu0 %v7695, 2
  %v10377 = vpop.permute.xlu0 %10376
  %10378 = vrot.lane.b32.xlu0 %v7698, 2
  %v10379 = vpop.permute.xlu0 %10378
  %10380 = vrot.lane.b32.xlu0 %v8168, 2
  %v10381 = vpop.permute.xlu0 %10380
  %10382 = vrot.lane.b32.xlu0 %v7701, 2
  %v10383 = vpop.permute.xlu0 %10382
  %10384 = vrot.lane.b32.xlu0 %v7704, 2
  %v10385 = vpop.permute.xlu0 %10384
  %10386 = vrot.lane.b32.xlu0 %v7707, 2
  %v10387 = vpop.permute.xlu0 %10386
  %10388 = vrot.lane.b32.xlu0 %v7710, 2
  %v10389 = vpop.permute.xlu0 %10388
  %10390 = vrot.lane.b32.xlu0 %v7713, 2
  %v10391 = vpop.permute.xlu0 %10390
  %10392 = vrot.lane.b32.xlu0 %v7716, 2
  %v10393 = vpop.permute.xlu0 %10392
  %10394 = vrot.lane.b32.xlu0 %v7719, 2
  %v10395 = vpop.permute.xlu0 %10394
  %10396 = vrot.lane.b32.xlu0 %v8171, 2
  %v10397 = vpop.permute.xlu0 %10396
  %10398 = vrot.lane.b32.xlu0 %v7722, 2
  %v10399 = vpop.permute.xlu0 %10398
  %10400 = vrot.lane.b32.xlu0 %v7725, 2
  %v10401 = vpop.permute.xlu0 %10400
  %10402 = vrot.lane.b32.xlu0 %v7728, 2
  %v10403 = vpop.permute.xlu0 %10402
  %10404 = vrot.lane.b32.xlu0 %v7731, 2
  %v10405 = vpop.permute.xlu0 %10404
  %10406 = vrot.lane.b32.xlu0 %v7734, 2
  %v10407 = vpop.permute.xlu0 %10406
  %10408 = vrot.lane.b32.xlu0 %v7737, 2
  %v10409 = vpop.permute.xlu0 %10408
  %10410 = vrot.lane.b32.xlu0 %v7740, 2
  %v10411 = vpop.permute.xlu0 %10410
  %10412 = vrot.lane.b32.xlu0 %v8174, 2
  %v10413 = vpop.permute.xlu0 %10412
  %10414 = vrot.lane.b32.xlu0 %v7743, 2
  %v10415 = vpop.permute.xlu0 %10414
  %10416 = vrot.lane.b32.xlu0 %v7746, 2
  %v10417 = vpop.permute.xlu0 %10416
  %10418 = vrot.lane.b32.xlu0 %v7749, 2
  %v10419 = vpop.permute.xlu0 %10418
  %10420 = vrot.lane.b32.xlu0 %v7752, 2
  %v10421 = vpop.permute.xlu0 %10420
  %10422 = vrot.lane.b32.xlu0 %v7755, 2
  %v10423 = vpop.permute.xlu0 %10422
  %10424 = vrot.lane.b32.xlu0 %v7758, 2
  %v10425 = vpop.permute.xlu0 %10424
  %10426 = vrot.lane.b32.xlu0 %v7761, 2
  %v10427 = vpop.permute.xlu0 %10426
  %10428 = vrot.lane.b32.xlu0 %v8177, 2
  %v10429 = vpop.permute.xlu0 %10428
  %10430 = vrot.lane.b32.xlu0 %v7764, 2
  %v10431 = vpop.permute.xlu0 %10430
  %10432 = vrot.lane.b32.xlu0 %v7767, 2
  %v10433 = vpop.permute.xlu0 %10432
  %10434 = vrot.lane.b32.xlu0 %v7770, 2
  %v10435 = vpop.permute.xlu0 %10434
  %10436 = vrot.lane.b32.xlu0 %v7773, 2
  %v10437 = vpop.permute.xlu0 %10436
  %10438 = vrot.lane.b32.xlu0 %v7776, 2
  %v10439 = vpop.permute.xlu0 %10438
  %10440 = vrot.lane.b32.xlu0 %v7779, 2
  %v10441 = vpop.permute.xlu0 %10440
  %10442 = vrot.lane.b32.xlu0 %v7782, 2
  %v10443 = vpop.permute.xlu0 %10442
  %10444 = vrot.lane.b32.xlu0 %v8180, 2
  %v10445 = vpop.permute.xlu0 %10444
  %10446 = vrot.lane.b32.xlu0 %v7785, 2
  %v10447 = vpop.permute.xlu0 %10446
  %10448 = vrot.lane.b32.xlu0 %v7788, 2
  %v10449 = vpop.permute.xlu0 %10448
  %10450 = vrot.lane.b32.xlu0 %v7791, 2
  %v10451 = vpop.permute.xlu0 %10450
  %10452 = vrot.lane.b32.xlu0 %v7794, 2
  %v10453 = vpop.permute.xlu0 %10452
  %10454 = vrot.lane.b32.xlu0 %v7797, 2
  %v10455 = vpop.permute.xlu0 %10454
  %10456 = vrot.lane.b32.xlu0 %v7800, 2
  %v10457 = vpop.permute.xlu0 %10456
  %10458 = vrot.lane.b32.xlu0 %v7803, 2
  %v10459 = vpop.permute.xlu0 %10458
  %10460 = vrot.lane.b32.xlu0 %v8183, 2
  %v10461 = vpop.permute.xlu0 %10460
  %10462 = vrot.lane.b32.xlu0 %v7806, 2
  %v10463 = vpop.permute.xlu0 %10462
  %10464 = vrot.lane.b32.xlu0 %v7809, 2
  %v10465 = vpop.permute.xlu0 %10464
  %10466 = vrot.lane.b32.xlu0 %v7812, 2
  %v10467 = vpop.permute.xlu0 %10466
  %10468 = vrot.lane.b32.xlu0 %v7815, 2
  %v10469 = vpop.permute.xlu0 %10468
  %10470 = vrot.lane.b32.xlu0 %v7818, 2
  %v10471 = vpop.permute.xlu0 %10470
  %10472 = vrot.lane.b32.xlu0 %v7821, 2
  %v10473 = vpop.permute.xlu0 %10472
  %10474 = vrot.lane.b32.xlu0 %v7824, 2
  %v10475 = vpop.permute.xlu0 %10474
  %10476 = vrot.lane.b32.xlu0 %v8186, 2
  %v10477 = vpop.permute.xlu0 %10476
  %10478 = vrot.lane.b32.xlu0 %v7827, 2
  %v10479 = vpop.permute.xlu0 %10478
  %10480 = vrot.lane.b32.xlu0 %v7830, 2
  %v10481 = vpop.permute.xlu0 %10480
  %10482 = vrot.lane.b32.xlu0 %v7833, 2
  %v10483 = vpop.permute.xlu0 %10482
  %10484 = vrot.lane.b32.xlu0 %v7836, 2
  %v10485 = vpop.permute.xlu0 %10484
  %10486 = vrot.lane.b32.xlu0 %v7839, 2
  %v10487 = vpop.permute.xlu0 %10486
  %10488 = vrot.lane.b32.xlu0 %v7842, 2
  %v10489 = vpop.permute.xlu0 %10488
  %10490 = vrot.lane.b32.xlu0 %v7845, 2
  %v10491 = vpop.permute.xlu0 %10490
  %10492 = vrot.lane.b32.xlu0 %v8189, 2
  %v10493 = vpop.permute.xlu0 %10492
  %10558 = vrot.lane.b32.xlu0 %v6368, 12
  %v10559 = vpop.permute.xlu0 %10558
  %10560 = vrot.lane.b32.xlu0 %v6369, 12
  %v10561 = vpop.permute.xlu0 %10560
  %10562 = vrot.lane.b32.xlu0 %v6370, 12
  %v10563 = vpop.permute.xlu0 %10562
  %10564 = vrot.lane.b32.xlu0 %v6371, 12
  %v10565 = vpop.permute.xlu0 %10564
  %10566 = vrot.lane.b32.xlu0 %v6372, 12
  %v10567 = vpop.permute.xlu0 %10566
  %10568 = vrot.lane.b32.xlu0 %v6373, 12
  %v10569 = vpop.permute.xlu0 %10568
  %10570 = vrot.lane.b32.xlu0 %v6374, 12
  %v10571 = vpop.permute.xlu0 %10570
  %10572 = vrot.lane.b32.xlu0 %v6375, 12
  %v10573 = vpop.permute.xlu0 %10572
  %10574 = vrot.lane.b32.xlu0 %v6376, 12
  %v10575 = vpop.permute.xlu0 %10574
  %10576 = vrot.lane.b32.xlu0 %v6377, 12
  %v10577 = vpop.permute.xlu0 %10576
  %10578 = vrot.lane.b32.xlu0 %v6378, 12
  %v10579 = vpop.permute.xlu0 %10578
  %10580 = vrot.lane.b32.xlu0 %v6379, 12
  %v10581 = vpop.permute.xlu0 %10580
  %10582 = vrot.lane.b32.xlu0 %v6380, 12
  %v10583 = vpop.permute.xlu0 %10582
  %10584 = vrot.lane.b32.xlu0 %v6381, 12
  %v10585 = vpop.permute.xlu0 %10584
  %10586 = vrot.lane.b32.xlu0 %v6382, 12
  %v10587 = vpop.permute.xlu0 %10586
  %10588 = vrot.lane.b32.xlu0 %v6383, 12
  %v10589 = vpop.permute.xlu0 %10588
  %10590 = vrot.lane.b32.xlu0 %v6384, 12
  %v10591 = vpop.permute.xlu0 %10590
  %10592 = vrot.lane.b32.xlu0 %v6385, 12
  %v10593 = vpop.permute.xlu0 %10592
  %10594 = vrot.lane.b32.xlu0 %v6386, 12
  %v10595 = vpop.permute.xlu0 %10594
  %10596 = vrot.lane.b32.xlu0 %v6387, 12
  %v10597 = vpop.permute.xlu0 %10596
  %10598 = vrot.lane.b32.xlu0 %v6388, 12
  %v10599 = vpop.permute.xlu0 %10598
  %10600 = vrot.lane.b32.xlu0 %v6389, 12
  %v10601 = vpop.permute.xlu0 %10600
  %10602 = vrot.lane.b32.xlu0 %v6390, 12
  %v10603 = vpop.permute.xlu0 %10602
  %10604 = vrot.lane.b32.xlu0 %v6391, 12
  %v10605 = vpop.permute.xlu0 %10604
  %10606 = vrot.lane.b32.xlu0 %v6392, 12
  %v10607 = vpop.permute.xlu0 %10606
  %10608 = vrot.lane.b32.xlu0 %v6393, 12
  %v10609 = vpop.permute.xlu0 %10608
  %10610 = vrot.lane.b32.xlu0 %v6394, 12
  %v10611 = vpop.permute.xlu0 %10610
  %10612 = vrot.lane.b32.xlu0 %v6395, 12
  %v10613 = vpop.permute.xlu0 %10612
  %10614 = vrot.lane.b32.xlu0 %v6396, 12
  %v10615 = vpop.permute.xlu0 %10614
  %10616 = vrot.lane.b32.xlu0 %v6397, 12
  %v10617 = vpop.permute.xlu0 %10616
  %10618 = vrot.lane.b32.xlu0 %v6398, 12
  %v10619 = vpop.permute.xlu0 %10618
  %10620 = vrot.lane.b32.xlu0 %v6399, 12
  %v10621 = vpop.permute.xlu0 %10620
  %10622 = vrot.lane.b32.xlu0 %v6400, 12
  %v10623 = vpop.permute.xlu0 %10622
  %10624 = vrot.lane.b32.xlu0 %v6401, 12
  %v10625 = vpop.permute.xlu0 %10624
  %10626 = vrot.lane.b32.xlu0 %v6402, 12
  %v10627 = vpop.permute.xlu0 %10626
  %10628 = vrot.lane.b32.xlu0 %v6403, 12
  %v10629 = vpop.permute.xlu0 %10628
  %10630 = vrot.lane.b32.xlu0 %v6404, 12
  %v10631 = vpop.permute.xlu0 %10630
  %10632 = vrot.lane.b32.xlu0 %v6405, 12
  %v10633 = vpop.permute.xlu0 %10632
  %10634 = vrot.lane.b32.xlu0 %v6406, 12
  %v10635 = vpop.permute.xlu0 %10634
  %10636 = vrot.lane.b32.xlu0 %v6407, 12
  %v10637 = vpop.permute.xlu0 %10636
  %10638 = vrot.lane.b32.xlu0 %v6408, 12
  %v10639 = vpop.permute.xlu0 %10638
  %10640 = vrot.lane.b32.xlu0 %v6409, 12
  %v10641 = vpop.permute.xlu0 %10640
  %10642 = vrot.lane.b32.xlu0 %v6410, 12
  %v10643 = vpop.permute.xlu0 %10642
  %10644 = vrot.lane.b32.xlu0 %v6411, 12
  %v10645 = vpop.permute.xlu0 %10644
  %10646 = vrot.lane.b32.xlu0 %v6412, 12
  %v10647 = vpop.permute.xlu0 %10646
  %10648 = vrot.lane.b32.xlu0 %v6413, 12
  %v10649 = vpop.permute.xlu0 %10648
  %10650 = vrot.lane.b32.xlu0 %v6414, 12
  %v10651 = vpop.permute.xlu0 %10650
  %10652 = vrot.lane.b32.xlu0 %v6415, 12
  %v10653 = vpop.permute.xlu0 %10652
  %10654 = vrot.lane.b32.xlu0 %v6416, 12
  %v10655 = vpop.permute.xlu0 %10654
  %10656 = vrot.lane.b32.xlu0 %v6417, 12
  %v10657 = vpop.permute.xlu0 %10656
  %10658 = vrot.lane.b32.xlu0 %v6418, 12
  %v10659 = vpop.permute.xlu0 %10658
  %10660 = vrot.lane.b32.xlu0 %v6419, 12
  %v10661 = vpop.permute.xlu0 %10660
  %10662 = vrot.lane.b32.xlu0 %v6420, 12
  %v10663 = vpop.permute.xlu0 %10662
  %10664 = vrot.lane.b32.xlu0 %v6421, 12
  %v10665 = vpop.permute.xlu0 %10664
  %10666 = vrot.lane.b32.xlu0 %v6422, 12
  %v10667 = vpop.permute.xlu0 %10666
  %10668 = vrot.lane.b32.xlu0 %v6423, 12
  %v10669 = vpop.permute.xlu0 %10668
  %10670 = vrot.lane.b32.xlu0 %v6424, 12
  %v10671 = vpop.permute.xlu0 %10670
  %10672 = vrot.lane.b32.xlu0 %v6425, 12
  %v10673 = vpop.permute.xlu0 %10672
  %10674 = vrot.lane.b32.xlu0 %v6426, 12
  %v10675 = vpop.permute.xlu0 %10674
  %10676 = vrot.lane.b32.xlu0 %v6427, 12
  %v10677 = vpop.permute.xlu0 %10676
  %10678 = vrot.lane.b32.xlu0 %v6428, 12
  %v10679 = vpop.permute.xlu0 %10678
  %10680 = vrot.lane.b32.xlu0 %v6429, 12
  %v10681 = vpop.permute.xlu0 %10680
  %10682 = vrot.lane.b32.xlu0 %v6430, 12
  %v10683 = vpop.permute.xlu0 %10682
  %10684 = vrot.lane.b32.xlu0 %v6431, 12
  %v10685 = vpop.permute.xlu0 %10684
  %10750 = vrot.lane.b32.xlu0 %v7960, 22
  %v10751 = vpop.permute.xlu0 %10750
  %10752 = vrot.lane.b32.xlu0 %v7963, 22
  %v10753 = vpop.permute.xlu0 %10752
  %10754 = vrot.lane.b32.xlu0 %v7966, 22
  %v10755 = vpop.permute.xlu0 %10754
  %10756 = vrot.lane.b32.xlu0 %v7969, 22
  %v10757 = vpop.permute.xlu0 %10756
  %10758 = vrot.lane.b32.xlu0 %v7972, 22
  %v10759 = vpop.permute.xlu0 %10758
  %10760 = vrot.lane.b32.xlu0 %v7975, 22
  %v10761 = vpop.permute.xlu0 %10760
  %10762 = vrot.lane.b32.xlu0 %v7978, 22
  %v10763 = vpop.permute.xlu0 %10762
  %10764 = vrot.lane.b32.xlu0 %v8208, 22
  %v10765 = vpop.permute.xlu0 %10764
  %10766 = vrot.lane.b32.xlu0 %v7981, 22
  %v10767 = vpop.permute.xlu0 %10766
  %10768 = vrot.lane.b32.xlu0 %v7984, 22
  %v10769 = vpop.permute.xlu0 %10768
  %10770 = vrot.lane.b32.xlu0 %v7987, 22
  %v10771 = vpop.permute.xlu0 %10770
  %10772 = vrot.lane.b32.xlu0 %v7990, 22
  %v10773 = vpop.permute.xlu0 %10772
  %10774 = vrot.lane.b32.xlu0 %v7993, 22
  %v10775 = vpop.permute.xlu0 %10774
  %10776 = vrot.lane.b32.xlu0 %v7996, 22
  %v10777 = vpop.permute.xlu0 %10776
  %10778 = vrot.lane.b32.xlu0 %v7999, 22
  %v10779 = vpop.permute.xlu0 %10778
  %10780 = vrot.lane.b32.xlu0 %v8211, 22
  %v10781 = vpop.permute.xlu0 %10780
  %10782 = vrot.lane.b32.xlu0 %v8002, 22
  %v10783 = vpop.permute.xlu0 %10782
  %10784 = vrot.lane.b32.xlu0 %v8005, 22
  %v10785 = vpop.permute.xlu0 %10784
  %10786 = vrot.lane.b32.xlu0 %v8008, 22
  %v10787 = vpop.permute.xlu0 %10786
  %10788 = vrot.lane.b32.xlu0 %v8011, 22
  %v10789 = vpop.permute.xlu0 %10788
  %10790 = vrot.lane.b32.xlu0 %v8014, 22
  %v10791 = vpop.permute.xlu0 %10790
  %10792 = vrot.lane.b32.xlu0 %v8017, 22
  %v10793 = vpop.permute.xlu0 %10792
  %10794 = vrot.lane.b32.xlu0 %v8020, 22
  %v10795 = vpop.permute.xlu0 %10794
  %10796 = vrot.lane.b32.xlu0 %v8214, 22
  %v10797 = vpop.permute.xlu0 %10796
  %10798 = vrot.lane.b32.xlu0 %v8023, 22
  %v10799 = vpop.permute.xlu0 %10798
  %10800 = vrot.lane.b32.xlu0 %v8026, 22
  %v10801 = vpop.permute.xlu0 %10800
  %10802 = vrot.lane.b32.xlu0 %v8029, 22
  %v10803 = vpop.permute.xlu0 %10802
  %10804 = vrot.lane.b32.xlu0 %v8032, 22
  %v10805 = vpop.permute.xlu0 %10804
  %10806 = vrot.lane.b32.xlu0 %v8035, 22
  %v10807 = vpop.permute.xlu0 %10806
  %10808 = vrot.lane.b32.xlu0 %v8038, 22
  %v10809 = vpop.permute.xlu0 %10808
  %10810 = vrot.lane.b32.xlu0 %v8041, 22
  %v10811 = vpop.permute.xlu0 %10810
  %10812 = vrot.lane.b32.xlu0 %v8217, 22
  %v10813 = vpop.permute.xlu0 %10812
  %10814 = vrot.lane.b32.xlu0 %v8044, 22
  %v10815 = vpop.permute.xlu0 %10814
  %10816 = vrot.lane.b32.xlu0 %v8047, 22
  %v10817 = vpop.permute.xlu0 %10816
  %10818 = vrot.lane.b32.xlu0 %v8050, 22
  %v10819 = vpop.permute.xlu0 %10818
  %10820 = vrot.lane.b32.xlu0 %v8053, 22
  %v10821 = vpop.permute.xlu0 %10820
  %10822 = vrot.lane.b32.xlu0 %v8056, 22
  %v10823 = vpop.permute.xlu0 %10822
  %10824 = vrot.lane.b32.xlu0 %v8059, 22
  %v10825 = vpop.permute.xlu0 %10824
  %10826 = vrot.lane.b32.xlu0 %v8062, 22
  %v10827 = vpop.permute.xlu0 %10826
  %10828 = vrot.lane.b32.xlu0 %v8220, 22
  %v10829 = vpop.permute.xlu0 %10828
  %10830 = vrot.lane.b32.xlu0 %v8065, 22
  %v10831 = vpop.permute.xlu0 %10830
  %10832 = vrot.lane.b32.xlu0 %v8068, 22
  %v10833 = vpop.permute.xlu0 %10832
  %10834 = vrot.lane.b32.xlu0 %v8071, 22
  %v10835 = vpop.permute.xlu0 %10834
  %10836 = vrot.lane.b32.xlu0 %v8074, 22
  %v10837 = vpop.permute.xlu0 %10836
  %10838 = vrot.lane.b32.xlu0 %v8077, 22
  %v10839 = vpop.permute.xlu0 %10838
  %10840 = vrot.lane.b32.xlu0 %v8080, 22
  %v10841 = vpop.permute.xlu0 %10840
  %10842 = vrot.lane.b32.xlu0 %v8083, 22
  %v10843 = vpop.permute.xlu0 %10842
  %10844 = vrot.lane.b32.xlu0 %v8223, 22
  %v10845 = vpop.permute.xlu0 %10844
  %10846 = vrot.lane.b32.xlu0 %v8086, 22
  %v10847 = vpop.permute.xlu0 %10846
  %10848 = vrot.lane.b32.xlu0 %v8089, 22
  %v10849 = vpop.permute.xlu0 %10848
  %10850 = vrot.lane.b32.xlu0 %v8092, 22
  %v10851 = vpop.permute.xlu0 %10850
  %10852 = vrot.lane.b32.xlu0 %v8095, 22
  %v10853 = vpop.permute.xlu0 %10852
  %10854 = vrot.lane.b32.xlu0 %v8098, 22
  %v10855 = vpop.permute.xlu0 %10854
  %10856 = vrot.lane.b32.xlu0 %v8101, 22
  %v10857 = vpop.permute.xlu0 %10856
  %10858 = vrot.lane.b32.xlu0 %v8104, 22
  %v10859 = vpop.permute.xlu0 %10858
  %10860 = vrot.lane.b32.xlu0 %v8226, 22
  %v10861 = vpop.permute.xlu0 %10860
  %10862 = vrot.lane.b32.xlu0 %v8107, 22
  %v10863 = vpop.permute.xlu0 %10862
  %10864 = vrot.lane.b32.xlu0 %v8110, 22
  %v10865 = vpop.permute.xlu0 %10864
  %10866 = vrot.lane.b32.xlu0 %v8113, 22
  %v10867 = vpop.permute.xlu0 %10866
  %10868 = vrot.lane.b32.xlu0 %v8116, 22
  %v10869 = vpop.permute.xlu0 %10868
  %10870 = vrot.lane.b32.xlu0 %v8119, 22
  %v10871 = vpop.permute.xlu0 %10870
  %10872 = vrot.lane.b32.xlu0 %v8122, 22
  %v10873 = vpop.permute.xlu0 %10872
  %10874 = vrot.lane.b32.xlu0 %v8125, 22
  %v10875 = vpop.permute.xlu0 %10874
  %10876 = vrot.lane.b32.xlu0 %v8229, 22
  %v10877 = vpop.permute.xlu0 %10876
  %vm10942 = vcmask 80896
  %v10943 = vsel %vm10942, %v6626, %v8231
  %v10944 = vsel %vm10942, %v6629, %v8233
  %v10945 = vsel %vm10942, %v6632, %v8235
  %v10946 = vsel %vm10942, %v6635, %v8237
  %v10947 = vsel %vm10942, %v6638, %v8239
  %v10948 = vsel %vm10942, %v6641, %v8241
  %v10949 = vsel %vm10942, %v6644, %v8243
  %v10950 = vsel %vm10942, %v6647, %v8245
  %v10951 = vsel %vm10942, %v6650, %v8247
  %v10952 = vsel %vm10942, %v6653, %v8249
  %v10953 = vsel %vm10942, %v6656, %v8251
  %v10954 = vsel %vm10942, %v6659, %v8253
  %v10955 = vsel %vm10942, %v6662, %v8255
  %v10956 = vsel %vm10942, %v6665, %v8257
  %v10957 = vsel %vm10942, %v6668, %v8259
  %v10958 = vsel %vm10942, %v6671, %v8261
  %v10959 = vsel %vm10942, %v6674, %v8263
  %v10960 = vsel %vm10942, %v6677, %v8265
  %v10961 = vsel %vm10942, %v6680, %v8267
  %v10962 = vsel %vm10942, %v6683, %v8269
  %v10963 = vsel %vm10942, %v6686, %v8271
  %v10964 = vsel %vm10942, %v6689, %v8273
  %v10965 = vsel %vm10942, %v6692, %v8275
  %v10966 = vsel %vm10942, %v6695, %v8277
  %v10967 = vsel %vm10942, %v6698, %v8279
  %v10968 = vsel %vm10942, %v6701, %v8281
  %v10969 = vsel %vm10942, %v6704, %v8283
  %v10970 = vsel %vm10942, %v6707, %v8285
  %v10971 = vsel %vm10942, %v6710, %v8287
  %v10972 = vsel %vm10942, %v6713, %v8289
  %v10973 = vsel %vm10942, %v6716, %v8291
  %v10974 = vsel %vm10942, %v6719, %v8293
  %v10975 = vsel %vm10942, %v6722, %v8295
  %v10976 = vsel %vm10942, %v6725, %v8297
  %v10977 = vsel %vm10942, %v6728, %v8299
  %v10978 = vsel %vm10942, %v6731, %v8301
  %v10979 = vsel %vm10942, %v6734, %v8303
  %v10980 = vsel %vm10942, %v6737, %v8305
  %v10981 = vsel %vm10942, %v6740, %v8307
  %v10982 = vsel %vm10942, %v6743, %v8309
  %v10983 = vsel %vm10942, %v6746, %v8311
  %v10984 = vsel %vm10942, %v6749, %v8313
  %v10985 = vsel %vm10942, %v6752, %v8315
  %v10986 = vsel %vm10942, %v6755, %v8317
  %v10987 = vsel %vm10942, %v6758, %v8319
  %v10988 = vsel %vm10942, %v6761, %v8321
  %v10989 = vsel %vm10942, %v6764, %v8323
  %v10990 = vsel %vm10942, %v6767, %v8325
  %v10991 = vsel %vm10942, %v6770, %v8327
  %v10992 = vsel %vm10942, %v6773, %v8329
  %v10993 = vsel %vm10942, %v6776, %v8331
  %v10994 = vsel %vm10942, %v6779, %v8333
  %v10995 = vsel %vm10942, %v6782, %v8335
  %v10996 = vsel %vm10942, %v6785, %v8337
  %v10997 = vsel %vm10942, %v6788, %v8339
  %v10998 = vsel %vm10942, %v6791, %v8341
  %v10999 = vsel %vm10942, %v6794, %v8343
  %v11000 = vsel %vm10942, %v6797, %v8345
  %v11001 = vsel %vm10942, %v6800, %v8347
  %v11002 = vsel %vm10942, %v6803, %v8349
  %v11003 = vsel %vm10942, %v6806, %v8351
  %v11004 = vsel %vm10942, %v6809, %v8353
  %v11005 = vsel %vm10942, %v6812, %v8355
  %v11006 = vsel %vm10942, %v6815, %v8357
  %vm11007 = vcmask 162816
  %v11008 = vsel %vm11007, %v10943, %v8423
  %v11009 = vsel %vm11007, %v10944, %v8425
  %v11010 = vsel %vm11007, %v10945, %v8427
  %v11011 = vsel %vm11007, %v10946, %v8429
  %v11012 = vsel %vm11007, %v10947, %v8431
  %v11013 = vsel %vm11007, %v10948, %v8433
  %v11014 = vsel %vm11007, %v10949, %v8435
  %v11015 = vsel %vm11007, %v10950, %v8437
  %v11016 = vsel %vm11007, %v10951, %v8439
  %v11017 = vsel %vm11007, %v10952, %v8441
  %v11018 = vsel %vm11007, %v10953, %v8443
  %v11019 = vsel %vm11007, %v10954, %v8445
  %v11020 = vsel %vm11007, %v10955, %v8447
  %v11021 = vsel %vm11007, %v10956, %v8449
  %v11022 = vsel %vm11007, %v10957, %v8451
  %v11023 = vsel %vm11007, %v10958, %v8453
  %v11024 = vsel %vm11007, %v10959, %v8455
  %v11025 = vsel %vm11007, %v10960, %v8457
  %v11026 = vsel %vm11007, %v10961, %v8459
  %v11027 = vsel %vm11007, %v10962, %v8461
  %v11028 = vsel %vm11007, %v10963, %v8463
  %v11029 = vsel %vm11007, %v10964, %v8465
  %v11030 = vsel %vm11007, %v10965, %v8467
  %v11031 = vsel %vm11007, %v10966, %v8469
  %v11032 = vsel %vm11007, %v10967, %v8471
  %v11033 = vsel %vm11007, %v10968, %v8473
  %v11034 = vsel %vm11007, %v10969, %v8475
  %v11035 = vsel %vm11007, %v10970, %v8477
  %v11036 = vsel %vm11007, %v10971, %v8479
  %v11037 = vsel %vm11007, %v10972, %v8481
  %v11038 = vsel %vm11007, %v10973, %v8483
  %v11039 = vsel %vm11007, %v10974, %v8485
  %v11040 = vsel %vm11007, %v10975, %v8487
  %v11041 = vsel %vm11007, %v10976, %v8489
  %v11042 = vsel %vm11007, %v10977, %v8491
  %v11043 = vsel %vm11007, %v10978, %v8493
  %v11044 = vsel %vm11007, %v10979, %v8495
  %v11045 = vsel %vm11007, %v10980, %v8497
  %v11046 = vsel %vm11007, %v10981, %v8499
  %v11047 = vsel %vm11007, %v10982, %v8501
  %v11048 = vsel %vm11007, %v10983, %v8503
  %v11049 = vsel %vm11007, %v10984, %v8505
  %v11050 = vsel %vm11007, %v10985, %v8507
  %v11051 = vsel %vm11007, %v10986, %v8509
  %v11052 = vsel %vm11007, %v10987, %v8511
  %v11053 = vsel %vm11007, %v10988, %v8513
  %v11054 = vsel %vm11007, %v10989, %v8515
  %v11055 = vsel %vm11007, %v10990, %v8517
  %v11056 = vsel %vm11007, %v10991, %v8519
  %v11057 = vsel %vm11007, %v10992, %v8521
  %v11058 = vsel %vm11007, %v10993, %v8523
  %v11059 = vsel %vm11007, %v10994, %v8525
  %v11060 = vsel %vm11007, %v10995, %v8527
  %v11061 = vsel %vm11007, %v10996, %v8529
  %v11062 = vsel %vm11007, %v10997, %v8531
  %v11063 = vsel %vm11007, %v10998, %v8533
  %v11064 = vsel %vm11007, %v10999, %v8535
  %v11065 = vsel %vm11007, %v11000, %v8537
  %v11066 = vsel %vm11007, %v11001, %v8539
  %v11067 = vsel %vm11007, %v11002, %v8541
  %v11068 = vsel %vm11007, %v11003, %v8543
  %v11069 = vsel %vm11007, %v11004, %v8545
  %v11070 = vsel %vm11007, %v11005, %v8547
  %v11071 = vsel %vm11007, %v11006, %v8549
  %vm11072 = vcmask 244736
  %v11073 = vsel %vm11072, %v11008, %v8615
  %v11074 = vsel %vm11072, %v11009, %v8617
  %v11075 = vsel %vm11072, %v11010, %v8619
  %v11076 = vsel %vm11072, %v11011, %v8621
  %v11077 = vsel %vm11072, %v11012, %v8623
  %v11078 = vsel %vm11072, %v11013, %v8625
  %v11079 = vsel %vm11072, %v11014, %v8627
  %v11080 = vsel %vm11072, %v11015, %v8629
  %v11081 = vsel %vm11072, %v11016, %v8631
  %v11082 = vsel %vm11072, %v11017, %v8633
  %v11083 = vsel %vm11072, %v11018, %v8635
  %v11084 = vsel %vm11072, %v11019, %v8637
  %v11085 = vsel %vm11072, %v11020, %v8639
  %v11086 = vsel %vm11072, %v11021, %v8641
  %v11087 = vsel %vm11072, %v11022, %v8643
  %v11088 = vsel %vm11072, %v11023, %v8645
  %v11089 = vsel %vm11072, %v11024, %v8647
  %v11090 = vsel %vm11072, %v11025, %v8649
  %v11091 = vsel %vm11072, %v11026, %v8651
  %v11092 = vsel %vm11072, %v11027, %v8653
  %v11093 = vsel %vm11072, %v11028, %v8655
  %v11094 = vsel %vm11072, %v11029, %v8657
  %v11095 = vsel %vm11072, %v11030, %v8659
  %v11096 = vsel %vm11072, %v11031, %v8661
  %v11097 = vsel %vm11072, %v11032, %v8663
  %v11098 = vsel %vm11072, %v11033, %v8665
  %v11099 = vsel %vm11072, %v11034, %v8667
  %v11100 = vsel %vm11072, %v11035, %v8669
  %v11101 = vsel %vm11072, %v11036, %v8671
  %v11102 = vsel %vm11072, %v11037, %v8673
  %v11103 = vsel %vm11072, %v11038, %v8675
  %v11104 = vsel %vm11072, %v11039, %v8677
  %v11105 = vsel %vm11072, %v11040, %v8679
  %v11106 = vsel %vm11072, %v11041, %v8681
  %v11107 = vsel %vm11072, %v11042, %v8683
  %v11108 = vsel %vm11072, %v11043, %v8685
  %v11109 = vsel %vm11072, %v11044, %v8687
  %v11110 = vsel %vm11072, %v11045, %v8689
  %v11111 = vsel %vm11072, %v11046, %v8691
  %v11112 = vsel %vm11072, %v11047, %v8693
  %v11113 = vsel %vm11072, %v11048, %v8695
  %v11114 = vsel %vm11072, %v11049, %v8697
  %v11115 = vsel %vm11072, %v11050, %v8699
  %v11116 = vsel %vm11072, %v11051, %v8701
  %v11117 = vsel %vm11072, %v11052, %v8703
  %v11118 = vsel %vm11072, %v11053, %v8705
  %v11119 = vsel %vm11072, %v11054, %v8707
  %v11120 = vsel %vm11072, %v11055, %v8709
  %v11121 = vsel %vm11072, %v11056, %v8711
  %v11122 = vsel %vm11072, %v11057, %v8713
  %v11123 = vsel %vm11072, %v11058, %v8715
  %v11124 = vsel %vm11072, %v11059, %v8717
  %v11125 = vsel %vm11072, %v11060, %v8719
  %v11126 = vsel %vm11072, %v11061, %v8721
  %v11127 = vsel %vm11072, %v11062, %v8723
  %v11128 = vsel %vm11072, %v11063, %v8725
  %v11129 = vsel %vm11072, %v11064, %v8727
  %v11130 = vsel %vm11072, %v11065, %v8729
  %v11131 = vsel %vm11072, %v11066, %v8731
  %v11132 = vsel %vm11072, %v11067, %v8733
  %v11133 = vsel %vm11072, %v11068, %v8735
  %v11134 = vsel %vm11072, %v11069, %v8737
  %v11135 = vsel %vm11072, %v11070, %v8739
  %v11136 = vsel %vm11072, %v11071, %v8741
  %vm11137 = vcmask 326656
  %v11138 = vsel %vm11137, %v11073, %v8807
  %v11139 = vsel %vm11137, %v11074, %v8809
  %v11140 = vsel %vm11137, %v11075, %v8811
  %v11141 = vsel %vm11137, %v11076, %v8813
  %v11142 = vsel %vm11137, %v11077, %v8815
  %v11143 = vsel %vm11137, %v11078, %v8817
  %v11144 = vsel %vm11137, %v11079, %v8819
  %v11145 = vsel %vm11137, %v11080, %v8821
  %v11146 = vsel %vm11137, %v11081, %v8823
  %v11147 = vsel %vm11137, %v11082, %v8825
  %v11148 = vsel %vm11137, %v11083, %v8827
  %v11149 = vsel %vm11137, %v11084, %v8829
  %v11150 = vsel %vm11137, %v11085, %v8831
  %v11151 = vsel %vm11137, %v11086, %v8833
  %v11152 = vsel %vm11137, %v11087, %v8835
  %v11153 = vsel %vm11137, %v11088, %v8821
  %v11154 = vsel %vm11137, %v11089, %v8837
  %v11155 = vsel %vm11137, %v11090, %v8839
  %v11156 = vsel %vm11137, %v11091, %v8841
  %v11157 = vsel %vm11137, %v11092, %v8843
  %v11158 = vsel %vm11137, %v11093, %v8845
  %v11159 = vsel %vm11137, %v11094, %v8847
  %v11160 = vsel %vm11137, %v11095, %v8849
  %v11161 = vsel %vm11137, %v11096, %v8821
  %v11162 = vsel %vm11137, %v11097, %v8851
  %v11163 = vsel %vm11137, %v11098, %v8853
  %v11164 = vsel %vm11137, %v11099, %v8855
  %v11165 = vsel %vm11137, %v11100, %v8857
  %v11166 = vsel %vm11137, %v11101, %v8859
  %v11167 = vsel %vm11137, %v11102, %v8861
  %v11168 = vsel %vm11137, %v11103, %v8863
  %v11169 = vsel %vm11137, %v11104, %v8821
  %v11170 = vsel %vm11137, %v11105, %v8865
  %v11171 = vsel %vm11137, %v11106, %v8867
  %v11172 = vsel %vm11137, %v11107, %v8869
  %v11173 = vsel %vm11137, %v11108, %v8871
  %v11174 = vsel %vm11137, %v11109, %v8873
  %v11175 = vsel %vm11137, %v11110, %v8875
  %v11176 = vsel %vm11137, %v11111, %v8877
  %v11177 = vsel %vm11137, %v11112, %v8821
  %v11178 = vsel %vm11137, %v11113, %v8879
  %v11179 = vsel %vm11137, %v11114, %v8881
  %v11180 = vsel %vm11137, %v11115, %v8883
  %v11181 = vsel %vm11137, %v11116, %v8885
  %v11182 = vsel %vm11137, %v11117, %v8887
  %v11183 = vsel %vm11137, %v11118, %v8889
  %v11184 = vsel %vm11137, %v11119, %v8891
  %v11185 = vsel %vm11137, %v11120, %v8821
  %v11186 = vsel %vm11137, %v11121, %v8893
  %v11187 = vsel %vm11137, %v11122, %v8895
  %v11188 = vsel %vm11137, %v11123, %v8897
  %v11189 = vsel %vm11137, %v11124, %v8899
  %v11190 = vsel %vm11137, %v11125, %v8901
  %v11191 = vsel %vm11137, %v11126, %v8903
  %v11192 = vsel %vm11137, %v11127, %v8905
  %v11193 = vsel %vm11137, %v11128, %v8821
  %v11194 = vsel %vm11137, %v11129, %v8907
  %v11195 = vsel %vm11137, %v11130, %v8909
  %v11196 = vsel %vm11137, %v11131, %v8911
  %v11197 = vsel %vm11137, %v11132, %v8913
  %v11198 = vsel %vm11137, %v11133, %v8915
  %v11199 = vsel %vm11137, %v11134, %v8917
  %v11200 = vsel %vm11137, %v11135, %v8919
  %v11201 = vsel %vm11137, %v11136, %v8821
  %vm11202 = vcmask 408576
  %v11203 = vsel %vm11202, %v11138, %v8978
  %v11204 = vsel %vm11202, %v11139, %v8980
  %v11205 = vsel %vm11202, %v11140, %v8982
  %v11206 = vsel %vm11202, %v11141, %v8984
  %v11207 = vsel %vm11202, %v11142, %v8986
  %v11208 = vsel %vm11202, %v11143, %v8988
  %v11209 = vsel %vm11202, %v11144, %v8990
  %v11210 = vsel %vm11202, %v11145, %v8992
  %v11211 = vsel %vm11202, %v11146, %v8994
  %v11212 = vsel %vm11202, %v11147, %v8996
  %v11213 = vsel %vm11202, %v11148, %v8998
  %v11214 = vsel %vm11202, %v11149, %v9000
  %v11215 = vsel %vm11202, %v11150, %v9002
  %v11216 = vsel %vm11202, %v11151, %v9004
  %v11217 = vsel %vm11202, %v11152, %v9006
  %v11218 = vsel %vm11202, %v11153, %v8992
  %v11219 = vsel %vm11202, %v11154, %v9008
  %v11220 = vsel %vm11202, %v11155, %v9010
  %v11221 = vsel %vm11202, %v11156, %v9012
  %v11222 = vsel %vm11202, %v11157, %v9014
  %v11223 = vsel %vm11202, %v11158, %v9016
  %v11224 = vsel %vm11202, %v11159, %v9018
  %v11225 = vsel %vm11202, %v11160, %v9020
  %v11226 = vsel %vm11202, %v11161, %v8992
  %v11227 = vsel %vm11202, %v11162, %v9022
  %v11228 = vsel %vm11202, %v11163, %v9024
  %v11229 = vsel %vm11202, %v11164, %v9026
  %v11230 = vsel %vm11202, %v11165, %v9028
  %v11231 = vsel %vm11202, %v11166, %v9030
  %v11232 = vsel %vm11202, %v11167, %v9032
  %v11233 = vsel %vm11202, %v11168, %v9034
  %v11234 = vsel %vm11202, %v11169, %v8992
  %v11235 = vsel %vm11202, %v11170, %v9036
  %v11236 = vsel %vm11202, %v11171, %v9038
  %v11237 = vsel %vm11202, %v11172, %v9040
  %v11238 = vsel %vm11202, %v11173, %v9042
  %v11239 = vsel %vm11202, %v11174, %v9044
  %v11240 = vsel %vm11202, %v11175, %v9046
  %v11241 = vsel %vm11202, %v11176, %v9048
  %v11242 = vsel %vm11202, %v11177, %v8992
  %v11243 = vsel %vm11202, %v11178, %v9050
  %v11244 = vsel %vm11202, %v11179, %v9052
  %v11245 = vsel %vm11202, %v11180, %v9054
  %v11246 = vsel %vm11202, %v11181, %v9056
  %v11247 = vsel %vm11202, %v11182, %v9058
  %v11248 = vsel %vm11202, %v11183, %v9060
  %v11249 = vsel %vm11202, %v11184, %v9062
  %v11250 = vsel %vm11202, %v11185, %v8992
  %v11251 = vsel %vm11202, %v11186, %v9064
  %v11252 = vsel %vm11202, %v11187, %v9066
  %v11253 = vsel %vm11202, %v11188, %v9068
  %v11254 = vsel %vm11202, %v11189, %v9070
  %v11255 = vsel %vm11202, %v11190, %v9072
  %v11256 = vsel %vm11202, %v11191, %v9074
  %v11257 = vsel %vm11202, %v11192, %v9076
  %v11258 = vsel %vm11202, %v11193, %v8992
  %v11259 = vsel %vm11202, %v11194, %v9078
  %v11260 = vsel %vm11202, %v11195, %v9080
  %v11261 = vsel %vm11202, %v11196, %v9082
  %v11262 = vsel %vm11202, %v11197, %v9084
  %v11263 = vsel %vm11202, %v11198, %v9086
  %v11264 = vsel %vm11202, %v11199, %v9088
  %v11265 = vsel %vm11202, %v11200, %v9090
  %v11266 = vsel %vm11202, %v11201, %v8992
  %vm11267 = vcmask 490496
  %v11268 = vsel %vm11267, %v11203, %v9149
  %v11269 = vsel %vm11267, %v11204, %v9151
  %v11270 = vsel %vm11267, %v11205, %v9153
  %v11271 = vsel %vm11267, %v11206, %v9155
  %v11272 = vsel %vm11267, %v11207, %v9157
  %v11273 = vsel %vm11267, %v11208, %v9159
  %v11274 = vsel %vm11267, %v11209, %v9161
  %v11275 = vsel %vm11267, %v11210, %v9163
  %v11276 = vsel %vm11267, %v11211, %v9165
  %v11277 = vsel %vm11267, %v11212, %v9167
  %v11278 = vsel %vm11267, %v11213, %v9169
  %v11279 = vsel %vm11267, %v11214, %v9171
  %v11280 = vsel %vm11267, %v11215, %v9173
  %v11281 = vsel %vm11267, %v11216, %v9175
  %v11282 = vsel %vm11267, %v11217, %v9177
  %v11283 = vsel %vm11267, %v11218, %v9163
  %v11284 = vsel %vm11267, %v11219, %v9179
  %v11285 = vsel %vm11267, %v11220, %v9181
  %v11286 = vsel %vm11267, %v11221, %v9183
  %v11287 = vsel %vm11267, %v11222, %v9185
  %v11288 = vsel %vm11267, %v11223, %v9187
  %v11289 = vsel %vm11267, %v11224, %v9189
  %v11290 = vsel %vm11267, %v11225, %v9191
  %v11291 = vsel %vm11267, %v11226, %v9163
  %v11292 = vsel %vm11267, %v11227, %v9193
  %v11293 = vsel %vm11267, %v11228, %v9195
  %v11294 = vsel %vm11267, %v11229, %v9197
  %v11295 = vsel %vm11267, %v11230, %v9199
  %v11296 = vsel %vm11267, %v11231, %v9201
  %v11297 = vsel %vm11267, %v11232, %v9203
  %v11298 = vsel %vm11267, %v11233, %v9205
  %v11299 = vsel %vm11267, %v11234, %v9163
  %v11300 = vsel %vm11267, %v11235, %v9207
  %v11301 = vsel %vm11267, %v11236, %v9209
  %v11302 = vsel %vm11267, %v11237, %v9211
  %v11303 = vsel %vm11267, %v11238, %v9213
  %v11304 = vsel %vm11267, %v11239, %v9215
  %v11305 = vsel %vm11267, %v11240, %v9217
  %v11306 = vsel %vm11267, %v11241, %v9219
  %v11307 = vsel %vm11267, %v11242, %v9163
  %v11308 = vsel %vm11267, %v11243, %v9221
  %v11309 = vsel %vm11267, %v11244, %v9223
  %v11310 = vsel %vm11267, %v11245, %v9225
  %v11311 = vsel %vm11267, %v11246, %v9227
  %v11312 = vsel %vm11267, %v11247, %v9229
  %v11313 = vsel %vm11267, %v11248, %v9231
  %v11314 = vsel %vm11267, %v11249, %v9233
  %v11315 = vsel %vm11267, %v11250, %v9163
  %v11316 = vsel %vm11267, %v11251, %v9235
  %v11317 = vsel %vm11267, %v11252, %v9237
  %v11318 = vsel %vm11267, %v11253, %v9239
  %v11319 = vsel %vm11267, %v11254, %v9241
  %v11320 = vsel %vm11267, %v11255, %v9243
  %v11321 = vsel %vm11267, %v11256, %v9245
  %v11322 = vsel %vm11267, %v11257, %v9247
  %v11323 = vsel %vm11267, %v11258, %v9163
  %v11324 = vsel %vm11267, %v11259, %v9249
  %v11325 = vsel %vm11267, %v11260, %v9251
  %v11326 = vsel %vm11267, %v11261, %v9253
  %v11327 = vsel %vm11267, %v11262, %v9255
  %v11328 = vsel %vm11267, %v11263, %v9257
  %v11329 = vsel %vm11267, %v11264, %v9259
  %v11330 = vsel %vm11267, %v11265, %v9261
  %v11331 = vsel %vm11267, %v11266, %v9163
  %vm11332 = vcmask 572416
  %v11333 = vsel %vm11332, %v11268, %v9320
  %v11334 = vsel %vm11332, %v11269, %v9322
  %v11335 = vsel %vm11332, %v11270, %v9324
  %v11336 = vsel %vm11332, %v11271, %v9326
  %v11337 = vsel %vm11332, %v11272, %v9328
  %v11338 = vsel %vm11332, %v11273, %v9330
  %v11339 = vsel %vm11332, %v11274, %v9332
  %v11340 = vsel %vm11332, %v11275, %v9334
  %v11341 = vsel %vm11332, %v11276, %v9336
  %v11342 = vsel %vm11332, %v11277, %v9338
  %v11343 = vsel %vm11332, %v11278, %v9340
  %v11344 = vsel %vm11332, %v11279, %v9342
  %v11345 = vsel %vm11332, %v11280, %v9344
  %v11346 = vsel %vm11332, %v11281, %v9346
  %v11347 = vsel %vm11332, %v11282, %v9348
  %v11348 = vsel %vm11332, %v11283, %v9334
  %v11349 = vsel %vm11332, %v11284, %v9350
  %v11350 = vsel %vm11332, %v11285, %v9352
  %v11351 = vsel %vm11332, %v11286, %v9354
  %v11352 = vsel %vm11332, %v11287, %v9356
  %v11353 = vsel %vm11332, %v11288, %v9358
  %v11354 = vsel %vm11332, %v11289, %v9360
  %v11355 = vsel %vm11332, %v11290, %v9362
  %v11356 = vsel %vm11332, %v11291, %v9334
  %v11357 = vsel %vm11332, %v11292, %v9364
  %v11358 = vsel %vm11332, %v11293, %v9366
  %v11359 = vsel %vm11332, %v11294, %v9368
  %v11360 = vsel %vm11332, %v11295, %v9370
  %v11361 = vsel %vm11332, %v11296, %v9372
  %v11362 = vsel %vm11332, %v11297, %v9374
  %v11363 = vsel %vm11332, %v11298, %v9376
  %v11364 = vsel %vm11332, %v11299, %v9334
  %v11365 = vsel %vm11332, %v11300, %v9378
  %v11366 = vsel %vm11332, %v11301, %v9380
  %v11367 = vsel %vm11332, %v11302, %v9382
  %v11368 = vsel %vm11332, %v11303, %v9384
  %v11369 = vsel %vm11332, %v11304, %v9386
  %v11370 = vsel %vm11332, %v11305, %v9388
  %v11371 = vsel %vm11332, %v11306, %v9390
  %v11372 = vsel %vm11332, %v11307, %v9334
  %v11373 = vsel %vm11332, %v11308, %v9392
  %v11374 = vsel %vm11332, %v11309, %v9394
  %v11375 = vsel %vm11332, %v11310, %v9396
  %v11376 = vsel %vm11332, %v11311, %v9398
  %v11377 = vsel %vm11332, %v11312, %v9400
  %v11378 = vsel %vm11332, %v11313, %v9402
  %v11379 = vsel %vm11332, %v11314, %v9404
  %v11380 = vsel %vm11332, %v11315, %v9334
  %v11381 = vsel %vm11332, %v11316, %v9406
  %v11382 = vsel %vm11332, %v11317, %v9408
  %v11383 = vsel %vm11332, %v11318, %v9410
  %v11384 = vsel %vm11332, %v11319, %v9412
  %v11385 = vsel %vm11332, %v11320, %v9414
  %v11386 = vsel %vm11332, %v11321, %v9416
  %v11387 = vsel %vm11332, %v11322, %v9418
  %v11388 = vsel %vm11332, %v11323, %v9334
  %v11389 = vsel %vm11332, %v11324, %v9420
  %v11390 = vsel %vm11332, %v11325, %v9422
  %v11391 = vsel %vm11332, %v11326, %v9424
  %v11392 = vsel %vm11332, %v11327, %v9426
  %v11393 = vsel %vm11332, %v11328, %v9428
  %v11394 = vsel %vm11332, %v11329, %v9430
  %v11395 = vsel %vm11332, %v11330, %v9432
  %v11396 = vsel %vm11332, %v11331, %v9334
  %vm11397 = vcmask 654336
  %v11398 = vsel %vm11397, %v11333, %v9491
  %v11399 = vsel %vm11397, %v11334, %v9493
  %v11400 = vsel %vm11397, %v11335, %v9495
  %v11401 = vsel %vm11397, %v11336, %v9497
  %v11402 = vsel %vm11397, %v11337, %v9499
  %v11403 = vsel %vm11397, %v11338, %v9501
  %v11404 = vsel %vm11397, %v11339, %v9503
  %v11405 = vsel %vm11397, %v11340, %v9505
  %v11406 = vsel %vm11397, %v11341, %v9491
  %v11407 = vsel %vm11397, %v11342, %v9507
  %v11408 = vsel %vm11397, %v11343, %v9509
  %v11409 = vsel %vm11397, %v11344, %v9511
  %v11410 = vsel %vm11397, %v11345, %v9513
  %v11411 = vsel %vm11397, %v11346, %v9515
  %v11412 = vsel %vm11397, %v11347, %v9517
  %v11413 = vsel %vm11397, %v11348, %v9519
  %v11414 = vsel %vm11397, %v11349, %v9491
  %v11415 = vsel %vm11397, %v11350, %v9521
  %v11416 = vsel %vm11397, %v11351, %v9523
  %v11417 = vsel %vm11397, %v11352, %v9525
  %v11418 = vsel %vm11397, %v11353, %v9527
  %v11419 = vsel %vm11397, %v11354, %v9529
  %v11420 = vsel %vm11397, %v11355, %v9531
  %v11421 = vsel %vm11397, %v11356, %v9533
  %v11422 = vsel %vm11397, %v11357, %v9491
  %v11423 = vsel %vm11397, %v11358, %v9535
  %v11424 = vsel %vm11397, %v11359, %v9537
  %v11425 = vsel %vm11397, %v11360, %v9539
  %v11426 = vsel %vm11397, %v11361, %v9541
  %v11427 = vsel %vm11397, %v11362, %v9543
  %v11428 = vsel %vm11397, %v11363, %v9545
  %v11429 = vsel %vm11397, %v11364, %v9547
  %v11430 = vsel %vm11397, %v11365, %v9491
  %v11431 = vsel %vm11397, %v11366, %v9549
  %v11432 = vsel %vm11397, %v11367, %v9551
  %v11433 = vsel %vm11397, %v11368, %v9553
  %v11434 = vsel %vm11397, %v11369, %v9555
  %v11435 = vsel %vm11397, %v11370, %v9557
  %v11436 = vsel %vm11397, %v11371, %v9559
  %v11437 = vsel %vm11397, %v11372, %v9561
  %v11438 = vsel %vm11397, %v11373, %v9491
  %v11439 = vsel %vm11397, %v11374, %v9563
  %v11440 = vsel %vm11397, %v11375, %v9565
  %v11441 = vsel %vm11397, %v11376, %v9567
  %v11442 = vsel %vm11397, %v11377, %v9569
  %v11443 = vsel %vm11397, %v11378, %v9571
  %v11444 = vsel %vm11397, %v11379, %v9573
  %v11445 = vsel %vm11397, %v11380, %v9575
  %v11446 = vsel %vm11397, %v11381, %v9491
  %v11447 = vsel %vm11397, %v11382, %v9577
  %v11448 = vsel %vm11397, %v11383, %v9579
  %v11449 = vsel %vm11397, %v11384, %v9581
  %v11450 = vsel %vm11397, %v11385, %v9583
  %v11451 = vsel %vm11397, %v11386, %v9585
  %v11452 = vsel %vm11397, %v11387, %v9587
  %v11453 = vsel %vm11397, %v11388, %v9589
  %v11454 = vsel %vm11397, %v11389, %v9491
  %v11455 = vsel %vm11397, %v11390, %v9591
  %v11456 = vsel %vm11397, %v11391, %v9593
  %v11457 = vsel %vm11397, %v11392, %v9595
  %v11458 = vsel %vm11397, %v11393, %v9597
  %v11459 = vsel %vm11397, %v11394, %v9599
  %v11460 = vsel %vm11397, %v11395, %v9601
  %v11461 = vsel %vm11397, %v11396, %v9603
  %vm11462 = vcmask 736256
  %v11463 = vsel %vm11462, %v11398, %v9662
  %v11464 = vsel %vm11462, %v11399, %v9664
  %v11465 = vsel %vm11462, %v11400, %v9666
  %v11466 = vsel %vm11462, %v11401, %v9668
  %v11467 = vsel %vm11462, %v11402, %v9670
  %v11468 = vsel %vm11462, %v11403, %v9672
  %v11469 = vsel %vm11462, %v11404, %v9674
  %v11470 = vsel %vm11462, %v11405, %v9676
  %v11471 = vsel %vm11462, %v11406, %v9662
  %v11472 = vsel %vm11462, %v11407, %v9678
  %v11473 = vsel %vm11462, %v11408, %v9680
  %v11474 = vsel %vm11462, %v11409, %v9682
  %v11475 = vsel %vm11462, %v11410, %v9684
  %v11476 = vsel %vm11462, %v11411, %v9686
  %v11477 = vsel %vm11462, %v11412, %v9688
  %v11478 = vsel %vm11462, %v11413, %v9690
  %v11479 = vsel %vm11462, %v11414, %v9662
  %v11480 = vsel %vm11462, %v11415, %v9692
  %v11481 = vsel %vm11462, %v11416, %v9694
  %v11482 = vsel %vm11462, %v11417, %v9696
  %v11483 = vsel %vm11462, %v11418, %v9698
  %v11484 = vsel %vm11462, %v11419, %v9700
  %v11485 = vsel %vm11462, %v11420, %v9702
  %v11486 = vsel %vm11462, %v11421, %v9704
  %v11487 = vsel %vm11462, %v11422, %v9662
  %v11488 = vsel %vm11462, %v11423, %v9706
  %v11489 = vsel %vm11462, %v11424, %v9708
  %v11490 = vsel %vm11462, %v11425, %v9710
  %v11491 = vsel %vm11462, %v11426, %v9712
  %v11492 = vsel %vm11462, %v11427, %v9714
  %v11493 = vsel %vm11462, %v11428, %v9716
  %v11494 = vsel %vm11462, %v11429, %v9718
  %v11495 = vsel %vm11462, %v11430, %v9662
  %v11496 = vsel %vm11462, %v11431, %v9720
  %v11497 = vsel %vm11462, %v11432, %v9722
  %v11498 = vsel %vm11462, %v11433, %v9724
  %v11499 = vsel %vm11462, %v11434, %v9726
  %v11500 = vsel %vm11462, %v11435, %v9728
  %v11501 = vsel %vm11462, %v11436, %v9730
  %v11502 = vsel %vm11462, %v11437, %v9732
  %v11503 = vsel %vm11462, %v11438, %v9662
  %v11504 = vsel %vm11462, %v11439, %v9734
  %v11505 = vsel %vm11462, %v11440, %v9736
  %v11506 = vsel %vm11462, %v11441, %v9738
  %v11507 = vsel %vm11462, %v11442, %v9740
  %v11508 = vsel %vm11462, %v11443, %v9742
  %v11509 = vsel %vm11462, %v11444, %v9744
  %v11510 = vsel %vm11462, %v11445, %v9746
  %v11511 = vsel %vm11462, %v11446, %v9662
  %v11512 = vsel %vm11462, %v11447, %v9748
  %v11513 = vsel %vm11462, %v11448, %v9750
  %v11514 = vsel %vm11462, %v11449, %v9752
  %v11515 = vsel %vm11462, %v11450, %v9754
  %v11516 = vsel %vm11462, %v11451, %v9756
  %v11517 = vsel %vm11462, %v11452, %v9758
  %v11518 = vsel %vm11462, %v11453, %v9760
  %v11519 = vsel %vm11462, %v11454, %v9662
  %v11520 = vsel %vm11462, %v11455, %v9762
  %v11521 = vsel %vm11462, %v11456, %v9764
  %v11522 = vsel %vm11462, %v11457, %v9766
  %v11523 = vsel %vm11462, %v11458, %v9768
  %v11524 = vsel %vm11462, %v11459, %v9770
  %v11525 = vsel %vm11462, %v11460, %v9772
  %v11526 = vsel %vm11462, %v11461, %v9774
  %vm11527 = vcmask 818176
  %v11528 = vsel %vm11527, %v11463, %v9833
  %v11529 = vsel %vm11527, %v11464, %v9835
  %v11530 = vsel %vm11527, %v11465, %v9837
  %v11531 = vsel %vm11527, %v11466, %v9839
  %v11532 = vsel %vm11527, %v11467, %v9841
  %v11533 = vsel %vm11527, %v11468, %v9843
  %v11534 = vsel %vm11527, %v11469, %v9845
  %v11535 = vsel %vm11527, %v11470, %v9847
  %v11536 = vsel %vm11527, %v11471, %v9833
  %v11537 = vsel %vm11527, %v11472, %v9849
  %v11538 = vsel %vm11527, %v11473, %v9851
  %v11539 = vsel %vm11527, %v11474, %v9853
  %v11540 = vsel %vm11527, %v11475, %v9855
  %v11541 = vsel %vm11527, %v11476, %v9857
  %v11542 = vsel %vm11527, %v11477, %v9859
  %v11543 = vsel %vm11527, %v11478, %v9861
  %v11544 = vsel %vm11527, %v11479, %v9833
  %v11545 = vsel %vm11527, %v11480, %v9863
  %v11546 = vsel %vm11527, %v11481, %v9865
  %v11547 = vsel %vm11527, %v11482, %v9867
  %v11548 = vsel %vm11527, %v11483, %v9869
  %v11549 = vsel %vm11527, %v11484, %v9871
  %v11550 = vsel %vm11527, %v11485, %v9873
  %v11551 = vsel %vm11527, %v11486, %v9875
  %v11552 = vsel %vm11527, %v11487, %v9833
  %v11553 = vsel %vm11527, %v11488, %v9877
  %v11554 = vsel %vm11527, %v11489, %v9879
  %v11555 = vsel %vm11527, %v11490, %v9881
  %v11556 = vsel %vm11527, %v11491, %v9883
  %v11557 = vsel %vm11527, %v11492, %v9885
  %v11558 = vsel %vm11527, %v11493, %v9887
  %v11559 = vsel %vm11527, %v11494, %v9889
  %v11560 = vsel %vm11527, %v11495, %v9833
  %v11561 = vsel %vm11527, %v11496, %v9891
  %v11562 = vsel %vm11527, %v11497, %v9893
  %v11563 = vsel %vm11527, %v11498, %v9895
  %v11564 = vsel %vm11527, %v11499, %v9897
  %v11565 = vsel %vm11527, %v11500, %v9899
  %v11566 = vsel %vm11527, %v11501, %v9901
  %v11567 = vsel %vm11527, %v11502, %v9903
  %v11568 = vsel %vm11527, %v11503, %v9833
  %v11569 = vsel %vm11527, %v11504, %v9905
  %v11570 = vsel %vm11527, %v11505, %v9907
  %v11571 = vsel %vm11527, %v11506, %v9909
  %v11572 = vsel %vm11527, %v11507, %v9911
  %v11573 = vsel %vm11527, %v11508, %v9913
  %v11574 = vsel %vm11527, %v11509, %v9915
  %v11575 = vsel %vm11527, %v11510, %v9917
  %v11576 = vsel %vm11527, %v11511, %v9833
  %v11577 = vsel %vm11527, %v11512, %v9919
  %v11578 = vsel %vm11527, %v11513, %v9921
  %v11579 = vsel %vm11527, %v11514, %v9923
  %v11580 = vsel %vm11527, %v11515, %v9925
  %v11581 = vsel %vm11527, %v11516, %v9927
  %v11582 = vsel %vm11527, %v11517, %v9929
  %v11583 = vsel %vm11527, %v11518, %v9931
  %v11584 = vsel %vm11527, %v11519, %v9833
  %v11585 = vsel %vm11527, %v11520, %v9933
  %v11586 = vsel %vm11527, %v11521, %v9935
  %v11587 = vsel %vm11527, %v11522, %v9937
  %v11588 = vsel %vm11527, %v11523, %v9939
  %v11589 = vsel %vm11527, %v11524, %v9941
  %v11590 = vsel %vm11527, %v11525, %v9943
  %v11591 = vsel %vm11527, %v11526, %v9945
  %vm11592 = vcmask 900096
  %v11593 = vsel %vm11592, %v11528, %v10004
  %v11594 = vsel %vm11592, %v11529, %v10006
  %v11595 = vsel %vm11592, %v11530, %v10008
  %v11596 = vsel %vm11592, %v11531, %v10010
  %v11597 = vsel %vm11592, %v11532, %v10012
  %v11598 = vsel %vm11592, %v11533, %v10014
  %v11599 = vsel %vm11592, %v11534, %v10016
  %v11600 = vsel %vm11592, %v11535, %v10018
  %v11601 = vsel %vm11592, %v11536, %v10004
  %v11602 = vsel %vm11592, %v11537, %v10020
  %v11603 = vsel %vm11592, %v11538, %v10022
  %v11604 = vsel %vm11592, %v11539, %v10024
  %v11605 = vsel %vm11592, %v11540, %v10026
  %v11606 = vsel %vm11592, %v11541, %v10028
  %v11607 = vsel %vm11592, %v11542, %v10030
  %v11608 = vsel %vm11592, %v11543, %v10032
  %v11609 = vsel %vm11592, %v11544, %v10004
  %v11610 = vsel %vm11592, %v11545, %v10034
  %v11611 = vsel %vm11592, %v11546, %v10036
  %v11612 = vsel %vm11592, %v11547, %v10038
  %v11613 = vsel %vm11592, %v11548, %v10040
  %v11614 = vsel %vm11592, %v11549, %v10042
  %v11615 = vsel %vm11592, %v11550, %v10044
  %v11616 = vsel %vm11592, %v11551, %v10046
  %v11617 = vsel %vm11592, %v11552, %v10004
  %v11618 = vsel %vm11592, %v11553, %v10048
  %v11619 = vsel %vm11592, %v11554, %v10050
  %v11620 = vsel %vm11592, %v11555, %v10052
  %v11621 = vsel %vm11592, %v11556, %v10054
  %v11622 = vsel %vm11592, %v11557, %v10056
  %v11623 = vsel %vm11592, %v11558, %v10058
  %v11624 = vsel %vm11592, %v11559, %v10060
  %v11625 = vsel %vm11592, %v11560, %v10004
  %v11626 = vsel %vm11592, %v11561, %v10062
  %v11627 = vsel %vm11592, %v11562, %v10064
  %v11628 = vsel %vm11592, %v11563, %v10066
  %v11629 = vsel %vm11592, %v11564, %v10068
  %v11630 = vsel %vm11592, %v11565, %v10070
  %v11631 = vsel %vm11592, %v11566, %v10072
  %v11632 = vsel %vm11592, %v11567, %v10074
  %v11633 = vsel %vm11592, %v11568, %v10004
  %v11634 = vsel %vm11592, %v11569, %v10076
  %v11635 = vsel %vm11592, %v11570, %v10078
  %v11636 = vsel %vm11592, %v11571, %v10080
  %v11637 = vsel %vm11592, %v11572, %v10082
  %v11638 = vsel %vm11592, %v11573, %v10084
  %v11639 = vsel %vm11592, %v11574, %v10086
  %v11640 = vsel %vm11592, %v11575, %v10088
  %v11641 = vsel %vm11592, %v11576, %v10004
  %v11642 = vsel %vm11592, %v11577, %v10090
  %v11643 = vsel %vm11592, %v11578, %v10092
  %v11644 = vsel %vm11592, %v11579, %v10094
  %v11645 = vsel %vm11592, %v11580, %v10096
  %v11646 = vsel %vm11592, %v11581, %v10098
  %v11647 = vsel %vm11592, %v11582, %v10100
  %v11648 = vsel %vm11592, %v11583, %v10102
  %v11649 = vsel %vm11592, %v11584, %v10004
  %v11650 = vsel %vm11592, %v11585, %v10104
  %v11651 = vsel %vm11592, %v11586, %v10106
  %v11652 = vsel %vm11592, %v11587, %v10108
  %v11653 = vsel %vm11592, %v11588, %v10110
  %v11654 = vsel %vm11592, %v11589, %v10112
  %v11655 = vsel %vm11592, %v11590, %v10114
  %v11656 = vsel %vm11592, %v11591, %v10116
  %vm11657 = vcmask 982016
  %v11658 = vsel %vm11657, %v11593, %v10175
  %v11659 = vsel %vm11657, %v11594, %v10177
  %v11660 = vsel %vm11657, %v11595, %v10179
  %v11661 = vsel %vm11657, %v11596, %v10181
  %v11662 = vsel %vm11657, %v11597, %v10183
  %v11663 = vsel %vm11657, %v11598, %v10185
  %v11664 = vsel %vm11657, %v11599, %v10187
  %v11665 = vsel %vm11657, %v11600, %v10189
  %v11666 = vsel %vm11657, %v11601, %v10191
  %v11667 = vsel %vm11657, %v11602, %v10193
  %v11668 = vsel %vm11657, %v11603, %v10195
  %v11669 = vsel %vm11657, %v11604, %v10197
  %v11670 = vsel %vm11657, %v11605, %v10199
  %v11671 = vsel %vm11657, %v11606, %v10201
  %v11672 = vsel %vm11657, %v11607, %v10203
  %v11673 = vsel %vm11657, %v11608, %v10205
  %v11674 = vsel %vm11657, %v11609, %v10207
  %v11675 = vsel %vm11657, %v11610, %v10209
  %v11676 = vsel %vm11657, %v11611, %v10211
  %v11677 = vsel %vm11657, %v11612, %v10213
  %v11678 = vsel %vm11657, %v11613, %v10215
  %v11679 = vsel %vm11657, %v11614, %v10217
  %v11680 = vsel %vm11657, %v11615, %v10219
  %v11681 = vsel %vm11657, %v11616, %v10221
  %v11682 = vsel %vm11657, %v11617, %v10223
  %v11683 = vsel %vm11657, %v11618, %v10225
  %v11684 = vsel %vm11657, %v11619, %v10227
  %v11685 = vsel %vm11657, %v11620, %v10229
  %v11686 = vsel %vm11657, %v11621, %v10231
  %v11687 = vsel %vm11657, %v11622, %v10233
  %v11688 = vsel %vm11657, %v11623, %v10235
  %v11689 = vsel %vm11657, %v11624, %v10237
  %v11690 = vsel %vm11657, %v11625, %v10239
  %v11691 = vsel %vm11657, %v11626, %v10241
  %v11692 = vsel %vm11657, %v11627, %v10243
  %v11693 = vsel %vm11657, %v11628, %v10245
  %v11694 = vsel %vm11657, %v11629, %v10247
  %v11695 = vsel %vm11657, %v11630, %v10249
  %v11696 = vsel %vm11657, %v11631, %v10251
  %v11697 = vsel %vm11657, %v11632, %v10253
  %v11698 = vsel %vm11657, %v11633, %v10255
  %v11699 = vsel %vm11657, %v11634, %v10257
  %v11700 = vsel %vm11657, %v11635, %v10259
  %v11701 = vsel %vm11657, %v11636, %v10261
  %v11702 = vsel %vm11657, %v11637, %v10263
  %v11703 = vsel %vm11657, %v11638, %v10265
  %v11704 = vsel %vm11657, %v11639, %v10267
  %v11705 = vsel %vm11657, %v11640, %v10269
  %v11706 = vsel %vm11657, %v11641, %v10271
  %v11707 = vsel %vm11657, %v11642, %v10273
  %v11708 = vsel %vm11657, %v11643, %v10275
  %v11709 = vsel %vm11657, %v11644, %v10277
  %v11710 = vsel %vm11657, %v11645, %v10279
  %v11711 = vsel %vm11657, %v11646, %v10281
  %v11712 = vsel %vm11657, %v11647, %v10283
  %v11713 = vsel %vm11657, %v11648, %v10285
  %v11714 = vsel %vm11657, %v11649, %v10287
  %v11715 = vsel %vm11657, %v11650, %v10289
  %v11716 = vsel %vm11657, %v11651, %v10291
  %v11717 = vsel %vm11657, %v11652, %v10293
  %v11718 = vsel %vm11657, %v11653, %v10295
  %v11719 = vsel %vm11657, %v11654, %v10297
  %v11720 = vsel %vm11657, %v11655, %v10299
  %v11721 = vsel %vm11657, %v11656, %v10301
  %vm11722 = vcmask 15360
  %v11723 = vsel %vm11722, %v10175, %v10367
  %v11724 = vsel %vm11722, %v10177, %v10369
  %v11725 = vsel %vm11722, %v10179, %v10371
  %v11726 = vsel %vm11722, %v10181, %v10373
  %v11727 = vsel %vm11722, %v10183, %v10375
  %v11728 = vsel %vm11722, %v10185, %v10377
  %v11729 = vsel %vm11722, %v10187, %v10379
  %v11730 = vsel %vm11722, %v10189, %v10381
  %v11731 = vsel %vm11722, %v10191, %v10383
  %v11732 = vsel %vm11722, %v10193, %v10385
  %v11733 = vsel %vm11722, %v10195, %v10387
  %v11734 = vsel %vm11722, %v10197, %v10389
  %v11735 = vsel %vm11722, %v10199, %v10391
  %v11736 = vsel %vm11722, %v10201, %v10393
  %v11737 = vsel %vm11722, %v10203, %v10395
  %v11738 = vsel %vm11722, %v10205, %v10397
  %v11739 = vsel %vm11722, %v10207, %v10399
  %v11740 = vsel %vm11722, %v10209, %v10401
  %v11741 = vsel %vm11722, %v10211, %v10403
  %v11742 = vsel %vm11722, %v10213, %v10405
  %v11743 = vsel %vm11722, %v10215, %v10407
  %v11744 = vsel %vm11722, %v10217, %v10409
  %v11745 = vsel %vm11722, %v10219, %v10411
  %v11746 = vsel %vm11722, %v10221, %v10413
  %v11747 = vsel %vm11722, %v10223, %v10415
  %v11748 = vsel %vm11722, %v10225, %v10417
  %v11749 = vsel %vm11722, %v10227, %v10419
  %v11750 = vsel %vm11722, %v10229, %v10421
  %v11751 = vsel %vm11722, %v10231, %v10423
  %v11752 = vsel %vm11722, %v10233, %v10425
  %v11753 = vsel %vm11722, %v10235, %v10427
  %v11754 = vsel %vm11722, %v10237, %v10429
  %v11755 = vsel %vm11722, %v10239, %v10431
  %v11756 = vsel %vm11722, %v10241, %v10433
  %v11757 = vsel %vm11722, %v10243, %v10435
  %v11758 = vsel %vm11722, %v10245, %v10437
  %v11759 = vsel %vm11722, %v10247, %v10439
  %v11760 = vsel %vm11722, %v10249, %v10441
  %v11761 = vsel %vm11722, %v10251, %v10443
  %v11762 = vsel %vm11722, %v10253, %v10445
  %v11763 = vsel %vm11722, %v10255, %v10447
  %v11764 = vsel %vm11722, %v10257, %v10449
  %v11765 = vsel %vm11722, %v10259, %v10451
  %v11766 = vsel %vm11722, %v10261, %v10453
  %v11767 = vsel %vm11722, %v10263, %v10455
  %v11768 = vsel %vm11722, %v10265, %v10457
  %v11769 = vsel %vm11722, %v10267, %v10459
  %v11770 = vsel %vm11722, %v10269, %v10461
  %v11771 = vsel %vm11722, %v10271, %v10463
  %v11772 = vsel %vm11722, %v10273, %v10465
  %v11773 = vsel %vm11722, %v10275, %v10467
  %v11774 = vsel %vm11722, %v10277, %v10469
  %v11775 = vsel %vm11722, %v10279, %v10471
  %v11776 = vsel %vm11722, %v10281, %v10473
  %v11777 = vsel %vm11722, %v10283, %v10475
  %v11778 = vsel %vm11722, %v10285, %v10477
  %v11779 = vsel %vm11722, %v10287, %v10479
  %v11780 = vsel %vm11722, %v10289, %v10481
  %v11781 = vsel %vm11722, %v10291, %v10483
  %v11782 = vsel %vm11722, %v10293, %v10485
  %v11783 = vsel %vm11722, %v10295, %v10487
  %v11784 = vsel %vm11722, %v10297, %v10489
  %v11785 = vsel %vm11722, %v10299, %v10491
  %v11786 = vsel %vm11722, %v10301, %v10493
  %vm11787 = vcmask 97280
  %v11788 = vsel %vm11787, %v11723, %v10559
  %v11789 = vsel %vm11787, %v11724, %v10561
  %v11790 = vsel %vm11787, %v11725, %v10563
  %v11791 = vsel %vm11787, %v11726, %v10565
  %v11792 = vsel %vm11787, %v11727, %v10567
  %v11793 = vsel %vm11787, %v11728, %v10569
  %v11794 = vsel %vm11787, %v11729, %v10571
  %v11795 = vsel %vm11787, %v11730, %v10573
  %v11796 = vsel %vm11787, %v11731, %v10575
  %v11797 = vsel %vm11787, %v11732, %v10577
  %v11798 = vsel %vm11787, %v11733, %v10579
  %v11799 = vsel %vm11787, %v11734, %v10581
  %v11800 = vsel %vm11787, %v11735, %v10583
  %v11801 = vsel %vm11787, %v11736, %v10585
  %v11802 = vsel %vm11787, %v11737, %v10587
  %v11803 = vsel %vm11787, %v11738, %v10589
  %v11804 = vsel %vm11787, %v11739, %v10591
  %v11805 = vsel %vm11787, %v11740, %v10593
  %v11806 = vsel %vm11787, %v11741, %v10595
  %v11807 = vsel %vm11787, %v11742, %v10597
  %v11808 = vsel %vm11787, %v11743, %v10599
  %v11809 = vsel %vm11787, %v11744, %v10601
  %v11810 = vsel %vm11787, %v11745, %v10603
  %v11811 = vsel %vm11787, %v11746, %v10605
  %v11812 = vsel %vm11787, %v11747, %v10607
  %v11813 = vsel %vm11787, %v11748, %v10609
  %v11814 = vsel %vm11787, %v11749, %v10611
  %v11815 = vsel %vm11787, %v11750, %v10613
  %v11816 = vsel %vm11787, %v11751, %v10615
  %v11817 = vsel %vm11787, %v11752, %v10617
  %v11818 = vsel %vm11787, %v11753, %v10619
  %v11819 = vsel %vm11787, %v11754, %v10621
  %v11820 = vsel %vm11787, %v11755, %v10623
  %v11821 = vsel %vm11787, %v11756, %v10625
  %v11822 = vsel %vm11787, %v11757, %v10627
  %v11823 = vsel %vm11787, %v11758, %v10629
  %v11824 = vsel %vm11787, %v11759, %v10631
  %v11825 = vsel %vm11787, %v11760, %v10633
  %v11826 = vsel %vm11787, %v11761, %v10635
  %v11827 = vsel %vm11787, %v11762, %v10637
  %v11828 = vsel %vm11787, %v11763, %v10639
  %v11829 = vsel %vm11787, %v11764, %v10641
  %v11830 = vsel %vm11787, %v11765, %v10643
  %v11831 = vsel %vm11787, %v11766, %v10645
  %v11832 = vsel %vm11787, %v11767, %v10647
  %v11833 = vsel %vm11787, %v11768, %v10649
  %v11834 = vsel %vm11787, %v11769, %v10651
  %v11835 = vsel %vm11787, %v11770, %v10653
  %v11836 = vsel %vm11787, %v11771, %v10655
  %v11837 = vsel %vm11787, %v11772, %v10657
  %v11838 = vsel %vm11787, %v11773, %v10659
  %v11839 = vsel %vm11787, %v11774, %v10661
  %v11840 = vsel %vm11787, %v11775, %v10663
  %v11841 = vsel %vm11787, %v11776, %v10665
  %v11842 = vsel %vm11787, %v11777, %v10667
  %v11843 = vsel %vm11787, %v11778, %v10669
  %v11844 = vsel %vm11787, %v11779, %v10671
  %v11845 = vsel %vm11787, %v11780, %v10673
  %v11846 = vsel %vm11787, %v11781, %v10675
  %v11847 = vsel %vm11787, %v11782, %v10677
  %v11848 = vsel %vm11787, %v11783, %v10679
  %v11849 = vsel %vm11787, %v11784, %v10681
  %v11850 = vsel %vm11787, %v11785, %v10683
  %v11851 = vsel %vm11787, %v11786, %v10685
  %vm11852 = vcmask 179200
  %v11853 = vsel %vm11852, %v11788, %v10751
  %v11854 = vsel %vm11852, %v11789, %v10753
  %v11855 = vsel %vm11852, %v11790, %v10755
  %v11856 = vsel %vm11852, %v11791, %v10757
  %v11857 = vsel %vm11852, %v11792, %v10759
  %v11858 = vsel %vm11852, %v11793, %v10761
  %v11859 = vsel %vm11852, %v11794, %v10763
  %v11860 = vsel %vm11852, %v11795, %v10765
  %v11861 = vsel %vm11852, %v11796, %v10767
  %v11862 = vsel %vm11852, %v11797, %v10769
  %v11863 = vsel %vm11852, %v11798, %v10771
  %v11864 = vsel %vm11852, %v11799, %v10773
  %v11865 = vsel %vm11852, %v11800, %v10775
  %v11866 = vsel %vm11852, %v11801, %v10777
  %v11867 = vsel %vm11852, %v11802, %v10779
  %v11868 = vsel %vm11852, %v11803, %v10781
  %v11869 = vsel %vm11852, %v11804, %v10783
  %v11870 = vsel %vm11852, %v11805, %v10785
  %v11871 = vsel %vm11852, %v11806, %v10787
  %v11872 = vsel %vm11852, %v11807, %v10789
  %v11873 = vsel %vm11852, %v11808, %v10791
  %v11874 = vsel %vm11852, %v11809, %v10793
  %v11875 = vsel %vm11852, %v11810, %v10795
  %v11876 = vsel %vm11852, %v11811, %v10797
  %v11877 = vsel %vm11852, %v11812, %v10799
  %v11878 = vsel %vm11852, %v11813, %v10801
  %v11879 = vsel %vm11852, %v11814, %v10803
  %v11880 = vsel %vm11852, %v11815, %v10805
  %v11881 = vsel %vm11852, %v11816, %v10807
  %v11882 = vsel %vm11852, %v11817, %v10809
  %v11883 = vsel %vm11852, %v11818, %v10811
  %v11884 = vsel %vm11852, %v11819, %v10813
  %v11885 = vsel %vm11852, %v11820, %v10815
  %v11886 = vsel %vm11852, %v11821, %v10817
  %v11887 = vsel %vm11852, %v11822, %v10819
  %v11888 = vsel %vm11852, %v11823, %v10821
  %v11889 = vsel %vm11852, %v11824, %v10823
  %v11890 = vsel %vm11852, %v11825, %v10825
  %v11891 = vsel %vm11852, %v11826, %v10827
  %v11892 = vsel %vm11852, %v11827, %v10829
  %v11893 = vsel %vm11852, %v11828, %v10831
  %v11894 = vsel %vm11852, %v11829, %v10833
  %v11895 = vsel %vm11852, %v11830, %v10835
  %v11896 = vsel %vm11852, %v11831, %v10837
  %v11897 = vsel %vm11852, %v11832, %v10839
  %v11898 = vsel %vm11852, %v11833, %v10841
  %v11899 = vsel %vm11852, %v11834, %v10843
  %v11900 = vsel %vm11852, %v11835, %v10845
  %v11901 = vsel %vm11852, %v11836, %v10847
  %v11902 = vsel %vm11852, %v11837, %v10849
  %v11903 = vsel %vm11852, %v11838, %v10851
  %v11904 = vsel %vm11852, %v11839, %v10853
  %v11905 = vsel %vm11852, %v11840, %v10855
  %v11906 = vsel %vm11852, %v11841, %v10857
  %v11907 = vsel %vm11852, %v11842, %v10859
  %v11908 = vsel %vm11852, %v11843, %v10861
  %v11909 = vsel %vm11852, %v11844, %v10863
  %v11910 = vsel %vm11852, %v11845, %v10865
  %v11911 = vsel %vm11852, %v11846, %v10867
  %v11912 = vsel %vm11852, %v11847, %v10869
  %v11913 = vsel %vm11852, %v11848, %v10871
  %v11914 = vsel %vm11852, %v11849, %v10873
  %v11915 = vsel %vm11852, %v11850, %v10875
  %v11916 = vsel %vm11852, %v11851, %v10877
  %v11917 = vld [vmem:[%s3] sm:$0xff]
  %v11918 = vld [vmem:[%s3 + $0x8] sm:$0xff]
  %v11919 = vld [vmem:[%s3 + $0x10] sm:$0xff]
  %v11920 = vld [vmem:[%s3 + $0x18] sm:$0xff]
  %v11921 = vld [vmem:[%s3 + $0x20] sm:$0xff]
  %v11922 = vld [vmem:[%s3 + $0x28] sm:$0xff]
  %v11923 = vld [vmem:[%s3 + $0x30] sm:$0xff]
  %v11924 = vld [vmem:[%s3 + $0x38] sm:$0xff]
  %v11925 = vld [vmem:[%s3 + $0x40] sm:$0xff]
  %v11926 = vld [vmem:[%s3 + $0x48] sm:$0xff]
  %v11927 = vld [vmem:[%s3 + $0x50] sm:$0xff]
  %v11928 = vld [vmem:[%s3 + $0x58] sm:$0xff]
  %v11929 = vld [vmem:[%s3 + $0x60] sm:$0xff]
  %v11930 = vld [vmem:[%s3 + $0x68] sm:$0xff]
  %v11931 = vld [vmem:[%s3 + $0x70] sm:$0xff]
  %v11932 = vld [vmem:[%s3 + $0x78] sm:$0xff]
  %v11933 = vld [vmem:[%s3 + $0x80] sm:$0xff]
  %v11934 = vld [vmem:[%s3 + $0x88] sm:$0xff]
  %v11935 = vld [vmem:[%s3 + $0x90] sm:$0xff]
  %v11936 = vld [vmem:[%s3 + $0x98] sm:$0xff]
  %vm11937 = vcmask 261120
  %v11939 = vsel %vm11937, %v11853, 0
  %v11942 = vsel %vm11937, %v11854, 0
  %v11945 = vsel %vm11937, %v11855, 0
  %v11948 = vsel %vm11937, %v11856, 0
  %v11951 = vsel %vm11937, %v11857, 0
  %v11954 = vsel %vm11937, %v11858, 0
  %v11957 = vsel %vm11937, %v11859, 0
  %v11960 = vsel %vm11937, %v11860, 0
  %v11963 = vsel %vm11937, %v11861, 0
  %v11966 = vsel %vm11937, %v11862, 0
  %v11969 = vsel %vm11937, %v11863, 0
  %v11972 = vsel %vm11937, %v11864, 0
  %v11975 = vsel %vm11937, %v11865, 0
  %v11978 = vsel %vm11937, %v11866, 0
  %v11981 = vsel %vm11937, %v11867, 0
  %v11984 = vsel %vm11937, %v11868, 0
  %v11987 = vsel %vm11937, %v11869, 0
  %v11990 = vsel %vm11937, %v11870, 0
  %v11993 = vsel %vm11937, %v11871, 0
  %v11996 = vsel %vm11937, %v11872, 0
  %v11999 = vsel %vm11937, %v11873, 0
  %v12002 = vsel %vm11937, %v11874, 0
  %v12005 = vsel %vm11937, %v11875, 0
  %v12008 = vsel %vm11937, %v11876, 0
  %v12011 = vsel %vm11937, %v11877, 0
  %v12014 = vsel %vm11937, %v11878, 0
  %v12017 = vsel %vm11937, %v11879, 0
  %v12020 = vsel %vm11937, %v11880, 0
  %v12023 = vsel %vm11937, %v11881, 0
  %v12026 = vsel %vm11937, %v11882, 0
  %v12029 = vsel %vm11937, %v11883, 0
  %v12032 = vsel %vm11937, %v11884, 0
  %v12035 = vsel %vm11937, %v11885, 0
  %v12038 = vsel %vm11937, %v11886, 0
  %v12041 = vsel %vm11937, %v11887, 0
  %v12044 = vsel %vm11937, %v11888, 0
  %v12047 = vsel %vm11937, %v11889, 0
  %v12050 = vsel %vm11937, %v11890, 0
  %v12053 = vsel %vm11937, %v11891, 0
  %v12056 = vsel %vm11937, %v11892, 0
  %v12059 = vsel %vm11937, %v11893, 0
  %v12062 = vsel %vm11937, %v11894, 0
  %v12065 = vsel %vm11937, %v11895, 0
  %v12068 = vsel %vm11937, %v11896, 0
  %v12071 = vsel %vm11937, %v11897, 0
  %v12074 = vsel %vm11937, %v11898, 0
  %v12077 = vsel %vm11937, %v11899, 0
  %v12080 = vsel %vm11937, %v11900, 0
  %v12083 = vsel %vm11937, %v11901, 0
  %v12086 = vsel %vm11937, %v11902, 0
  %v12089 = vsel %vm11937, %v11903, 0
  %v12092 = vsel %vm11937, %v11904, 0
  %v12095 = vsel %vm11937, %v11905, 0
  %v12098 = vsel %vm11937, %v11906, 0
  %v12101 = vsel %vm11937, %v11907, 0
  %v12104 = vsel %vm11937, %v11908, 0
  %v12107 = vsel %vm11937, %v11909, 0
  %v12110 = vsel %vm11937, %v11910, 0
  %v12113 = vsel %vm11937, %v11911, 0
  %v12116 = vsel %vm11937, %v11912, 0
  %v12119 = vsel %vm11937, %v11913, 0
  %v12122 = vsel %vm11937, %v11914, 0
  %v12125 = vsel %vm11937, %v11915, 0
  %v12128 = vsel %vm11937, %v11916, 0
  %12130 = vmatprep.subr.mxu0 0.0
  %12131 = vmatpush1.msra.mxu0 %v11917
  %12132 = vmatprep.subr.mxu0 0.0
  %12133 = vmatpush1.msra.mxu0 %v11918
  %12134 = vmatprep.subr.mxu0 0.0
  %12135 = vmatpush1.msra.mxu0 %v11919
  %12136 = vmatprep.subr.mxu0 0.0
  %12137 = vmatpush1.msra.mxu0 %v11920
  %12138 = vmatprep.subr.mxu0 0.0
  %12139 = vmatpush1.msra.mxu0 %v11921
  %12140 = vmatprep.subr.mxu0 0.0
  %12141 = vmatpush1.msra.mxu0 %v11922
  %12142 = vmatprep.subr.mxu0 0.0
  %12143 = vmatpush1.msra.mxu0 %v11923
  %12144 = vmatprep.subr.mxu0 0.0
  %12145 = vmatpush1.msra.mxu0 %v11924
  %12146 = vmatprep.subr.mxu0 0.0
  %12147 = vmatpush1.msra.mxu0 %v11925
  %12148 = vmatprep.subr.mxu0 0.0
  %12149 = vmatpush1.msra.mxu0 %v11926
  %12150 = vmatprep.subr.mxu0 0.0
  %12151 = vmatpush1.msra.mxu0 %v11927
  %12152 = vmatprep.subr.mxu0 0.0
  %12153 = vmatpush1.msra.mxu0 %v11928
  %12154 = vmatprep.subr.mxu0 0.0
  %12155 = vmatpush1.msra.mxu0 %v11929
  %12156 = vmatprep.subr.mxu0 0.0
  %12157 = vmatpush1.msra.mxu0 %v11930
  %12158 = vmatprep.subr.mxu0 0.0
  %12159 = vmatpush1.msra.mxu0 %v11931
  %12160 = vmatprep.subr.mxu0 0.0
  %12161 = vmatpush1.msra.mxu0 %v11932
  %12162 = vmatprep.subr.mxu0 0.0
  %12163 = vmatpush1.msra.mxu0 %v11933
  %12164 = vmatprep.subr.mxu0 0.0
  %12165 = vmatpush1.msra.mxu0 %v11934
  %12166 = vmatprep.subr.mxu0 0.0
  %12167 = vmatpush1.msra.mxu0 %v11935
  %12168 = vmatprep.subr.mxu0 0.0
  %12169 = vmatpush1.msra.mxu0 %v11936
  %12170 = vmatprep.subr.mxu0 0.0
  %12171 = vmatpush1.msra.mxu0 0.0
  %12172 = vmatprep.subr.mxu0 0.0
  %12173 = vmatpush1.msra.mxu0 0.0
  %12174 = vmatprep.subr.mxu0 0.0
  %12175 = vmatpush1.msra.mxu0 0.0
  %12176 = vmatprep.subr.mxu0 0.0
  %12177 = vmatpush1.msra.mxu0 0.0
  %12178 = vmatprep.subr.mxu0 0.0
  %12179 = vmatpush1.msra.mxu0 0.0
  %12180 = vmatprep.subr.mxu0 0.0
  %12181 = vmatpush1.msra.mxu0 0.0
  %12182 = vmatprep.subr.mxu0 0.0
  %12183 = vmatpush1.msra.mxu0 0.0
  %12184 = vmatprep.subr.mxu0 0.0
  %12185 = vmatpush1.msra.mxu0 0.0
  %12186 = vmatprep.subr.mxu0 0.0
  %12187 = vmatpush1.msra.mxu0 0.0
  %12188 = vmatprep.subr.mxu0 0.0
  %12189 = vmatpush1.msra.mxu0 0.0
  %12190 = vmatprep.subr.mxu0 0.0
  %12191 = vmatpush1.msra.mxu0 0.0
  %12192 = vmatprep.subr.mxu0 0.0
  %12193 = vmatpush1.msra.mxu0 0.0
  %12194 = vmatprep.mubr.f32.mxu0 %v11939
  %12195 = vmatmul.mubr.f32.gmra.mrb[0].mxu0 %v11658
  %v12196 = vpop.f32.mrb[0].mxu0
  %v12197 = vadd.f32 0.0, %v12196
  %v12198 = vpop.f32.mrb[0].mxu0
  %12199 = vmatprep.mubr.f32.mxu0 %v11942
  %12200 = vmatmul.mubr.f32.gmra.mrb[0].mxu0 %v11659
  %v12201 = vpop.f32.mrb[0].mxu0
  %v12202 = vadd.f32 0.0, %v12201
  %v12203 = vpop.f32.mrb[0].mxu0
  %12204 = vmatprep.mubr.f32.mxu0 %v11945
  %12205 = vmatmul.mubr.f32.gmra.mrb[0].mxu0 %v11660
  %v12206 = vpop.f32.mrb[0].mxu0
  %v12207 = vadd.f32 0.0, %v12206
  %v12208 = vpop.f32.mrb[0].mxu0
  %12209 = vmatprep.mubr.f32.mxu0 %v11948
  %12210 = vmatmul.mubr.f32.gmra.mrb[0].mxu0 %v11661
  %v12211 = vpop.f32.mrb[0].mxu0
  %v12212 = vadd.f32 0.0, %v12211
  %v12213 = vpop.f32.mrb[0].mxu0
  %12214 = vmatprep.mubr.f32.mxu0 %v11951
  %12215 = vmatmul.mubr.f32.gmra.mrb[0].mxu0 %v11662
  %v12216 = vpop.f32.mrb[0].mxu0
  %v12217 = vadd.f32 0.0, %v12216
  %v12218 = vpop.f32.mrb[0].mxu0
  %12219 = vmatprep.mubr.f32.mxu0 %v11954
  %12220 = vmatmul.mubr.f32.gmra.mrb[0].mxu0 %v11663
  %v12221 = vpop.f32.mrb[0].mxu0
  %v12222 = vadd.f32 0.0, %v12221
  %v12223 = vpop.f32.mrb[0].mxu0
  %12224 = vmatprep.mubr.f32.mxu0 %v11957
  %12225 = vmatmul.mubr.f32.gmra.mrb[0].mxu0 %v11664
  %v12226 = vpop.f32.mrb[0].mxu0
  %v12227 = vadd.f32 0.0, %v12226
  %v12228 = vpop.f32.mrb[0].mxu0
  %12229 = vmatprep.mubr.f32.mxu0 %v11960
  %12230 = vmatmul.mubr.f32.gmra.mrb[0].mxu0 %v11665
  %v12231 = vpop.f32.mrb[0].mxu0
  %v12232 = vadd.f32 0.0, %v12231
  %v12233 = vpop.f32.mrb[0].mxu0
  %12234 = vmatprep.mubr.f32.mxu0 %v11963
  %12235 = vmatmul.mubr.f32.gmra.mrb[0].mxu0 %v11666
  %v12236 = vpop.f32.mrb[0].mxu0
  %v12237 = vadd.f32 0.0, %v12236
  %v12238 = vpop.f32.mrb[0].mxu0
  %12239 = vmatprep.mubr.f32.mxu0 %v11966
  %12240 = vmatmul.mubr.f32.gmra.mrb[0].mxu0 %v11667
  %v12241 = vpop.f32.mrb[0].mxu0
  %v12242 = vadd.f32 0.0, %v12241
  %v12243 = vpop.f32.mrb[0].mxu0
  %12244 = vmatprep.mubr.f32.mxu0 %v11969
  %12245 = vmatmul.mubr.f32.gmra.mrb[0].mxu0 %v11668
  %v12246 = vpop.f32.mrb[0].mxu0
  %v12247 = vadd.f32 0.0, %v12246
  %v12248 = vpop.f32.mrb[0].mxu0
  %12249 = vmatprep.mubr.f32.mxu0 %v11972
  %12250 = vmatmul.mubr.f32.gmra.mrb[0].mxu0 %v11669
  %v12251 = vpop.f32.mrb[0].mxu0
  %v12252 = vadd.f32 0.0, %v12251
  %v12253 = vpop.f32.mrb[0].mxu0
  %12254 = vmatprep.mubr.f32.mxu0 %v11975
  %12255 = vmatmul.mubr.f32.gmra.mrb[0].mxu0 %v11670
  %v12256 = vpop.f32.mrb[0].mxu0
  %v12257 = vadd.f32 0.0, %v12256
  %v12258 = vpop.f32.mrb[0].mxu0
  %12259 = vmatprep.mubr.f32.mxu0 %v11978
  %12260 = vmatmul.mubr.f32.gmra.mrb[0].mxu0 %v11671
  %v12261 = vpop.f32.mrb[0].mxu0
  %v12262 = vadd.f32 0.0, %v12261
  %v12263 = vpop.f32.mrb[0].mxu0
  %12264 = vmatprep.mubr.f32.mxu0 %v11981
  %12265 = vmatmul.mubr.f32.gmra.mrb[0].mxu0 %v11672
  %v12266 = vpop.f32.mrb[0].mxu0
  %v12267 = vadd.f32 0.0, %v12266
  %v12268 = vpop.f32.mrb[0].mxu0
  %12269 = vmatprep.mubr.f32.mxu0 %v11984
  %12270 = vmatmul.mubr.f32.gmra.mrb[0].mxu0 %v11673
  %v12271 = vpop.f32.mrb[0].mxu0
  %v12272 = vadd.f32 0.0, %v12271
  %v12273 = vpop.f32.mrb[0].mxu0
  %12274 = vmatprep.mubr.f32.mxu0 %v11987
  %12275 = vmatmul.mubr.f32.gmra.mrb[0].mxu0 %v11674
  %v12276 = vpop.f32.mrb[0].mxu0
  %v12277 = vadd.f32 0.0, %v12276
  %v12278 = vpop.f32.mrb[0].mxu0
  %12279 = vmatprep.mubr.f32.mxu0 %v11990
  %12280 = vmatmul.mubr.f32.gmra.mrb[0].mxu0 %v11675
  %v12281 = vpop.f32.mrb[0].mxu0
  %v12282 = vadd.f32 0.0, %v12281
  %v12283 = vpop.f32.mrb[0].mxu0
  %12284 = vmatprep.mubr.f32.mxu0 %v11993
  %12285 = vmatmul.mubr.f32.gmra.mrb[0].mxu0 %v11676
  %v12286 = vpop.f32.mrb[0].mxu0
  %v12287 = vadd.f32 0.0, %v12286
  %v12288 = vpop.f32.mrb[0].mxu0
  %12289 = vmatprep.mubr.f32.mxu0 %v11996
  %12290 = vmatmul.mubr.f32.gmra.mrb[0].mxu0 %v11677
  %v12291 = vpop.f32.mrb[0].mxu0
  %v12292 = vadd.f32 0.0, %v12291
  %v12293 = vpop.f32.mrb[0].mxu0
  %12294 = vmatprep.mubr.f32.mxu0 %v11999
  %12295 = vmatmul.mubr.f32.gmra.mrb[0].mxu0 %v11678
  %v12296 = vpop.f32.mrb[0].mxu0
  %v12297 = vadd.f32 0.0, %v12296
  %v12298 = vpop.f32.mrb[0].mxu0
  %12299 = vmatprep.mubr.f32.mxu0 %v12002
  %12300 = vmatmul.mubr.f32.gmra.mrb[0].mxu0 %v11679
  %v12301 = vpop.f32.mrb[0].mxu0
  %v12302 = vadd.f32 0.0, %v12301
  %v12303 = vpop.f32.mrb[0].mxu0
  %12304 = vmatprep.mubr.f32.mxu0 %v12005
  %12305 = vmatmul.mubr.f32.gmra.mrb[0].mxu0 %v11680
  %v12306 = vpop.f32.mrb[0].mxu0
  %v12307 = vadd.f32 0.0, %v12306
  %v12308 = vpop.f32.mrb[0].mxu0
  %12309 = vmatprep.mubr.f32.mxu0 %v12008
  %12310 = vmatmul.mubr.f32.gmra.mrb[0].mxu0 %v11681
  %v12311 = vpop.f32.mrb[0].mxu0
  %v12312 = vadd.f32 0.0, %v12311
  %v12313 = vpop.f32.mrb[0].mxu0
  %12314 = vmatprep.mubr.f32.mxu0 %v12011
  %12315 = vmatmul.mubr.f32.gmra.mrb[0].mxu0 %v11682
  %v12316 = vpop.f32.mrb[0].mxu0
  %v12317 = vadd.f32 0.0, %v12316
  %v12318 = vpop.f32.mrb[0].mxu0
  %12319 = vmatprep.mubr.f32.mxu0 %v12014
  %12320 = vmatmul.mubr.f32.gmra.mrb[0].mxu0 %v11683
  %v12321 = vpop.f32.mrb[0].mxu0
  %v12322 = vadd.f32 0.0, %v12321
  %v12323 = vpop.f32.mrb[0].mxu0
  %12324 = vmatprep.mubr.f32.mxu0 %v12017
  %12325 = vmatmul.mubr.f32.gmra.mrb[0].mxu0 %v11684
  %v12326 = vpop.f32.mrb[0].mxu0
  %v12327 = vadd.f32 0.0, %v12326
  %v12328 = vpop.f32.mrb[0].mxu0
  %12329 = vmatprep.mubr.f32.mxu0 %v12020
  %12330 = vmatmul.mubr.f32.gmra.mrb[0].mxu0 %v11685
  %v12331 = vpop.f32.mrb[0].mxu0
  %v12332 = vadd.f32 0.0, %v12331
  %v12333 = vpop.f32.mrb[0].mxu0
  %12334 = vmatprep.mubr.f32.mxu0 %v12023
  %12335 = vmatmul.mubr.f32.gmra.mrb[0].mxu0 %v11686
  %v12336 = vpop.f32.mrb[0].mxu0
  %v12337 = vadd.f32 0.0, %v12336
  %v12338 = vpop.f32.mrb[0].mxu0
  %12339 = vmatprep.mubr.f32.mxu0 %v12026
  %12340 = vmatmul.mubr.f32.gmra.mrb[0].mxu0 %v11687
  %v12341 = vpop.f32.mrb[0].mxu0
  %v12342 = vadd.f32 0.0, %v12341
  %v12343 = vpop.f32.mrb[0].mxu0
  %12344 = vmatprep.mubr.f32.mxu0 %v12029
  %12345 = vmatmul.mubr.f32.gmra.mrb[0].mxu0 %v11688
  %v12346 = vpop.f32.mrb[0].mxu0
  %v12347 = vadd.f32 0.0, %v12346
  %v12348 = vpop.f32.mrb[0].mxu0
  %12349 = vmatprep.mubr.f32.mxu0 %v12032
  %12350 = vmatmul.mubr.f32.gmra.mrb[0].mxu0 %v11689
  %v12351 = vpop.f32.mrb[0].mxu0
  %v12352 = vadd.f32 0.0, %v12351
  %v12353 = vpop.f32.mrb[0].mxu0
  %12354 = vmatprep.mubr.f32.mxu0 %v12035
  %12355 = vmatmul.mubr.f32.gmra.mrb[0].mxu0 %v11690
  %v12356 = vpop.f32.mrb[0].mxu0
  %v12357 = vadd.f32 0.0, %v12356
  %v12358 = vpop.f32.mrb[0].mxu0
  %12359 = vmatprep.mubr.f32.mxu0 %v12038
  %12360 = vmatmul.mubr.f32.gmra.mrb[0].mxu0 %v11691
  %v12361 = vpop.f32.mrb[0].mxu0
  %v12362 = vadd.f32 0.0, %v12361
  %v12363 = vpop.f32.mrb[0].mxu0
  %12364 = vmatprep.mubr.f32.mxu0 %v12041
  %12365 = vmatmul.mubr.f32.gmra.mrb[0].mxu0 %v11692
  %v12366 = vpop.f32.mrb[0].mxu0
  %v12367 = vadd.f32 0.0, %v12366
  %v12368 = vpop.f32.mrb[0].mxu0
  %12369 = vmatprep.mubr.f32.mxu0 %v12044
  %12370 = vmatmul.mubr.f32.gmra.mrb[0].mxu0 %v11693
  %v12371 = vpop.f32.mrb[0].mxu0
  %v12372 = vadd.f32 0.0, %v12371
  %v12373 = vpop.f32.mrb[0].mxu0
  %12374 = vmatprep.mubr.f32.mxu0 %v12047
  %12375 = vmatmul.mubr.f32.gmra.mrb[0].mxu0 %v11694
  %v12376 = vpop.f32.mrb[0].mxu0
  %v12377 = vadd.f32 0.0, %v12376
  %v12378 = vpop.f32.mrb[0].mxu0
  %12379 = vmatprep.mubr.f32.mxu0 %v12050
  %12380 = vmatmul.mubr.f32.gmra.mrb[0].mxu0 %v11695
  %v12381 = vpop.f32.mrb[0].mxu0
  %v12382 = vadd.f32 0.0, %v12381
  %v12383 = vpop.f32.mrb[0].mxu0
  %12384 = vmatprep.mubr.f32.mxu0 %v12053
  %12385 = vmatmul.mubr.f32.gmra.mrb[0].mxu0 %v11696
  %v12386 = vpop.f32.mrb[0].mxu0
  %v12387 = vadd.f32 0.0, %v12386
  %v12388 = vpop.f32.mrb[0].mxu0
  %12389 = vmatprep.mubr.f32.mxu0 %v12056
  %12390 = vmatmul.mubr.f32.gmra.mrb[0].mxu0 %v11697
  %v12391 = vpop.f32.mrb[0].mxu0
  %v12392 = vadd.f32 0.0, %v12391
  %v12393 = vpop.f32.mrb[0].mxu0
  %12394 = vmatprep.mubr.f32.mxu0 %v12059
  %12395 = vmatmul.mubr.f32.gmra.mrb[0].mxu0 %v11698
  %v12396 = vpop.f32.mrb[0].mxu0
  %v12397 = vadd.f32 0.0, %v12396
  %v12398 = vpop.f32.mrb[0].mxu0
  %12399 = vmatprep.mubr.f32.mxu0 %v12062
  %12400 = vmatmul.mubr.f32.gmra.mrb[0].mxu0 %v11699
  %v12401 = vpop.f32.mrb[0].mxu0
  %v12402 = vadd.f32 0.0, %v12401
  %v12403 = vpop.f32.mrb[0].mxu0
  %12404 = vmatprep.mubr.f32.mxu0 %v12065
  %12405 = vmatmul.mubr.f32.gmra.mrb[0].mxu0 %v11700
  %v12406 = vpop.f32.mrb[0].mxu0
  %v12407 = vadd.f32 0.0, %v12406
  %v12408 = vpop.f32.mrb[0].mxu0
  %12409 = vmatprep.mubr.f32.mxu0 %v12068
  %12410 = vmatmul.mubr.f32.gmra.mrb[0].mxu0 %v11701
  %v12411 = vpop.f32.mrb[0].mxu0
  %v12412 = vadd.f32 0.0, %v12411
  %v12413 = vpop.f32.mrb[0].mxu0
  %12414 = vmatprep.mubr.f32.mxu0 %v12071
  %12415 = vmatmul.mubr.f32.gmra.mrb[0].mxu0 %v11702
  %v12416 = vpop.f32.mrb[0].mxu0
  %v12417 = vadd.f32 0.0, %v12416
  %v12418 = vpop.f32.mrb[0].mxu0
  %12419 = vmatprep.mubr.f32.mxu0 %v12074
  %12420 = vmatmul.mubr.f32.gmra.mrb[0].mxu0 %v11703
  %v12421 = vpop.f32.mrb[0].mxu0
  %v12422 = vadd.f32 0.0, %v12421
  %v12423 = vpop.f32.mrb[0].mxu0
  %12424 = vmatprep.mubr.f32.mxu0 %v12077
  %12425 = vmatmul.mubr.f32.gmra.mrb[0].mxu0 %v11704
  %v12426 = vpop.f32.mrb[0].mxu0
  %v12427 = vadd.f32 0.0, %v12426
  %v12428 = vpop.f32.mrb[0].mxu0
  %12429 = vmatprep.mubr.f32.mxu0 %v12080
  %12430 = vmatmul.mubr.f32.gmra.mrb[0].mxu0 %v11705
  %v12431 = vpop.f32.mrb[0].mxu0
  %v12432 = vadd.f32 0.0, %v12431
  %v12433 = vpop.f32.mrb[0].mxu0
  %12434 = vmatprep.mubr.f32.mxu0 %v12083
  %12435 = vmatmul.mubr.f32.gmra.mrb[0].mxu0 %v11706
  %v12436 = vpop.f32.mrb[0].mxu0
  %v12437 = vadd.f32 0.0, %v12436
  %v12438 = vpop.f32.mrb[0].mxu0
  %12439 = vmatprep.mubr.f32.mxu0 %v12086
  %12440 = vmatmul.mubr.f32.gmra.mrb[0].mxu0 %v11707
  %v12441 = vpop.f32.mrb[0].mxu0
  %v12442 = vadd.f32 0.0, %v12441
  %v12443 = vpop.f32.mrb[0].mxu0
  %12444 = vmatprep.mubr.f32.mxu0 %v12089
  %12445 = vmatmul.mubr.f32.gmra.mrb[0].mxu0 %v11708
  %v12446 = vpop.f32.mrb[0].mxu0
  %v12447 = vadd.f32 0.0, %v12446
  %v12448 = vpop.f32.mrb[0].mxu0
  %12449 = vmatprep.mubr.f32.mxu0 %v12092
  %12450 = vmatmul.mubr.f32.gmra.mrb[0].mxu0 %v11709
  %v12451 = vpop.f32.mrb[0].mxu0
  %v12452 = vadd.f32 0.0, %v12451
  %v12453 = vpop.f32.mrb[0].mxu0
  %12454 = vmatprep.mubr.f32.mxu0 %v12095
  %12455 = vmatmul.mubr.f32.gmra.mrb[0].mxu0 %v11710
  %v12456 = vpop.f32.mrb[0].mxu0
  %v12457 = vadd.f32 0.0, %v12456
  %v12458 = vpop.f32.mrb[0].mxu0
  %12459 = vmatprep.mubr.f32.mxu0 %v12098
  %12460 = vmatmul.mubr.f32.gmra.mrb[0].mxu0 %v11711
  %v12461 = vpop.f32.mrb[0].mxu0
  %v12462 = vadd.f32 0.0, %v12461
  %v12463 = vpop.f32.mrb[0].mxu0
  %12464 = vmatprep.mubr.f32.mxu0 %v12101
  %12465 = vmatmul.mubr.f32.gmra.mrb[0].mxu0 %v11712
  %v12466 = vpop.f32.mrb[0].mxu0
  %v12467 = vadd.f32 0.0, %v12466
  %v12468 = vpop.f32.mrb[0].mxu0
  %12469 = vmatprep.mubr.f32.mxu0 %v12104
  %12470 = vmatmul.mubr.f32.gmra.mrb[0].mxu0 %v11713
  %v12471 = vpop.f32.mrb[0].mxu0
  %v12472 = vadd.f32 0.0, %v12471
  %v12473 = vpop.f32.mrb[0].mxu0
  %12474 = vmatprep.mubr.f32.mxu0 %v12107
  %12475 = vmatmul.mubr.f32.gmra.mrb[0].mxu0 %v11714
  %v12476 = vpop.f32.mrb[0].mxu0
  %v12477 = vadd.f32 0.0, %v12476
  %v12478 = vpop.f32.mrb[0].mxu0
  %12479 = vmatprep.mubr.f32.mxu0 %v12110
  %12480 = vmatmul.mubr.f32.gmra.mrb[0].mxu0 %v11715
  %v12481 = vpop.f32.mrb[0].mxu0
  %v12482 = vadd.f32 0.0, %v12481
  %v12483 = vpop.f32.mrb[0].mxu0
  %12484 = vmatprep.mubr.f32.mxu0 %v12113
  %12485 = vmatmul.mubr.f32.gmra.mrb[0].mxu0 %v11716
  %v12486 = vpop.f32.mrb[0].mxu0
  %v12487 = vadd.f32 0.0, %v12486
  %v12488 = vpop.f32.mrb[0].mxu0
  %12489 = vmatprep.mubr.f32.mxu0 %v12116
  %12490 = vmatmul.mubr.f32.gmra.mrb[0].mxu0 %v11717
  %v12491 = vpop.f32.mrb[0].mxu0
  %v12492 = vadd.f32 0.0, %v12491
  %v12493 = vpop.f32.mrb[0].mxu0
  %12494 = vmatprep.mubr.f32.mxu0 %v12119
  %12495 = vmatmul.mubr.f32.gmra.mrb[0].mxu0 %v11718
  %v12496 = vpop.f32.mrb[0].mxu0
  %v12497 = vadd.f32 0.0, %v12496
  %v12498 = vpop.f32.mrb[0].mxu0
  %12499 = vmatprep.mubr.f32.mxu0 %v12122
  %12500 = vmatmul.mubr.f32.gmra.mrb[0].mxu0 %v11719
  %v12501 = vpop.f32.mrb[0].mxu0
  %v12502 = vadd.f32 0.0, %v12501
  %v12503 = vpop.f32.mrb[0].mxu0
  %12504 = vmatprep.mubr.f32.mxu0 %v12125
  %12505 = vmatmul.mubr.f32.gmra.mrb[0].mxu0 %v11720
  %v12506 = vpop.f32.mrb[0].mxu0
  %v12507 = vadd.f32 0.0, %v12506
  %v12508 = vpop.f32.mrb[0].mxu0
  %12509 = vmatprep.mubr.f32.mxu0 %v12128
  %12510 = vmatmul.mubr.f32.gmra.mrb[0].mxu0 %v11721
  %v12511 = vpop.f32.mrb[0].mxu0
  %v12512 = vadd.f32 0.0, %v12511
  %v12513 = vpop.f32.mrb[0].mxu0
  %12514 = vdwg.mxu0
  %12579 = vrot.lane.b32.xlu0 %v12197, 108
  %v12580 = vpop.permute.xlu0 %12579
  %12581 = vrot.lane.b32.xlu0 %v12202, 108
  %v12582 = vpop.permute.xlu0 %12581
  %12583 = vrot.lane.b32.xlu0 %v12207, 108
  %v12584 = vpop.permute.xlu0 %12583
  %12585 = vrot.lane.b32.xlu0 %v12212, 108
  %v12586 = vpop.permute.xlu0 %12585
  %12587 = vrot.lane.b32.xlu0 %v12217, 108
  %v12588 = vpop.permute.xlu0 %12587
  %12589 = vrot.lane.b32.xlu0 %v12222, 108
  %v12590 = vpop.permute.xlu0 %12589
  %12591 = vrot.lane.b32.xlu0 %v12227, 108
  %v12592 = vpop.permute.xlu0 %12591
  %12593 = vrot.lane.b32.xlu0 %v12232, 108
  %v12594 = vpop.permute.xlu0 %12593
  %12595 = vrot.lane.b32.xlu0 %v12237, 108
  %v12596 = vpop.permute.xlu0 %12595
  %12597 = vrot.lane.b32.xlu0 %v12242, 108
  %v12598 = vpop.permute.xlu0 %12597
  %12599 = vrot.lane.b32.xlu0 %v12247, 108
  %v12600 = vpop.permute.xlu0 %12599
  %12601 = vrot.lane.b32.xlu0 %v12252, 108
  %v12602 = vpop.permute.xlu0 %12601
  %12603 = vrot.lane.b32.xlu0 %v12257, 108
  %v12604 = vpop.permute.xlu0 %12603
  %12605 = vrot.lane.b32.xlu0 %v12262, 108
  %v12606 = vpop.permute.xlu0 %12605
  %12607 = vrot.lane.b32.xlu0 %v12267, 108
  %v12608 = vpop.permute.xlu0 %12607
  %12609 = vrot.lane.b32.xlu0 %v12272, 108
  %v12610 = vpop.permute.xlu0 %12609
  %12611 = vrot.lane.b32.xlu0 %v12277, 108
  %v12612 = vpop.permute.xlu0 %12611
  %12613 = vrot.lane.b32.xlu0 %v12282, 108
  %v12614 = vpop.permute.xlu0 %12613
  %12615 = vrot.lane.b32.xlu0 %v12287, 108
  %v12616 = vpop.permute.xlu0 %12615
  %12617 = vrot.lane.b32.xlu0 %v12292, 108
  %v12618 = vpop.permute.xlu0 %12617
  %12619 = vrot.lane.b32.xlu0 %v12297, 108
  %v12620 = vpop.permute.xlu0 %12619
  %12621 = vrot.lane.b32.xlu0 %v12302, 108
  %v12622 = vpop.permute.xlu0 %12621
  %12623 = vrot.lane.b32.xlu0 %v12307, 108
  %v12624 = vpop.permute.xlu0 %12623
  %12625 = vrot.lane.b32.xlu0 %v12312, 108
  %v12626 = vpop.permute.xlu0 %12625
  %12627 = vrot.lane.b32.xlu0 %v12317, 108
  %v12628 = vpop.permute.xlu0 %12627
  %12629 = vrot.lane.b32.xlu0 %v12322, 108
  %v12630 = vpop.permute.xlu0 %12629
  %12631 = vrot.lane.b32.xlu0 %v12327, 108
  %v12632 = vpop.permute.xlu0 %12631
  %12633 = vrot.lane.b32.xlu0 %v12332, 108
  %v12634 = vpop.permute.xlu0 %12633
  %12635 = vrot.lane.b32.xlu0 %v12337, 108
  %v12636 = vpop.permute.xlu0 %12635
  %12637 = vrot.lane.b32.xlu0 %v12342, 108
  %v12638 = vpop.permute.xlu0 %12637
  %12639 = vrot.lane.b32.xlu0 %v12347, 108
  %v12640 = vpop.permute.xlu0 %12639
  %12641 = vrot.lane.b32.xlu0 %v12352, 108
  %v12642 = vpop.permute.xlu0 %12641
  %12643 = vrot.lane.b32.xlu0 %v12357, 108
  %v12644 = vpop.permute.xlu0 %12643
  %12645 = vrot.lane.b32.xlu0 %v12362, 108
  %v12646 = vpop.permute.xlu0 %12645
  %12647 = vrot.lane.b32.xlu0 %v12367, 108
  %v12648 = vpop.permute.xlu0 %12647
  %12649 = vrot.lane.b32.xlu0 %v12372, 108
  %v12650 = vpop.permute.xlu0 %12649
  %12651 = vrot.lane.b32.xlu0 %v12377, 108
  %v12652 = vpop.permute.xlu0 %12651
  %12653 = vrot.lane.b32.xlu0 %v12382, 108
  %v12654 = vpop.permute.xlu0 %12653
  %12655 = vrot.lane.b32.xlu0 %v12387, 108
  %v12656 = vpop.permute.xlu0 %12655
  %12657 = vrot.lane.b32.xlu0 %v12392, 108
  %v12658 = vpop.permute.xlu0 %12657
  %12659 = vrot.lane.b32.xlu0 %v12397, 108
  %v12660 = vpop.permute.xlu0 %12659
  %12661 = vrot.lane.b32.xlu0 %v12402, 108
  %v12662 = vpop.permute.xlu0 %12661
  %12663 = vrot.lane.b32.xlu0 %v12407, 108
  %v12664 = vpop.permute.xlu0 %12663
  %12665 = vrot.lane.b32.xlu0 %v12412, 108
  %v12666 = vpop.permute.xlu0 %12665
  %12667 = vrot.lane.b32.xlu0 %v12417, 108
  %v12668 = vpop.permute.xlu0 %12667
  %12669 = vrot.lane.b32.xlu0 %v12422, 108
  %v12670 = vpop.permute.xlu0 %12669
  %12671 = vrot.lane.b32.xlu0 %v12427, 108
  %v12672 = vpop.permute.xlu0 %12671
  %12673 = vrot.lane.b32.xlu0 %v12432, 108
  %v12674 = vpop.permute.xlu0 %12673
  %12675 = vrot.lane.b32.xlu0 %v12437, 108
  %v12676 = vpop.permute.xlu0 %12675
  %12677 = vrot.lane.b32.xlu0 %v12442, 108
  %v12678 = vpop.permute.xlu0 %12677
  %12679 = vrot.lane.b32.xlu0 %v12447, 108
  %v12680 = vpop.permute.xlu0 %12679
  %12681 = vrot.lane.b32.xlu0 %v12452, 108
  %v12682 = vpop.permute.xlu0 %12681
  %12683 = vrot.lane.b32.xlu0 %v12457, 108
  %v12684 = vpop.permute.xlu0 %12683
  %12685 = vrot.lane.b32.xlu0 %v12462, 108
  %v12686 = vpop.permute.xlu0 %12685
  %12687 = vrot.lane.b32.xlu0 %v12467, 108
  %v12688 = vpop.permute.xlu0 %12687
  %12689 = vrot.lane.b32.xlu0 %v12472, 108
  %v12690 = vpop.permute.xlu0 %12689
  %12691 = vrot.lane.b32.xlu0 %v12477, 108
  %v12692 = vpop.permute.xlu0 %12691
  %12693 = vrot.lane.b32.xlu0 %v12482, 108
  %v12694 = vpop.permute.xlu0 %12693
  %12695 = vrot.lane.b32.xlu0 %v12487, 108
  %v12696 = vpop.permute.xlu0 %12695
  %12697 = vrot.lane.b32.xlu0 %v12492, 108
  %v12698 = vpop.permute.xlu0 %12697
  %12699 = vrot.lane.b32.xlu0 %v12497, 108
  %v12700 = vpop.permute.xlu0 %12699
  %12701 = vrot.lane.b32.xlu0 %v12502, 108
  %v12702 = vpop.permute.xlu0 %12701
  %12703 = vrot.lane.b32.xlu0 %v12507, 108
  %v12704 = vpop.permute.xlu0 %12703
  %12705 = vrot.lane.b32.xlu0 %v12512, 108
  %v12706 = vpop.permute.xlu0 %12705
  %v12771 = vmax.f32 %v12197, %v12580
  %v12772 = vmax.f32 %v12202, %v12582
  %v12773 = vmax.f32 %v12207, %v12584
  %v12774 = vmax.f32 %v12212, %v12586
  %v12775 = vmax.f32 %v12217, %v12588
  %v12776 = vmax.f32 %v12222, %v12590
  %v12777 = vmax.f32 %v12227, %v12592
  %v12778 = vmax.f32 %v12232, %v12594
  %v12779 = vmax.f32 %v12237, %v12596
  %v12780 = vmax.f32 %v12242, %v12598
  %v12781 = vmax.f32 %v12247, %v12600
  %v12782 = vmax.f32 %v12252, %v12602
  %v12783 = vmax.f32 %v12257, %v12604
  %v12784 = vmax.f32 %v12262, %v12606
  %v12785 = vmax.f32 %v12267, %v12608
  %v12786 = vmax.f32 %v12272, %v12610
  %v12787 = vmax.f32 %v12277, %v12612
  %v12788 = vmax.f32 %v12282, %v12614
  %v12789 = vmax.f32 %v12287, %v12616
  %v12790 = vmax.f32 %v12292, %v12618
  %v12791 = vmax.f32 %v12297, %v12620
  %v12792 = vmax.f32 %v12302, %v12622
  %v12793 = vmax.f32 %v12307, %v12624
  %v12794 = vmax.f32 %v12312, %v12626
  %v12795 = vmax.f32 %v12317, %v12628
  %v12796 = vmax.f32 %v12322, %v12630
  %v12797 = vmax.f32 %v12327, %v12632
  %v12798 = vmax.f32 %v12332, %v12634
  %v12799 = vmax.f32 %v12337, %v12636
  %v12800 = vmax.f32 %v12342, %v12638
  %v12801 = vmax.f32 %v12347, %v12640
  %v12802 = vmax.f32 %v12352, %v12642
  %v12803 = vmax.f32 %v12357, %v12644
  %v12804 = vmax.f32 %v12362, %v12646
  %v12805 = vmax.f32 %v12367, %v12648
  %v12806 = vmax.f32 %v12372, %v12650
  %v12807 = vmax.f32 %v12377, %v12652
  %v12808 = vmax.f32 %v12382, %v12654
  %v12809 = vmax.f32 %v12387, %v12656
  %v12810 = vmax.f32 %v12392, %v12658
  %v12811 = vmax.f32 %v12397, %v12660
  %v12812 = vmax.f32 %v12402, %v12662
  %v12813 = vmax.f32 %v12407, %v12664
  %v12814 = vmax.f32 %v12412, %v12666
  %v12815 = vmax.f32 %v12417, %v12668
  %v12816 = vmax.f32 %v12422, %v12670
  %v12817 = vmax.f32 %v12427, %v12672
  %v12818 = vmax.f32 %v12432, %v12674
  %v12819 = vmax.f32 %v12437, %v12676
  %v12820 = vmax.f32 %v12442, %v12678
  %v12821 = vmax.f32 %v12447, %v12680
  %v12822 = vmax.f32 %v12452, %v12682
  %v12823 = vmax.f32 %v12457, %v12684
  %v12824 = vmax.f32 %v12462, %v12686
  %v12825 = vmax.f32 %v12467, %v12688
  %v12826 = vmax.f32 %v12472, %v12690
  %v12827 = vmax.f32 %v12477, %v12692
  %v12828 = vmax.f32 %v12482, %v12694
  %v12829 = vmax.f32 %v12487, %v12696
  %v12830 = vmax.f32 %v12492, %v12698
  %v12831 = vmax.f32 %v12497, %v12700
  %v12832 = vmax.f32 %v12502, %v12702
  %v12833 = vmax.f32 %v12507, %v12704
  %v12834 = vmax.f32 %v12512, %v12706
  %12835 = vrot.lane.b32.xlu0 %v12197, 88
  %v12836 = vpop.permute.xlu0 %12835
  %12837 = vrot.lane.b32.xlu0 %v12202, 88
  %v12838 = vpop.permute.xlu0 %12837
  %12839 = vrot.lane.b32.xlu0 %v12207, 88
  %v12840 = vpop.permute.xlu0 %12839
  %12841 = vrot.lane.b32.xlu0 %v12212, 88
  %v12842 = vpop.permute.xlu0 %12841
  %12843 = vrot.lane.b32.xlu0 %v12217, 88
  %v12844 = vpop.permute.xlu0 %12843
  %12845 = vrot.lane.b32.xlu0 %v12222, 88
  %v12846 = vpop.permute.xlu0 %12845
  %12847 = vrot.lane.b32.xlu0 %v12227, 88
  %v12848 = vpop.permute.xlu0 %12847
  %12849 = vrot.lane.b32.xlu0 %v12232, 88
  %v12850 = vpop.permute.xlu0 %12849
  %12851 = vrot.lane.b32.xlu0 %v12237, 88
  %v12852 = vpop.permute.xlu0 %12851
  %12853 = vrot.lane.b32.xlu0 %v12242, 88
  %v12854 = vpop.permute.xlu0 %12853
  %12855 = vrot.lane.b32.xlu0 %v12247, 88
  %v12856 = vpop.permute.xlu0 %12855
  %12857 = vrot.lane.b32.xlu0 %v12252, 88
  %v12858 = vpop.permute.xlu0 %12857
  %12859 = vrot.lane.b32.xlu0 %v12257, 88
  %v12860 = vpop.permute.xlu0 %12859
  %12861 = vrot.lane.b32.xlu0 %v12262, 88
  %v12862 = vpop.permute.xlu0 %12861
  %12863 = vrot.lane.b32.xlu0 %v12267, 88
  %v12864 = vpop.permute.xlu0 %12863
  %12865 = vrot.lane.b32.xlu0 %v12272, 88
  %v12866 = vpop.permute.xlu0 %12865
  %12867 = vrot.lane.b32.xlu0 %v12277, 88
  %v12868 = vpop.permute.xlu0 %12867
  %12869 = vrot.lane.b32.xlu0 %v12282, 88
  %v12870 = vpop.permute.xlu0 %12869
  %12871 = vrot.lane.b32.xlu0 %v12287, 88
  %v12872 = vpop.permute.xlu0 %12871
  %12873 = vrot.lane.b32.xlu0 %v12292, 88
  %v12874 = vpop.permute.xlu0 %12873
  %12875 = vrot.lane.b32.xlu0 %v12297, 88
  %v12876 = vpop.permute.xlu0 %12875
  %12877 = vrot.lane.b32.xlu0 %v12302, 88
  %v12878 = vpop.permute.xlu0 %12877
  %12879 = vrot.lane.b32.xlu0 %v12307, 88
  %v12880 = vpop.permute.xlu0 %12879
  %12881 = vrot.lane.b32.xlu0 %v12312, 88
  %v12882 = vpop.permute.xlu0 %12881
  %12883 = vrot.lane.b32.xlu0 %v12317, 88
  %v12884 = vpop.permute.xlu0 %12883
  %12885 = vrot.lane.b32.xlu0 %v12322, 88
  %v12886 = vpop.permute.xlu0 %12885
  %12887 = vrot.lane.b32.xlu0 %v12327, 88
  %v12888 = vpop.permute.xlu0 %12887
  %12889 = vrot.lane.b32.xlu0 %v12332, 88
  %v12890 = vpop.permute.xlu0 %12889
  %12891 = vrot.lane.b32.xlu0 %v12337, 88
  %v12892 = vpop.permute.xlu0 %12891
  %12893 = vrot.lane.b32.xlu0 %v12342, 88
  %v12894 = vpop.permute.xlu0 %12893
  %12895 = vrot.lane.b32.xlu0 %v12347, 88
  %v12896 = vpop.permute.xlu0 %12895
  %12897 = vrot.lane.b32.xlu0 %v12352, 88
  %v12898 = vpop.permute.xlu0 %12897
  %12899 = vrot.lane.b32.xlu0 %v12357, 88
  %v12900 = vpop.permute.xlu0 %12899
  %12901 = vrot.lane.b32.xlu0 %v12362, 88
  %v12902 = vpop.permute.xlu0 %12901
  %12903 = vrot.lane.b32.xlu0 %v12367, 88
  %v12904 = vpop.permute.xlu0 %12903
  %12905 = vrot.lane.b32.xlu0 %v12372, 88
  %v12906 = vpop.permute.xlu0 %12905
  %12907 = vrot.lane.b32.xlu0 %v12377, 88
  %v12908 = vpop.permute.xlu0 %12907
  %12909 = vrot.lane.b32.xlu0 %v12382, 88
  %v12910 = vpop.permute.xlu0 %12909
  %12911 = vrot.lane.b32.xlu0 %v12387, 88
  %v12912 = vpop.permute.xlu0 %12911
  %12913 = vrot.lane.b32.xlu0 %v12392, 88
  %v12914 = vpop.permute.xlu0 %12913
  %12915 = vrot.lane.b32.xlu0 %v12397, 88
  %v12916 = vpop.permute.xlu0 %12915
  %12917 = vrot.lane.b32.xlu0 %v12402, 88
  %v12918 = vpop.permute.xlu0 %12917
  %12919 = vrot.lane.b32.xlu0 %v12407, 88
  %v12920 = vpop.permute.xlu0 %12919
  %12921 = vrot.lane.b32.xlu0 %v12412, 88
  %v12922 = vpop.permute.xlu0 %12921
  %12923 = vrot.lane.b32.xlu0 %v12417, 88
  %v12924 = vpop.permute.xlu0 %12923
  %12925 = vrot.lane.b32.xlu0 %v12422, 88
  %v12926 = vpop.permute.xlu0 %12925
  %12927 = vrot.lane.b32.xlu0 %v12427, 88
  %v12928 = vpop.permute.xlu0 %12927
  %12929 = vrot.lane.b32.xlu0 %v12432, 88
  %v12930 = vpop.permute.xlu0 %12929
  %12931 = vrot.lane.b32.xlu0 %v12437, 88
  %v12932 = vpop.permute.xlu0 %12931
  %12933 = vrot.lane.b32.xlu0 %v12442, 88
  %v12934 = vpop.permute.xlu0 %12933
  %12935 = vrot.lane.b32.xlu0 %v12447, 88
  %v12936 = vpop.permute.xlu0 %12935
  %12937 = vrot.lane.b32.xlu0 %v12452, 88
  %v12938 = vpop.permute.xlu0 %12937
  %12939 = vrot.lane.b32.xlu0 %v12457, 88
  %v12940 = vpop.permute.xlu0 %12939
  %12941 = vrot.lane.b32.xlu0 %v12462, 88
  %v12942 = vpop.permute.xlu0 %12941
  %12943 = vrot.lane.b32.xlu0 %v12467, 88
  %v12944 = vpop.permute.xlu0 %12943
  %12945 = vrot.lane.b32.xlu0 %v12472, 88
  %v12946 = vpop.permute.xlu0 %12945
  %12947 = vrot.lane.b32.xlu0 %v12477, 88
  %v12948 = vpop.permute.xlu0 %12947
  %12949 = vrot.lane.b32.xlu0 %v12482, 88
  %v12950 = vpop.permute.xlu0 %12949
  %12951 = vrot.lane.b32.xlu0 %v12487, 88
  %v12952 = vpop.permute.xlu0 %12951
  %12953 = vrot.lane.b32.xlu0 %v12492, 88
  %v12954 = vpop.permute.xlu0 %12953
  %12955 = vrot.lane.b32.xlu0 %v12497, 88
  %v12956 = vpop.permute.xlu0 %12955
  %12957 = vrot.lane.b32.xlu0 %v12502, 88
  %v12958 = vpop.permute.xlu0 %12957
  %12959 = vrot.lane.b32.xlu0 %v12507, 88
  %v12960 = vpop.permute.xlu0 %12959
  %12961 = vrot.lane.b32.xlu0 %v12512, 88
  %v12962 = vpop.permute.xlu0 %12961
  %v13027 = vmax.f32 %v12771, %v12836
  %v13028 = vmax.f32 %v12772, %v12838
  %v13029 = vmax.f32 %v12773, %v12840
  %v13030 = vmax.f32 %v12774, %v12842
  %v13031 = vmax.f32 %v12775, %v12844
  %v13032 = vmax.f32 %v12776, %v12846
  %v13033 = vmax.f32 %v12777, %v12848
  %v13034 = vmax.f32 %v12778, %v12850
  %v13035 = vmax.f32 %v12779, %v12852
  %v13036 = vmax.f32 %v12780, %v12854
  %v13037 = vmax.f32 %v12781, %v12856
  %v13038 = vmax.f32 %v12782, %v12858
  %v13039 = vmax.f32 %v12783, %v12860
  %v13040 = vmax.f32 %v12784, %v12862
  %v13041 = vmax.f32 %v12785, %v12864
  %v13042 = vmax.f32 %v12786, %v12866
  %v13043 = vmax.f32 %v12787, %v12868
  %v13044 = vmax.f32 %v12788, %v12870
  %v13045 = vmax.f32 %v12789, %v12872
  %v13046 = vmax.f32 %v12790, %v12874
  %v13047 = vmax.f32 %v12791, %v12876
  %v13048 = vmax.f32 %v12792, %v12878
  %v13049 = vmax.f32 %v12793, %v12880
  %v13050 = vmax.f32 %v12794, %v12882
  %v13051 = vmax.f32 %v12795, %v12884
  %v13052 = vmax.f32 %v12796, %v12886
  %v13053 = vmax.f32 %v12797, %v12888
  %v13054 = vmax.f32 %v12798, %v12890
  %v13055 = vmax.f32 %v12799, %v12892
  %v13056 = vmax.f32 %v12800, %v12894
  %v13057 = vmax.f32 %v12801, %v12896
  %v13058 = vmax.f32 %v12802, %v12898
  %v13059 = vmax.f32 %v12803, %v12900
  %v13060 = vmax.f32 %v12804, %v12902
  %v13061 = vmax.f32 %v12805, %v12904
  %v13062 = vmax.f32 %v12806, %v12906
  %v13063 = vmax.f32 %v12807, %v12908
  %v13064 = vmax.f32 %v12808, %v12910
  %v13065 = vmax.f32 %v12809, %v12912
  %v13066 = vmax.f32 %v12810, %v12914
  %v13067 = vmax.f32 %v12811, %v12916
  %v13068 = vmax.f32 %v12812, %v12918
  %v13069 = vmax.f32 %v12813, %v12920
  %v13070 = vmax.f32 %v12814, %v12922
  %v13071 = vmax.f32 %v12815, %v12924
  %v13072 = vmax.f32 %v12816, %v12926
  %v13073 = vmax.f32 %v12817, %v12928
  %v13074 = vmax.f32 %v12818, %v12930
  %v13075 = vmax.f32 %v12819, %v12932
  %v13076 = vmax.f32 %v12820, %v12934
  %v13077 = vmax.f32 %v12821, %v12936
  %v13078 = vmax.f32 %v12822, %v12938
  %v13079 = vmax.f32 %v12823, %v12940
  %v13080 = vmax.f32 %v12824, %v12942
  %v13081 = vmax.f32 %v12825, %v12944
  %v13082 = vmax.f32 %v12826, %v12946
  %v13083 = vmax.f32 %v12827, %v12948
  %v13084 = vmax.f32 %v12828, %v12950
  %v13085 = vmax.f32 %v12829, %v12952
  %v13086 = vmax.f32 %v12830, %v12954
  %v13087 = vmax.f32 %v12831, %v12956
  %v13088 = vmax.f32 %v12832, %v12958
  %v13089 = vmax.f32 %v12833, %v12960
  %v13090 = vmax.f32 %v12834, %v12962
  %13091 = vrot.lane.b32.xlu0 %v12197, 68
  %v13092 = vpop.permute.xlu0 %13091
  %13093 = vrot.lane.b32.xlu0 %v12202, 68
  %v13094 = vpop.permute.xlu0 %13093
  %13095 = vrot.lane.b32.xlu0 %v12207, 68
  %v13096 = vpop.permute.xlu0 %13095
  %13097 = vrot.lane.b32.xlu0 %v12212, 68
  %v13098 = vpop.permute.xlu0 %13097
  %13099 = vrot.lane.b32.xlu0 %v12217, 68
  %v13100 = vpop.permute.xlu0 %13099
  %13101 = vrot.lane.b32.xlu0 %v12222, 68
  %v13102 = vpop.permute.xlu0 %13101
  %13103 = vrot.lane.b32.xlu0 %v12227, 68
  %v13104 = vpop.permute.xlu0 %13103
  %13105 = vrot.lane.b32.xlu0 %v12232, 68
  %v13106 = vpop.permute.xlu0 %13105
  %13107 = vrot.lane.b32.xlu0 %v12237, 68
  %v13108 = vpop.permute.xlu0 %13107
  %13109 = vrot.lane.b32.xlu0 %v12242, 68
  %v13110 = vpop.permute.xlu0 %13109
  %13111 = vrot.lane.b32.xlu0 %v12247, 68
  %v13112 = vpop.permute.xlu0 %13111
  %13113 = vrot.lane.b32.xlu0 %v12252, 68
  %v13114 = vpop.permute.xlu0 %13113
  %13115 = vrot.lane.b32.xlu0 %v12257, 68
  %v13116 = vpop.permute.xlu0 %13115
  %13117 = vrot.lane.b32.xlu0 %v12262, 68
  %v13118 = vpop.permute.xlu0 %13117
  %13119 = vrot.lane.b32.xlu0 %v12267, 68
  %v13120 = vpop.permute.xlu0 %13119
  %13121 = vrot.lane.b32.xlu0 %v12272, 68
  %v13122 = vpop.permute.xlu0 %13121
  %13123 = vrot.lane.b32.xlu0 %v12277, 68
  %v13124 = vpop.permute.xlu0 %13123
  %13125 = vrot.lane.b32.xlu0 %v12282, 68
  %v13126 = vpop.permute.xlu0 %13125
  %13127 = vrot.lane.b32.xlu0 %v12287, 68
  %v13128 = vpop.permute.xlu0 %13127
  %13129 = vrot.lane.b32.xlu0 %v12292, 68
  %v13130 = vpop.permute.xlu0 %13129
  %13131 = vrot.lane.b32.xlu0 %v12297, 68
  %v13132 = vpop.permute.xlu0 %13131
  %13133 = vrot.lane.b32.xlu0 %v12302, 68
  %v13134 = vpop.permute.xlu0 %13133
  %13135 = vrot.lane.b32.xlu0 %v12307, 68
  %v13136 = vpop.permute.xlu0 %13135
  %13137 = vrot.lane.b32.xlu0 %v12312, 68
  %v13138 = vpop.permute.xlu0 %13137
  %13139 = vrot.lane.b32.xlu0 %v12317, 68
  %v13140 = vpop.permute.xlu0 %13139
  %13141 = vrot.lane.b32.xlu0 %v12322, 68
  %v13142 = vpop.permute.xlu0 %13141
  %13143 = vrot.lane.b32.xlu0 %v12327, 68
  %v13144 = vpop.permute.xlu0 %13143
  %13145 = vrot.lane.b32.xlu0 %v12332, 68
  %v13146 = vpop.permute.xlu0 %13145
  %13147 = vrot.lane.b32.xlu0 %v12337, 68
  %v13148 = vpop.permute.xlu0 %13147
  %13149 = vrot.lane.b32.xlu0 %v12342, 68
  %v13150 = vpop.permute.xlu0 %13149
  %13151 = vrot.lane.b32.xlu0 %v12347, 68
  %v13152 = vpop.permute.xlu0 %13151
  %13153 = vrot.lane.b32.xlu0 %v12352, 68
  %v13154 = vpop.permute.xlu0 %13153
  %13155 = vrot.lane.b32.xlu0 %v12357, 68
  %v13156 = vpop.permute.xlu0 %13155
  %13157 = vrot.lane.b32.xlu0 %v12362, 68
  %v13158 = vpop.permute.xlu0 %13157
  %13159 = vrot.lane.b32.xlu0 %v12367, 68
  %v13160 = vpop.permute.xlu0 %13159
  %13161 = vrot.lane.b32.xlu0 %v12372, 68
  %v13162 = vpop.permute.xlu0 %13161
  %13163 = vrot.lane.b32.xlu0 %v12377, 68
  %v13164 = vpop.permute.xlu0 %13163
  %13165 = vrot.lane.b32.xlu0 %v12382, 68
  %v13166 = vpop.permute.xlu0 %13165
  %13167 = vrot.lane.b32.xlu0 %v12387, 68
  %v13168 = vpop.permute.xlu0 %13167
  %13169 = vrot.lane.b32.xlu0 %v12392, 68
  %v13170 = vpop.permute.xlu0 %13169
  %13171 = vrot.lane.b32.xlu0 %v12397, 68
  %v13172 = vpop.permute.xlu0 %13171
  %13173 = vrot.lane.b32.xlu0 %v12402, 68
  %v13174 = vpop.permute.xlu0 %13173
  %13175 = vrot.lane.b32.xlu0 %v12407, 68
  %v13176 = vpop.permute.xlu0 %13175
  %13177 = vrot.lane.b32.xlu0 %v12412, 68
  %v13178 = vpop.permute.xlu0 %13177
  %13179 = vrot.lane.b32.xlu0 %v12417, 68
  %v13180 = vpop.permute.xlu0 %13179
  %13181 = vrot.lane.b32.xlu0 %v12422, 68
  %v13182 = vpop.permute.xlu0 %13181
  %13183 = vrot.lane.b32.xlu0 %v12427, 68
  %v13184 = vpop.permute.xlu0 %13183
  %13185 = vrot.lane.b32.xlu0 %v12432, 68
  %v13186 = vpop.permute.xlu0 %13185
  %13187 = vrot.lane.b32.xlu0 %v12437, 68
  %v13188 = vpop.permute.xlu0 %13187
  %13189 = vrot.lane.b32.xlu0 %v12442, 68
  %v13190 = vpop.permute.xlu0 %13189
  %13191 = vrot.lane.b32.xlu0 %v12447, 68
  %v13192 = vpop.permute.xlu0 %13191
  %13193 = vrot.lane.b32.xlu0 %v12452, 68
  %v13194 = vpop.permute.xlu0 %13193
  %13195 = vrot.lane.b32.xlu0 %v12457, 68
  %v13196 = vpop.permute.xlu0 %13195
  %13197 = vrot.lane.b32.xlu0 %v12462, 68
  %v13198 = vpop.permute.xlu0 %13197
  %13199 = vrot.lane.b32.xlu0 %v12467, 68
  %v13200 = vpop.permute.xlu0 %13199
  %13201 = vrot.lane.b32.xlu0 %v12472, 68
  %v13202 = vpop.permute.xlu0 %13201
  %13203 = vrot.lane.b32.xlu0 %v12477, 68
  %v13204 = vpop.permute.xlu0 %13203
  %13205 = vrot.lane.b32.xlu0 %v12482, 68
  %v13206 = vpop.permute.xlu0 %13205
  %13207 = vrot.lane.b32.xlu0 %v12487, 68
  %v13208 = vpop.permute.xlu0 %13207
  %13209 = vrot.lane.b32.xlu0 %v12492, 68
  %v13210 = vpop.permute.xlu0 %13209
  %13211 = vrot.lane.b32.xlu0 %v12497, 68
  %v13212 = vpop.permute.xlu0 %13211
  %13213 = vrot.lane.b32.xlu0 %v12502, 68
  %v13214 = vpop.permute.xlu0 %13213
  %13215 = vrot.lane.b32.xlu0 %v12507, 68
  %v13216 = vpop.permute.xlu0 %13215
  %13217 = vrot.lane.b32.xlu0 %v12512, 68
  %v13218 = vpop.permute.xlu0 %13217
  %v13283 = vmax.f32 %v13027, %v13092
  %v13284 = vmax.f32 %v13028, %v13094
  %v13285 = vmax.f32 %v13029, %v13096
  %v13286 = vmax.f32 %v13030, %v13098
  %v13287 = vmax.f32 %v13031, %v13100
  %v13288 = vmax.f32 %v13032, %v13102
  %v13289 = vmax.f32 %v13033, %v13104
  %v13290 = vmax.f32 %v13034, %v13106
  %v13291 = vmax.f32 %v13035, %v13108
  %v13292 = vmax.f32 %v13036, %v13110
  %v13293 = vmax.f32 %v13037, %v13112
  %v13294 = vmax.f32 %v13038, %v13114
  %v13295 = vmax.f32 %v13039, %v13116
  %v13296 = vmax.f32 %v13040, %v13118
  %v13297 = vmax.f32 %v13041, %v13120
  %v13298 = vmax.f32 %v13042, %v13122
  %v13299 = vmax.f32 %v13043, %v13124
  %v13300 = vmax.f32 %v13044, %v13126
  %v13301 = vmax.f32 %v13045, %v13128
  %v13302 = vmax.f32 %v13046, %v13130
  %v13303 = vmax.f32 %v13047, %v13132
  %v13304 = vmax.f32 %v13048, %v13134
  %v13305 = vmax.f32 %v13049, %v13136
  %v13306 = vmax.f32 %v13050, %v13138
  %v13307 = vmax.f32 %v13051, %v13140
  %v13308 = vmax.f32 %v13052, %v13142
  %v13309 = vmax.f32 %v13053, %v13144
  %v13310 = vmax.f32 %v13054, %v13146
  %v13311 = vmax.f32 %v13055, %v13148
  %v13312 = vmax.f32 %v13056, %v13150
  %v13313 = vmax.f32 %v13057, %v13152
  %v13314 = vmax.f32 %v13058, %v13154
  %v13315 = vmax.f32 %v13059, %v13156
  %v13316 = vmax.f32 %v13060, %v13158
  %v13317 = vmax.f32 %v13061, %v13160
  %v13318 = vmax.f32 %v13062, %v13162
  %v13319 = vmax.f32 %v13063, %v13164
  %v13320 = vmax.f32 %v13064, %v13166
  %v13321 = vmax.f32 %v13065, %v13168
  %v13322 = vmax.f32 %v13066, %v13170
  %v13323 = vmax.f32 %v13067, %v13172
  %v13324 = vmax.f32 %v13068, %v13174
  %v13325 = vmax.f32 %v13069, %v13176
  %v13326 = vmax.f32 %v13070, %v13178
  %v13327 = vmax.f32 %v13071, %v13180
  %v13328 = vmax.f32 %v13072, %v13182
  %v13329 = vmax.f32 %v13073, %v13184
  %v13330 = vmax.f32 %v13074, %v13186
  %v13331 = vmax.f32 %v13075, %v13188
  %v13332 = vmax.f32 %v13076, %v13190
  %v13333 = vmax.f32 %v13077, %v13192
  %v13334 = vmax.f32 %v13078, %v13194
  %v13335 = vmax.f32 %v13079, %v13196
  %v13336 = vmax.f32 %v13080, %v13198
  %v13337 = vmax.f32 %v13081, %v13200
  %v13338 = vmax.f32 %v13082, %v13202
  %v13339 = vmax.f32 %v13083, %v13204
  %v13340 = vmax.f32 %v13084, %v13206
  %v13341 = vmax.f32 %v13085, %v13208
  %v13342 = vmax.f32 %v13086, %v13210
  %v13343 = vmax.f32 %v13087, %v13212
  %v13344 = vmax.f32 %v13088, %v13214
  %v13345 = vmax.f32 %v13089, %v13216
  %v13346 = vmax.f32 %v13090, %v13218
  %v13347 = vld [vmem:[%s4] sm:$0x1]
  %v13349 = vlaneseq
  %v13350 = vshrl.u32 %v13349, 7
  %v13351 = vsub.s32 0, %v13350
  %v13352 = vrot.slane %v13347, %v13351
  %v13354 = vadd.f32 %v13283, %v13352
  %v13355 = vadd.f32 %v13284, %v13352
  %v13356 = vadd.f32 %v13285, %v13352
  %v13357 = vadd.f32 %v13286, %v13352
  %v13358 = vadd.f32 %v13287, %v13352
  %v13359 = vadd.f32 %v13288, %v13352
  %v13360 = vadd.f32 %v13289, %v13352
  %v13361 = vadd.f32 %v13290, %v13352
  %v13362 = vadd.f32 %v13291, %v13352
  %v13363 = vadd.f32 %v13292, %v13352
  %v13364 = vadd.f32 %v13293, %v13352
  %v13365 = vadd.f32 %v13294, %v13352
  %v13366 = vadd.f32 %v13295, %v13352
  %v13367 = vadd.f32 %v13296, %v13352
  %v13368 = vadd.f32 %v13297, %v13352
  %v13369 = vadd.f32 %v13298, %v13352
  %v13370 = vadd.f32 %v13299, %v13352
  %v13371 = vadd.f32 %v13300, %v13352
  %v13372 = vadd.f32 %v13301, %v13352
  %v13373 = vadd.f32 %v13302, %v13352
  %v13374 = vadd.f32 %v13303, %v13352
  %v13375 = vadd.f32 %v13304, %v13352
  %v13376 = vadd.f32 %v13305, %v13352
  %v13377 = vadd.f32 %v13306, %v13352
  %v13378 = vadd.f32 %v13307, %v13352
  %v13379 = vadd.f32 %v13308, %v13352
  %v13380 = vadd.f32 %v13309, %v13352
  %v13381 = vadd.f32 %v13310, %v13352
  %v13382 = vadd.f32 %v13311, %v13352
  %v13383 = vadd.f32 %v13312, %v13352
  %v13384 = vadd.f32 %v13313, %v13352
  %v13385 = vadd.f32 %v13314, %v13352
  %v13386 = vadd.f32 %v13315, %v13352
  %v13387 = vadd.f32 %v13316, %v13352
  %v13388 = vadd.f32 %v13317, %v13352
  %v13389 = vadd.f32 %v13318, %v13352
  %v13390 = vadd.f32 %v13319, %v13352
  %v13391 = vadd.f32 %v13320, %v13352
  %v13392 = vadd.f32 %v13321, %v13352
  %v13393 = vadd.f32 %v13322, %v13352
  %v13394 = vadd.f32 %v13323, %v13352
  %v13395 = vadd.f32 %v13324, %v13352
  %v13396 = vadd.f32 %v13325, %v13352
  %v13397 = vadd.f32 %v13326, %v13352
  %v13398 = vadd.f32 %v13327, %v13352
  %v13399 = vadd.f32 %v13328, %v13352
  %v13400 = vadd.f32 %v13329, %v13352
  %v13401 = vadd.f32 %v13330, %v13352
  %v13402 = vadd.f32 %v13331, %v13352
  %v13403 = vadd.f32 %v13332, %v13352
  %v13404 = vadd.f32 %v13333, %v13352
  %v13405 = vadd.f32 %v13334, %v13352
  %v13406 = vadd.f32 %v13335, %v13352
  %v13407 = vadd.f32 %v13336, %v13352
  %v13408 = vadd.f32 %v13337, %v13352
  %v13409 = vadd.f32 %v13338, %v13352
  %v13410 = vadd.f32 %v13339, %v13352
  %v13411 = vadd.f32 %v13340, %v13352
  %v13412 = vadd.f32 %v13341, %v13352
  %v13413 = vadd.f32 %v13342, %v13352
  %v13414 = vadd.f32 %v13343, %v13352
  %v13415 = vadd.f32 %v13344, %v13352
  %v13416 = vadd.f32 %v13345, %v13352
  %v13417 = vadd.f32 %v13346, %v13352
  %v13418 = vmax.f32 %v13354, 0.0
  %v13419 = vmax.f32 %v13355, 0.0
  %v13420 = vmax.f32 %v13356, 0.0
  %v13421 = vmax.f32 %v13357, 0.0
  %v13422 = vmax.f32 %v13358, 0.0
  %v13423 = vmax.f32 %v13359, 0.0
  %v13424 = vmax.f32 %v13360, 0.0
  %v13425 = vmax.f32 %v13361, 0.0
  %v13426 = vmax.f32 %v13362, 0.0
  %v13427 = vmax.f32 %v13363, 0.0
  %v13428 = vmax.f32 %v13364, 0.0
  %v13429 = vmax.f32 %v13365, 0.0
  %v13430 = vmax.f32 %v13366, 0.0
  %v13431 = vmax.f32 %v13367, 0.0
  %v13432 = vmax.f32 %v13368, 0.0
  %v13433 = vmax.f32 %v13369, 0.0
  %v13434 = vmax.f32 %v13370, 0.0
  %v13435 = vmax.f32 %v13371, 0.0
  %v13436 = vmax.f32 %v13372, 0.0
  %v13437 = vmax.f32 %v13373, 0.0
  %v13438 = vmax.f32 %v13374, 0.0
  %v13439 = vmax.f32 %v13375, 0.0
  %v13440 = vmax.f32 %v13376, 0.0
  %v13441 = vmax.f32 %v13377, 0.0
  %v13442 = vmax.f32 %v13378, 0.0
  %v13443 = vmax.f32 %v13379, 0.0
  %v13444 = vmax.f32 %v13380, 0.0
  %v13445 = vmax.f32 %v13381, 0.0
  %v13446 = vmax.f32 %v13382, 0.0
  %v13447 = vmax.f32 %v13383, 0.0
  %v13448 = vmax.f32 %v13384, 0.0
  %v13449 = vmax.f32 %v13385, 0.0
  %v13450 = vmax.f32 %v13386, 0.0
  %v13451 = vmax.f32 %v13387, 0.0
  %v13452 = vmax.f32 %v13388, 0.0
  %v13453 = vmax.f32 %v13389, 0.0
  %v13454 = vmax.f32 %v13390, 0.0
  %v13455 = vmax.f32 %v13391, 0.0
  %v13456 = vmax.f32 %v13392, 0.0
  %v13457 = vmax.f32 %v13393, 0.0
  %v13458 = vmax.f32 %v13394, 0.0
  %v13459 = vmax.f32 %v13395, 0.0
  %v13460 = vmax.f32 %v13396, 0.0
  %v13461 = vmax.f32 %v13397, 0.0
  %v13462 = vmax.f32 %v13398, 0.0
  %v13463 = vmax.f32 %v13399, 0.0
  %v13464 = vmax.f32 %v13400, 0.0
  %v13465 = vmax.f32 %v13401, 0.0
  %v13466 = vmax.f32 %v13402, 0.0
  %v13467 = vmax.f32 %v13403, 0.0
  %v13468 = vmax.f32 %v13404, 0.0
  %v13469 = vmax.f32 %v13405, 0.0
  %v13470 = vmax.f32 %v13406, 0.0
  %v13471 = vmax.f32 %v13407, 0.0
  %v13472 = vmax.f32 %v13408, 0.0
  %v13473 = vmax.f32 %v13409, 0.0
  %v13474 = vmax.f32 %v13410, 0.0
  %v13475 = vmax.f32 %v13411, 0.0
  %v13476 = vmax.f32 %v13412, 0.0
  %v13477 = vmax.f32 %v13413, 0.0
  %v13478 = vmax.f32 %v13414, 0.0
  %v13479 = vmax.f32 %v13415, 0.0
  %v13480 = vmax.f32 %v13416, 0.0
  %v13481 = vmax.f32 %v13417, 0.0
  %v13490 = vrot.slane %v13426, 7
  %vm13491 = vcmask 1041409
  %v13492 = vsel %vm13491, %v13490, %v13418
  %v13493 = vrot.slane %v13434, 6
  %vm13494 = vcmask 1042434
  %v13495 = vsel %vm13494, %v13493, %v13492
  %v13496 = vrot.slane %v13442, 5
  %vm13497 = vcmask 1043459
  %v13498 = vsel %vm13497, %v13496, %v13495
  %v13499 = vrot.slane %v13450, 4
  %vm13500 = vcmask 1044484
  %v13501 = vsel %vm13500, %v13499, %v13498
  %v13502 = vrot.slane %v13458, 3
  %vm13503 = vcmask 1045509
  %v13504 = vsel %vm13503, %v13502, %v13501
  %v13505 = vrot.slane %v13466, 2
  %vm13506 = vcmask 1046534
  %v13507 = vsel %vm13506, %v13505, %v13504
  %v13508 = vrot.slane %v13474, 1
  %vm13509 = vcmask 1047559
  %v13510 = vsel %vm13509, %v13508, %v13507
  %v13512 = vrot.slane %v13418, 1
  %v13513 = vsel %vm13491, %v13426, %v13512
  %v13514 = vrot.slane %v13434, 7
  %v13515 = vsel %vm13494, %v13514, %v13513
  %v13516 = vrot.slane %v13442, 6
  %v13517 = vsel %vm13497, %v13516, %v13515
  %v13518 = vrot.slane %v13450, 5
  %v13519 = vsel %vm13500, %v13518, %v13517
  %v13520 = vrot.slane %v13458, 4
  %v13521 = vsel %vm13503, %v13520, %v13519
  %v13522 = vrot.slane %v13466, 3
  %v13523 = vsel %vm13506, %v13522, %v13521
  %v13524 = vrot.slane %v13474, 2
  %v13525 = vsel %vm13509, %v13524, %v13523
  %13526 = vrot.lane.b32.xlu0 %v13525, 20
  %v13527 = vpop.permute.xlu0 %13526
  %v13529 = vrot.slane %v13418, 2
  %v13530 = vrot.slane %v13426, 1
  %v13531 = vsel %vm13491, %v13530, %v13529
  %v13532 = vsel %vm13494, %v13434, %v13531
  %v13533 = vrot.slane %v13442, 7
  %v13534 = vsel %vm13497, %v13533, %v13532
  %v13535 = vrot.slane %v13450, 6
  %v13536 = vsel %vm13500, %v13535, %v13534
  %v13537 = vrot.slane %v13458, 5
  %v13538 = vsel %vm13503, %v13537, %v13536
  %v13539 = vrot.slane %v13466, 4
  %v13540 = vsel %vm13506, %v13539, %v13538
  %v13541 = vrot.slane %v13474, 3
  %v13542 = vsel %vm13509, %v13541, %v13540
  %13543 = vrot.lane.b32.xlu0 %v13542, 40
  %v13544 = vpop.permute.xlu0 %13543
  %v13546 = vrot.slane %v13418, 3
  %v13547 = vrot.slane %v13426, 2
  %v13548 = vsel %vm13491, %v13547, %v13546
  %v13549 = vrot.slane %v13434, 1
  %v13550 = vsel %vm13494, %v13549, %v13548
  %v13551 = vsel %vm13497, %v13442, %v13550
  %v13552 = vrot.slane %v13450, 7
  %v13553 = vsel %vm13500, %v13552, %v13551
  %v13554 = vrot.slane %v13458, 6
  %v13555 = vsel %vm13503, %v13554, %v13553
  %v13556 = vrot.slane %v13466, 5
  %v13557 = vsel %vm13506, %v13556, %v13555
  %v13558 = vrot.slane %v13474, 4
  %v13559 = vsel %vm13509, %v13558, %v13557
  %13560 = vrot.lane.b32.xlu0 %v13559, 60
  %v13561 = vpop.permute.xlu0 %13560
  %v13563 = vrot.slane %v13418, 4
  %v13564 = vrot.slane %v13426, 3
  %v13565 = vsel %vm13491, %v13564, %v13563
  %v13566 = vrot.slane %v13434, 2
  %v13567 = vsel %vm13494, %v13566, %v13565
  %v13568 = vrot.slane %v13442, 1
  %v13569 = vsel %vm13497, %v13568, %v13567
  %v13570 = vsel %vm13500, %v13450, %v13569
  %v13571 = vrot.slane %v13458, 7
  %v13572 = vsel %vm13503, %v13571, %v13570
  %v13573 = vrot.slane %v13466, 6
  %v13574 = vsel %vm13506, %v13573, %v13572
  %v13575 = vrot.slane %v13474, 5
  %v13576 = vsel %vm13509, %v13575, %v13574
  %13577 = vrot.lane.b32.xlu0 %v13576, 80
  %v13578 = vpop.permute.xlu0 %13577
  %v13580 = vrot.slane %v13418, 5
  %v13581 = vrot.slane %v13426, 4
  %v13582 = vsel %vm13491, %v13581, %v13580
  %v13583 = vrot.slane %v13434, 3
  %v13584 = vsel %vm13494, %v13583, %v13582
  %v13585 = vrot.slane %v13442, 2
  %v13586 = vsel %vm13497, %v13585, %v13584
  %v13587 = vrot.slane %v13450, 1
  %v13588 = vsel %vm13500, %v13587, %v13586
  %v13589 = vsel %vm13503, %v13458, %v13588
  %v13590 = vrot.slane %v13466, 7
  %v13591 = vsel %vm13506, %v13590, %v13589
  %v13592 = vrot.slane %v13474, 6
  %v13593 = vsel %vm13509, %v13592, %v13591
  %13594 = vrot.lane.b32.xlu0 %v13593, 100
  %v13595 = vpop.permute.xlu0 %13594
  %v13597 = vrot.slane %v13418, 6
  %v13598 = vrot.slane %v13426, 5
  %v13599 = vsel %vm13491, %v13598, %v13597
  %v13600 = vrot.slane %v13434, 4
  %v13601 = vsel %vm13494, %v13600, %v13599
  %v13602 = vrot.slane %v13442, 3
  %v13603 = vsel %vm13497, %v13602, %v13601
  %v13604 = vrot.slane %v13450, 2
  %v13605 = vsel %vm13500, %v13604, %v13603
  %v13606 = vrot.slane %v13458, 1
  %v13607 = vsel %vm13503, %v13606, %v13605
  %v13608 = vsel %vm13506, %v13466, %v13607
  %v13609 = vrot.slane %v13474, 7
  %v13610 = vsel %vm13509, %v13609, %v13608
  %13611 = vrot.lane.b32.xlu0 %v13610, 120
  %v13612 = vpop.permute.xlu0 %13611
  %v13614 = vrot.slane %v13418, 7
  %v13615 = vrot.slane %v13426, 6
  %v13616 = vsel %vm13491, %v13615, %v13614
  %v13617 = vrot.slane %v13434, 5
  %v13618 = vsel %vm13494, %v13617, %v13616
  %v13619 = vrot.slane %v13442, 4
  %v13620 = vsel %vm13497, %v13619, %v13618
  %v13621 = vrot.slane %v13450, 3
  %v13622 = vsel %vm13500, %v13621, %v13620
  %v13623 = vrot.slane %v13458, 2
  %v13624 = vsel %vm13503, %v13623, %v13622
  %v13625 = vrot.slane %v13466, 1
  %v13626 = vsel %vm13506, %v13625, %v13624
  %v13627 = vsel %vm13509, %v13474, %v13626
  %13628 = vrot.lane.b32.xlu0 %v13627, 12
  %v13629 = vpop.permute.xlu0 %13628
  %v13639 = vrot.slane %v13427, 7
  %v13640 = vsel %vm13491, %v13639, %v13419
  %v13641 = vrot.slane %v13435, 6
  %v13642 = vsel %vm13494, %v13641, %v13640
  %v13643 = vrot.slane %v13443, 5
  %v13644 = vsel %vm13497, %v13643, %v13642
  %v13645 = vrot.slane %v13451, 4
  %v13646 = vsel %vm13500, %v13645, %v13644
  %v13647 = vrot.slane %v13459, 3
  %v13648 = vsel %vm13503, %v13647, %v13646
  %v13649 = vrot.slane %v13467, 2
  %v13650 = vsel %vm13506, %v13649, %v13648
  %v13651 = vrot.slane %v13475, 1
  %v13652 = vsel %vm13509, %v13651, %v13650
  %13653 = vrot.lane.b32.xlu0 %v13652, 32
  %v13654 = vpop.permute.xlu0 %13653
  %v13656 = vrot.slane %v13419, 1
  %v13657 = vsel %vm13491, %v13427, %v13656
  %v13658 = vrot.slane %v13435, 7
  %v13659 = vsel %vm13494, %v13658, %v13657
  %v13660 = vrot.slane %v13443, 6
  %v13661 = vsel %vm13497, %v13660, %v13659
  %v13662 = vrot.slane %v13451, 5
  %v13663 = vsel %vm13500, %v13662, %v13661
  %v13664 = vrot.slane %v13459, 4
  %v13665 = vsel %vm13503, %v13664, %v13663
  %v13666 = vrot.slane %v13467, 3
  %v13667 = vsel %vm13506, %v13666, %v13665
  %v13668 = vrot.slane %v13475, 2
  %v13669 = vsel %vm13509, %v13668, %v13667
  %13670 = vrot.lane.b32.xlu0 %v13669, 52
  %v13671 = vpop.permute.xlu0 %13670
  %v13673 = vrot.slane %v13419, 2
  %v13674 = vrot.slane %v13427, 1
  %v13675 = vsel %vm13491, %v13674, %v13673
  %v13676 = vsel %vm13494, %v13435, %v13675
  %v13677 = vrot.slane %v13443, 7
  %v13678 = vsel %vm13497, %v13677, %v13676
  %v13679 = vrot.slane %v13451, 6
  %v13680 = vsel %vm13500, %v13679, %v13678
  %v13681 = vrot.slane %v13459, 5
  %v13682 = vsel %vm13503, %v13681, %v13680
  %v13683 = vrot.slane %v13467, 4
  %v13684 = vsel %vm13506, %v13683, %v13682
  %v13685 = vrot.slane %v13475, 3
  %v13686 = vsel %vm13509, %v13685, %v13684
  %13687 = vrot.lane.b32.xlu0 %v13686, 72
  %v13688 = vpop.permute.xlu0 %13687
  %v13690 = vrot.slane %v13419, 3
  %v13691 = vrot.slane %v13427, 2
  %v13692 = vsel %vm13491, %v13691, %v13690
  %v13693 = vrot.slane %v13435, 1
  %v13694 = vsel %vm13494, %v13693, %v13692
  %v13695 = vsel %vm13497, %v13443, %v13694
  %v13696 = vrot.slane %v13451, 7
  %v13697 = vsel %vm13500, %v13696, %v13695
  %v13698 = vrot.slane %v13459, 6
  %v13699 = vsel %vm13503, %v13698, %v13697
  %v13700 = vrot.slane %v13467, 5
  %v13701 = vsel %vm13506, %v13700, %v13699
  %v13702 = vrot.slane %v13475, 4
  %v13703 = vsel %vm13509, %v13702, %v13701
  %13704 = vrot.lane.b32.xlu0 %v13703, 92
  %v13705 = vpop.permute.xlu0 %13704
  %v13707 = vrot.slane %v13419, 4
  %v13708 = vrot.slane %v13427, 3
  %v13709 = vsel %vm13491, %v13708, %v13707
  %v13710 = vrot.slane %v13435, 2
  %v13711 = vsel %vm13494, %v13710, %v13709
  %v13712 = vrot.slane %v13443, 1
  %v13713 = vsel %vm13497, %v13712, %v13711
  %v13714 = vsel %vm13500, %v13451, %v13713
  %v13715 = vrot.slane %v13459, 7
  %v13716 = vsel %vm13503, %v13715, %v13714
  %v13717 = vrot.slane %v13467, 6
  %v13718 = vsel %vm13506, %v13717, %v13716
  %v13719 = vrot.slane %v13475, 5
  %v13720 = vsel %vm13509, %v13719, %v13718
  %13721 = vrot.lane.b32.xlu0 %v13720, 112
  %v13722 = vpop.permute.xlu0 %13721
  %v13724 = vrot.slane %v13419, 5
  %v13725 = vrot.slane %v13427, 4
  %v13726 = vsel %vm13491, %v13725, %v13724
  %v13727 = vrot.slane %v13435, 3
  %v13728 = vsel %vm13494, %v13727, %v13726
  %v13729 = vrot.slane %v13443, 2
  %v13730 = vsel %vm13497, %v13729, %v13728
  %v13731 = vrot.slane %v13451, 1
  %v13732 = vsel %vm13500, %v13731, %v13730
  %v13733 = vsel %vm13503, %v13459, %v13732
  %v13734 = vrot.slane %v13467, 7
  %v13735 = vsel %vm13506, %v13734, %v13733
  %v13736 = vrot.slane %v13475, 6
  %v13737 = vsel %vm13509, %v13736, %v13735
  %13738 = vrot.lane.b32.xlu0 %v13737, 4
  %v13739 = vpop.permute.xlu0 %13738
  %v13741 = vrot.slane %v13419, 6
  %v13742 = vrot.slane %v13427, 5
  %v13743 = vsel %vm13491, %v13742, %v13741
  %v13744 = vrot.slane %v13435, 4
  %v13745 = vsel %vm13494, %v13744, %v13743
  %v13746 = vrot.slane %v13443, 3
  %v13747 = vsel %vm13497, %v13746, %v13745
  %v13748 = vrot.slane %v13451, 2
  %v13749 = vsel %vm13500, %v13748, %v13747
  %v13750 = vrot.slane %v13459, 1
  %v13751 = vsel %vm13503, %v13750, %v13749
  %v13752 = vsel %vm13506, %v13467, %v13751
  %v13753 = vrot.slane %v13475, 7
  %v13754 = vsel %vm13509, %v13753, %v13752
  %13755 = vrot.lane.b32.xlu0 %v13754, 24
  %v13756 = vpop.permute.xlu0 %13755
  %v13758 = vrot.slane %v13419, 7
  %v13759 = vrot.slane %v13427, 6
  %v13760 = vsel %vm13491, %v13759, %v13758
  %v13761 = vrot.slane %v13435, 5
  %v13762 = vsel %vm13494, %v13761, %v13760
  %v13763 = vrot.slane %v13443, 4
  %v13764 = vsel %vm13497, %v13763, %v13762
  %v13765 = vrot.slane %v13451, 3
  %v13766 = vsel %vm13500, %v13765, %v13764
  %v13767 = vrot.slane %v13459, 2
  %v13768 = vsel %vm13503, %v13767, %v13766
  %v13769 = vrot.slane %v13467, 1
  %v13770 = vsel %vm13506, %v13769, %v13768
  %v13771 = vsel %vm13509, %v13475, %v13770
  %13772 = vrot.lane.b32.xlu0 %v13771, 44
  %v13773 = vpop.permute.xlu0 %13772
  %v13775 = vsel %vm11007, %v13510, %v13527
  %v13776 = vsel %vm11137, %v13775, %v13544
  %v13777 = vsel %vm11267, %v13776, %v13561
  %v13778 = vsel %vm11397, %v13777, %v13578
  %v13779 = vsel %vm11527, %v13778, %v13595
  %v13780 = vsel %vm11657, %v13779, %v13612
  %v13781 = vsel %vm11787, %v13612, %v13629
  %v13782 = vsel %vm11937, %v13781, %v13654
  %vm13783 = vcmask 424960
  %v13784 = vsel %vm13783, %v13782, %v13671
  %vm13785 = vcmask 588800
  %v13786 = vsel %vm13785, %v13784, %v13688
  %vm13787 = vcmask 752640
  %v13788 = vsel %vm13787, %v13786, %v13705
  %vm13789 = vcmask 916480
  %v13790 = vsel %vm13789, %v13788, %v13722
  %vm13791 = vcmask 31744
  %v13792 = vsel %vm13791, %v13722, %v13739
  %vm13793 = vcmask 195584
  %v13794 = vsel %vm13793, %v13792, %v13756
  %vm13795 = vcmask 359424
  %v13796 = vsel %vm13795, %v13794, %v13773
  %v13805 = vrot.slane %v13428, 7
  %v13806 = vsel %vm13491, %v13805, %v13420
  %v13807 = vrot.slane %v13436, 6
  %v13808 = vsel %vm13494, %v13807, %v13806
  %v13809 = vrot.slane %v13444, 5
  %v13810 = vsel %vm13497, %v13809, %v13808
  %v13811 = vrot.slane %v13452, 4
  %v13812 = vsel %vm13500, %v13811, %v13810
  %v13813 = vrot.slane %v13460, 3
  %v13814 = vsel %vm13503, %v13813, %v13812
  %v13815 = vrot.slane %v13468, 2
  %v13816 = vsel %vm13506, %v13815, %v13814
  %v13817 = vrot.slane %v13476, 1
  %v13818 = vsel %vm13509, %v13817, %v13816
  %v13820 = vrot.slane %v13420, 1
  %v13821 = vsel %vm13491, %v13428, %v13820
  %v13822 = vrot.slane %v13436, 7
  %v13823 = vsel %vm13494, %v13822, %v13821
  %v13824 = vrot.slane %v13444, 6
  %v13825 = vsel %vm13497, %v13824, %v13823
  %v13826 = vrot.slane %v13452, 5
  %v13827 = vsel %vm13500, %v13826, %v13825
  %v13828 = vrot.slane %v13460, 4
  %v13829 = vsel %vm13503, %v13828, %v13827
  %v13830 = vrot.slane %v13468, 3
  %v13831 = vsel %vm13506, %v13830, %v13829
  %v13832 = vrot.slane %v13476, 2
  %v13833 = vsel %vm13509, %v13832, %v13831
  %13834 = vrot.lane.b32.xlu0 %v13833, 20
  %v13835 = vpop.permute.xlu0 %13834
  %v13837 = vrot.slane %v13420, 2
  %v13838 = vrot.slane %v13428, 1
  %v13839 = vsel %vm13491, %v13838, %v13837
  %v13840 = vsel %vm13494, %v13436, %v13839
  %v13841 = vrot.slane %v13444, 7
  %v13842 = vsel %vm13497, %v13841, %v13840
  %v13843 = vrot.slane %v13452, 6
  %v13844 = vsel %vm13500, %v13843, %v13842
  %v13845 = vrot.slane %v13460, 5
  %v13846 = vsel %vm13503, %v13845, %v13844
  %v13847 = vrot.slane %v13468, 4
  %v13848 = vsel %vm13506, %v13847, %v13846
  %v13849 = vrot.slane %v13476, 3
  %v13850 = vsel %vm13509, %v13849, %v13848
  %13851 = vrot.lane.b32.xlu0 %v13850, 40
  %v13852 = vpop.permute.xlu0 %13851
  %v13854 = vrot.slane %v13420, 3
  %v13855 = vrot.slane %v13428, 2
  %v13856 = vsel %vm13491, %v13855, %v13854
  %v13857 = vrot.slane %v13436, 1
  %v13858 = vsel %vm13494, %v13857, %v13856
  %v13859 = vsel %vm13497, %v13444, %v13858
  %v13860 = vrot.slane %v13452, 7
  %v13861 = vsel %vm13500, %v13860, %v13859
  %v13862 = vrot.slane %v13460, 6
  %v13863 = vsel %vm13503, %v13862, %v13861
  %v13864 = vrot.slane %v13468, 5
  %v13865 = vsel %vm13506, %v13864, %v13863
  %v13866 = vrot.slane %v13476, 4
  %v13867 = vsel %vm13509, %v13866, %v13865
  %13868 = vrot.lane.b32.xlu0 %v13867, 60
  %v13869 = vpop.permute.xlu0 %13868
  %v13871 = vrot.slane %v13420, 4
  %v13872 = vrot.slane %v13428, 3
  %v13873 = vsel %vm13491, %v13872, %v13871
  %v13874 = vrot.slane %v13436, 2
  %v13875 = vsel %vm13494, %v13874, %v13873
  %v13876 = vrot.slane %v13444, 1
  %v13877 = vsel %vm13497, %v13876, %v13875
  %v13878 = vsel %vm13500, %v13452, %v13877
  %v13879 = vrot.slane %v13460, 7
  %v13880 = vsel %vm13503, %v13879, %v13878
  %v13881 = vrot.slane %v13468, 6
  %v13882 = vsel %vm13506, %v13881, %v13880
  %v13883 = vrot.slane %v13476, 5
  %v13884 = vsel %vm13509, %v13883, %v13882
  %13885 = vrot.lane.b32.xlu0 %v13884, 80
  %v13886 = vpop.permute.xlu0 %13885
  %v13888 = vrot.slane %v13420, 5
  %v13889 = vrot.slane %v13428, 4
  %v13890 = vsel %vm13491, %v13889, %v13888
  %v13891 = vrot.slane %v13436, 3
  %v13892 = vsel %vm13494, %v13891, %v13890
  %v13893 = vrot.slane %v13444, 2
  %v13894 = vsel %vm13497, %v13893, %v13892
  %v13895 = vrot.slane %v13452, 1
  %v13896 = vsel %vm13500, %v13895, %v13894
  %v13897 = vsel %vm13503, %v13460, %v13896
  %v13898 = vrot.slane %v13468, 7
  %v13899 = vsel %vm13506, %v13898, %v13897
  %v13900 = vrot.slane %v13476, 6
  %v13901 = vsel %vm13509, %v13900, %v13899
  %13902 = vrot.lane.b32.xlu0 %v13901, 100
  %v13903 = vpop.permute.xlu0 %13902
  %v13905 = vrot.slane %v13420, 6
  %v13906 = vrot.slane %v13428, 5
  %v13907 = vsel %vm13491, %v13906, %v13905
  %v13908 = vrot.slane %v13436, 4
  %v13909 = vsel %vm13494, %v13908, %v13907
  %v13910 = vrot.slane %v13444, 3
  %v13911 = vsel %vm13497, %v13910, %v13909
  %v13912 = vrot.slane %v13452, 2
  %v13913 = vsel %vm13500, %v13912, %v13911
  %v13914 = vrot.slane %v13460, 1
  %v13915 = vsel %vm13503, %v13914, %v13913
  %v13916 = vsel %vm13506, %v13468, %v13915
  %v13917 = vrot.slane %v13476, 7
  %v13918 = vsel %vm13509, %v13917, %v13916
  %13919 = vrot.lane.b32.xlu0 %v13918, 120
  %v13920 = vpop.permute.xlu0 %13919
  %v13922 = vrot.slane %v13420, 7
  %v13923 = vrot.slane %v13428, 6
  %v13924 = vsel %vm13491, %v13923, %v13922
  %v13925 = vrot.slane %v13436, 5
  %v13926 = vsel %vm13494, %v13925, %v13924
  %v13927 = vrot.slane %v13444, 4
  %v13928 = vsel %vm13497, %v13927, %v13926
  %v13929 = vrot.slane %v13452, 3
  %v13930 = vsel %vm13500, %v13929, %v13928
  %v13931 = vrot.slane %v13460, 2
  %v13932 = vsel %vm13503, %v13931, %v13930
  %v13933 = vrot.slane %v13468, 1
  %v13934 = vsel %vm13506, %v13933, %v13932
  %v13935 = vsel %vm13509, %v13476, %v13934
  %13936 = vrot.lane.b32.xlu0 %v13935, 12
  %v13937 = vpop.permute.xlu0 %13936
  %v13947 = vrot.slane %v13429, 7
  %v13948 = vsel %vm13491, %v13947, %v13421
  %v13949 = vrot.slane %v13437, 6
  %v13950 = vsel %vm13494, %v13949, %v13948
  %v13951 = vrot.slane %v13445, 5
  %v13952 = vsel %vm13497, %v13951, %v13950
  %v13953 = vrot.slane %v13453, 4
  %v13954 = vsel %vm13500, %v13953, %v13952
  %v13955 = vrot.slane %v13461, 3
  %v13956 = vsel %vm13503, %v13955, %v13954
  %v13957 = vrot.slane %v13469, 2
  %v13958 = vsel %vm13506, %v13957, %v13956
  %v13959 = vrot.slane %v13477, 1
  %v13960 = vsel %vm13509, %v13959, %v13958
  %13961 = vrot.lane.b32.xlu0 %v13960, 32
  %v13962 = vpop.permute.xlu0 %13961
  %v13964 = vrot.slane %v13421, 1
  %v13965 = vsel %vm13491, %v13429, %v13964
  %v13966 = vrot.slane %v13437, 7
  %v13967 = vsel %vm13494, %v13966, %v13965
  %v13968 = vrot.slane %v13445, 6
  %v13969 = vsel %vm13497, %v13968, %v13967
  %v13970 = vrot.slane %v13453, 5
  %v13971 = vsel %vm13500, %v13970, %v13969
  %v13972 = vrot.slane %v13461, 4
  %v13973 = vsel %vm13503, %v13972, %v13971
  %v13974 = vrot.slane %v13469, 3
  %v13975 = vsel %vm13506, %v13974, %v13973
  %v13976 = vrot.slane %v13477, 2
  %v13977 = vsel %vm13509, %v13976, %v13975
  %13978 = vrot.lane.b32.xlu0 %v13977, 52
  %v13979 = vpop.permute.xlu0 %13978
  %v13981 = vrot.slane %v13421, 2
  %v13982 = vrot.slane %v13429, 1
  %v13983 = vsel %vm13491, %v13982, %v13981
  %v13984 = vsel %vm13494, %v13437, %v13983
  %v13985 = vrot.slane %v13445, 7
  %v13986 = vsel %vm13497, %v13985, %v13984
  %v13987 = vrot.slane %v13453, 6
  %v13988 = vsel %vm13500, %v13987, %v13986
  %v13989 = vrot.slane %v13461, 5
  %v13990 = vsel %vm13503, %v13989, %v13988
  %v13991 = vrot.slane %v13469, 4
  %v13992 = vsel %vm13506, %v13991, %v13990
  %v13993 = vrot.slane %v13477, 3
  %v13994 = vsel %vm13509, %v13993, %v13992
  %13995 = vrot.lane.b32.xlu0 %v13994, 72
  %v13996 = vpop.permute.xlu0 %13995
  %v13998 = vrot.slane %v13421, 3
  %v13999 = vrot.slane %v13429, 2
  %v14000 = vsel %vm13491, %v13999, %v13998
  %v14001 = vrot.slane %v13437, 1
  %v14002 = vsel %vm13494, %v14001, %v14000
  %v14003 = vsel %vm13497, %v13445, %v14002
  %v14004 = vrot.slane %v13453, 7
  %v14005 = vsel %vm13500, %v14004, %v14003
  %v14006 = vrot.slane %v13461, 6
  %v14007 = vsel %vm13503, %v14006, %v14005
  %v14008 = vrot.slane %v13469, 5
  %v14009 = vsel %vm13506, %v14008, %v14007
  %v14010 = vrot.slane %v13477, 4
  %v14011 = vsel %vm13509, %v14010, %v14009
  %14012 = vrot.lane.b32.xlu0 %v14011, 92
  %v14013 = vpop.permute.xlu0 %14012
  %v14015 = vrot.slane %v13421, 4
  %v14016 = vrot.slane %v13429, 3
  %v14017 = vsel %vm13491, %v14016, %v14015
  %v14018 = vrot.slane %v13437, 2
  %v14019 = vsel %vm13494, %v14018, %v14017
  %v14020 = vrot.slane %v13445, 1
  %v14021 = vsel %vm13497, %v14020, %v14019
  %v14022 = vsel %vm13500, %v13453, %v14021
  %v14023 = vrot.slane %v13461, 7
  %v14024 = vsel %vm13503, %v14023, %v14022
  %v14025 = vrot.slane %v13469, 6
  %v14026 = vsel %vm13506, %v14025, %v14024
  %v14027 = vrot.slane %v13477, 5
  %v14028 = vsel %vm13509, %v14027, %v14026
  %14029 = vrot.lane.b32.xlu0 %v14028, 112
  %v14030 = vpop.permute.xlu0 %14029
  %v14032 = vrot.slane %v13421, 5
  %v14033 = vrot.slane %v13429, 4
  %v14034 = vsel %vm13491, %v14033, %v14032
  %v14035 = vrot.slane %v13437, 3
  %v14036 = vsel %vm13494, %v14035, %v14034
  %v14037 = vrot.slane %v13445, 2
  %v14038 = vsel %vm13497, %v14037, %v14036
  %v14039 = vrot.slane %v13453, 1
  %v14040 = vsel %vm13500, %v14039, %v14038
  %v14041 = vsel %vm13503, %v13461, %v14040
  %v14042 = vrot.slane %v13469, 7
  %v14043 = vsel %vm13506, %v14042, %v14041
  %v14044 = vrot.slane %v13477, 6
  %v14045 = vsel %vm13509, %v14044, %v14043
  %14046 = vrot.lane.b32.xlu0 %v14045, 4
  %v14047 = vpop.permute.xlu0 %14046
  %v14049 = vrot.slane %v13421, 6
  %v14050 = vrot.slane %v13429, 5
  %v14051 = vsel %vm13491, %v14050, %v14049
  %v14052 = vrot.slane %v13437, 4
  %v14053 = vsel %vm13494, %v14052, %v14051
  %v14054 = vrot.slane %v13445, 3
  %v14055 = vsel %vm13497, %v14054, %v14053
  %v14056 = vrot.slane %v13453, 2
  %v14057 = vsel %vm13500, %v14056, %v14055
  %v14058 = vrot.slane %v13461, 1
  %v14059 = vsel %vm13503, %v14058, %v14057
  %v14060 = vsel %vm13506, %v13469, %v14059
  %v14061 = vrot.slane %v13477, 7
  %v14062 = vsel %vm13509, %v14061, %v14060
  %14063 = vrot.lane.b32.xlu0 %v14062, 24
  %v14064 = vpop.permute.xlu0 %14063
  %v14066 = vrot.slane %v13421, 7
  %v14067 = vrot.slane %v13429, 6
  %v14068 = vsel %vm13491, %v14067, %v14066
  %v14069 = vrot.slane %v13437, 5
  %v14070 = vsel %vm13494, %v14069, %v14068
  %v14071 = vrot.slane %v13445, 4
  %v14072 = vsel %vm13497, %v14071, %v14070
  %v14073 = vrot.slane %v13453, 3
  %v14074 = vsel %vm13500, %v14073, %v14072
  %v14075 = vrot.slane %v13461, 2
  %v14076 = vsel %vm13503, %v14075, %v14074
  %v14077 = vrot.slane %v13469, 1
  %v14078 = vsel %vm13506, %v14077, %v14076
  %v14079 = vsel %vm13509, %v13477, %v14078
  %14080 = vrot.lane.b32.xlu0 %v14079, 44
  %v14081 = vpop.permute.xlu0 %14080
  %v14083 = vsel %vm11007, %v13818, %v13835
  %v14084 = vsel %vm11137, %v14083, %v13852
  %v14085 = vsel %vm11267, %v14084, %v13869
  %v14086 = vsel %vm11397, %v14085, %v13886
  %v14087 = vsel %vm11527, %v14086, %v13903
  %v14088 = vsel %vm11657, %v14087, %v13920
  %v14089 = vsel %vm11787, %v13920, %v13937
  %v14090 = vsel %vm11937, %v14089, %v13962
  %v14091 = vsel %vm13783, %v14090, %v13979
  %v14092 = vsel %vm13785, %v14091, %v13996
  %v14093 = vsel %vm13787, %v14092, %v14013
  %v14094 = vsel %vm13789, %v14093, %v14030
  %v14095 = vsel %vm13791, %v14030, %v14047
  %v14096 = vsel %vm13793, %v14095, %v14064
  %v14097 = vsel %vm13795, %v14096, %v14081
  %v14106 = vrot.slane %v13430, 7
  %v14107 = vsel %vm13491, %v14106, %v13422
  %v14108 = vrot.slane %v13438, 6
  %v14109 = vsel %vm13494, %v14108, %v14107
  %v14110 = vrot.slane %v13446, 5
  %v14111 = vsel %vm13497, %v14110, %v14109
  %v14112 = vrot.slane %v13454, 4
  %v14113 = vsel %vm13500, %v14112, %v14111
  %v14114 = vrot.slane %v13462, 3
  %v14115 = vsel %vm13503, %v14114, %v14113
  %v14116 = vrot.slane %v13470, 2
  %v14117 = vsel %vm13506, %v14116, %v14115
  %v14118 = vrot.slane %v13478, 1
  %v14119 = vsel %vm13509, %v14118, %v14117
  %v14121 = vrot.slane %v13422, 1
  %v14122 = vsel %vm13491, %v13430, %v14121
  %v14123 = vrot.slane %v13438, 7
  %v14124 = vsel %vm13494, %v14123, %v14122
  %v14125 = vrot.slane %v13446, 6
  %v14126 = vsel %vm13497, %v14125, %v14124
  %v14127 = vrot.slane %v13454, 5
  %v14128 = vsel %vm13500, %v14127, %v14126
  %v14129 = vrot.slane %v13462, 4
  %v14130 = vsel %vm13503, %v14129, %v14128
  %v14131 = vrot.slane %v13470, 3
  %v14132 = vsel %vm13506, %v14131, %v14130
  %v14133 = vrot.slane %v13478, 2
  %v14134 = vsel %vm13509, %v14133, %v14132
  %14135 = vrot.lane.b32.xlu0 %v14134, 20
  %v14136 = vpop.permute.xlu0 %14135
  %v14138 = vrot.slane %v13422, 2
  %v14139 = vrot.slane %v13430, 1
  %v14140 = vsel %vm13491, %v14139, %v14138
  %v14141 = vsel %vm13494, %v13438, %v14140
  %v14142 = vrot.slane %v13446, 7
  %v14143 = vsel %vm13497, %v14142, %v14141
  %v14144 = vrot.slane %v13454, 6
  %v14145 = vsel %vm13500, %v14144, %v14143
  %v14146 = vrot.slane %v13462, 5
  %v14147 = vsel %vm13503, %v14146, %v14145
  %v14148 = vrot.slane %v13470, 4
  %v14149 = vsel %vm13506, %v14148, %v14147
  %v14150 = vrot.slane %v13478, 3
  %v14151 = vsel %vm13509, %v14150, %v14149
  %14152 = vrot.lane.b32.xlu0 %v14151, 40
  %v14153 = vpop.permute.xlu0 %14152
  %v14155 = vrot.slane %v13422, 3
  %v14156 = vrot.slane %v13430, 2
  %v14157 = vsel %vm13491, %v14156, %v14155
  %v14158 = vrot.slane %v13438, 1
  %v14159 = vsel %vm13494, %v14158, %v14157
  %v14160 = vsel %vm13497, %v13446, %v14159
  %v14161 = vrot.slane %v13454, 7
  %v14162 = vsel %vm13500, %v14161, %v14160
  %v14163 = vrot.slane %v13462, 6
  %v14164 = vsel %vm13503, %v14163, %v14162
  %v14165 = vrot.slane %v13470, 5
  %v14166 = vsel %vm13506, %v14165, %v14164
  %v14167 = vrot.slane %v13478, 4
  %v14168 = vsel %vm13509, %v14167, %v14166
  %14169 = vrot.lane.b32.xlu0 %v14168, 60
  %v14170 = vpop.permute.xlu0 %14169
  %v14172 = vrot.slane %v13422, 4
  %v14173 = vrot.slane %v13430, 3
  %v14174 = vsel %vm13491, %v14173, %v14172
  %v14175 = vrot.slane %v13438, 2
  %v14176 = vsel %vm13494, %v14175, %v14174
  %v14177 = vrot.slane %v13446, 1
  %v14178 = vsel %vm13497, %v14177, %v14176
  %v14179 = vsel %vm13500, %v13454, %v14178
  %v14180 = vrot.slane %v13462, 7
  %v14181 = vsel %vm13503, %v14180, %v14179
  %v14182 = vrot.slane %v13470, 6
  %v14183 = vsel %vm13506, %v14182, %v14181
  %v14184 = vrot.slane %v13478, 5
  %v14185 = vsel %vm13509, %v14184, %v14183
  %14186 = vrot.lane.b32.xlu0 %v14185, 80
  %v14187 = vpop.permute.xlu0 %14186
  %v14189 = vrot.slane %v13422, 5
  %v14190 = vrot.slane %v13430, 4
  %v14191 = vsel %vm13491, %v14190, %v14189
  %v14192 = vrot.slane %v13438, 3
  %v14193 = vsel %vm13494, %v14192, %v14191
  %v14194 = vrot.slane %v13446, 2
  %v14195 = vsel %vm13497, %v14194, %v14193
  %v14196 = vrot.slane %v13454, 1
  %v14197 = vsel %vm13500, %v14196, %v14195
  %v14198 = vsel %vm13503, %v13462, %v14197
  %v14199 = vrot.slane %v13470, 7
  %v14200 = vsel %vm13506, %v14199, %v14198
  %v14201 = vrot.slane %v13478, 6
  %v14202 = vsel %vm13509, %v14201, %v14200
  %14203 = vrot.lane.b32.xlu0 %v14202, 100
  %v14204 = vpop.permute.xlu0 %14203
  %v14206 = vrot.slane %v13422, 6
  %v14207 = vrot.slane %v13430, 5
  %v14208 = vsel %vm13491, %v14207, %v14206
  %v14209 = vrot.slane %v13438, 4
  %v14210 = vsel %vm13494, %v14209, %v14208
  %v14211 = vrot.slane %v13446, 3
  %v14212 = vsel %vm13497, %v14211, %v14210
  %v14213 = vrot.slane %v13454, 2
  %v14214 = vsel %vm13500, %v14213, %v14212
  %v14215 = vrot.slane %v13462, 1
  %v14216 = vsel %vm13503, %v14215, %v14214
  %v14217 = vsel %vm13506, %v13470, %v14216
  %v14218 = vrot.slane %v13478, 7
  %v14219 = vsel %vm13509, %v14218, %v14217
  %14220 = vrot.lane.b32.xlu0 %v14219, 120
  %v14221 = vpop.permute.xlu0 %14220
  %v14223 = vrot.slane %v13422, 7
  %v14224 = vrot.slane %v13430, 6
  %v14225 = vsel %vm13491, %v14224, %v14223
  %v14226 = vrot.slane %v13438, 5
  %v14227 = vsel %vm13494, %v14226, %v14225
  %v14228 = vrot.slane %v13446, 4
  %v14229 = vsel %vm13497, %v14228, %v14227
  %v14230 = vrot.slane %v13454, 3
  %v14231 = vsel %vm13500, %v14230, %v14229
  %v14232 = vrot.slane %v13462, 2
  %v14233 = vsel %vm13503, %v14232, %v14231
  %v14234 = vrot.slane %v13470, 1
  %v14235 = vsel %vm13506, %v14234, %v14233
  %v14236 = vsel %vm13509, %v13478, %v14235
  %14237 = vrot.lane.b32.xlu0 %v14236, 12
  %v14238 = vpop.permute.xlu0 %14237
  %v14248 = vrot.slane %v13431, 7
  %v14249 = vsel %vm13491, %v14248, %v13423
  %v14250 = vrot.slane %v13439, 6
  %v14251 = vsel %vm13494, %v14250, %v14249
  %v14252 = vrot.slane %v13447, 5
  %v14253 = vsel %vm13497, %v14252, %v14251
  %v14254 = vrot.slane %v13455, 4
  %v14255 = vsel %vm13500, %v14254, %v14253
  %v14256 = vrot.slane %v13463, 3
  %v14257 = vsel %vm13503, %v14256, %v14255
  %v14258 = vrot.slane %v13471, 2
  %v14259 = vsel %vm13506, %v14258, %v14257
  %v14260 = vrot.slane %v13479, 1
  %v14261 = vsel %vm13509, %v14260, %v14259
  %14262 = vrot.lane.b32.xlu0 %v14261, 32
  %v14263 = vpop.permute.xlu0 %14262
  %v14265 = vrot.slane %v13423, 1
  %v14266 = vsel %vm13491, %v13431, %v14265
  %v14267 = vrot.slane %v13439, 7
  %v14268 = vsel %vm13494, %v14267, %v14266
  %v14269 = vrot.slane %v13447, 6
  %v14270 = vsel %vm13497, %v14269, %v14268
  %v14271 = vrot.slane %v13455, 5
  %v14272 = vsel %vm13500, %v14271, %v14270
  %v14273 = vrot.slane %v13463, 4
  %v14274 = vsel %vm13503, %v14273, %v14272
  %v14275 = vrot.slane %v13471, 3
  %v14276 = vsel %vm13506, %v14275, %v14274
  %v14277 = vrot.slane %v13479, 2
  %v14278 = vsel %vm13509, %v14277, %v14276
  %14279 = vrot.lane.b32.xlu0 %v14278, 52
  %v14280 = vpop.permute.xlu0 %14279
  %v14282 = vrot.slane %v13423, 2
  %v14283 = vrot.slane %v13431, 1
  %v14284 = vsel %vm13491, %v14283, %v14282
  %v14285 = vsel %vm13494, %v13439, %v14284
  %v14286 = vrot.slane %v13447, 7
  %v14287 = vsel %vm13497, %v14286, %v14285
  %v14288 = vrot.slane %v13455, 6
  %v14289 = vsel %vm13500, %v14288, %v14287
  %v14290 = vrot.slane %v13463, 5
  %v14291 = vsel %vm13503, %v14290, %v14289
  %v14292 = vrot.slane %v13471, 4
  %v14293 = vsel %vm13506, %v14292, %v14291
  %v14294 = vrot.slane %v13479, 3
  %v14295 = vsel %vm13509, %v14294, %v14293
  %14296 = vrot.lane.b32.xlu0 %v14295, 72
  %v14297 = vpop.permute.xlu0 %14296
  %v14299 = vrot.slane %v13423, 3
  %v14300 = vrot.slane %v13431, 2
  %v14301 = vsel %vm13491, %v14300, %v14299
  %v14302 = vrot.slane %v13439, 1
  %v14303 = vsel %vm13494, %v14302, %v14301
  %v14304 = vsel %vm13497, %v13447, %v14303
  %v14305 = vrot.slane %v13455, 7
  %v14306 = vsel %vm13500, %v14305, %v14304
  %v14307 = vrot.slane %v13463, 6
  %v14308 = vsel %vm13503, %v14307, %v14306
  %v14309 = vrot.slane %v13471, 5
  %v14310 = vsel %vm13506, %v14309, %v14308
  %v14311 = vrot.slane %v13479, 4
  %v14312 = vsel %vm13509, %v14311, %v14310
  %14313 = vrot.lane.b32.xlu0 %v14312, 92
  %v14314 = vpop.permute.xlu0 %14313
  %v14316 = vrot.slane %v13423, 4
  %v14317 = vrot.slane %v13431, 3
  %v14318 = vsel %vm13491, %v14317, %v14316
  %v14319 = vrot.slane %v13439, 2
  %v14320 = vsel %vm13494, %v14319, %v14318
  %v14321 = vrot.slane %v13447, 1
  %v14322 = vsel %vm13497, %v14321, %v14320
  %v14323 = vsel %vm13500, %v13455, %v14322
  %v14324 = vrot.slane %v13463, 7
  %v14325 = vsel %vm13503, %v14324, %v14323
  %v14326 = vrot.slane %v13471, 6
  %v14327 = vsel %vm13506, %v14326, %v14325
  %v14328 = vrot.slane %v13479, 5
  %v14329 = vsel %vm13509, %v14328, %v14327
  %14330 = vrot.lane.b32.xlu0 %v14329, 112
  %v14331 = vpop.permute.xlu0 %14330
  %v14333 = vrot.slane %v13423, 5
  %v14334 = vrot.slane %v13431, 4
  %v14335 = vsel %vm13491, %v14334, %v14333
  %v14336 = vrot.slane %v13439, 3
  %v14337 = vsel %vm13494, %v14336, %v14335
  %v14338 = vrot.slane %v13447, 2
  %v14339 = vsel %vm13497, %v14338, %v14337
  %v14340 = vrot.slane %v13455, 1
  %v14341 = vsel %vm13500, %v14340, %v14339
  %v14342 = vsel %vm13503, %v13463, %v14341
  %v14343 = vrot.slane %v13471, 7
  %v14344 = vsel %vm13506, %v14343, %v14342
  %v14345 = vrot.slane %v13479, 6
  %v14346 = vsel %vm13509, %v14345, %v14344
  %14347 = vrot.lane.b32.xlu0 %v14346, 4
  %v14348 = vpop.permute.xlu0 %14347
  %v14350 = vrot.slane %v13423, 6
  %v14351 = vrot.slane %v13431, 5
  %v14352 = vsel %vm13491, %v14351, %v14350
  %v14353 = vrot.slane %v13439, 4
  %v14354 = vsel %vm13494, %v14353, %v14352
  %v14355 = vrot.slane %v13447, 3
  %v14356 = vsel %vm13497, %v14355, %v14354
  %v14357 = vrot.slane %v13455, 2
  %v14358 = vsel %vm13500, %v14357, %v14356
  %v14359 = vrot.slane %v13463, 1
  %v14360 = vsel %vm13503, %v14359, %v14358
  %v14361 = vsel %vm13506, %v13471, %v14360
  %v14362 = vrot.slane %v13479, 7
  %v14363 = vsel %vm13509, %v14362, %v14361
  %14364 = vrot.lane.b32.xlu0 %v14363, 24
  %v14365 = vpop.permute.xlu0 %14364
  %v14367 = vrot.slane %v13423, 7
  %v14368 = vrot.slane %v13431, 6
  %v14369 = vsel %vm13491, %v14368, %v14367
  %v14370 = vrot.slane %v13439, 5
  %v14371 = vsel %vm13494, %v14370, %v14369
  %v14372 = vrot.slane %v13447, 4
  %v14373 = vsel %vm13497, %v14372, %v14371
  %v14374 = vrot.slane %v13455, 3
  %v14375 = vsel %vm13500, %v14374, %v14373
  %v14376 = vrot.slane %v13463, 2
  %v14377 = vsel %vm13503, %v14376, %v14375
  %v14378 = vrot.slane %v13471, 1
  %v14379 = vsel %vm13506, %v14378, %v14377
  %v14380 = vsel %vm13509, %v13479, %v14379
  %14381 = vrot.lane.b32.xlu0 %v14380, 44
  %v14382 = vpop.permute.xlu0 %14381
  %v14384 = vsel %vm11007, %v14119, %v14136
  %v14385 = vsel %vm11137, %v14384, %v14153
  %v14386 = vsel %vm11267, %v14385, %v14170
  %v14387 = vsel %vm11397, %v14386, %v14187
  %v14388 = vsel %vm11527, %v14387, %v14204
  %v14389 = vsel %vm11657, %v14388, %v14221
  %v14390 = vsel %vm11787, %v14221, %v14238
  %v14391 = vsel %vm11937, %v14390, %v14263
  %v14392 = vsel %vm13783, %v14391, %v14280
  %v14393 = vsel %vm13785, %v14392, %v14297
  %v14394 = vsel %vm13787, %v14393, %v14314
  %v14395 = vsel %vm13789, %v14394, %v14331
  %v14396 = vsel %vm13791, %v14331, %v14348
  %v14397 = vsel %vm13793, %v14396, %v14365
  %v14398 = vsel %vm13795, %v14397, %v14382
  %v14407 = vrot.slane %v13432, 7
  %v14408 = vsel %vm13491, %v14407, %v13424
  %v14409 = vrot.slane %v13440, 6
  %v14410 = vsel %vm13494, %v14409, %v14408
  %v14411 = vrot.slane %v13448, 5
  %v14412 = vsel %vm13497, %v14411, %v14410
  %v14413 = vrot.slane %v13456, 4
  %v14414 = vsel %vm13500, %v14413, %v14412
  %v14415 = vrot.slane %v13464, 3
  %v14416 = vsel %vm13503, %v14415, %v14414
  %v14417 = vrot.slane %v13472, 2
  %v14418 = vsel %vm13506, %v14417, %v14416
  %v14419 = vrot.slane %v13480, 1
  %v14420 = vsel %vm13509, %v14419, %v14418
  %v14422 = vrot.slane %v13424, 1
  %v14423 = vsel %vm13491, %v13432, %v14422
  %v14424 = vrot.slane %v13440, 7
  %v14425 = vsel %vm13494, %v14424, %v14423
  %v14426 = vrot.slane %v13448, 6
  %v14427 = vsel %vm13497, %v14426, %v14425
  %v14428 = vrot.slane %v13456, 5
  %v14429 = vsel %vm13500, %v14428, %v14427
  %v14430 = vrot.slane %v13464, 4
  %v14431 = vsel %vm13503, %v14430, %v14429
  %v14432 = vrot.slane %v13472, 3
  %v14433 = vsel %vm13506, %v14432, %v14431
  %v14434 = vrot.slane %v13480, 2
  %v14435 = vsel %vm13509, %v14434, %v14433
  %14436 = vrot.lane.b32.xlu0 %v14435, 20
  %v14437 = vpop.permute.xlu0 %14436
  %v14439 = vrot.slane %v13424, 2
  %v14440 = vrot.slane %v13432, 1
  %v14441 = vsel %vm13491, %v14440, %v14439
  %v14442 = vsel %vm13494, %v13440, %v14441
  %v14443 = vrot.slane %v13448, 7
  %v14444 = vsel %vm13497, %v14443, %v14442
  %v14445 = vrot.slane %v13456, 6
  %v14446 = vsel %vm13500, %v14445, %v14444
  %v14447 = vrot.slane %v13464, 5
  %v14448 = vsel %vm13503, %v14447, %v14446
  %v14449 = vrot.slane %v13472, 4
  %v14450 = vsel %vm13506, %v14449, %v14448
  %v14451 = vrot.slane %v13480, 3
  %v14452 = vsel %vm13509, %v14451, %v14450
  %14453 = vrot.lane.b32.xlu0 %v14452, 40
  %v14454 = vpop.permute.xlu0 %14453
  %v14456 = vrot.slane %v13424, 3
  %v14457 = vrot.slane %v13432, 2
  %v14458 = vsel %vm13491, %v14457, %v14456
  %v14459 = vrot.slane %v13440, 1
  %v14460 = vsel %vm13494, %v14459, %v14458
  %v14461 = vsel %vm13497, %v13448, %v14460
  %v14462 = vrot.slane %v13456, 7
  %v14463 = vsel %vm13500, %v14462, %v14461
  %v14464 = vrot.slane %v13464, 6
  %v14465 = vsel %vm13503, %v14464, %v14463
  %v14466 = vrot.slane %v13472, 5
  %v14467 = vsel %vm13506, %v14466, %v14465
  %v14468 = vrot.slane %v13480, 4
  %v14469 = vsel %vm13509, %v14468, %v14467
  %14470 = vrot.lane.b32.xlu0 %v14469, 60
  %v14471 = vpop.permute.xlu0 %14470
  %v14473 = vrot.slane %v13424, 4
  %v14474 = vrot.slane %v13432, 3
  %v14475 = vsel %vm13491, %v14474, %v14473
  %v14476 = vrot.slane %v13440, 2
  %v14477 = vsel %vm13494, %v14476, %v14475
  %v14478 = vrot.slane %v13448, 1
  %v14479 = vsel %vm13497, %v14478, %v14477
  %v14480 = vsel %vm13500, %v13456, %v14479
  %v14481 = vrot.slane %v13464, 7
  %v14482 = vsel %vm13503, %v14481, %v14480
  %v14483 = vrot.slane %v13472, 6
  %v14484 = vsel %vm13506, %v14483, %v14482
  %v14485 = vrot.slane %v13480, 5
  %v14486 = vsel %vm13509, %v14485, %v14484
  %14487 = vrot.lane.b32.xlu0 %v14486, 80
  %v14488 = vpop.permute.xlu0 %14487
  %v14490 = vrot.slane %v13424, 5
  %v14491 = vrot.slane %v13432, 4
  %v14492 = vsel %vm13491, %v14491, %v14490
  %v14493 = vrot.slane %v13440, 3
  %v14494 = vsel %vm13494, %v14493, %v14492
  %v14495 = vrot.slane %v13448, 2
  %v14496 = vsel %vm13497, %v14495, %v14494
  %v14497 = vrot.slane %v13456, 1
  %v14498 = vsel %vm13500, %v14497, %v14496
  %v14499 = vsel %vm13503, %v13464, %v14498
  %v14500 = vrot.slane %v13472, 7
  %v14501 = vsel %vm13506, %v14500, %v14499
  %v14502 = vrot.slane %v13480, 6
  %v14503 = vsel %vm13509, %v14502, %v14501
  %14504 = vrot.lane.b32.xlu0 %v14503, 100
  %v14505 = vpop.permute.xlu0 %14504
  %v14507 = vrot.slane %v13424, 6
  %v14508 = vrot.slane %v13432, 5
  %v14509 = vsel %vm13491, %v14508, %v14507
  %v14510 = vrot.slane %v13440, 4
  %v14511 = vsel %vm13494, %v14510, %v14509
  %v14512 = vrot.slane %v13448, 3
  %v14513 = vsel %vm13497, %v14512, %v14511
  %v14514 = vrot.slane %v13456, 2
  %v14515 = vsel %vm13500, %v14514, %v14513
  %v14516 = vrot.slane %v13464, 1
  %v14517 = vsel %vm13503, %v14516, %v14515
  %v14518 = vsel %vm13506, %v13472, %v14517
  %v14519 = vrot.slane %v13480, 7
  %v14520 = vsel %vm13509, %v14519, %v14518
  %14521 = vrot.lane.b32.xlu0 %v14520, 120
  %v14522 = vpop.permute.xlu0 %14521
  %v14524 = vrot.slane %v13424, 7
  %v14525 = vrot.slane %v13432, 6
  %v14526 = vsel %vm13491, %v14525, %v14524
  %v14527 = vrot.slane %v13440, 5
  %v14528 = vsel %vm13494, %v14527, %v14526
  %v14529 = vrot.slane %v13448, 4
  %v14530 = vsel %vm13497, %v14529, %v14528
  %v14531 = vrot.slane %v13456, 3
  %v14532 = vsel %vm13500, %v14531, %v14530
  %v14533 = vrot.slane %v13464, 2
  %v14534 = vsel %vm13503, %v14533, %v14532
  %v14535 = vrot.slane %v13472, 1
  %v14536 = vsel %vm13506, %v14535, %v14534
  %v14537 = vsel %vm13509, %v13480, %v14536
  %14538 = vrot.lane.b32.xlu0 %v14537, 12
  %v14539 = vpop.permute.xlu0 %14538
  %v14549 = vrot.slane %v13433, 7
  %v14550 = vsel %vm13491, %v14549, %v13425
  %v14551 = vrot.slane %v13441, 6
  %v14552 = vsel %vm13494, %v14551, %v14550
  %v14553 = vrot.slane %v13449, 5
  %v14554 = vsel %vm13497, %v14553, %v14552
  %v14555 = vrot.slane %v13457, 4
  %v14556 = vsel %vm13500, %v14555, %v14554
  %v14557 = vrot.slane %v13465, 3
  %v14558 = vsel %vm13503, %v14557, %v14556
  %v14559 = vrot.slane %v13473, 2
  %v14560 = vsel %vm13506, %v14559, %v14558
  %v14561 = vrot.slane %v13481, 1
  %v14562 = vsel %vm13509, %v14561, %v14560
  %14563 = vrot.lane.b32.xlu0 %v14562, 32
  %v14564 = vpop.permute.xlu0 %14563
  %v14566 = vrot.slane %v13425, 1
  %v14567 = vsel %vm13491, %v13433, %v14566
  %v14568 = vrot.slane %v13441, 7
  %v14569 = vsel %vm13494, %v14568, %v14567
  %v14570 = vrot.slane %v13449, 6
  %v14571 = vsel %vm13497, %v14570, %v14569
  %v14572 = vrot.slane %v13457, 5
  %v14573 = vsel %vm13500, %v14572, %v14571
  %v14574 = vrot.slane %v13465, 4
  %v14575 = vsel %vm13503, %v14574, %v14573
  %v14576 = vrot.slane %v13473, 3
  %v14577 = vsel %vm13506, %v14576, %v14575
  %v14578 = vrot.slane %v13481, 2
  %v14579 = vsel %vm13509, %v14578, %v14577
  %14580 = vrot.lane.b32.xlu0 %v14579, 52
  %v14581 = vpop.permute.xlu0 %14580
  %v14583 = vrot.slane %v13425, 2
  %v14584 = vrot.slane %v13433, 1
  %v14585 = vsel %vm13491, %v14584, %v14583
  %v14586 = vsel %vm13494, %v13441, %v14585
  %v14587 = vrot.slane %v13449, 7
  %v14588 = vsel %vm13497, %v14587, %v14586
  %v14589 = vrot.slane %v13457, 6
  %v14590 = vsel %vm13500, %v14589, %v14588
  %v14591 = vrot.slane %v13465, 5
  %v14592 = vsel %vm13503, %v14591, %v14590
  %v14593 = vrot.slane %v13473, 4
  %v14594 = vsel %vm13506, %v14593, %v14592
  %v14595 = vrot.slane %v13481, 3
  %v14596 = vsel %vm13509, %v14595, %v14594
  %14597 = vrot.lane.b32.xlu0 %v14596, 72
  %v14598 = vpop.permute.xlu0 %14597
  %v14600 = vrot.slane %v13425, 3
  %v14601 = vrot.slane %v13433, 2
  %v14602 = vsel %vm13491, %v14601, %v14600
  %v14603 = vrot.slane %v13441, 1
  %v14604 = vsel %vm13494, %v14603, %v14602
  %v14605 = vsel %vm13497, %v13449, %v14604
  %v14606 = vrot.slane %v13457, 7
  %v14607 = vsel %vm13500, %v14606, %v14605
  %v14608 = vrot.slane %v13465, 6
  %v14609 = vsel %vm13503, %v14608, %v14607
  %v14610 = vrot.slane %v13473, 5
  %v14611 = vsel %vm13506, %v14610, %v14609
  %v14612 = vrot.slane %v13481, 4
  %v14613 = vsel %vm13509, %v14612, %v14611
  %14614 = vrot.lane.b32.xlu0 %v14613, 92
  %v14615 = vpop.permute.xlu0 %14614
  %v14617 = vrot.slane %v13425, 4
  %v14618 = vrot.slane %v13433, 3
  %v14619 = vsel %vm13491, %v14618, %v14617
  %v14620 = vrot.slane %v13441, 2
  %v14621 = vsel %vm13494, %v14620, %v14619
  %v14622 = vrot.slane %v13449, 1
  %v14623 = vsel %vm13497, %v14622, %v14621
  %v14624 = vsel %vm13500, %v13457, %v14623
  %v14625 = vrot.slane %v13465, 7
  %v14626 = vsel %vm13503, %v14625, %v14624
  %v14627 = vrot.slane %v13473, 6
  %v14628 = vsel %vm13506, %v14627, %v14626
  %v14629 = vrot.slane %v13481, 5
  %v14630 = vsel %vm13509, %v14629, %v14628
  %14631 = vrot.lane.b32.xlu0 %v14630, 112
  %v14632 = vpop.permute.xlu0 %14631
  %v14634 = vrot.slane %v13425, 5
  %v14635 = vrot.slane %v13433, 4
  %v14636 = vsel %vm13491, %v14635, %v14634
  %v14637 = vrot.slane %v13441, 3
  %v14638 = vsel %vm13494, %v14637, %v14636
  %v14639 = vrot.slane %v13449, 2
  %v14640 = vsel %vm13497, %v14639, %v14638
  %v14641 = vrot.slane %v13457, 1
  %v14642 = vsel %vm13500, %v14641, %v14640
  %v14643 = vsel %vm13503, %v13465, %v14642
  %v14644 = vrot.slane %v13473, 7
  %v14645 = vsel %vm13506, %v14644, %v14643
  %v14646 = vrot.slane %v13481, 6
  %v14647 = vsel %vm13509, %v14646, %v14645
  %14648 = vrot.lane.b32.xlu0 %v14647, 4
  %v14649 = vpop.permute.xlu0 %14648
  %v14651 = vrot.slane %v13425, 6
  %v14652 = vrot.slane %v13433, 5
  %v14653 = vsel %vm13491, %v14652, %v14651
  %v14654 = vrot.slane %v13441, 4
  %v14655 = vsel %vm13494, %v14654, %v14653
  %v14656 = vrot.slane %v13449, 3
  %v14657 = vsel %vm13497, %v14656, %v14655
  %v14658 = vrot.slane %v13457, 2
  %v14659 = vsel %vm13500, %v14658, %v14657
  %v14660 = vrot.slane %v13465, 1
  %v14661 = vsel %vm13503, %v14660, %v14659
  %v14662 = vsel %vm13506, %v13473, %v14661
  %v14663 = vrot.slane %v13481, 7
  %v14664 = vsel %vm13509, %v14663, %v14662
  %14665 = vrot.lane.b32.xlu0 %v14664, 24
  %v14666 = vpop.permute.xlu0 %14665
  %v14668 = vrot.slane %v13425, 7
  %v14669 = vrot.slane %v13433, 6
  %v14670 = vsel %vm13491, %v14669, %v14668
  %v14671 = vrot.slane %v13441, 5
  %v14672 = vsel %vm13494, %v14671, %v14670
  %v14673 = vrot.slane %v13449, 4
  %v14674 = vsel %vm13497, %v14673, %v14672
  %v14675 = vrot.slane %v13457, 3
  %v14676 = vsel %vm13500, %v14675, %v14674
  %v14677 = vrot.slane %v13465, 2
  %v14678 = vsel %vm13503, %v14677, %v14676
  %v14679 = vrot.slane %v13473, 1
  %v14680 = vsel %vm13506, %v14679, %v14678
  %v14681 = vsel %vm13509, %v13481, %v14680
  %14682 = vrot.lane.b32.xlu0 %v14681, 44
  %v14683 = vpop.permute.xlu0 %14682
  %v14685 = vsel %vm11007, %v14420, %v14437
  %v14686 = vsel %vm11137, %v14685, %v14454
  %v14687 = vsel %vm11267, %v14686, %v14471
  %v14688 = vsel %vm11397, %v14687, %v14488
  %v14689 = vsel %vm11527, %v14688, %v14505
  %v14690 = vsel %vm11657, %v14689, %v14522
  %v14691 = vsel %vm11787, %v14522, %v14539
  %v14692 = vsel %vm11937, %v14691, %v14564
  %v14693 = vsel %vm13783, %v14692, %v14581
  %v14694 = vsel %vm13785, %v14693, %v14598
  %v14695 = vsel %vm13787, %v14694, %v14615
  %v14696 = vsel %vm13789, %v14695, %v14632
  %v14697 = vsel %vm13791, %v14632, %v14649
  %v14698 = vsel %vm13793, %v14697, %v14666
  %v14699 = vsel %vm13795, %v14698, %v14683
  %14703 = vrot.lane.b32.xlu0 %v14088, 64
  %v14704 = vpop.permute.xlu0 %14703
  %14705 = vrot.lane.b32.xlu0 %v14094, 64
  %v14706 = vpop.permute.xlu0 %14705
  %14707 = vrot.lane.b32.xlu0 %v14097, 64
  %v14708 = vpop.permute.xlu0 %14707
  %v14709 = vsel %vm1356, %v14704, %v14706
  %v14710 = vsel %vm1356, %v14706, %v14708
  %14717 = vrot.lane.b32.xlu0 %v14690, 64
  %v14718 = vpop.permute.xlu0 %14717
  %14719 = vrot.lane.b32.xlu0 %v14696, 64
  %v14720 = vpop.permute.xlu0 %14719
  %14721 = vrot.lane.b32.xlu0 %v14699, 64
  %v14722 = vpop.permute.xlu0 %14721
  %v14723 = vsel %vm1356, %v14718, %v14720
  %v14724 = vsel %vm1356, %v14720, %v14722
  %v14728 = vsel %vm1356, %v13796, %v14704
  %v14729 = vsel %vm1356, %v14398, %v14718
  %v14730 = vld [vmem:[%s5] sm:$0xff]
  %v14731 = vld [vmem:[%s5 + $0x8] sm:$0xff]
  %v14732 = vld [vmem:[%s5 + $0x10] sm:$0xff]
  %v14733 = vld [vmem:[%s5 + $0x18] sm:$0xff]
  %v14734 = vld [vmem:[%s5 + $0x20] sm:$0xff]
  %v14735 = vld [vmem:[%s5 + $0x28] sm:$0xff]
  %v14736 = vld [vmem:[%s5 + $0x30] sm:$0xff]
  %v14737 = vld [vmem:[%s5 + $0x38] sm:$0xff]
  %v14738 = vld [vmem:[%s5 + $0x40] sm:$0xff]
  %v14739 = vld [vmem:[%s5 + $0x48] sm:$0xff]
  %v14740 = vld [vmem:[%s5 + $0x50] sm:$0xff]
  %v14741 = vld [vmem:[%s5 + $0x58] sm:$0xff]
  %v14742 = vld [vmem:[%s5 + $0x60] sm:$0xff]
  %v14743 = vld [vmem:[%s5 + $0x68] sm:$0xff]
  %v14744 = vld [vmem:[%s5 + $0x70] sm:$0xff]
  %v14745 = vld [vmem:[%s5 + $0x78] sm:$0xff]
  %v14746 = vld [vmem:[%s5 + $0x80] sm:$0xff]
  %v14747 = vld [vmem:[%s5 + $0x88] sm:$0xff]
  %v14748 = vld [vmem:[%s5 + $0x90] sm:$0xff]
  %v14749 = vld [vmem:[%s5 + $0x98] sm:$0xff]
  %v14750 = vld [vmem:[%s5 + $0xa0] sm:$0xff]
  %v14751 = vld [vmem:[%s5 + $0xa8] sm:$0xff]
  %v14752 = vld [vmem:[%s5 + $0xb0] sm:$0xff]
  %v14753 = vld [vmem:[%s5 + $0xb8] sm:$0xff]
  %v14754 = vld [vmem:[%s5 + $0xc0] sm:$0xff]
  %v14755 = vld [vmem:[%s5 + $0xc8] sm:$0xff]
  %v14756 = vld [vmem:[%s5 + $0xd0] sm:$0xff]
  %v14757 = vld [vmem:[%s5 + $0xd8] sm:$0xff]
  %v14758 = vld [vmem:[%s5 + $0xe0] sm:$0xff]
  %v14759 = vld [vmem:[%s5 + $0xe8] sm:$0xff]
  %v14760 = vld [vmem:[%s5 + $0xf0] sm:$0xff]
  %v14761 = vld [vmem:[%s5 + $0xf8] sm:$0xff]
  %v14762 = vld [vmem:[%s5 + $0x100] sm:$0xff]
  %v14763 = vld [vmem:[%s5 + $0x108] sm:$0xff]
  %v14764 = vld [vmem:[%s5 + $0x110] sm:$0xff]
  %v14765 = vld [vmem:[%s5 + $0x118] sm:$0xff]
  %v14766 = vld [vmem:[%s5 + $0x120] sm:$0xff]
  %v14767 = vld [vmem:[%s5 + $0x128] sm:$0xff]
  %v14768 = vld [vmem:[%s5 + $0x130] sm:$0xff]
  %v14769 = vld [vmem:[%s5 + $0x138] sm:$0xff]
  %v14770 = vld [vmem:[%s5 + $0x140] sm:$0xff]
  %v14771 = vld [vmem:[%s5 + $0x148] sm:$0xff]
  %v14772 = vld [vmem:[%s5 + $0x150] sm:$0xff]
  %v14773 = vld [vmem:[%s5 + $0x158] sm:$0xff]
  %v14774 = vld [vmem:[%s5 + $0x160] sm:$0xff]
  %v14775 = vld [vmem:[%s5 + $0x168] sm:$0xff]
  %v14776 = vld [vmem:[%s5 + $0x170] sm:$0xff]
  %v14777 = vld [vmem:[%s5 + $0x178] sm:$0xff]
  %v14778 = vld [vmem:[%s5 + $0x180] sm:$0xff]
  %v14779 = vld [vmem:[%s5 + $0x188] sm:$0xff]
  %v14780 = vld [vmem:[%s5 + $0x190] sm:$0xff]
  %v14781 = vld [vmem:[%s5 + $0x198] sm:$0xff]
  %v14782 = vld [vmem:[%s5 + $0x1a0] sm:$0xff]
  %v14783 = vld [vmem:[%s5 + $0x1a8] sm:$0xff]
  %v14784 = vld [vmem:[%s5 + $0x1b0] sm:$0xff]
  %v14785 = vld [vmem:[%s5 + $0x1b8] sm:$0xff]
  %v14786 = vld [vmem:[%s5 + $0x1c0] sm:$0xff]
  %v14787 = vld [vmem:[%s5 + $0x1c8] sm:$0xff]
  %v14788 = vld [vmem:[%s5 + $0x1d0] sm:$0xff]
  %v14789 = vld [vmem:[%s5 + $0x1d8] sm:$0xff]
  %v14790 = vld [vmem:[%s5 + $0x1e0] sm:$0xff]
  %v14791 = vld [vmem:[%s5 + $0x1e8] sm:$0xff]
  %v14792 = vld [vmem:[%s5 + $0x1f0] sm:$0xff]
  %v14793 = vld [vmem:[%s5 + $0x1f8] sm:$0xff]
  %v14794 = vld [vmem:[%s5 + $0x200] sm:$0xff]
  %v14795 = vld [vmem:[%s5 + $0x208] sm:$0xff]
  %v14796 = vld [vmem:[%s5 + $0x210] sm:$0xff]
  %v14797 = vld [vmem:[%s5 + $0x218] sm:$0xff]
  %v14798 = vld [vmem:[%s5 + $0x220] sm:$0xff]
  %v14799 = vld [vmem:[%s5 + $0x228] sm:$0xff]
  %v14800 = vld [vmem:[%s5 + $0x230] sm:$0xff]
  %v14801 = vld [vmem:[%s5 + $0x238] sm:$0xff]
  %v14802 = vld [vmem:[%s5 + $0x240] sm:$0xff]
  %v14803 = vld [vmem:[%s5 + $0x248] sm:$0xff]
  %v14804 = vld [vmem:[%s5 + $0x250] sm:$0xff]
  %v14805 = vld [vmem:[%s5 + $0x258] sm:$0xff]
  %v14806 = vld [vmem:[%s5 + $0x260] sm:$0xff]
  %v14807 = vld [vmem:[%s5 + $0x268] sm:$0xff]
  %v14808 = vld [vmem:[%s5 + $0x270] sm:$0xff]
  %v14809 = vld [vmem:[%s5 + $0x278] sm:$0xff]
  %v14810 = vld [vmem:[%s5 + $0x280] sm:$0xff]
  %v14811 = vld [vmem:[%s5 + $0x288] sm:$0xff]
  %v14812 = vld [vmem:[%s5 + $0x290] sm:$0xff]
  %v14813 = vld [vmem:[%s5 + $0x298] sm:$0xff]
  %v14814 = vld [vmem:[%s5 + $0x2a0] sm:$0xff]
  %v14815 = vld [vmem:[%s5 + $0x2a8] sm:$0xff]
  %v14816 = vld [vmem:[%s5 + $0x2b0] sm:$0xff]
  %v14817 = vld [vmem:[%s5 + $0x2b8] sm:$0xff]
  %v14818 = vld [vmem:[%s5 + $0x2c0] sm:$0xff]
  %v14819 = vld [vmem:[%s5 + $0x2c8] sm:$0xff]
  %v14820 = vld [vmem:[%s5 + $0x2d0] sm:$0xff]
  %v14821 = vld [vmem:[%s5 + $0x2d8] sm:$0xff]
  %v14822 = vld [vmem:[%s5 + $0x2e0] sm:$0xff]
  %v14823 = vld [vmem:[%s5 + $0x2e8] sm:$0xff]
  %v14824 = vld [vmem:[%s5 + $0x2f0] sm:$0xff]
  %v14825 = vld [vmem:[%s5 + $0x2f8] sm:$0xff]
  %v14826 = vld [vmem:[%s5 + $0x300] sm:$0xff]
  %v14827 = vld [vmem:[%s5 + $0x308] sm:$0xff]
  %v14828 = vld [vmem:[%s5 + $0x310] sm:$0xff]
  %v14829 = vld [vmem:[%s5 + $0x318] sm:$0xff]
  %v14830 = vld [vmem:[%s5 + $0x320] sm:$0xff]
  %v14831 = vld [vmem:[%s5 + $0x328] sm:$0xff]
  %v14832 = vld [vmem:[%s5 + $0x330] sm:$0xff]
  %v14833 = vld [vmem:[%s5 + $0x338] sm:$0xff]
  %v14834 = vld [vmem:[%s5 + $0x340] sm:$0xff]
  %v14835 = vld [vmem:[%s5 + $0x348] sm:$0xff]
  %v14836 = vld [vmem:[%s5 + $0x350] sm:$0xff]
  %v14837 = vld [vmem:[%s5 + $0x358] sm:$0xff]
  %v14838 = vld [vmem:[%s5 + $0x360] sm:$0xff]
  %v14839 = vld [vmem:[%s5 + $0x368] sm:$0xff]
  %v14840 = vld [vmem:[%s5 + $0x370] sm:$0xff]
  %v14841 = vld [vmem:[%s5 + $0x378] sm:$0xff]
  %v14842 = vld [vmem:[%s5 + $0x380] sm:$0xff]
  %v14843 = vld [vmem:[%s5 + $0x388] sm:$0xff]
  %v14844 = vld [vmem:[%s5 + $0x390] sm:$0xff]
  %v14845 = vld [vmem:[%s5 + $0x398] sm:$0xff]
  %v14846 = vld [vmem:[%s5 + $0x3a0] sm:$0xff]
  %v14847 = vld [vmem:[%s5 + $0x3a8] sm:$0xff]
  %v14848 = vld [vmem:[%s5 + $0x3b0] sm:$0xff]
  %v14849 = vld [vmem:[%s5 + $0x3b8] sm:$0xff]
  %v14850 = vld [vmem:[%s5 + $0x3c0] sm:$0xff]
  %v14851 = vld [vmem:[%s5 + $0x3c8] sm:$0xff]
  %v14852 = vld [vmem:[%s5 + $0x3d0] sm:$0xff]
  %v14853 = vld [vmem:[%s5 + $0x3d8] sm:$0xff]
  %v14854 = vld [vmem:[%s5 + $0x3e0] sm:$0xff]
  %v14855 = vld [vmem:[%s5 + $0x3e8] sm:$0xff]
  %v14856 = vld [vmem:[%s5 + $0x3f0] sm:$0xff]
  %v14857 = vld [vmem:[%s5 + $0x3f8] sm:$0xff]
  %v14858 = vld [vmem:[%s5 + $0x400] sm:$0xff]
  %v14859 = vld [vmem:[%s5 + $0x408] sm:$0xff]
  %v14860 = vld [vmem:[%s5 + $0x410] sm:$0xff]
  %v14861 = vld [vmem:[%s5 + $0x418] sm:$0xff]
  %v14862 = vld [vmem:[%s5 + $0x420] sm:$0xff]
  %v14863 = vld [vmem:[%s5 + $0x428] sm:$0xff]
  %v14864 = vld [vmem:[%s5 + $0x430] sm:$0xff]
  %v14865 = vld [vmem:[%s5 + $0x438] sm:$0xff]
  %v14866 = vld [vmem:[%s5 + $0x440] sm:$0xff]
  %v14867 = vld [vmem:[%s5 + $0x448] sm:$0xff]
  %v14868 = vld [vmem:[%s5 + $0x450] sm:$0xff]
  %v14869 = vld [vmem:[%s5 + $0x458] sm:$0xff]
  %v14870 = vld [vmem:[%s5 + $0x460] sm:$0xff]
  %v14871 = vld [vmem:[%s5 + $0x468] sm:$0xff]
  %v14872 = vld [vmem:[%s5 + $0x470] sm:$0xff]
  %v14873 = vld [vmem:[%s5 + $0x478] sm:$0xff]
  %v14874 = vld [vmem:[%s5 + $0x480] sm:$0xff]
  %v14875 = vld [vmem:[%s5 + $0x488] sm:$0xff]
  %v14876 = vld [vmem:[%s5 + $0x490] sm:$0xff]
  %v14877 = vld [vmem:[%s5 + $0x498] sm:$0xff]
  %v14878 = vld [vmem:[%s5 + $0x4a0] sm:$0xff]
  %v14879 = vld [vmem:[%s5 + $0x4a8] sm:$0xff]
  %v14880 = vld [vmem:[%s5 + $0x4b0] sm:$0xff]
  %v14881 = vld [vmem:[%s5 + $0x4b8] sm:$0xff]
  %v14882 = vld [vmem:[%s5 + $0x4c0] sm:$0xff]
  %v14883 = vld [vmem:[%s5 + $0x4c8] sm:$0xff]
  %v14884 = vld [vmem:[%s5 + $0x4d0] sm:$0xff]
  %v14885 = vld [vmem:[%s5 + $0x4d8] sm:$0xff]
  %v14886 = vld [vmem:[%s5 + $0x4e0] sm:$0xff]
  %v14887 = vld [vmem:[%s5 + $0x4e8] sm:$0xff]
  %v14888 = vld [vmem:[%s5 + $0x4f0] sm:$0xff]
  %v14889 = vld [vmem:[%s5 + $0x4f8] sm:$0xff]
  %v14890 = vld [vmem:[%s6] sm:$0x1]
  %v14892 = vlaneseq
  %v14893 = vshrl.u32 %v14892, 7
  %v14894 = vsub.s32 0, %v14893
  %v14895 = vrot.slane %v14890, %v14894
  %14897 = vmatprep.subr.mxu0 0.0
  %14898 = vmatpush1.msra.mxu0 %v14730
  %14899 = vmatprep.subr.mxu0 0.0
  %14900 = vmatpush1.msra.mxu0 %v14731
  %14901 = vmatprep.subr.mxu0 0.0
  %14902 = vmatpush1.msra.mxu0 %v14732
  %14903 = vmatprep.subr.mxu0 0.0
  %14904 = vmatpush1.msra.mxu0 %v14733
  %14905 = vmatprep.subr.mxu0 0.0
  %14906 = vmatpush1.msra.mxu0 %v14734
  %14907 = vmatprep.subr.mxu0 0.0
  %14908 = vmatpush1.msra.mxu0 %v14735
  %14909 = vmatprep.subr.mxu0 0.0
  %14910 = vmatpush1.msra.mxu0 %v14736
  %14911 = vmatprep.subr.mxu0 0.0
  %14912 = vmatpush1.msra.mxu0 %v14737
  %14913 = vmatprep.subr.mxu0 0.0
  %14914 = vmatpush1.msra.mxu0 %v14738
  %14915 = vmatprep.subr.mxu0 0.0
  %14916 = vmatpush1.msra.mxu0 %v14739
  %14917 = vmatprep.subr.mxu0 0.0
  %14918 = vmatpush1.msra.mxu0 %v14740
  %14919 = vmatprep.subr.mxu0 0.0
  %14920 = vmatpush1.msra.mxu0 %v14741
  %14921 = vmatprep.subr.mxu0 0.0
  %14922 = vmatpush1.msra.mxu0 %v14742
  %14923 = vmatprep.subr.mxu0 0.0
  %14924 = vmatpush1.msra.mxu0 %v14743
  %14925 = vmatprep.subr.mxu0 0.0
  %14926 = vmatpush1.msra.mxu0 %v14744
  %14927 = vmatprep.subr.mxu0 0.0
  %14928 = vmatpush1.msra.mxu0 %v14745
  %14929 = vmatprep.subr.mxu0 0.0
  %14930 = vmatpush1.msra.mxu0 %v14746
  %14931 = vmatprep.subr.mxu0 0.0
  %14932 = vmatpush1.msra.mxu0 %v14747
  %14933 = vmatprep.subr.mxu0 0.0
  %14934 = vmatpush1.msra.mxu0 %v14748
  %14935 = vmatprep.subr.mxu0 0.0
  %14936 = vmatpush1.msra.mxu0 %v14749
  %14937 = vmatprep.subr.mxu0 0.0
  %14938 = vmatpush1.msra.mxu0 %v14750
  %14939 = vmatprep.subr.mxu0 0.0
  %14940 = vmatpush1.msra.mxu0 %v14751
  %14941 = vmatprep.subr.mxu0 0.0
  %14942 = vmatpush1.msra.mxu0 %v14752
  %14943 = vmatprep.subr.mxu0 0.0
  %14944 = vmatpush1.msra.mxu0 %v14753
  %14945 = vmatprep.subr.mxu0 0.0
  %14946 = vmatpush1.msra.mxu0 %v14754
  %14947 = vmatprep.subr.mxu0 0.0
  %14948 = vmatpush1.msra.mxu0 %v14755
  %14949 = vmatprep.subr.mxu0 0.0
  %14950 = vmatpush1.msra.mxu0 %v14756
  %14951 = vmatprep.subr.mxu0 0.0
  %14952 = vmatpush1.msra.mxu0 %v14757
  %14953 = vmatprep.subr.mxu0 0.0
  %14954 = vmatpush1.msra.mxu0 %v14758
  %14955 = vmatprep.subr.mxu0 0.0
  %14956 = vmatpush1.msra.mxu0 %v14759
  %14957 = vmatprep.subr.mxu0 0.0
  %14958 = vmatpush1.msra.mxu0 %v14760
  %14959 = vmatprep.subr.mxu0 0.0
  %14960 = vmatpush1.msra.mxu0 %v14761
  %14961 = vmatprep.mubr.f32.mxu0 %v13790
  %14962 = vmatmul.mubr.f32.gmra.mrb[0].mxu0 %v13780
  %v14963 = vpop.f32.mrb[0].mxu0
  %v14964 = vadd.f32 %v14895, %v14963
  %v14965 = vpop.f32.mrb[0].mxu0
  %14966 = vdwg.mxu0
  %14967 = vmatprep.subr.mxu0 0.0
  %14968 = vmatpush1.msra.mxu0 %v14762
  %14969 = vmatprep.subr.mxu0 0.0
  %14970 = vmatpush1.msra.mxu0 %v14763
  %14971 = vmatprep.subr.mxu0 0.0
  %14972 = vmatpush1.msra.mxu0 %v14764
  %14973 = vmatprep.subr.mxu0 0.0
  %14974 = vmatpush1.msra.mxu0 %v14765
  %14975 = vmatprep.subr.mxu0 0.0
  %14976 = vmatpush1.msra.mxu0 %v14766
  %14977 = vmatprep.subr.mxu0 0.0
  %14978 = vmatpush1.msra.mxu0 %v14767
  %14979 = vmatprep.subr.mxu0 0.0
  %14980 = vmatpush1.msra.mxu0 %v14768
  %14981 = vmatprep.subr.mxu0 0.0
  %14982 = vmatpush1.msra.mxu0 %v14769
  %14983 = vmatprep.subr.mxu0 0.0
  %14984 = vmatpush1.msra.mxu0 %v14770
  %14985 = vmatprep.subr.mxu0 0.0
  %14986 = vmatpush1.msra.mxu0 %v14771
  %14987 = vmatprep.subr.mxu0 0.0
  %14988 = vmatpush1.msra.mxu0 %v14772
  %14989 = vmatprep.subr.mxu0 0.0
  %14990 = vmatpush1.msra.mxu0 %v14773
  %14991 = vmatprep.subr.mxu0 0.0
  %14992 = vmatpush1.msra.mxu0 %v14774
  %14993 = vmatprep.subr.mxu0 0.0
  %14994 = vmatpush1.msra.mxu0 %v14775
  %14995 = vmatprep.subr.mxu0 0.0
  %14996 = vmatpush1.msra.mxu0 %v14776
  %14997 = vmatprep.subr.mxu0 0.0
  %14998 = vmatpush1.msra.mxu0 %v14777
  %14999 = vmatprep.subr.mxu0 0.0
  %15000 = vmatpush1.msra.mxu0 %v14778
  %15001 = vmatprep.subr.mxu0 0.0
  %15002 = vmatpush1.msra.mxu0 %v14779
  %15003 = vmatprep.subr.mxu0 0.0
  %15004 = vmatpush1.msra.mxu0 %v14780
  %15005 = vmatprep.subr.mxu0 0.0
  %15006 = vmatpush1.msra.mxu0 %v14781
  %15007 = vmatprep.subr.mxu0 0.0
  %15008 = vmatpush1.msra.mxu0 %v14782
  %15009 = vmatprep.subr.mxu0 0.0
  %15010 = vmatpush1.msra.mxu0 %v14783
  %15011 = vmatprep.subr.mxu0 0.0
  %15012 = vmatpush1.msra.mxu0 %v14784
  %15013 = vmatprep.subr.mxu0 0.0
  %15014 = vmatpush1.msra.mxu0 %v14785
  %15015 = vmatprep.subr.mxu0 0.0
  %15016 = vmatpush1.msra.mxu0 %v14786
  %15017 = vmatprep.subr.mxu0 0.0
  %15018 = vmatpush1.msra.mxu0 %v14787
  %15019 = vmatprep.subr.mxu0 0.0
  %15020 = vmatpush1.msra.mxu0 %v14788
  %15021 = vmatprep.subr.mxu0 0.0
  %15022 = vmatpush1.msra.mxu0 %v14789
  %15023 = vmatprep.subr.mxu0 0.0
  %15024 = vmatpush1.msra.mxu0 %v14790
  %15025 = vmatprep.subr.mxu0 0.0
  %15026 = vmatpush1.msra.mxu0 %v14791
  %15027 = vmatprep.subr.mxu0 0.0
  %15028 = vmatpush1.msra.mxu0 %v14792
  %15029 = vmatprep.subr.mxu0 0.0
  %15030 = vmatpush1.msra.mxu0 %v14793
  %15031 = vmatprep.mubr.f32.mxu0 %v14709
  %15032 = vmatmul.mubr.f32.gmra.mrb[0].mxu0 %v14728
  %v15033 = vpop.f32.mrb[0].mxu0
  %v15034 = vadd.f32 %v14964, %v15033
  %v15035 = vpop.f32.mrb[0].mxu0
  %15036 = vdwg.mxu0
  %15037 = vmatprep.subr.mxu0 0.0
  %15038 = vmatpush1.msra.mxu0 %v14794
  %15039 = vmatprep.subr.mxu0 0.0
  %15040 = vmatpush1.msra.mxu0 %v14795
  %15041 = vmatprep.subr.mxu0 0.0
  %15042 = vmatpush1.msra.mxu0 %v14796
  %15043 = vmatprep.subr.mxu0 0.0
  %15044 = vmatpush1.msra.mxu0 %v14797
  %15045 = vmatprep.subr.mxu0 0.0
  %15046 = vmatpush1.msra.mxu0 %v14798
  %15047 = vmatprep.subr.mxu0 0.0
  %15048 = vmatpush1.msra.mxu0 %v14799
  %15049 = vmatprep.subr.mxu0 0.0
  %15050 = vmatpush1.msra.mxu0 %v14800
  %15051 = vmatprep.subr.mxu0 0.0
  %15052 = vmatpush1.msra.mxu0 %v14801
  %15053 = vmatprep.subr.mxu0 0.0
  %15054 = vmatpush1.msra.mxu0 %v14802
  %15055 = vmatprep.subr.mxu0 0.0
  %15056 = vmatpush1.msra.mxu0 %v14803
  %15057 = vmatprep.subr.mxu0 0.0
  %15058 = vmatpush1.msra.mxu0 %v14804
  %15059 = vmatprep.subr.mxu0 0.0
  %15060 = vmatpush1.msra.mxu0 %v14805
  %15061 = vmatprep.subr.mxu0 0.0
  %15062 = vmatpush1.msra.mxu0 %v14806
  %15063 = vmatprep.subr.mxu0 0.0
  %15064 = vmatpush1.msra.mxu0 %v14807
  %15065 = vmatprep.subr.mxu0 0.0
  %15066 = vmatpush1.msra.mxu0 %v14808
  %15067 = vmatprep.subr.mxu0 0.0
  %15068 = vmatpush1.msra.mxu0 %v14809
  %15069 = vmatprep.subr.mxu0 0.0
  %15070 = vmatpush1.msra.mxu0 %v14810
  %15071 = vmatprep.subr.mxu0 0.0
  %15072 = vmatpush1.msra.mxu0 %v14811
  %15073 = vmatprep.subr.mxu0 0.0
  %15074 = vmatpush1.msra.mxu0 %v14812
  %15075 = vmatprep.subr.mxu0 0.0
  %15076 = vmatpush1.msra.mxu0 %v14813
  %15077 = vmatprep.subr.mxu0 0.0
  %15078 = vmatpush1.msra.mxu0 %v14814
  %15079 = vmatprep.subr.mxu0 0.0
  %15080 = vmatpush1.msra.mxu0 %v14815
  %15081 = vmatprep.subr.mxu0 0.0
  %15082 = vmatpush1.msra.mxu0 %v14816
  %15083 = vmatprep.subr.mxu0 0.0
  %15084 = vmatpush1.msra.mxu0 %v14817
  %15085 = vmatprep.subr.mxu0 0.0
  %15086 = vmatpush1.msra.mxu0 %v14818
  %15087 = vmatprep.subr.mxu0 0.0
  %15088 = vmatpush1.msra.mxu0 %v14819
  %15089 = vmatprep.subr.mxu0 0.0
  %15090 = vmatpush1.msra.mxu0 %v14820
  %15091 = vmatprep.subr.mxu0 0.0
  %15092 = vmatpush1.msra.mxu0 %v14821
  %15093 = vmatprep.subr.mxu0 0.0
  %15094 = vmatpush1.msra.mxu0 %v14822
  %15095 = vmatprep.subr.mxu0 0.0
  %15096 = vmatpush1.msra.mxu0 %v14823
  %15097 = vmatprep.subr.mxu0 0.0
  %15098 = vmatpush1.msra.mxu0 %v14824
  %15099 = vmatprep.subr.mxu0 0.0
  %15100 = vmatpush1.msra.mxu0 %v14825
  %15101 = vmatprep.mubr.f32.mxu0 %v14389
  %15102 = vmatmul.mubr.f32.gmra.mrb[0].mxu0 %v14710
  %v15103 = vpop.f32.mrb[0].mxu0
  %v15104 = vadd.f32 %v15034, %v15103
  %v15105 = vpop.f32.mrb[0].mxu0
  %15106 = vdwg.mxu0
  %15107 = vmatprep.subr.mxu0 0.0
  %15108 = vmatpush1.msra.mxu0 %v14826
  %15109 = vmatprep.subr.mxu0 0.0
  %15110 = vmatpush1.msra.mxu0 %v14827
  %15111 = vmatprep.subr.mxu0 0.0
  %15112 = vmatpush1.msra.mxu0 %v14828
  %15113 = vmatprep.subr.mxu0 0.0
  %15114 = vmatpush1.msra.mxu0 %v14829
  %15115 = vmatprep.subr.mxu0 0.0
  %15116 = vmatpush1.msra.mxu0 %v14830
  %15117 = vmatprep.subr.mxu0 0.0
  %15118 = vmatpush1.msra.mxu0 %v14831
  %15119 = vmatprep.subr.mxu0 0.0
  %15120 = vmatpush1.msra.mxu0 %v14832
  %15121 = vmatprep.subr.mxu0 0.0
  %15122 = vmatpush1.msra.mxu0 %v14833
  %15123 = vmatprep.subr.mxu0 0.0
  %15124 = vmatpush1.msra.mxu0 %v14834
  %15125 = vmatprep.subr.mxu0 0.0
  %15126 = vmatpush1.msra.mxu0 %v14835
  %15127 = vmatprep.subr.mxu0 0.0
  %15128 = vmatpush1.msra.mxu0 %v14836
  %15129 = vmatprep.subr.mxu0 0.0
  %15130 = vmatpush1.msra.mxu0 %v14837
  %15131 = vmatprep.subr.mxu0 0.0
  %15132 = vmatpush1.msra.mxu0 %v14838
  %15133 = vmatprep.subr.mxu0 0.0
  %15134 = vmatpush1.msra.mxu0 %v14839
  %15135 = vmatprep.subr.mxu0 0.0
  %15136 = vmatpush1.msra.mxu0 %v14840
  %15137 = vmatprep.subr.mxu0 0.0
  %15138 = vmatpush1.msra.mxu0 %v14841
  %15139 = vmatprep.subr.mxu0 0.0
  %15140 = vmatpush1.msra.mxu0 %v14842
  %15141 = vmatprep.subr.mxu0 0.0
  %15142 = vmatpush1.msra.mxu0 %v14843
  %15143 = vmatprep.subr.mxu0 0.0
  %15144 = vmatpush1.msra.mxu0 %v14844
  %15145 = vmatprep.subr.mxu0 0.0
  %15146 = vmatpush1.msra.mxu0 %v14845
  %15147 = vmatprep.subr.mxu0 0.0
  %15148 = vmatpush1.msra.mxu0 %v14846
  %15149 = vmatprep.subr.mxu0 0.0
  %15150 = vmatpush1.msra.mxu0 %v14847
  %15151 = vmatprep.subr.mxu0 0.0
  %15152 = vmatpush1.msra.mxu0 %v14848
  %15153 = vmatprep.subr.mxu0 0.0
  %15154 = vmatpush1.msra.mxu0 %v14849
  %15155 = vmatprep.subr.mxu0 0.0
  %15156 = vmatpush1.msra.mxu0 %v14850
  %15157 = vmatprep.subr.mxu0 0.0
  %15158 = vmatpush1.msra.mxu0 %v14851
  %15159 = vmatprep.subr.mxu0 0.0
  %15160 = vmatpush1.msra.mxu0 %v14852
  %15161 = vmatprep.subr.mxu0 0.0
  %15162 = vmatpush1.msra.mxu0 %v14853
  %15163 = vmatprep.subr.mxu0 0.0
  %15164 = vmatpush1.msra.mxu0 %v14854
  %15165 = vmatprep.subr.mxu0 0.0
  %15166 = vmatpush1.msra.mxu0 %v14855
  %15167 = vmatprep.subr.mxu0 0.0
  %15168 = vmatpush1.msra.mxu0 %v14856
  %15169 = vmatprep.subr.mxu0 0.0
  %15170 = vmatpush1.msra.mxu0 %v14857
  %15171 = vmatprep.mubr.f32.mxu0 %v14729
  %15172 = vmatmul.mubr.f32.gmra.mrb[0].mxu0 %v14395
  %v15173 = vpop.f32.mrb[0].mxu0
  %v15174 = vadd.f32 %v15104, %v15173
  %v15175 = vpop.f32.mrb[0].mxu0
  %15176 = vdwg.mxu0
  %15177 = vmatprep.subr.mxu0 0.0
  %15178 = vmatpush1.msra.mxu0 %v14858
  %15179 = vmatprep.subr.mxu0 0.0
  %15180 = vmatpush1.msra.mxu0 %v14859
  %15181 = vmatprep.subr.mxu0 0.0
  %15182 = vmatpush1.msra.mxu0 %v14860
  %15183 = vmatprep.subr.mxu0 0.0
  %15184 = vmatpush1.msra.mxu0 %v14861
  %15185 = vmatprep.subr.mxu0 0.0
  %15186 = vmatpush1.msra.mxu0 %v14862
  %15187 = vmatprep.subr.mxu0 0.0
  %15188 = vmatpush1.msra.mxu0 %v14863
  %15189 = vmatprep.subr.mxu0 0.0
  %15190 = vmatpush1.msra.mxu0 %v14864
  %15191 = vmatprep.subr.mxu0 0.0
  %15192 = vmatpush1.msra.mxu0 %v14865
  %15193 = vmatprep.subr.mxu0 0.0
  %15194 = vmatpush1.msra.mxu0 %v14866
  %15195 = vmatprep.subr.mxu0 0.0
  %15196 = vmatpush1.msra.mxu0 %v14867
  %15197 = vmatprep.subr.mxu0 0.0
  %15198 = vmatpush1.msra.mxu0 %v14868
  %15199 = vmatprep.subr.mxu0 0.0
  %15200 = vmatpush1.msra.mxu0 %v14869
  %15201 = vmatprep.subr.mxu0 0.0
  %15202 = vmatpush1.msra.mxu0 %v14870
  %15203 = vmatprep.subr.mxu0 0.0
  %15204 = vmatpush1.msra.mxu0 %v14871
  %15205 = vmatprep.subr.mxu0 0.0
  %15206 = vmatpush1.msra.mxu0 %v14872
  %15207 = vmatprep.subr.mxu0 0.0
  %15208 = vmatpush1.msra.mxu0 %v14873
  %15209 = vmatprep.subr.mxu0 0.0
  %15210 = vmatpush1.msra.mxu0 %v14874
  %15211 = vmatprep.subr.mxu0 0.0
  %15212 = vmatpush1.msra.mxu0 %v14875
  %15213 = vmatprep.subr.mxu0 0.0
  %15214 = vmatpush1.msra.mxu0 %v14876
  %15215 = vmatprep.subr.mxu0 0.0
  %15216 = vmatpush1.msra.mxu0 %v14877
  %15217 = vmatprep.subr.mxu0 0.0
  %15218 = vmatpush1.msra.mxu0 %v14878
  %15219 = vmatprep.subr.mxu0 0.0
  %15220 = vmatpush1.msra.mxu0 %v14879
  %15221 = vmatprep.subr.mxu0 0.0
  %15222 = vmatpush1.msra.mxu0 %v14880
  %15223 = vmatprep.subr.mxu0 0.0
  %15224 = vmatpush1.msra.mxu0 %v14881
  %15225 = vmatprep.subr.mxu0 0.0
  %15226 = vmatpush1.msra.mxu0 %v14882
  %15227 = vmatprep.subr.mxu0 0.0
  %15228 = vmatpush1.msra.mxu0 %v14883
  %15229 = vmatprep.subr.mxu0 0.0
  %15230 = vmatpush1.msra.mxu0 %v14884
  %15231 = vmatprep.subr.mxu0 0.0
  %15232 = vmatpush1.msra.mxu0 %v14885
  %15233 = vmatprep.subr.mxu0 0.0
  %15234 = vmatpush1.msra.mxu0 %v14886
  %15235 = vmatprep.subr.mxu0 0.0
  %15236 = vmatpush1.msra.mxu0 %v14887
  %15237 = vmatprep.subr.mxu0 0.0
  %15238 = vmatpush1.msra.mxu0 %v14888
  %15239 = vmatprep.subr.mxu0 0.0
  %15240 = vmatpush1.msra.mxu0 %v14889
  %15241 = vmatprep.mubr.f32.mxu0 %v14724
  %15242 = vmatmul.mubr.f32.gmra.mrb[0].mxu0 %v14723
  %v15243 = vpop.f32.mrb[0].mxu0
  %v15244 = vadd.f32 %v15174, %v15243
  %v15245 = vpop.f32.mrb[0].mxu0
  %15246 = vdwg.mxu0
  %v15247 = vmax.f32 %v15244, 0.0
  %v15248 = vld [vmem:[%s7] sm:$0xff]
  %v15249 = vld [vmem:[%s7 + $0x8] sm:$0xff]
  %v15250 = vld [vmem:[%s7 + $0x10] sm:$0xff]
  %v15251 = vld [vmem:[%s7 + $0x18] sm:$0xff]
  %v15252 = vld [vmem:[%s7 + $0x20] sm:$0xff]
  %v15253 = vld [vmem:[%s7 + $0x28] sm:$0xff]
  %v15254 = vld [vmem:[%s7 + $0x30] sm:$0xff]
  %v15255 = vld [vmem:[%s7 + $0x38] sm:$0xff]
  %v15256 = vld [vmem:[%s7 + $0x40] sm:$0xff]
  %v15257 = vld [vmem:[%s7 + $0x48] sm:$0xff]
  %v15258 = vld [vmem:[%s7 + $0x50] sm:$0xff]
  %v15259 = vld [vmem:[%s7 + $0x58] sm:$0xff]
  %v15260 = vld [vmem:[%s7 + $0x60] sm:$0xff]
  %v15261 = vld [vmem:[%s7 + $0x68] sm:$0xff]
  %v15262 = vld [vmem:[%s7 + $0x70] sm:$0xff]
  %v15263 = vld [vmem:[%s8] sm:$0x1]
  %v15265 = vlaneseq
  %v15266 = vshrl.u32 %v15265, 7
  %v15267 = vsub.s32 0, %v15266
  %v15268 = vrot.slane %v15263, %v15267
  %v15271 = vsel %vm11657, %v15247, 0
  %15273 = vmatprep.subr.mxu0 0.0
  %15274 = vmatpush1.msra.mxu0 %v15248
  %15275 = vmatprep.subr.mxu0 0.0
  %15276 = vmatpush1.msra.mxu0 %v15249
  %15277 = vmatprep.subr.mxu0 0.0
  %15278 = vmatpush1.msra.mxu0 %v15250
  %15279 = vmatprep.subr.mxu0 0.0
  %15280 = vmatpush1.msra.mxu0 %v15251
  %15281 = vmatprep.subr.mxu0 0.0
  %15282 = vmatpush1.msra.mxu0 %v15252
  %15283 = vmatprep.subr.mxu0 0.0
  %15284 = vmatpush1.msra.mxu0 %v15253
  %15285 = vmatprep.subr.mxu0 0.0
  %15286 = vmatpush1.msra.mxu0 %v15254
  %15287 = vmatprep.subr.mxu0 0.0
  %15288 = vmatpush1.msra.mxu0 %v15255
  %15289 = vmatprep.subr.mxu0 0.0
  %15290 = vmatpush1.msra.mxu0 %v15256
  %15291 = vmatprep.subr.mxu0 0.0
  %15292 = vmatpush1.msra.mxu0 %v15257
  %15293 = vmatprep.subr.mxu0 0.0
  %15294 = vmatpush1.msra.mxu0 %v15258
  %15295 = vmatprep.subr.mxu0 0.0
  %15296 = vmatpush1.msra.mxu0 %v15259
  %15297 = vmatprep.subr.mxu0 0.0
  %15298 = vmatpush1.msra.mxu0 %v15260
  %15299 = vmatprep.subr.mxu0 0.0
  %15300 = vmatpush1.msra.mxu0 %v15261
  %15301 = vmatprep.subr.mxu0 0.0
  %15302 = vmatpush1.msra.mxu0 %v15262
  %15303 = vmatprep.subr.mxu0 0.0
  %15304 = vmatpush1.msra.mxu0 0.0
  %15305 = vmatprep.subr.mxu0 0.0
  %15306 = vmatpush1.msra.mxu0 0.0
  %15307 = vmatprep.subr.mxu0 0.0
  %15308 = vmatpush1.msra.mxu0 0.0
  %15309 = vmatprep.subr.mxu0 0.0
  %15310 = vmatpush1.msra.mxu0 0.0
  %15311 = vmatprep.subr.mxu0 0.0
  %15312 = vmatpush1.msra.mxu0 0.0
  %15313 = vmatprep.subr.mxu0 0.0
  %15314 = vmatpush1.msra.mxu0 0.0
  %15315 = vmatprep.subr.mxu0 0.0
  %15316 = vmatpush1.msra.mxu0 0.0
  %15317 = vmatprep.subr.mxu0 0.0
  %15318 = vmatpush1.msra.mxu0 0.0
  %15319 = vmatprep.subr.mxu0 0.0
  %15320 = vmatpush1.msra.mxu0 0.0
  %15321 = vmatprep.subr.mxu0 0.0
  %15322 = vmatpush1.msra.mxu0 0.0
  %15323 = vmatprep.subr.mxu0 0.0
  %15324 = vmatpush1.msra.mxu0 0.0
  %15325 = vmatprep.subr.mxu0 0.0
  %15326 = vmatpush1.msra.mxu0 0.0
  %15327 = vmatprep.subr.mxu0 0.0
  %15328 = vmatpush1.msra.mxu0 0.0
  %15329 = vmatprep.subr.mxu0 0.0
  %15330 = vmatpush1.msra.mxu0 0.0
  %15331 = vmatprep.subr.mxu0 0.0
  %15332 = vmatpush1.msra.mxu0 0.0
  %15333 = vmatprep.subr.mxu0 0.0
  %15334 = vmatpush1.msra.mxu0 0.0
  %15335 = vmatprep.subr.mxu0 0.0
  %15336 = vmatpush1.msra.mxu0 0.0
  %15337 = vmatprep.mubr.f32.mxu0 0.0
  %15338 = vmatmul.mubr.f32.gmra.mrb[0].mxu0 %v15271
  %v15339 = vpop.f32.mrb[0].mxu0
  %v15340 = vadd.f32 %v15268, %v15339
  %v15341 = vpop.f32.mrb[0].mxu0
  %15342 = vdwg.mxu0
  %15343 = vst.msk [vmem:[%s9] sm:$0xff] %vm10942, %v15340
  // Predicated region
  $region38: #{convnet_forward.1} parent=0 // pred_check
    _
  $region39: #{convnet_forward.1} parent=0 // pred_check_branch
    %15345 = sbr.rel (0) target = $region41
  $region40: #{convnet_forward.1} parent=0 // pred_region
    _
  $region41: #{convnet_forward.1} parent=0 // pred_fallthru
    _
  // Predicated region
  $region42: #{convnet_forward.1} parent=0 // pred_check
    _
  $region43: #{convnet_forward.1} parent=0 // pred_check_branch
    %15347 = sbr.rel (0) target = $region45
  $region44: #{convnet_forward.1} parent=0 // pred_region
    _
  $region45: #{convnet_forward.1} parent=0 // pred_fallthru
    _

</llo_original>
